<compile_context>
chip_gen: v7x
topology: tpu7x:2x2x1
jax: 0.10.0
libtpu: 0.0.40
codegen_flags: <defaults>
</compile_context>

<pallas_src>
import functools

import jax
import jax.numpy as jnp
from jax import lax
from jax.experimental import pallas as pl
from jax.experimental.pallas import tpu as pltpu

_HIGH = lax.Precision.HIGHEST  # only used by the pure-XLA reference


def relu(x):
    return jnp.maximum(x, 0.0)


def _pick_tile(dim, cap):
    """Largest tile <= cap that divides dim and keeps lane alignment (x128)."""
    if dim <= cap:
        return dim
    t = (min(cap, dim) // 128) * 128
    while t > 0:
        if dim % t == 0:
            return t
        t -= 128
    return dim


# --------------------------------------------------------------------------
# Fused Conv2d(Cin,Cout,3,pad=1) + ReLU + MaxPool2d(2,2)  (encoder front end)
# --------------------------------------------------------------------------
def _conv_pool_kernel(p_ref, w_ref, b_ref, o_ref):
    # p_ref: (1, 4, Cin*9, TS) pool-phase im2col patches
    # w_ref: (Cout, Cin*9)     conv weight (torch layout, reshaped)
    # b_ref: (Cout, 1)
    # o_ref: (1, Cout, TS)     max-pooled relu(conv), channel-major
    w = w_ref[...]
    b = b_ref[...]
    acc = None
    for phase in range(4):
        y = jnp.dot(w, p_ref[0, phase], preferred_element_type=jnp.float32)
        y = jnp.maximum(y + b, 0.0)
        acc = y if acc is None else jnp.maximum(acc, y)
    o_ref[0] = acc


def conv3x3_relu_pool(x, w, b, *, ts_cap=4096):
    """x: (N,Cin,H,W); w: (Cout,Cin,3,3); b: (Cout,) -> (N,Cout,(H//2)*(W//2))."""
    N, Cin, H, W = x.shape
    Cout = w.shape[0]
    Hp, Wp = H // 2, W // 2
    S = Hp * Wp
    K = Cin * 9

    # Host-side (XLA) pool-phase im2col: patches[n, dh*2+dw, ci*9+kh*3+kw, s].
    xp = jnp.pad(x, ((0, 0), (0, 0), (1, 1), (1, 1)))
    phases = []
    for dh in range(2):
        for dw in range(2):
            taps = []
            for ci in range(Cin):
                for kh in range(3):
                    for kw in range(3):
                        taps.append(
                            xp[:, ci, dh + kh:dh + kh + H:2,
                               dw + kw:dw + kw + W:2].reshape(N, S))
            phases.append(jnp.stack(taps, axis=1))          # (N, K, S)
    patches = jnp.stack(phases, axis=1)                     # (N, 4, K, S)

    ts = _pick_tile(S, ts_cap)
    ns = S // ts
    return pl.pallas_call(
        _conv_pool_kernel,
        out_shape=jax.ShapeDtypeStruct((N, Cout, S), jnp.float32),
        grid=(N, ns),
        in_specs=[
            pl.BlockSpec((1, 4, K, ts), lambda n, s: (n, 0, 0, s)),
            pl.BlockSpec((Cout, K), lambda n, s: (0, 0)),
            pl.BlockSpec((Cout, 1), lambda n, s: (0, 0)),
        ],
        out_specs=pl.BlockSpec((1, Cout, ts), lambda n, s: (n, 0, s)),
        compiler_params=pltpu.CompilerParams(
            dimension_semantics=("parallel", "parallel")),
    )(patches, w.reshape(Cout, K), b.reshape(Cout, 1))


# --------------------------------------------------------------------------
# Linear: y = act(x @ W.T + b).  Torch-layout weight, Nout- and K-tiled,
# accumulation directly into the resident output block (no scratch).
# --------------------------------------------------------------------------
def _linear_kernel(x_ref, w_ref, b_ref, o_ref, *, nk, act):
    k = pl.program_id(1)

    @pl.when(k == 0)
    def _():
        o_ref[...] = jnp.zeros_like(o_ref)

    # (M, tk) x (tn, tk) contracted on K -> (M, tn); weight stays (Nout, K).
    o_ref[...] += lax.dot_general(
        x_ref[...], w_ref[...],
        dimension_numbers=(((1,), (1,)), ((), ())),
        preferred_element_type=jnp.float32)

    @pl.when(k == nk - 1)
    def _():
        o_ref[...] = act(o_ref[...] + b_ref[...])


def linear(x, w, b, act, *, tn_cap=4096, wtile_bytes=8 << 20):
    """x: (M, K); w: (Nout, K) (torch layout); b: (Nout,)."""
    M, K = x.shape
    Nout = w.shape[0]
    tn = _pick_tile(Nout, tn_cap)
    tk = _pick_tile(K, max(128, wtile_bytes // (4 * tn)))
    nn, nk = Nout // tn, K // tk
    kernel = functools.partial(_linear_kernel, nk=nk, act=act)
    return pl.pallas_call(
        kernel,
        out_shape=jax.ShapeDtypeStruct((M, Nout), jnp.float32),
        grid=(nn, nk),
        in_specs=[
            pl.BlockSpec((M, tk), lambda j, k: (0, k)),
            pl.BlockSpec((tn, tk), lambda j, k: (j, k)),
            pl.BlockSpec((1, tn), lambda j, k: (0, j)),
        ],
        out_specs=pl.BlockSpec((M, tn), lambda j, k: (0, j)),
        compiler_params=pltpu.CompilerParams(
            dimension_semantics=("parallel", "arbitrary"),
            vmem_limit_bytes=64 << 20),
    )(x, w, b.reshape(1, Nout))


# --------------------------------------------------------------------------
# Fused hid_2mu + hid_2sigma + reparameterize (one kernel launch).
# --------------------------------------------------------------------------
def _latent_kernel(h_ref, wmu_ref, wsg_ref, bmu_ref, bsg_ref, eps_ref,
                   mu_ref, sg_ref, z_ref):
    dn = (((1,), (1,)), ((), ()))
    h = h_ref[...]
    mu = lax.dot_general(h, wmu_ref[...], dn,
                         preferred_element_type=jnp.float32) + bmu_ref[...]
    sg = lax.dot_general(h, wsg_ref[...], dn,
                         preferred_element_type=jnp.float32) + bsg_ref[...]
    mu_ref[...] = mu
    sg_ref[...] = sg
    z_ref[...] = mu + jnp.exp(0.5 * sg) * eps_ref[...]


def latent_heads(h, wmu, bmu, wsg, bsg, eps):
    M, hd = h.shape
    Z = wmu.shape[0]
    shp = jax.ShapeDtypeStruct((M, Z), jnp.float32)
    return pl.pallas_call(
        _latent_kernel,
        out_shape=(shp, shp, shp),
        grid=(1,),
        in_specs=[
            pl.BlockSpec((M, hd), lambda i: (0, 0)),
            pl.BlockSpec((Z, hd), lambda i: (0, 0)),
            pl.BlockSpec((Z, hd), lambda i: (0, 0)),
            pl.BlockSpec((1, Z), lambda i: (0, 0)),
            pl.BlockSpec((1, Z), lambda i: (0, 0)),
            pl.BlockSpec((M, Z), lambda i: (0, 0)),
        ],
        out_specs=(pl.BlockSpec((M, Z), lambda i: (0, 0)),) * 3,
        compiler_params=pltpu.CompilerParams(
            dimension_semantics=("arbitrary",)),
    )(h, wmu, wsg, bmu.reshape(1, Z), bsg.reshape(1, Z), eps)


# --------------------------------------------------------------------------
# ConvTranspose2d(Cin, Cout, 2, stride=2) + ReLU: one MXU matmul per image,
# all four (kh, kw) phases folded into the 4*Cout output rows.
# --------------------------------------------------------------------------
def _deconv_kernel(x_ref, w_ref, b_ref, o_ref):
    y = jnp.dot(w_ref[...], x_ref[0], preferred_element_type=jnp.float32)
    o_ref[0] = jnp.maximum(y + b_ref[...], 0.0)


def conv_transpose_2x2_s2_relu(xd, w, b, *, ts_cap=4096):
    """xd: (N,Cin,Hp*Wp) channel-major; w: (Cin,Cout,2,2); b: (Cout,).

    Returns (N, 4*Cout, Hp*Wp); row (dh*2+dw)*Cout+co holds output pixel
    (co, 2*ph+dh, 2*pw+dw).
    """
    N, Cin, S = xd.shape
    Cout = w.shape[1]
    wd = w.transpose(2, 3, 1, 0).reshape(4 * Cout, Cin)   # rows = (dh, dw, co)
    bd = jnp.tile(b, 4).reshape(4 * Cout, 1)
    ts = _pick_tile(S, ts_cap)
    ns = S // ts
    return pl.pallas_call(
        _deconv_kernel,
        out_shape=jax.ShapeDtypeStruct((N, 4 * Cout, S), jnp.float32),
        grid=(N, ns),
        in_specs=[
            pl.BlockSpec((1, Cin, ts), lambda n, s: (n, 0, s)),
            pl.BlockSpec((4 * Cout, Cin), lambda n, s: (0, 0)),
            pl.BlockSpec((4 * Cout, 1), lambda n, s: (0, 0)),
        ],
        out_specs=pl.BlockSpec((1, 4 * Cout, ts), lambda n, s: (n, 0, s)),
        compiler_params=pltpu.CompilerParams(
            dimension_semantics=("parallel", "parallel")),
    )(xd, wd, bd)


# --------------------------------------------------------------------------
# Conv2d(Cin, Cout, 3, pad=1) + sigmoid over channel-major input (decoder
# output head).  Patches are built channel-major so the kernel writes an
# (N, Cout, H*W) slab that reshapes to NCHW for free.
# --------------------------------------------------------------------------
def _conv_sigmoid_kernel(p_ref, w_ref, b_ref, o_ref):
    y = jnp.dot(w_ref[...], p_ref[0], preferred_element_type=jnp.float32)
    o_ref[0] = jax.nn.sigmoid(y + b_ref[...])


def conv3x3_sigmoid(y, w, b, *, ts_cap=4096):
    """y: (N,Cin,H,W); w: (Cout,Cin,3,3); b: (Cout,) -> (N,Cout,H*W)."""
    N, Cin, H, W = y.shape
    Cout = w.shape[0]
    S = H * W
    K = Cin * 9
    yp = jnp.pad(y, ((0, 0), (0, 0), (1, 1), (1, 1)))
    taps = []
    for ci in range(Cin):
        for kh in range(3):
            for kw in range(3):
                taps.append(yp[:, ci, kh:kh + H, kw:kw + W].reshape(N, S))
    patches = jnp.stack(taps, axis=1)                        # (N, K, S)
    # TODO(synk): at the full 256x256 size these patches are 9x the activation
    # in HBM; an in-kernel shifted-slab variant would avoid that expansion.

    ts = _pick_tile(S, ts_cap)
    ns = S // ts
    return pl.pallas_call(
        _conv_sigmoid_kernel,
        out_shape=jax.ShapeDtypeStruct((N, Cout, S), jnp.float32),
        grid=(N, ns),
        in_specs=[
            pl.BlockSpec((1, K, ts), lambda n, s: (n, 0, s)),
            pl.BlockSpec((Cout, K), lambda n, s: (0, 0)),
            pl.BlockSpec((Cout, 1), lambda n, s: (0, 0)),
        ],
        out_specs=pl.BlockSpec((1, Cout, ts), lambda n, s: (n, 0, s)),
        compiler_params=pltpu.CompilerParams(
            dimension_semantics=("parallel", "parallel")),
    )(patches, w.reshape(Cout, K), b.reshape(Cout, 1))


# --------------------------------------------------------------------------
# Parameters & forward pass
# --------------------------------------------------------------------------
def init_params(key, h_dim, z_dim, H, W):
    Hp, Wp = H // 2, W // 2
    fc_size = 32 * Hp * Wp
    ks = jax.random.split(key, 16)

    def lin(kw, kb, fan_in, shape_w, shape_b):
        s = fan_in ** -0.5
        return (jax.random.uniform(kw, shape_w, jnp.float32, -s, s),
                jax.random.uniform(kb, shape_b, jnp.float32, -s, s))

    p = {}
    p['conv'] = lin(ks[0], ks[1], 3 * 9, (32, 3, 3, 3), (32,))
    p['img_2hid'] = lin(ks[2], ks[3], fc_size, (h_dim, fc_size), (h_dim,))
    p['hid_2mu'] = lin(ks[4], ks[5], h_dim, (z_dim, h_dim), (z_dim,))
    p['hid_2sigma'] = lin(ks[6], ks[7], h_dim, (z_dim, h_dim), (z_dim,))
    p['z_2hid'] = lin(ks[8], ks[9], z_dim, (h_dim, z_dim), (h_dim,))
    p['hid_2img'] = lin(ks[10], ks[11], h_dim, (fc_size, h_dim), (fc_size,))
    p['convT1'] = lin(ks[12], ks[13], 32 * 4, (32, 32, 2, 2), (32,))
    p['convT2'] = lin(ks[14], ks[15], 32 * 9, (32, 3, 3, 3), (3,))
    return p


def vae_forward(params, x, eps):
    # TODO(synk): torch.randn_like inside reparameterize is replaced by an
    # explicit eps input (generated with jax.random.normal by the caller).
    N, _, H, W = x.shape
    Hp, Wp = H // 2, W // 2
    fc_size = 32 * Hp * Wp

    # ----- encoder -----
    wc, bc = params['conv']
    pooled = conv3x3_relu_pool(x, wc, bc)          # (N, 32, Hp*Wp) channel-major
    flat = pooled.reshape(N, fc_size)              # == torch .view(-1, fc_size)
    h = linear(flat, *params['img_2hid'], relu)
    mu, sigma, z = latent_heads(h, *params['hid_2mu'],
                                *params['hid_2sigma'], eps)

    # ----- decoder -----
    h2 = linear(z, *params['z_2hid'], relu)
    xf = linear(h2, *params['hid_2img'], relu)     # (N, fc_size)
    xd = xf.reshape(N, 32, Hp * Wp)                # torch .view(-1, 32, Hp, Wp)
    w1, b1 = params['convT1']
    d = conv_transpose_2x2_s2_relu(xd, w1, b1)     # (N, 128, Hp*Wp)
    # De-interleave the 4 deconv phases; XLA fuses this into the conv patch
    # gather below, so no standalone full-tensor transpose is materialized.
    y1 = (d.reshape(N, 2, 2, 32, Hp, Wp)
            .transpose(0, 3, 4, 1, 5, 2)
            .reshape(N, 32, H, W))
    w2, b2 = params['convT2']
    # ConvTranspose2d(k=3,s=1,p=1) == Conv2d(pad=1) with flipped/transposed W
    w2c = jnp.flip(w2, (2, 3)).transpose(1, 0, 2, 3)        # (3, 32, 3, 3)
    out = conv3x3_sigmoid(y1, w2c, b2).reshape(N, 3, H, W)
    return out, mu, sigma


# --------------------------------------------------------------------------
# Plain-JAX/XLA reference (full f32) for verification
# --------------------------------------------------------------------------
def vae_forward_ref(params, x, eps):
    N, _, H, W = x.shape
    Hp, Wp = H // 2, W // 2

    def lin(x_, p_):
        return jnp.matmul(x_, p_[0].T, precision=_HIGH) + p_[1]

    wc, bc = params['conv']
    y = lax.conv_general_dilated(x, wc, (1, 1), ((1, 1), (1, 1)),
                                 dimension_numbers=('NCHW', 'OIHW', 'NCHW'),
                                 precision=_HIGH) + bc[None, :, None, None]
    y = jnp.maximum(y, 0.0)
    y = lax.reduce_window(y, -jnp.inf, lax.max, (1, 1, 2, 2), (1, 1, 2, 2),
                          'VALID')
    h = jnp.maximum(lin(y.reshape(N, -1), params['img_2hid']), 0.0)
    mu = lin(h, params['hid_2mu'])
    sigma = lin(h, params['hid_2sigma'])
    z = mu + jnp.exp(0.5 * sigma) * eps
    h2 = jnp.maximum(lin(z, params['z_2hid']), 0.0)
    xf = jnp.maximum(lin(h2, params['hid_2img']), 0.0)
    xd = xf.reshape(N, 32, Hp, Wp)
    w1, b1 = params['convT1']
    w1c = jnp.flip(w1, (2, 3)).transpose(1, 0, 2, 3)
    y1 = lax.conv_general_dilated(xd, w1c, (1, 1), ((1, 1), (1, 1)),
                                  lhs_dilation=(2, 2),
                                  dimension_numbers=('NCHW', 'OIHW', 'NCHW'),
                                  precision=_HIGH) + b1[None, :, None, None]
    y1 = jnp.maximum(y1, 0.0)
    w2, b2 = params['convT2']
    w2c = jnp.flip(w2, (2, 3)).transpose(1, 0, 2, 3)
    y2 = lax.conv_general_dilated(y1, w2c, (1, 1), ((1, 1), (1, 1)),
                                  dimension_numbers=('NCHW', 'OIHW', 'NCHW'),
                                  precision=_HIGH) + b2[None, :, None, None]
    return jax.nn.sigmoid(y2), mu, sigma


if __name__ == "__main__":
    # small demo config (reference module implies H = W = 256, fc = 32*128*128)
    H = W = 32
    h_dim, z_dim, N = 64, 16, 2

    key = jax.random.PRNGKey(0)
    kp, kx, ke = jax.random.split(key, 3)
    params = init_params(kp, h_dim, z_dim, H, W)
    x = jax.random.normal(kx, (N, 3, H, W), jnp.float32)
    eps = jax.random.normal(ke, (N, z_dim), jnp.float32)

    fwd = jax.jit(vae_forward)
    out, mu, sigma = jax.block_until_ready(fwd(params, x, eps))

    assert out.shape == (N, 3, H, W)
    assert mu.shape == (N, z_dim) and sigma.shape == (N, z_dim)

    ro, rmu, rsigma = vae_forward_ref(params, x, eps)
    # Kernels run the MXU at default precision (bf16 passes, f32 accumulate);
    # the reference is full f32, hence the 1e-2 tolerance.
    assert jnp.allclose(mu, rmu, atol=1e-2, rtol=1e-2)
    assert jnp.allclose(sigma, rsigma, atol=1e-2, rtol=1e-2)
    assert jnp.allclose(out, ro, atol=1e-2, rtol=1e-2)

    print("KERNEL_OK")
</pallas_src>

<mosaic_0001>
module attributes {stable_mosaic.version = 11 : i64} {
  func.func @_conv_pool_kernel(%arg0: i32, %arg1: i32, %arg2: memref<1x4x27x256xf32, #tpu.memory_space<vmem>>, %arg3: memref<32x27xf32, #tpu.memory_space<vmem>>, %arg4: memref<32x1xf32, #tpu.memory_space<vmem>>, %arg5: memref<1x32x256xf32, #tpu.memory_space<vmem>>) attributes {dimension_semantics = [#tpu.dimension_semantics<parallel>, #tpu.dimension_semantics<parallel>], iteration_bounds = array<i64: 2, 1>, scalar_prefetch = 0 : i64, scratch_operands = 0 : i64, tpu.core_type = #tpu.core_type<tc>, window_params = [{transform_indices = @transform_0, window_bounds = array<i64: 1, 4, 27, 256>}, {pipeline_mode = #tpu.pipeline_mode<synchronous>, transform_indices = @transform_1, window_bounds = array<i64: 32, 27>}, {pipeline_mode = #tpu.pipeline_mode<synchronous>, transform_indices = @transform_2, window_bounds = array<i64: 32, 1>}, {transform_indices = @transform_3, window_bounds = array<i64: 1, 32, 256>}]} {
    %c0 = arith.constant 0 : index
    %c0_0 = arith.constant 0 : index
    %0 = vector.load %arg3[%c0, %c0_0] : memref<32x27xf32, #tpu.memory_space<vmem>>, vector<32x27xf32>
    %c0_1 = arith.constant 0 : index
    %c0_2 = arith.constant 0 : index
    %1 = vector.load %arg4[%c0_1, %c0_2] : memref<32x1xf32, #tpu.memory_space<vmem>>, vector<32x1xf32>
    %c0_3 = arith.constant 0 : index
    %c0_4 = arith.constant 0 : index
    %c0_5 = arith.constant 0 : index
    %c0_6 = arith.constant 0 : index
    %2 = vector.load %arg2[%c0_3, %c0_4, %c0_5, %c0_6] : memref<1x4x27x256xf32, #tpu.memory_space<vmem>>, vector<1x1x27x256xf32>
    %3 = vector.shape_cast %2 : vector<1x1x27x256xf32> to vector<27x256xf32>
    %cst = arith.constant dense<0.000000e+00> : vector<32x256xf32>
    %4 = tpu.matmul %0, %3, %cst {dimension_numbers = #tpu.dot_dimension_numbers<[1], [0], [0], [1], [0, 0, 1, 1], [], []>} : vector<32x27xf32>, vector<27x256xf32>, vector<32x256xf32> -> vector<32x256xf32>
    %5 = vector.broadcast %1 : vector<32x1xf32> to vector<32x256xf32>
    %6 = arith.addf %4, %5 : vector<32x256xf32>
    %cst_7 = arith.constant 0.000000e+00 : f32
    %7 = vector.broadcast %cst_7 : f32 to vector<32x256xf32>
    %8 = arith.maximumf %6, %7 : vector<32x256xf32>
    %c0_8 = arith.constant 0 : index
    %c1 = arith.constant 1 : index
    %c0_9 = arith.constant 0 : index
    %c0_10 = arith.constant 0 : index
    %9 = vector.load %arg2[%c0_8, %c1, %c0_9, %c0_10] : memref<1x4x27x256xf32, #tpu.memory_space<vmem>>, vector<1x1x27x256xf32>
    %10 = vector.shape_cast %9 : vector<1x1x27x256xf32> to vector<27x256xf32>
    %cst_11 = arith.constant dense<0.000000e+00> : vector<32x256xf32>
    %11 = tpu.matmul %0, %10, %cst_11 {dimension_numbers = #tpu.dot_dimension_numbers<[1], [0], [0], [1], [0, 0, 1, 1], [], []>} : vector<32x27xf32>, vector<27x256xf32>, vector<32x256xf32> -> vector<32x256xf32>
    %12 = vector.broadcast %1 : vector<32x1xf32> to vector<32x256xf32>
    %13 = arith.addf %11, %12 : vector<32x256xf32>
    %cst_12 = arith.constant 0.000000e+00 : f32
    %14 = vector.broadcast %cst_12 : f32 to vector<32x256xf32>
    %15 = arith.maximumf %13, %14 : vector<32x256xf32>
    %16 = arith.maximumf %8, %15 : vector<32x256xf32>
    %c0_13 = arith.constant 0 : index
    %c2 = arith.constant 2 : index
    %c0_14 = arith.constant 0 : index
    %c0_15 = arith.constant 0 : index
    %17 = vector.load %arg2[%c0_13, %c2, %c0_14, %c0_15] : memref<1x4x27x256xf32, #tpu.memory_space<vmem>>, vector<1x1x27x256xf32>
    %18 = vector.shape_cast %17 : vector<1x1x27x256xf32> to vector<27x256xf32>
    %cst_16 = arith.constant dense<0.000000e+00> : vector<32x256xf32>
    %19 = tpu.matmul %0, %18, %cst_16 {dimension_numbers = #tpu.dot_dimension_numbers<[1], [0], [0], [1], [0, 0, 1, 1], [], []>} : vector<32x27xf32>, vector<27x256xf32>, vector<32x256xf32> -> vector<32x256xf32>
    %20 = vector.broadcast %1 : vector<32x1xf32> to vector<32x256xf32>
    %21 = arith.addf %19, %20 : vector<32x256xf32>
    %cst_17 = arith.constant 0.000000e+00 : f32
    %22 = vector.broadcast %cst_17 : f32 to vector<32x256xf32>
    %23 = arith.maximumf %21, %22 : vector<32x256xf32>
    %24 = arith.maximumf %16, %23 : vector<32x256xf32>
    %c0_18 = arith.constant 0 : index
    %c3 = arith.constant 3 : index
    %c0_19 = arith.constant 0 : index
    %c0_20 = arith.constant 0 : index
    %25 = vector.load %arg2[%c0_18, %c3, %c0_19, %c0_20] : memref<1x4x27x256xf32, #tpu.memory_space<vmem>>, vector<1x1x27x256xf32>
    %26 = vector.shape_cast %25 : vector<1x1x27x256xf32> to vector<27x256xf32>
    %cst_21 = arith.constant dense<0.000000e+00> : vector<32x256xf32>
    %27 = tpu.matmul %0, %26, %cst_21 {dimension_numbers = #tpu.dot_dimension_numbers<[1], [0], [0], [1], [0, 0, 1, 1], [], []>} : vector<32x27xf32>, vector<27x256xf32>, vector<32x256xf32> -> vector<32x256xf32>
    %28 = vector.broadcast %1 : vector<32x1xf32> to vector<32x256xf32>
    %29 = arith.addf %27, %28 : vector<32x256xf32>
    %cst_22 = arith.constant 0.000000e+00 : f32
    %30 = vector.broadcast %cst_22 : f32 to vector<32x256xf32>
    %31 = arith.maximumf %29, %30 : vector<32x256xf32>
    %32 = arith.maximumf %24, %31 : vector<32x256xf32>
    %c0_23 = arith.constant 0 : index
    %c0_24 = arith.constant 0 : index
    %c0_25 = arith.constant 0 : index
    %33 = vector.load %arg5[%c0_23, %c0_24, %c0_25] : memref<1x32x256xf32, #tpu.memory_space<vmem>>, vector<1x32x256xf32>
    %34 = vector.shape_cast %33 : vector<1x32x256xf32> to vector<32x256xf32>
    %35 = vector.shape_cast %32 : vector<32x256xf32> to vector<1x32x256xf32>
    tpu.vector_store %arg5[%c0_23, %c0_24, %c0_25], %35 {strides = array<i32>} : memref<1x32x256xf32, #tpu.memory_space<vmem>>, vector<1x32x256xf32>,
    return
  }
  func.func @transform_0(%arg0: i32, %arg1: i32) -> (i32, i32, i32, i32) {
    %c0_i32 = arith.constant 0 : i32
    %c0_i32_0 = arith.constant 0 : i32
    %c0_i32_1 = arith.constant 0 : i32
    return %arg0, %c0_i32, %c0_i32_0, %arg1 : i32, i32, i32, i32
  }
  func.func @transform_1(%arg0: i32, %arg1: i32) -> (i32, i32) {
    %c0_i32 = arith.constant 0 : i32
    %c0_i32_0 = arith.constant 0 : i32
    %c0_i32_1 = arith.constant 0 : i32
    return %c0_i32, %c0_i32_0 : i32, i32
  }
  func.func @transform_2(%arg0: i32, %arg1: i32) -> (i32, i32) {
    %c0_i32 = arith.constant 0 : i32
    %c0_i32_0 = arith.constant 0 : i32
    %c0_i32_1 = arith.constant 0 : i32
    return %c0_i32, %c0_i32_0 : i32, i32
  }
  func.func @transform_3(%arg0: i32, %arg1: i32) -> (i32, i32, i32) {
    %c0_i32 = arith.constant 0 : i32
    %c0_i32_0 = arith.constant 0 : i32
    return %arg0, %c0_i32, %arg1 : i32, i32, i32
  }
}

module attributes {stable_mosaic.version = 11 : i64} {
  func.func @_linear_kernel(%arg0: i32, %arg1: i32, %arg2: memref<2x8192xf32, #tpu.memory_space<vmem>>, %arg3: memref<64x8192xf32, #tpu.memory_space<vmem>>, %arg4: memref<1x64xf32, #tpu.memory_space<vmem>>, %arg5: memref<2x64xf32, #tpu.memory_space<vmem>>) attributes {dimension_semantics = [#tpu.dimension_semantics<parallel>, #tpu.dimension_semantics<arbitrary>], iteration_bounds = array<i64: 1, 1>, scalar_prefetch = 0 : i64, scratch_operands = 0 : i64, tpu.core_type = #tpu.core_type<tc>, window_params = [{transform_indices = @transform_0, window_bounds = array<i64: 2, 8192>}, {transform_indices = @transform_1, window_bounds = array<i64: 64, 8192>}, {transform_indices = @transform_2, window_bounds = array<i64: 1, 64>}, {transform_indices = @transform_3, window_bounds = array<i64: 2, 64>}]} {
    %c0_i32 = arith.constant 0 : i32
    %0 = arith.cmpi eq, %arg1, %c0_i32 : i32
    %1 = arith.extui %0 : i1 to i32
    %c0_i32_0 = arith.constant 0 : i32
    %2 = arith.cmpi ne, %1, %c0_i32_0 : i32
    scf.if %2 {
      %cst_10 = arith.constant 0.000000e+00 : f32
      %12 = vector.broadcast %cst_10 : f32 to vector<2x64xf32>
      %c0_11 = arith.constant 0 : index
      %c0_12 = arith.constant 0 : index
      %13 = vector.load %arg5[%c0_11, %c0_12] : memref<2x64xf32, #tpu.memory_space<vmem>>, vector<2x64xf32>
      tpu.vector_store %arg5[%c0_11, %c0_12], %12 {strides = array<i32>} : memref<2x64xf32, #tpu.memory_space<vmem>>, vector<2x64xf32>,
    } else {
    }
    %c0 = arith.constant 0 : index
    %c0_1 = arith.constant 0 : index
    %3 = vector.load %arg5[%c0, %c0_1] : memref<2x64xf32, #tpu.memory_space<vmem>>, vector<2x64xf32>
    %c0_2 = arith.constant 0 : index
    %c0_3 = arith.constant 0 : index
    %4 = vector.load %arg2[%c0_2, %c0_3] : memref<2x8192xf32, #tpu.memory_space<vmem>>, vector<2x8192xf32>
    %c0_4 = arith.constant 0 : index
    %c0_5 = arith.constant 0 : index
    %5 = vector.load %arg3[%c0_4, %c0_5] : memref<64x8192xf32, #tpu.memory_space<vmem>>, vector<64x8192xf32>
    %cst = arith.constant dense<0.000000e+00> : vector<2x64xf32>
    %6 = tpu.matmul %4, %5, %cst {dimension_numbers = #tpu.dot_dimension_numbers<[1], [1], [0], [0], [0, 0, 1, 0], [], []>} : vector<2x8192xf32>, vector<64x8192xf32>, vector<2x64xf32> -> vector<2x64xf32>
    %7 = arith.addf %3, %6 : vector<2x64xf32>
    %c0_6 = arith.constant 0 : index
    %c0_7 = arith.constant 0 : index
    %8 = vector.load %arg5[%c0_6, %c0_7] : memref<2x64xf32, #tpu.memory_space<vmem>>, vector<2x64xf32>
    tpu.vector_store %arg5[%c0_6, %c0_7], %7 {strides = array<i32>} : memref<2x64xf32, #tpu.memory_space<vmem>>, vector<2x64xf32>,
    %c0_i32_8 = arith.constant 0 : i32
    %9 = arith.cmpi eq, %arg1, %c0_i32_8 : i32
    %10 = arith.extui %9 : i1 to i32
    %c0_i32_9 = arith.constant 0 : i32
    %11 = arith.cmpi ne, %10, %c0_i32_9 : i32
    scf.if %11 {
      %c0_10 = arith.constant 0 : index
      %c0_11 = arith.constant 0 : index
      %12 = vector.load %arg5[%c0_10, %c0_11] : memref<2x64xf32, #tpu.memory_space<vmem>>, vector<2x64xf32>
      %c0_12 = arith.constant 0 : index
      %c0_13 = arith.constant 0 : index
      %13 = vector.load %arg4[%c0_12, %c0_13] : memref<1x64xf32, #tpu.memory_space<vmem>>, vector<1x64xf32>
      %14 = vector.broadcast %13 : vector<1x64xf32> to vector<2x64xf32>
      %15 = arith.addf %12, %14 : vector<2x64xf32>
      %cst_14 = arith.constant 0.000000e+00 : f32
      %16 = vector.broadcast %cst_14 : f32 to vector<2x64xf32>
      %17 = arith.maximumf %15, %16 : vector<2x64xf32>
      %c0_15 = arith.constant 0 : index
      %c0_16 = arith.constant 0 : index
      %18 = vector.load %arg5[%c0_15, %c0_16] : memref<2x64xf32, #tpu.memory_space<vmem>>, vector<2x64xf32>
      tpu.vector_store %arg5[%c0_15, %c0_16], %17 {strides = array<i32>} : memref<2x64xf32, #tpu.memory_space<vmem>>, vector<2x64xf32>,
    } else {
    }
    return
  }
  func.func @transform_0(%arg0: i32, %arg1: i32) -> (i32, i32) {
    %c0_i32 = arith.constant 0 : i32
    %c0_i32_0 = arith.constant 0 : i32
    return %c0_i32, %arg1 : i32, i32
  }
  func.func @transform_1(%arg0: i32, %arg1: i32) -> (i32, i32) {
    %c0_i32 = arith.constant 0 : i32
    return %arg0, %arg1 : i32, i32
  }
  func.func @transform_2(%arg0: i32, %arg1: i32) -> (i32, i32) {
    %c0_i32 = arith.constant 0 : i32
    %c0_i32_0 = arith.constant 0 : i32
    return %c0_i32, %arg0 : i32, i32
  }
  func.func @transform_3(%arg0: i32, %arg1: i32) -> (i32, i32) {
    %c0_i32 = arith.constant 0 : i32
    %c0_i32_0 = arith.constant 0 : i32
    return %c0_i32, %arg0 : i32, i32
  }
}

module attributes {stable_mosaic.version = 11 : i64} {
  func.func @_latent_kernel(%arg0: i32, %arg1: memref<2x64xf32, #tpu.memory_space<vmem>>, %arg2: memref<16x64xf32, #tpu.memory_space<vmem>>, %arg3: memref<16x64xf32, #tpu.memory_space<vmem>>, %arg4: memref<1x16xf32, #tpu.memory_space<vmem>>, %arg5: memref<1x16xf32, #tpu.memory_space<vmem>>, %arg6: memref<2x16xf32, #tpu.memory_space<vmem>>, %arg7: memref<2x16xf32, #tpu.memory_space<vmem>>, %arg8: memref<2x16xf32, #tpu.memory_space<vmem>>, %arg9: memref<2x16xf32, #tpu.memory_space<vmem>>) attributes {dimension_semantics = [#tpu.dimension_semantics<arbitrary>], iteration_bounds = array<i64: 1>, scalar_prefetch = 0 : i64, scratch_operands = 0 : i64, tpu.core_type = #tpu.core_type<tc>, window_params = [{pipeline_mode = #tpu.pipeline_mode<synchronous>, transform_indices = @transform_0, window_bounds = array<i64: 2, 64>}, {pipeline_mode = #tpu.pipeline_mode<synchronous>, transform_indices = @transform_1, window_bounds = array<i64: 16, 64>}, {pipeline_mode = #tpu.pipeline_mode<synchronous>, transform_indices = @transform_2, window_bounds = array<i64: 16, 64>}, {pipeline_mode = #tpu.pipeline_mode<synchronous>, transform_indices = @transform_3, window_bounds = array<i64: 1, 16>}, {pipeline_mode = #tpu.pipeline_mode<synchronous>, transform_indices = @transform_4, window_bounds = array<i64: 1, 16>}, {pipeline_mode = #tpu.pipeline_mode<synchronous>, transform_indices = @transform_5, window_bounds = array<i64: 2, 16>}, {pipeline_mode = #tpu.pipeline_mode<synchronous>, transform_indices = @transform_6, window_bounds = array<i64: 2, 16>}, {pipeline_mode = #tpu.pipeline_mode<synchronous>, transform_indices = @transform_7, window_bounds = array<i64: 2, 16>}, {pipeline_mode = #tpu.pipeline_mode<synchronous>, transform_indices = @transform_8, window_bounds = array<i64: 2, 16>}]} {
    %c0 = arith.constant 0 : index
    %c0_0 = arith.constant 0 : index
    %0 = vector.load %arg1[%c0, %c0_0] : memref<2x64xf32, #tpu.memory_space<vmem>>, vector<2x64xf32>
    %c0_1 = arith.constant 0 : index
    %c0_2 = arith.constant 0 : index
    %1 = vector.load %arg2[%c0_1, %c0_2] : memref<16x64xf32, #tpu.memory_space<vmem>>, vector<16x64xf32>
    %cst = arith.constant dense<0.000000e+00> : vector<2x16xf32>
    %2 = tpu.matmul %0, %1, %cst {dimension_numbers = #tpu.dot_dimension_numbers<[1], [1], [0], [0], [0, 0, 1, 0], [], []>} : vector<2x64xf32>, vector<16x64xf32>, vector<2x16xf32> -> vector<2x16xf32>
    %c0_3 = arith.constant 0 : index
    %c0_4 = arith.constant 0 : index
    %3 = vector.load %arg4[%c0_3, %c0_4] : memref<1x16xf32, #tpu.memory_space<vmem>>, vector<1x16xf32>
    %4 = vector.broadcast %3 : vector<1x16xf32> to vector<2x16xf32>
    %5 = arith.addf %2, %4 : vector<2x16xf32>
    %c0_5 = arith.constant 0 : index
    %c0_6 = arith.constant 0 : index
    %6 = vector.load %arg3[%c0_5, %c0_6] : memref<16x64xf32, #tpu.memory_space<vmem>>, vector<16x64xf32>
    %cst_7 = arith.constant dense<0.000000e+00> : vector<2x16xf32>
    %7 = tpu.matmul %0, %6, %cst_7 {dimension_numbers = #tpu.dot_dimension_numbers<[1], [1], [0], [0], [0, 0, 1, 0], [], []>} : vector<2x64xf32>, vector<16x64xf32>, vector<2x16xf32> -> vector<2x16xf32>
    %c0_8 = arith.constant 0 : index
    %c0_9 = arith.constant 0 : index
    %8 = vector.load %arg5[%c0_8, %c0_9] : memref<1x16xf32, #tpu.memory_space<vmem>>, vector<1x16xf32>
    %9 = vector.broadcast %8 : vector<1x16xf32> to vector<2x16xf32>
    %10 = arith.addf %7, %9 : vector<2x16xf32>
    %c0_10 = arith.constant 0 : index
    %c0_11 = arith.constant 0 : index
    %11 = vector.load %arg7[%c0_10, %c0_11] : memref<2x16xf32, #tpu.memory_space<vmem>>, vector<2x16xf32>
    tpu.vector_store %arg7[%c0_10, %c0_11], %5 {strides = array<i32>} : memref<2x16xf32, #tpu.memory_space<vmem>>, vector<2x16xf32>,
    %c0_12 = arith.constant 0 : index
    %c0_13 = arith.constant 0 : index
    %12 = vector.load %arg8[%c0_12, %c0_13] : memref<2x16xf32, #tpu.memory_space<vmem>>, vector<2x16xf32>
    tpu.vector_store %arg8[%c0_12, %c0_13], %10 {strides = array<i32>} : memref<2x16xf32, #tpu.memory_space<vmem>>, vector<2x16xf32>,
    %cst_14 = arith.constant 5.000000e-01 : f32
    %13 = vector.broadcast %cst_14 : f32 to vector<2x16xf32>
    %14 = arith.mulf %13, %10 : vector<2x16xf32>
    %15 = math.exp %14 : vector<2x16xf32>
    %c0_15 = arith.constant 0 : index
    %c0_16 = arith.constant 0 : index
    %16 = vector.load %arg6[%c0_15, %c0_16] : memref<2x16xf32, #tpu.memory_space<vmem>>, vector<2x16xf32>
    %17 = arith.mulf %15, %16 : vector<2x16xf32>
    %18 = arith.addf %5, %17 : vector<2x16xf32>
    %c0_17 = arith.constant 0 : index
    %c0_18 = arith.constant 0 : index
    %19 = vector.load %arg9[%c0_17, %c0_18] : memref<2x16xf32, #tpu.memory_space<vmem>>, vector<2x16xf32>
    tpu.vector_store %arg9[%c0_17, %c0_18], %18 {strides = array<i32>} : memref<2x16xf32, #tpu.memory_space<vmem>>, vector<2x16xf32>,
    return
  }
  func.func @transform_0(%arg0: i32) -> (i32, i32) {
    %c0_i32 = arith.constant 0 : i32
    %c0_i32_0 = arith.constant 0 : i32
    %c0_i32_1 = arith.constant 0 : i32
    return %c0_i32, %c0_i32_0 : i32, i32
  }
  func.func @transform_1(%arg0: i32) -> (i32, i32) {
    %c0_i32 = arith.constant 0 : i32
    %c0_i32_0 = arith.constant 0 : i32
    %c0_i32_1 = arith.constant 0 : i32
    return %c0_i32, %c0_i32_0 : i32, i32
  }
  func.func @transform_2(%arg0: i32) -> (i32, i32) {
    %c0_i32 = arith.constant 0 : i32
    %c0_i32_0 = arith.constant 0 : i32
    %c0_i32_1 = arith.constant 0 : i32
    return %c0_i32, %c0_i32_0 : i32, i32
  }
  func.func @transform_3(%arg0: i32) -> (i32, i32) {
    %c0_i32 = arith.constant 0 : i32
    %c0_i32_0 = arith.constant 0 : i32
    %c0_i32_1 = arith.constant 0 : i32
    return %c0_i32, %c0_i32_0 : i32, i32
  }
  func.func @transform_4(%arg0: i32) -> (i32, i32) {
    %c0_i32 = arith.constant 0 : i32
    %c0_i32_0 = arith.constant 0 : i32
    %c0_i32_1 = arith.constant 0 : i32
    return %c0_i32, %c0_i32_0 : i32, i32
  }
  func.func @transform_5(%arg0: i32) -> (i32, i32) {
    %c0_i32 = arith.constant 0 : i32
    %c0_i32_0 = arith.constant 0 : i32
    %c0_i32_1 = arith.constant 0 : i32
    return %c0_i32, %c0_i32_0 : i32, i32
  }
  func.func @transform_6(%arg0: i32) -> (i32, i32) {
    %c0_i32 = arith.constant 0 : i32
    %c0_i32_0 = arith.constant 0 : i32
    %c0_i32_1 = arith.constant 0 : i32
    return %c0_i32, %c0_i32_0 : i32, i32
  }
  func.func @transform_7(%arg0: i32) -> (i32, i32) {
    %c0_i32 = arith.constant 0 : i32
    %c0_i32_0 = arith.constant 0 : i32
    %c0_i32_1 = arith.constant 0 : i32
    return %c0_i32, %c0_i32_0 : i32, i32
  }
  func.func @transform_8(%arg0: i32) -> (i32, i32) {
    %c0_i32 = arith.constant 0 : i32
    %c0_i32_0 = arith.constant 0 : i32
    %c0_i32_1 = arith.constant 0 : i32
    return %c0_i32, %c0_i32_0 : i32, i32
  }
}

module attributes {stable_mosaic.version = 11 : i64} {
  func.func @_linear_kernel(%arg0: i32, %arg1: i32, %arg2: memref<2x16xf32, #tpu.memory_space<vmem>>, %arg3: memref<64x16xf32, #tpu.memory_space<vmem>>, %arg4: memref<1x64xf32, #tpu.memory_space<vmem>>, %arg5: memref<2x64xf32, #tpu.memory_space<vmem>>) attributes {dimension_semantics = [#tpu.dimension_semantics<parallel>, #tpu.dimension_semantics<arbitrary>], iteration_bounds = array<i64: 1, 1>, scalar_prefetch = 0 : i64, scratch_operands = 0 : i64, tpu.core_type = #tpu.core_type<tc>, window_params = [{transform_indices = @transform_0, window_bounds = array<i64: 2, 16>}, {transform_indices = @transform_1, window_bounds = array<i64: 64, 16>}, {transform_indices = @transform_2, window_bounds = array<i64: 1, 64>}, {transform_indices = @transform_3, window_bounds = array<i64: 2, 64>}]} {
    %c0_i32 = arith.constant 0 : i32
    %0 = arith.cmpi eq, %arg1, %c0_i32 : i32
    %1 = arith.extui %0 : i1 to i32
    %c0_i32_0 = arith.constant 0 : i32
    %2 = arith.cmpi ne, %1, %c0_i32_0 : i32
    scf.if %2 {
      %cst_10 = arith.constant 0.000000e+00 : f32
      %12 = vector.broadcast %cst_10 : f32 to vector<2x64xf32>
      %c0_11 = arith.constant 0 : index
      %c0_12 = arith.constant 0 : index
      %13 = vector.load %arg5[%c0_11, %c0_12] : memref<2x64xf32, #tpu.memory_space<vmem>>, vector<2x64xf32>
      tpu.vector_store %arg5[%c0_11, %c0_12], %12 {strides = array<i32>} : memref<2x64xf32, #tpu.memory_space<vmem>>, vector<2x64xf32>,
    } else {
    }
    %c0 = arith.constant 0 : index
    %c0_1 = arith.constant 0 : index
    %3 = vector.load %arg5[%c0, %c0_1] : memref<2x64xf32, #tpu.memory_space<vmem>>, vector<2x64xf32>
    %c0_2 = arith.constant 0 : index
    %c0_3 = arith.constant 0 : index
    %4 = vector.load %arg2[%c0_2, %c0_3] : memref<2x16xf32, #tpu.memory_space<vmem>>, vector<2x16xf32>
    %c0_4 = arith.constant 0 : index
    %c0_5 = arith.constant 0 : index
    %5 = vector.load %arg3[%c0_4, %c0_5] : memref<64x16xf32, #tpu.memory_space<vmem>>, vector<64x16xf32>
    %cst = arith.constant dense<0.000000e+00> : vector<2x64xf32>
    %6 = tpu.matmul %4, %5, %cst {dimension_numbers = #tpu.dot_dimension_numbers<[1], [1], [0], [0], [0, 0, 1, 0], [], []>} : vector<2x16xf32>, vector<64x16xf32>, vector<2x64xf32> -> vector<2x64xf32>
    %7 = arith.addf %3, %6 : vector<2x64xf32>
    %c0_6 = arith.constant 0 : index
    %c0_7 = arith.constant 0 : index
    %8 = vector.load %arg5[%c0_6, %c0_7] : memref<2x64xf32, #tpu.memory_space<vmem>>, vector<2x64xf32>
    tpu.vector_store %arg5[%c0_6, %c0_7], %7 {strides = array<i32>} : memref<2x64xf32, #tpu.memory_space<vmem>>, vector<2x64xf32>,
    %c0_i32_8 = arith.constant 0 : i32
    %9 = arith.cmpi eq, %arg1, %c0_i32_8 : i32
    %10 = arith.extui %9 : i1 to i32
    %c0_i32_9 = arith.constant 0 : i32
    %11 = arith.cmpi ne, %10, %c0_i32_9 : i32
    scf.if %11 {
      %c0_10 = arith.constant 0 : index
      %c0_11 = arith.constant 0 : index
      %12 = vector.load %arg5[%c0_10, %c0_11] : memref<2x64xf32, #tpu.memory_space<vmem>>, vector<2x64xf32>
      %c0_12 = arith.constant 0 : index
      %c0_13 = arith.constant 0 : index
      %13 = vector.load %arg4[%c0_12, %c0_13] : memref<1x64xf32, #tpu.memory_space<vmem>>, vector<1x64xf32>
      %14 = vector.broadcast %13 : vector<1x64xf32> to vector<2x64xf32>
      %15 = arith.addf %12, %14 : vector<2x64xf32>
      %cst_14 = arith.constant 0.000000e+00 : f32
      %16 = vector.broadcast %cst_14 : f32 to vector<2x64xf32>
      %17 = arith.maximumf %15, %16 : vector<2x64xf32>
      %c0_15 = arith.constant 0 : index
      %c0_16 = arith.constant 0 : index
      %18 = vector.load %arg5[%c0_15, %c0_16] : memref<2x64xf32, #tpu.memory_space<vmem>>, vector<2x64xf32>
      tpu.vector_store %arg5[%c0_15, %c0_16], %17 {strides = array<i32>} : memref<2x64xf32, #tpu.memory_space<vmem>>, vector<2x64xf32>,
    } else {
    }
    return
  }
  func.func @transform_0(%arg0: i32, %arg1: i32) -> (i32, i32) {
    %c0_i32 = arith.constant 0 : i32
    %c0_i32_0 = arith.constant 0 : i32
    return %c0_i32, %arg1 : i32, i32
  }
  func.func @transform_1(%arg0: i32, %arg1: i32) -> (i32, i32) {
    %c0_i32 = arith.constant 0 : i32
    return %arg0, %arg1 : i32, i32
  }
  func.func @transform_2(%arg0: i32, %arg1: i32) -> (i32, i32) {
    %c0_i32 = arith.constant 0 : i32
    %c0_i32_0 = arith.constant 0 : i32
    return %c0_i32, %arg0 : i32, i32
  }
  func.func @transform_3(%arg0: i32, %arg1: i32) -> (i32, i32) {
    %c0_i32 = arith.constant 0 : i32
    %c0_i32_0 = arith.constant 0 : i32
    return %c0_i32, %arg0 : i32, i32
  }
}

module attributes {stable_mosaic.version = 11 : i64} {
  func.func @_linear_kernel(%arg0: i32, %arg1: i32, %arg2: memref<2x64xf32, #tpu.memory_space<vmem>>, %arg3: memref<4096x64xf32, #tpu.memory_space<vmem>>, %arg4: memref<1x4096xf32, #tpu.memory_space<vmem>>, %arg5: memref<2x4096xf32, #tpu.memory_space<vmem>>) attributes {dimension_semantics = [#tpu.dimension_semantics<parallel>, #tpu.dimension_semantics<arbitrary>], iteration_bounds = array<i64: 2, 1>, scalar_prefetch = 0 : i64, scratch_operands = 0 : i64, tpu.core_type = #tpu.core_type<tc>, window_params = [{transform_indices = @transform_0, window_bounds = array<i64: 2, 64>}, {transform_indices = @transform_1, window_bounds = array<i64: 4096, 64>}, {transform_indices = @transform_2, window_bounds = array<i64: 1, 4096>}, {transform_indices = @transform_3, window_bounds = array<i64: 2, 4096>}]} {
    %c0_i32 = arith.constant 0 : i32
    %0 = arith.cmpi eq, %arg1, %c0_i32 : i32
    %1 = arith.extui %0 : i1 to i32
    %c0_i32_0 = arith.constant 0 : i32
    %2 = arith.cmpi ne, %1, %c0_i32_0 : i32
    scf.if %2 {
      %cst_10 = arith.constant 0.000000e+00 : f32
      %12 = vector.broadcast %cst_10 : f32 to vector<2x4096xf32>
      %c0_11 = arith.constant 0 : index
      %c0_12 = arith.constant 0 : index
      %13 = vector.load %arg5[%c0_11, %c0_12] : memref<2x4096xf32, #tpu.memory_space<vmem>>, vector<2x4096xf32>
      tpu.vector_store %arg5[%c0_11, %c0_12], %12 {strides = array<i32>} : memref<2x4096xf32, #tpu.memory_space<vmem>>, vector<2x4096xf32>,
    } else {
    }
    %c0 = arith.constant 0 : index
    %c0_1 = arith.constant 0 : index
    %3 = vector.load %arg5[%c0, %c0_1] : memref<2x4096xf32, #tpu.memory_space<vmem>>, vector<2x4096xf32>
    %c0_2 = arith.constant 0 : index
    %c0_3 = arith.constant 0 : index
    %4 = vector.load %arg2[%c0_2, %c0_3] : memref<2x64xf32, #tpu.memory_space<vmem>>, vector<2x64xf32>
    %c0_4 = arith.constant 0 : index
    %c0_5 = arith.constant 0 : index
    %5 = vector.load %arg3[%c0_4, %c0_5] : memref<4096x64xf32, #tpu.memory_space<vmem>>, vector<4096x64xf32>
    %cst = arith.constant dense<0.000000e+00> : vector<2x4096xf32>
    %6 = tpu.matmul %4, %5, %cst {dimension_numbers = #tpu.dot_dimension_numbers<[1], [1], [0], [0], [0, 0, 1, 0], [], []>} : vector<2x64xf32>, vector<4096x64xf32>, vector<2x4096xf32> -> vector<2x4096xf32>
    %7 = arith.addf %3, %6 : vector<2x4096xf32>
    %c0_6 = arith.constant 0 : index
    %c0_7 = arith.constant 0 : index
    %8 = vector.load %arg5[%c0_6, %c0_7] : memref<2x4096xf32, #tpu.memory_space<vmem>>, vector<2x4096xf32>
    tpu.vector_store %arg5[%c0_6, %c0_7], %7 {strides = array<i32>} : memref<2x4096xf32, #tpu.memory_space<vmem>>, vector<2x4096xf32>,
    %c0_i32_8 = arith.constant 0 : i32
    %9 = arith.cmpi eq, %arg1, %c0_i32_8 : i32
    %10 = arith.extui %9 : i1 to i32
    %c0_i32_9 = arith.constant 0 : i32
    %11 = arith.cmpi ne, %10, %c0_i32_9 : i32
    scf.if %11 {
      %c0_10 = arith.constant 0 : index
      %c0_11 = arith.constant 0 : index
      %12 = vector.load %arg5[%c0_10, %c0_11] : memref<2x4096xf32, #tpu.memory_space<vmem>>, vector<2x4096xf32>
      %c0_12 = arith.constant 0 : index
      %c0_13 = arith.constant 0 : index
      %13 = vector.load %arg4[%c0_12, %c0_13] : memref<1x4096xf32, #tpu.memory_space<vmem>>, vector<1x4096xf32>
      %14 = vector.broadcast %13 : vector<1x4096xf32> to vector<2x4096xf32>
      %15 = arith.addf %12, %14 : vector<2x4096xf32>
      %cst_14 = arith.constant 0.000000e+00 : f32
      %16 = vector.broadcast %cst_14 : f32 to vector<2x4096xf32>
      %17 = arith.maximumf %15, %16 : vector<2x4096xf32>
      %c0_15 = arith.constant 0 : index
      %c0_16 = arith.constant 0 : index
      %18 = vector.load %arg5[%c0_15, %c0_16] : memref<2x4096xf32, #tpu.memory_space<vmem>>, vector<2x4096xf32>
      tpu.vector_store %arg5[%c0_15, %c0_16], %17 {strides = array<i32>} : memref<2x4096xf32, #tpu.memory_space<vmem>>, vector<2x4096xf32>,
    } else {
    }
    return
  }
  func.func @transform_0(%arg0: i32, %arg1: i32) -> (i32, i32) {
    %c0_i32 = arith.constant 0 : i32
    %c0_i32_0 = arith.constant 0 : i32
    return %c0_i32, %arg1 : i32, i32
  }
  func.func @transform_1(%arg0: i32, %arg1: i32) -> (i32, i32) {
    %c0_i32 = arith.constant 0 : i32
    return %arg0, %arg1 : i32, i32
  }
  func.func @transform_2(%arg0: i32, %arg1: i32) -> (i32, i32) {
    %c0_i32 = arith.constant 0 : i32
    %c0_i32_0 = arith.constant 0 : i32
    return %c0_i32, %arg0 : i32, i32
  }
  func.func @transform_3(%arg0: i32, %arg1: i32) -> (i32, i32) {
    %c0_i32 = arith.constant 0 : i32
    %c0_i32_0 = arith.constant 0 : i32
    return %c0_i32, %arg0 : i32, i32
  }
}

module attributes {stable_mosaic.version = 11 : i64} {
  func.func @_deconv_kernel(%arg0: i32, %arg1: i32, %arg2: memref<1x32x256xf32, #tpu.memory_space<vmem>>, %arg3: memref<128x32xf32, #tpu.memory_space<vmem>>, %arg4: memref<128x1xf32, #tpu.memory_space<vmem>>, %arg5: memref<1x128x256xf32, #tpu.memory_space<vmem>>) attributes {dimension_semantics = [#tpu.dimension_semantics<parallel>, #tpu.dimension_semantics<parallel>], iteration_bounds = array<i64: 2, 1>, scalar_prefetch = 0 : i64, scratch_operands = 0 : i64, tpu.core_type = #tpu.core_type<tc>, window_params = [{transform_indices = @transform_0, window_bounds = array<i64: 1, 32, 256>}, {pipeline_mode = #tpu.pipeline_mode<synchronous>, transform_indices = @transform_1, window_bounds = array<i64: 128, 32>}, {pipeline_mode = #tpu.pipeline_mode<synchronous>, transform_indices = @transform_2, window_bounds = array<i64: 128, 1>}, {transform_indices = @transform_3, window_bounds = array<i64: 1, 128, 256>}]} {
    %c0 = arith.constant 0 : index
    %c0_0 = arith.constant 0 : index
    %0 = vector.load %arg3[%c0, %c0_0] : memref<128x32xf32, #tpu.memory_space<vmem>>, vector<128x32xf32>
    %c0_1 = arith.constant 0 : index
    %c0_2 = arith.constant 0 : index
    %c0_3 = arith.constant 0 : index
    %1 = vector.load %arg2[%c0_1, %c0_2, %c0_3] : memref<1x32x256xf32, #tpu.memory_space<vmem>>, vector<1x32x256xf32>
    %2 = vector.shape_cast %1 : vector<1x32x256xf32> to vector<32x256xf32>
    %cst = arith.constant dense<0.000000e+00> : vector<128x256xf32>
    %3 = tpu.matmul %0, %2, %cst {dimension_numbers = #tpu.dot_dimension_numbers<[1], [0], [0], [1], [0, 0, 1, 1], [], []>} : vector<128x32xf32>, vector<32x256xf32>, vector<128x256xf32> -> vector<128x256xf32>
    %c0_4 = arith.constant 0 : index
    %c0_5 = arith.constant 0 : index
    %4 = vector.load %arg4[%c0_4, %c0_5] : memref<128x1xf32, #tpu.memory_space<vmem>>, vector<128x1xf32>
    %5 = vector.broadcast %4 : vector<128x1xf32> to vector<128x256xf32>
    %6 = arith.addf %3, %5 : vector<128x256xf32>
    %cst_6 = arith.constant 0.000000e+00 : f32
    %7 = vector.broadcast %cst_6 : f32 to vector<128x256xf32>
    %8 = arith.maximumf %6, %7 : vector<128x256xf32>
    %c0_7 = arith.constant 0 : index
    %c0_8 = arith.constant 0 : index
    %c0_9 = arith.constant 0 : index
    %9 = vector.load %arg5[%c0_7, %c0_8, %c0_9] : memref<1x128x256xf32, #tpu.memory_space<vmem>>, vector<1x128x256xf32>
    %10 = vector.shape_cast %9 : vector<1x128x256xf32> to vector<128x256xf32>
    %11 = vector.shape_cast %8 : vector<128x256xf32> to vector<1x128x256xf32>
    tpu.vector_store %arg5[%c0_7, %c0_8, %c0_9], %11 {strides = array<i32>} : memref<1x128x256xf32, #tpu.memory_space<vmem>>, vector<1x128x256xf32>,
    return
  }
  func.func @transform_0(%arg0: i32, %arg1: i32) -> (i32, i32, i32) {
    %c0_i32 = arith.constant 0 : i32
    %c0_i32_0 = arith.constant 0 : i32
    return %arg0, %c0_i32, %arg1 : i32, i32, i32
  }
  func.func @transform_1(%arg0: i32, %arg1: i32) -> (i32, i32) {
    %c0_i32 = arith.constant 0 : i32
    %c0_i32_0 = arith.constant 0 : i32
    %c0_i32_1 = arith.constant 0 : i32
    return %c0_i32, %c0_i32_0 : i32, i32
  }
  func.func @transform_2(%arg0: i32, %arg1: i32) -> (i32, i32) {
    %c0_i32 = arith.constant 0 : i32
    %c0_i32_0 = arith.constant 0 : i32
    %c0_i32_1 = arith.constant 0 : i32
    return %c0_i32, %c0_i32_0 : i32, i32
  }
  func.func @transform_3(%arg0: i32, %arg1: i32) -> (i32, i32, i32) {
    %c0_i32 = arith.constant 0 : i32
    %c0_i32_0 = arith.constant 0 : i32
    return %arg0, %c0_i32, %arg1 : i32, i32, i32
  }
}

module attributes {stable_mosaic.version = 11 : i64} {
  func.func @_conv_sigmoid_kernel(%arg0: i32, %arg1: i32, %arg2: memref<1x288x1024xf32, #tpu.memory_space<vmem>>, %arg3: memref<3x288xf32, #tpu.memory_space<vmem>>, %arg4: memref<3x1xf32, #tpu.memory_space<vmem>>, %arg5: memref<1x3x1024xf32, #tpu.memory_space<vmem>>) attributes {dimension_semantics = [#tpu.dimension_semantics<parallel>, #tpu.dimension_semantics<parallel>], iteration_bounds = array<i64: 2, 1>, scalar_prefetch = 0 : i64, scratch_operands = 0 : i64, tpu.core_type = #tpu.core_type<tc>, window_params = [{transform_indices = @transform_0, window_bounds = array<i64: 1, 288, 1024>}, {pipeline_mode = #tpu.pipeline_mode<synchronous>, transform_indices = @transform_1, window_bounds = array<i64: 3, 288>}, {pipeline_mode = #tpu.pipeline_mode<synchronous>, transform_indices = @transform_2, window_bounds = array<i64: 3, 1>}, {transform_indices = @transform_3, window_bounds = array<i64: 1, 3, 1024>}]} {
    %c0 = arith.constant 0 : index
    %c0_0 = arith.constant 0 : index
    %0 = vector.load %arg3[%c0, %c0_0] : memref<3x288xf32, #tpu.memory_space<vmem>>, vector<3x288xf32>
    %c0_1 = arith.constant 0 : index
    %c0_2 = arith.constant 0 : index
    %c0_3 = arith.constant 0 : index
    %1 = vector.load %arg2[%c0_1, %c0_2, %c0_3] : memref<1x288x1024xf32, #tpu.memory_space<vmem>>, vector<1x288x1024xf32>
    %2 = vector.shape_cast %1 : vector<1x288x1024xf32> to vector<288x1024xf32>
    %cst = arith.constant dense<0.000000e+00> : vector<3x1024xf32>
    %3 = tpu.matmul %0, %2, %cst {dimension_numbers = #tpu.dot_dimension_numbers<[1], [0], [0], [1], [0, 0, 1, 1], [], []>} : vector<3x288xf32>, vector<288x1024xf32>, vector<3x1024xf32> -> vector<3x1024xf32>
    %c0_4 = arith.constant 0 : index
    %c0_5 = arith.constant 0 : index
    %4 = vector.load %arg4[%c0_4, %c0_5] : memref<3x1xf32, #tpu.memory_space<vmem>>, vector<3x1xf32>
    %5 = vector.broadcast %4 : vector<3x1xf32> to vector<3x1024xf32>
    %6 = arith.addf %3, %5 : vector<3x1024xf32>
    %7 = arith.negf %6 : vector<3x1024xf32>
    %8 = math.exp %7 : vector<3x1024xf32>
    %cst_6 = arith.constant 1.000000e+00 : f32
    %9 = vector.broadcast %cst_6 : f32 to vector<3x1024xf32>
    %10 = arith.addf %9, %8 : vector<3x1024xf32>
    %11 = arith.divf %9, %10 : vector<3x1024xf32>
    %c0_7 = arith.constant 0 : index
    %c0_8 = arith.constant 0 : index
    %c0_9 = arith.constant 0 : index
    %12 = vector.load %arg5[%c0_7, %c0_8, %c0_9] : memref<1x3x1024xf32, #tpu.memory_space<vmem>>, vector<1x3x1024xf32>
    %13 = vector.shape_cast %12 : vector<1x3x1024xf32> to vector<3x1024xf32>
    %14 = vector.shape_cast %11 : vector<3x1024xf32> to vector<1x3x1024xf32>
    tpu.vector_store %arg5[%c0_7, %c0_8, %c0_9], %14 {strides = array<i32>} : memref<1x3x1024xf32, #tpu.memory_space<vmem>>, vector<1x3x1024xf32>,
    return
  }
  func.func @transform_0(%arg0: i32, %arg1: i32) -> (i32, i32, i32) {
    %c0_i32 = arith.constant 0 : i32
    %c0_i32_0 = arith.constant 0 : i32
    return %arg0, %c0_i32, %arg1 : i32, i32, i32
  }
  func.func @transform_1(%arg0: i32, %arg1: i32) -> (i32, i32) {
    %c0_i32 = arith.constant 0 : i32
    %c0_i32_0 = arith.constant 0 : i32
    %c0_i32_1 = arith.constant 0 : i32
    return %c0_i32, %c0_i32_0 : i32, i32
  }
  func.func @transform_2(%arg0: i32, %arg1: i32) -> (i32, i32) {
    %c0_i32 = arith.constant 0 : i32
    %c0_i32_0 = arith.constant 0 : i32
    %c0_i32_1 = arith.constant 0 : i32
    return %c0_i32, %c0_i32_0 : i32, i32
  }
  func.func @transform_3(%arg0: i32, %arg1: i32) -> (i32, i32, i32) {
    %c0_i32 = arith.constant 0 : i32
    %c0_i32_0 = arith.constant 0 : i32
    return %arg0, %c0_i32, %arg1 : i32, i32, i32
  }
}

</mosaic_0001>

<llo_original>
// kernel: tile.8
$region0: #{tile.8}
  #allocation2 [shape = 's32[1]{0}', space=sflag, size = 0x4, scoped, tag = 'scoped memory for tile.8']
  %s0 = inlined_call_operand.hbm [shape: f32[32], index: 0, kind: input, shape index: {}]
  %s1 = inlined_call_operand.vmem [shape: f32[4,32], index: 1, kind: output, shape index: {}]
  $region1: #{tile.8} parent=0
    #allocation0 [shape = 'u8[512]{0}', space=vmem, size = 0x400, scoped, tag = 'operand span for operand 0']
    #allocation1 [shape = 's32[1]{0}', space=sflag, size = 0x4, scoped, tag = 'scoped memory for tile.8']
    %2 = vsyncpa [#allocation1], 0
    // Predicated region
    $region2: #{tile.8} parent=1 // pred_check
      _
    $region3: #{tile.8} parent=1 // pred_check_branch
      %4 = sbr.rel (0) target = $region5
    $region4: #{tile.8} parent=1 // pred_region
      %s6 = ssub.s32 16, 16
      %7 = vsyncadd [#allocation1], %s6
      %s9 = sshll.u32 [#allocation0], 4
      %s10 = int_to_ptr.vmem [resolvable:$true] %s9
      %12 = dma.hbm_to_vmem [thread:$0]  %s0, 16, %s10, [#allocation1]
    $region5: #{tile.8} parent=1 // pred_fallthru
      _
    // Predicated region
    $region6: #{tile.8} parent=1 // pred_check
      _
    $region7: #{tile.8} parent=1 // pred_check_branch
      %14 = sbr.rel (0) target = $region9
    $region8: #{tile.8} parent=1 // pred_region
      %15 = dma.done [#allocation1], 16
    $region9: #{tile.8} parent=1 // pred_fallthru
      _
    %v16 = vld [vmem:[#allocation0] ss:$0 sm:$0xff]
    %17 = vst [vmem:[%s1] sm:$0xf] %v16
    %18 = vsyncpa [#allocation1], 1

// kernel: tile.0
$region0: #{tile.0}
  %s0 = inlined_call_operand.vmem [shape: f32[4,32], index: 0, kind: input, shape index: {}]
  %s1 = inlined_call_operand.hbm [shape: f32[128,1], index: 1, kind: output, shape index: {}]
  $region1: #{tile.0} parent=0
    #allocation0 [shape = 'u8[65536]{0}', space=vmem, size = 0x10000, scoped, tag = 'operand span for operand 1']
    #allocation1 [shape = 's32[1]{0}', space=sflag, size = 0x4, scoped, tag = 'scoped memory for tile.0']
    #allocation2 [shape = 'u8[4096]{0}', space=vmem, size = 0x1000, scoped, tag = 'scoped mem for input reshape']
    %2 = vsyncpa [#allocation1], 0
    %s4 = sshllo.u32 0, 4
    %v5 = vld [vmem:[%s0] sm:%s4]
    %6 = vst [vmem:[#allocation2] sm:%s4] %v5
    %v7 = vld [vmem:[#allocation2] sm:$0xf]
    %vm8 = vcmask 7168
    %9 = vst.msk [vmem:[#allocation0] sm:$0x1] %vm8, %v7
    %s10 = scalar_lea.vmem [#allocation0], 31
    %11 = vst.msk [vmem:[%s10] sm:$0x2] %vm8, %v7
    %s12 = scalar_lea.vmem [#allocation0], 62
    %13 = vst.msk [vmem:[%s12] sm:$0x4] %vm8, %v7
    %s14 = scalar_lea.vmem [#allocation0], 93
    %15 = vst.msk [vmem:[%s14] sm:$0x8] %vm8, %v7
    %v16 = vld [vmem:[#allocation2] sm:$0xf]
    %17 = vrot.lane.b32.xlu0 %v16, 127
    %v18 = vpop.permute.xlu0 %17
    %vm19 = vcmask 7168
    %s20 = scalar_lea.vmem [#allocation0], 1
    %21 = vst.msk [vmem:[%s20] sm:$0x1] %vm19, %v18
    %s22 = scalar_lea.vmem [#allocation0], 32
    %23 = vst.msk [vmem:[%s22] sm:$0x2] %vm19, %v18
    %s24 = scalar_lea.vmem [#allocation0], 63
    %25 = vst.msk [vmem:[%s24] sm:$0x4] %vm19, %v18
    %s26 = scalar_lea.vmem [#allocation0], 94
    %27 = vst.msk [vmem:[%s26] sm:$0x8] %vm19, %v18
    %v28 = vld [vmem:[#allocation2] sm:$0xf]
    %29 = vrot.lane.b32.xlu0 %v28, 126
    %v30 = vpop.permute.xlu0 %29
    %vm31 = vcmask 7168
    %s32 = scalar_lea.vmem [#allocation0], 2
    %33 = vst.msk [vmem:[%s32] sm:$0x1] %vm31, %v30
    %s34 = scalar_lea.vmem [#allocation0], 33
    %35 = vst.msk [vmem:[%s34] sm:$0x2] %vm31, %v30
    %s36 = scalar_lea.vmem [#allocation0], 64
    %37 = vst.msk [vmem:[%s36] sm:$0x4] %vm31, %v30
    %s38 = scalar_lea.vmem [#allocation0], 95
    %39 = vst.msk [vmem:[%s38] sm:$0x8] %vm31, %v30
    %v40 = vld [vmem:[#allocation2] sm:$0xf]
    %41 = vrot.lane.b32.xlu0 %v40, 125
    %v42 = vpop.permute.xlu0 %41
    %vm43 = vcmask 7168
    %s44 = scalar_lea.vmem [#allocation0], 3
    %45 = vst.msk [vmem:[%s44] sm:$0x1] %vm43, %v42
    %s46 = scalar_lea.vmem [#allocation0], 34
    %47 = vst.msk [vmem:[%s46] sm:$0x2] %vm43, %v42
    %s48 = scalar_lea.vmem [#allocation0], 65
    %49 = vst.msk [vmem:[%s48] sm:$0x4] %vm43, %v42
    %s50 = scalar_lea.vmem [#allocation0], 96
    %51 = vst.msk [vmem:[%s50] sm:$0x8] %vm43, %v42
    %v52 = vld [vmem:[#allocation2] sm:$0xf]
    %53 = vrot.lane.b32.xlu0 %v52, 124
    %v54 = vpop.permute.xlu0 %53
    %vm55 = vcmask 7168
    %s56 = scalar_lea.vmem [#allocation0], 4
    %57 = vst.msk [vmem:[%s56] sm:$0x1] %vm55, %v54
    %s58 = scalar_lea.vmem [#allocation0], 35
    %59 = vst.msk [vmem:[%s58] sm:$0x2] %vm55, %v54
    %s60 = scalar_lea.vmem [#allocation0], 66
    %61 = vst.msk [vmem:[%s60] sm:$0x4] %vm55, %v54
    %s62 = scalar_lea.vmem [#allocation0], 97
    %63 = vst.msk [vmem:[%s62] sm:$0x8] %vm55, %v54
    %v64 = vld [vmem:[#allocation2] sm:$0xf]
    %65 = vrot.lane.b32.xlu0 %v64, 123
    %v66 = vpop.permute.xlu0 %65
    %vm67 = vcmask 7168
    %s68 = scalar_lea.vmem [#allocation0], 5
    %69 = vst.msk [vmem:[%s68] sm:$0x1] %vm67, %v66
    %s70 = scalar_lea.vmem [#allocation0], 36
    %71 = vst.msk [vmem:[%s70] sm:$0x2] %vm67, %v66
    %s72 = scalar_lea.vmem [#allocation0], 67
    %73 = vst.msk [vmem:[%s72] sm:$0x4] %vm67, %v66
    %s74 = scalar_lea.vmem [#allocation0], 98
    %75 = vst.msk [vmem:[%s74] sm:$0x8] %vm67, %v66
    %v76 = vld [vmem:[#allocation2] sm:$0xf]
    %77 = vrot.lane.b32.xlu0 %v76, 122
    %v78 = vpop.permute.xlu0 %77
    %vm79 = vcmask 7168
    %s80 = scalar_lea.vmem [#allocation0], 6
    %81 = vst.msk [vmem:[%s80] sm:$0x1] %vm79, %v78
    %s82 = scalar_lea.vmem [#allocation0], 37
    %83 = vst.msk [vmem:[%s82] sm:$0x2] %vm79, %v78
    %s84 = scalar_lea.vmem [#allocation0], 68
    %85 = vst.msk [vmem:[%s84] sm:$0x4] %vm79, %v78
    %s86 = scalar_lea.vmem [#allocation0], 99
    %87 = vst.msk [vmem:[%s86] sm:$0x8] %vm79, %v78
    %v88 = vld [vmem:[#allocation2] sm:$0xf]
    %89 = vrot.lane.b32.xlu0 %v88, 121
    %v90 = vpop.permute.xlu0 %89
    %vm91 = vcmask 7168
    %s92 = scalar_lea.vmem [#allocation0], 7
    %93 = vst.msk [vmem:[%s92] sm:$0x1] %vm91, %v90
    %s94 = scalar_lea.vmem [#allocation0], 38
    %95 = vst.msk [vmem:[%s94] sm:$0x2] %vm91, %v90
    %s96 = scalar_lea.vmem [#allocation0], 69
    %97 = vst.msk [vmem:[%s96] sm:$0x4] %vm91, %v90
    %s98 = scalar_lea.vmem [#allocation0], 100
    %99 = vst.msk [vmem:[%s98] sm:$0x8] %vm91, %v90
    %v100 = vld [vmem:[#allocation2] sm:$0xf]
    %101 = vrot.lane.b32.xlu0 %v100, 120
    %v102 = vpop.permute.xlu0 %101
    %vm103 = vcmask 7168
    %s104 = scalar_lea.vmem [#allocation0], 8
    %105 = vst.msk [vmem:[%s104] sm:$0x1] %vm103, %v102
    %s106 = scalar_lea.vmem [#allocation0], 39
    %107 = vst.msk [vmem:[%s106] sm:$0x2] %vm103, %v102
    %s108 = scalar_lea.vmem [#allocation0], 70
    %109 = vst.msk [vmem:[%s108] sm:$0x4] %vm103, %v102
    %s110 = scalar_lea.vmem [#allocation0], 101
    %111 = vst.msk [vmem:[%s110] sm:$0x8] %vm103, %v102
    %v112 = vld [vmem:[#allocation2] sm:$0xf]
    %113 = vrot.lane.b32.xlu0 %v112, 119
    %v114 = vpop.permute.xlu0 %113
    %vm115 = vcmask 7168
    %s116 = scalar_lea.vmem [#allocation0], 9
    %117 = vst.msk [vmem:[%s116] sm:$0x1] %vm115, %v114
    %s118 = scalar_lea.vmem [#allocation0], 40
    %119 = vst.msk [vmem:[%s118] sm:$0x2] %vm115, %v114
    %s120 = scalar_lea.vmem [#allocation0], 71
    %121 = vst.msk [vmem:[%s120] sm:$0x4] %vm115, %v114
    %s122 = scalar_lea.vmem [#allocation0], 102
    %123 = vst.msk [vmem:[%s122] sm:$0x8] %vm115, %v114
    %v124 = vld [vmem:[#allocation2] sm:$0xf]
    %125 = vrot.lane.b32.xlu0 %v124, 118
    %v126 = vpop.permute.xlu0 %125
    %vm127 = vcmask 7168
    %s128 = scalar_lea.vmem [#allocation0], 10
    %129 = vst.msk [vmem:[%s128] sm:$0x1] %vm127, %v126
    %s130 = scalar_lea.vmem [#allocation0], 41
    %131 = vst.msk [vmem:[%s130] sm:$0x2] %vm127, %v126
    %s132 = scalar_lea.vmem [#allocation0], 72
    %133 = vst.msk [vmem:[%s132] sm:$0x4] %vm127, %v126
    %s134 = scalar_lea.vmem [#allocation0], 103
    %135 = vst.msk [vmem:[%s134] sm:$0x8] %vm127, %v126
    %v136 = vld [vmem:[#allocation2] sm:$0xf]
    %137 = vrot.lane.b32.xlu0 %v136, 117
    %v138 = vpop.permute.xlu0 %137
    %vm139 = vcmask 7168
    %s140 = scalar_lea.vmem [#allocation0], 11
    %141 = vst.msk [vmem:[%s140] sm:$0x1] %vm139, %v138
    %s142 = scalar_lea.vmem [#allocation0], 42
    %143 = vst.msk [vmem:[%s142] sm:$0x2] %vm139, %v138
    %s144 = scalar_lea.vmem [#allocation0], 73
    %145 = vst.msk [vmem:[%s144] sm:$0x4] %vm139, %v138
    %s146 = scalar_lea.vmem [#allocation0], 104
    %147 = vst.msk [vmem:[%s146] sm:$0x8] %vm139, %v138
    %v148 = vld [vmem:[#allocation2] sm:$0xf]
    %149 = vrot.lane.b32.xlu0 %v148, 116
    %v150 = vpop.permute.xlu0 %149
    %vm151 = vcmask 7168
    %s152 = scalar_lea.vmem [#allocation0], 12
    %153 = vst.msk [vmem:[%s152] sm:$0x1] %vm151, %v150
    %s154 = scalar_lea.vmem [#allocation0], 43
    %155 = vst.msk [vmem:[%s154] sm:$0x2] %vm151, %v150
    %s156 = scalar_lea.vmem [#allocation0], 74
    %157 = vst.msk [vmem:[%s156] sm:$0x4] %vm151, %v150
    %s158 = scalar_lea.vmem [#allocation0], 105
    %159 = vst.msk [vmem:[%s158] sm:$0x8] %vm151, %v150
    %v160 = vld [vmem:[#allocation2] sm:$0xf]
    %161 = vrot.lane.b32.xlu0 %v160, 115
    %v162 = vpop.permute.xlu0 %161
    %vm163 = vcmask 7168
    %s164 = scalar_lea.vmem [#allocation0], 13
    %165 = vst.msk [vmem:[%s164] sm:$0x1] %vm163, %v162
    %s166 = scalar_lea.vmem [#allocation0], 44
    %167 = vst.msk [vmem:[%s166] sm:$0x2] %vm163, %v162
    %s168 = scalar_lea.vmem [#allocation0], 75
    %169 = vst.msk [vmem:[%s168] sm:$0x4] %vm163, %v162
    %s170 = scalar_lea.vmem [#allocation0], 106
    %171 = vst.msk [vmem:[%s170] sm:$0x8] %vm163, %v162
    %v172 = vld [vmem:[#allocation2] sm:$0xf]
    %173 = vrot.lane.b32.xlu0 %v172, 114
    %v174 = vpop.permute.xlu0 %173
    %vm175 = vcmask 7168
    %s176 = scalar_lea.vmem [#allocation0], 14
    %177 = vst.msk [vmem:[%s176] sm:$0x1] %vm175, %v174
    %s178 = scalar_lea.vmem [#allocation0], 45
    %179 = vst.msk [vmem:[%s178] sm:$0x2] %vm175, %v174
    %s180 = scalar_lea.vmem [#allocation0], 76
    %181 = vst.msk [vmem:[%s180] sm:$0x4] %vm175, %v174
    %s182 = scalar_lea.vmem [#allocation0], 107
    %183 = vst.msk [vmem:[%s182] sm:$0x8] %vm175, %v174
    %v184 = vld [vmem:[#allocation2] sm:$0xf]
    %185 = vrot.lane.b32.xlu0 %v184, 113
    %v186 = vpop.permute.xlu0 %185
    %vm187 = vcmask 7168
    %s188 = scalar_lea.vmem [#allocation0], 15
    %189 = vst.msk [vmem:[%s188] sm:$0x1] %vm187, %v186
    %s190 = scalar_lea.vmem [#allocation0], 46
    %191 = vst.msk [vmem:[%s190] sm:$0x2] %vm187, %v186
    %s192 = scalar_lea.vmem [#allocation0], 77
    %193 = vst.msk [vmem:[%s192] sm:$0x4] %vm187, %v186
    %s194 = scalar_lea.vmem [#allocation0], 108
    %195 = vst.msk [vmem:[%s194] sm:$0x8] %vm187, %v186
    %v196 = vld [vmem:[#allocation2] sm:$0xf]
    %197 = vrot.lane.b32.xlu0 %v196, 112
    %v198 = vpop.permute.xlu0 %197
    %vm199 = vcmask 7168
    %s200 = scalar_lea.vmem [#allocation0], 16
    %201 = vst.msk [vmem:[%s200] sm:$0x1] %vm199, %v198
    %s202 = scalar_lea.vmem [#allocation0], 47
    %203 = vst.msk [vmem:[%s202] sm:$0x2] %vm199, %v198
    %s204 = scalar_lea.vmem [#allocation0], 78
    %205 = vst.msk [vmem:[%s204] sm:$0x4] %vm199, %v198
    %s206 = scalar_lea.vmem [#allocation0], 109
    %207 = vst.msk [vmem:[%s206] sm:$0x8] %vm199, %v198
    %v208 = vld [vmem:[#allocation2] sm:$0xf]
    %209 = vrot.lane.b32.xlu0 %v208, 111
    %v210 = vpop.permute.xlu0 %209
    %vm211 = vcmask 7168
    %s212 = scalar_lea.vmem [#allocation0], 17
    %213 = vst.msk [vmem:[%s212] sm:$0x1] %vm211, %v210
    %s214 = scalar_lea.vmem [#allocation0], 48
    %215 = vst.msk [vmem:[%s214] sm:$0x2] %vm211, %v210
    %s216 = scalar_lea.vmem [#allocation0], 79
    %217 = vst.msk [vmem:[%s216] sm:$0x4] %vm211, %v210
    %s218 = scalar_lea.vmem [#allocation0], 110
    %219 = vst.msk [vmem:[%s218] sm:$0x8] %vm211, %v210
    %v220 = vld [vmem:[#allocation2] sm:$0xf]
    %221 = vrot.lane.b32.xlu0 %v220, 110
    %v222 = vpop.permute.xlu0 %221
    %vm223 = vcmask 7168
    %s224 = scalar_lea.vmem [#allocation0], 18
    %225 = vst.msk [vmem:[%s224] sm:$0x1] %vm223, %v222
    %s226 = scalar_lea.vmem [#allocation0], 49
    %227 = vst.msk [vmem:[%s226] sm:$0x2] %vm223, %v222
    %s228 = scalar_lea.vmem [#allocation0], 80
    %229 = vst.msk [vmem:[%s228] sm:$0x4] %vm223, %v222
    %s230 = scalar_lea.vmem [#allocation0], 111
    %231 = vst.msk [vmem:[%s230] sm:$0x8] %vm223, %v222
    %v232 = vld [vmem:[#allocation2] sm:$0xf]
    %233 = vrot.lane.b32.xlu0 %v232, 109
    %v234 = vpop.permute.xlu0 %233
    %vm235 = vcmask 7168
    %s236 = scalar_lea.vmem [#allocation0], 19
    %237 = vst.msk [vmem:[%s236] sm:$0x1] %vm235, %v234
    %s238 = scalar_lea.vmem [#allocation0], 50
    %239 = vst.msk [vmem:[%s238] sm:$0x2] %vm235, %v234
    %s240 = scalar_lea.vmem [#allocation0], 81
    %241 = vst.msk [vmem:[%s240] sm:$0x4] %vm235, %v234
    %s242 = scalar_lea.vmem [#allocation0], 112
    %243 = vst.msk [vmem:[%s242] sm:$0x8] %vm235, %v234
    %v244 = vld [vmem:[#allocation2] sm:$0xf]
    %245 = vrot.lane.b32.xlu0 %v244, 108
    %v246 = vpop.permute.xlu0 %245
    %vm247 = vcmask 7168
    %s248 = scalar_lea.vmem [#allocation0], 20
    %249 = vst.msk [vmem:[%s248] sm:$0x1] %vm247, %v246
    %s250 = scalar_lea.vmem [#allocation0], 51
    %251 = vst.msk [vmem:[%s250] sm:$0x2] %vm247, %v246
    %s252 = scalar_lea.vmem [#allocation0], 82
    %253 = vst.msk [vmem:[%s252] sm:$0x4] %vm247, %v246
    %s254 = scalar_lea.vmem [#allocation0], 113
    %255 = vst.msk [vmem:[%s254] sm:$0x8] %vm247, %v246
    %v256 = vld [vmem:[#allocation2] sm:$0xf]
    %257 = vrot.lane.b32.xlu0 %v256, 107
    %v258 = vpop.permute.xlu0 %257
    %vm259 = vcmask 7168
    %s260 = scalar_lea.vmem [#allocation0], 21
    %261 = vst.msk [vmem:[%s260] sm:$0x1] %vm259, %v258
    %s262 = scalar_lea.vmem [#allocation0], 52
    %263 = vst.msk [vmem:[%s262] sm:$0x2] %vm259, %v258
    %s264 = scalar_lea.vmem [#allocation0], 83
    %265 = vst.msk [vmem:[%s264] sm:$0x4] %vm259, %v258
    %s266 = scalar_lea.vmem [#allocation0], 114
    %267 = vst.msk [vmem:[%s266] sm:$0x8] %vm259, %v258
    %v268 = vld [vmem:[#allocation2] sm:$0xf]
    %269 = vrot.lane.b32.xlu0 %v268, 106
    %v270 = vpop.permute.xlu0 %269
    %vm271 = vcmask 7168
    %s272 = scalar_lea.vmem [#allocation0], 22
    %273 = vst.msk [vmem:[%s272] sm:$0x1] %vm271, %v270
    %s274 = scalar_lea.vmem [#allocation0], 53
    %275 = vst.msk [vmem:[%s274] sm:$0x2] %vm271, %v270
    %s276 = scalar_lea.vmem [#allocation0], 84
    %277 = vst.msk [vmem:[%s276] sm:$0x4] %vm271, %v270
    %s278 = scalar_lea.vmem [#allocation0], 115
    %279 = vst.msk [vmem:[%s278] sm:$0x8] %vm271, %v270
    %v280 = vld [vmem:[#allocation2] sm:$0xf]
    %281 = vrot.lane.b32.xlu0 %v280, 105
    %v282 = vpop.permute.xlu0 %281
    %vm283 = vcmask 7168
    %s284 = scalar_lea.vmem [#allocation0], 23
    %285 = vst.msk [vmem:[%s284] sm:$0x1] %vm283, %v282
    %s286 = scalar_lea.vmem [#allocation0], 54
    %287 = vst.msk [vmem:[%s286] sm:$0x2] %vm283, %v282
    %s288 = scalar_lea.vmem [#allocation0], 85
    %289 = vst.msk [vmem:[%s288] sm:$0x4] %vm283, %v282
    %s290 = scalar_lea.vmem [#allocation0], 116
    %291 = vst.msk [vmem:[%s290] sm:$0x8] %vm283, %v282
    %v292 = vld [vmem:[#allocation2] sm:$0xf]
    %293 = vrot.lane.b32.xlu0 %v292, 104
    %v294 = vpop.permute.xlu0 %293
    %vm295 = vcmask 7168
    %s296 = scalar_lea.vmem [#allocation0], 24
    %297 = vst.msk [vmem:[%s296] sm:$0x1] %vm295, %v294
    %s298 = scalar_lea.vmem [#allocation0], 55
    %299 = vst.msk [vmem:[%s298] sm:$0x2] %vm295, %v294
    %s300 = scalar_lea.vmem [#allocation0], 86
    %301 = vst.msk [vmem:[%s300] sm:$0x4] %vm295, %v294
    %s302 = scalar_lea.vmem [#allocation0], 117
    %303 = vst.msk [vmem:[%s302] sm:$0x8] %vm295, %v294
    %v304 = vld [vmem:[#allocation2] sm:$0xf]
    %305 = vrot.lane.b32.xlu0 %v304, 103
    %v306 = vpop.permute.xlu0 %305
    %vm307 = vcmask 7168
    %s308 = scalar_lea.vmem [#allocation0], 25
    %309 = vst.msk [vmem:[%s308] sm:$0x1] %vm307, %v306
    %s310 = scalar_lea.vmem [#allocation0], 56
    %311 = vst.msk [vmem:[%s310] sm:$0x2] %vm307, %v306
    %s312 = scalar_lea.vmem [#allocation0], 87
    %313 = vst.msk [vmem:[%s312] sm:$0x4] %vm307, %v306
    %s314 = scalar_lea.vmem [#allocation0], 118
    %315 = vst.msk [vmem:[%s314] sm:$0x8] %vm307, %v306
    %v316 = vld [vmem:[#allocation2] sm:$0xf]
    %317 = vrot.lane.b32.xlu0 %v316, 102
    %v318 = vpop.permute.xlu0 %317
    %vm319 = vcmask 7168
    %s320 = scalar_lea.vmem [#allocation0], 26
    %321 = vst.msk [vmem:[%s320] sm:$0x1] %vm319, %v318
    %s322 = scalar_lea.vmem [#allocation0], 57
    %323 = vst.msk [vmem:[%s322] sm:$0x2] %vm319, %v318
    %s324 = scalar_lea.vmem [#allocation0], 88
    %325 = vst.msk [vmem:[%s324] sm:$0x4] %vm319, %v318
    %s326 = scalar_lea.vmem [#allocation0], 119
    %327 = vst.msk [vmem:[%s326] sm:$0x8] %vm319, %v318
    %v328 = vld [vmem:[#allocation2] sm:$0xf]
    %329 = vrot.lane.b32.xlu0 %v328, 101
    %v330 = vpop.permute.xlu0 %329
    %vm331 = vcmask 7168
    %s332 = scalar_lea.vmem [#allocation0], 27
    %333 = vst.msk [vmem:[%s332] sm:$0x1] %vm331, %v330
    %s334 = scalar_lea.vmem [#allocation0], 58
    %335 = vst.msk [vmem:[%s334] sm:$0x2] %vm331, %v330
    %s336 = scalar_lea.vmem [#allocation0], 89
    %337 = vst.msk [vmem:[%s336] sm:$0x4] %vm331, %v330
    %s338 = scalar_lea.vmem [#allocation0], 120
    %339 = vst.msk [vmem:[%s338] sm:$0x8] %vm331, %v330
    %v340 = vld [vmem:[#allocation2] sm:$0xf]
    %341 = vrot.lane.b32.xlu0 %v340, 100
    %v342 = vpop.permute.xlu0 %341
    %vm343 = vcmask 7168
    %s344 = scalar_lea.vmem [#allocation0], 28
    %345 = vst.msk [vmem:[%s344] sm:$0x1] %vm343, %v342
    %s346 = scalar_lea.vmem [#allocation0], 59
    %347 = vst.msk [vmem:[%s346] sm:$0x2] %vm343, %v342
    %s348 = scalar_lea.vmem [#allocation0], 90
    %349 = vst.msk [vmem:[%s348] sm:$0x4] %vm343, %v342
    %s350 = scalar_lea.vmem [#allocation0], 121
    %351 = vst.msk [vmem:[%s350] sm:$0x8] %vm343, %v342
    %v352 = vld [vmem:[#allocation2] sm:$0xf]
    %353 = vrot.lane.b32.xlu0 %v352, 99
    %v354 = vpop.permute.xlu0 %353
    %vm355 = vcmask 7168
    %s356 = scalar_lea.vmem [#allocation0], 29
    %357 = vst.msk [vmem:[%s356] sm:$0x1] %vm355, %v354
    %s358 = scalar_lea.vmem [#allocation0], 60
    %359 = vst.msk [vmem:[%s358] sm:$0x2] %vm355, %v354
    %s360 = scalar_lea.vmem [#allocation0], 91
    %361 = vst.msk [vmem:[%s360] sm:$0x4] %vm355, %v354
    %s362 = scalar_lea.vmem [#allocation0], 122
    %363 = vst.msk [vmem:[%s362] sm:$0x8] %vm355, %v354
    %v364 = vld [vmem:[#allocation2] sm:$0xf]
    %365 = vrot.lane.b32.xlu0 %v364, 98
    %v366 = vpop.permute.xlu0 %365
    %vm367 = vcmask 7168
    %s368 = scalar_lea.vmem [#allocation0], 30
    %369 = vst.msk [vmem:[%s368] sm:$0x1] %vm367, %v366
    %s370 = scalar_lea.vmem [#allocation0], 61
    %371 = vst.msk [vmem:[%s370] sm:$0x2] %vm367, %v366
    %s372 = scalar_lea.vmem [#allocation0], 92
    %373 = vst.msk [vmem:[%s372] sm:$0x4] %vm367, %v366
    %s374 = scalar_lea.vmem [#allocation0], 123
    %375 = vst.msk [vmem:[%s374] sm:$0x8] %vm367, %v366
    %v376 = vld [vmem:[#allocation2] sm:$0xf]
    %377 = vrot.lane.b32.xlu0 %v376, 97
    %v378 = vpop.permute.xlu0 %377
    %vm379 = vcmask 7168
    %s380 = scalar_lea.vmem [#allocation0], 31
    %381 = vst.msk [vmem:[%s380] sm:$0x1] %vm379, %v378
    %s382 = scalar_lea.vmem [#allocation0], 62
    %383 = vst.msk [vmem:[%s382] sm:$0x2] %vm379, %v378
    %s384 = scalar_lea.vmem [#allocation0], 93
    %385 = vst.msk [vmem:[%s384] sm:$0x4] %vm379, %v378
    %s386 = scalar_lea.vmem [#allocation0], 124
    %387 = vst.msk [vmem:[%s386] sm:$0x8] %vm379, %v378
    %s389 = ssub.s32 2048, 2048
    %390 = vsyncadd [#allocation1], %s389
    %s392 = sshll.u32 [#allocation0], 4
    %s393 = int_to_ptr.vmem [resolvable:$true] %s392
    %395 = dma.vmem_to_hbm [thread:$0]  %s393, 2048, %s1, [#allocation1]
    %396 = dma.done [#allocation1], 2048
    %397 = vsyncpa [#allocation1], 1

// kernel: squeeze.443
$region0: #{squeeze.443}
  %s0 = inlined_call_operand.vmem [shape: f32[2,1,16,16], index: 0, kind: input, shape index: {}]
  %s1 = inlined_call_operand.vmem [shape: f32[2,1,256], index: 1, kind: output, shape index: {}]
  $region1: #{squeeze.443} parent=0
    #allocation0 [shape = 'u8[16384]{0}', space=vmem, size = 0x4000, scoped, tag = 'scoped mem for output reshape']
    %v2 = vld [vmem:[%s0] ss:$8 sm:$0xf]
    %vm3 = vcmask 130048
    %4 = vst.msk [vmem:[#allocation0] ss:$8 sm:$0xf] %vm3, %v2
    %s5 = scalar_lea.vmem %s0, 7
    %v6 = vld [vmem:[%s5] ss:$8 sm:$0xf]
    %7 = vrot.lane.b32.xlu0 %v6, 112
    %v8 = vpop.permute.xlu0 %7
    %vm9 = vcmask 1048448
    %10 = vst.msk [vmem:[#allocation0] ss:$8 sm:$0xf] %vm9, %v8
    %s11 = scalar_lea.vmem %s0, 6
    %v12 = vld [vmem:[%s11] ss:$8 sm:$0xf]
    %13 = vrot.lane.b32.xlu0 %v12, 96
    %v14 = vpop.permute.xlu0 %13
    %vm15 = vcmask 917248
    %16 = vst.msk [vmem:[#allocation0] ss:$8 sm:$0xf] %vm15, %v14
    %s17 = scalar_lea.vmem %s0, 5
    %v18 = vld [vmem:[%s17] ss:$8 sm:$0xf]
    %19 = vrot.lane.b32.xlu0 %v18, 80
    %v20 = vpop.permute.xlu0 %19
    %vm21 = vcmask 786048
    %22 = vst.msk [vmem:[#allocation0] ss:$8 sm:$0xf] %vm21, %v20
    %s23 = scalar_lea.vmem %s0, 4
    %v24 = vld [vmem:[%s23] ss:$8 sm:$0xf]
    %25 = vrot.lane.b32.xlu0 %v24, 64
    %v26 = vpop.permute.xlu0 %25
    %vm27 = vcmask 654848
    %28 = vst.msk [vmem:[#allocation0] ss:$8 sm:$0xf] %vm27, %v26
    %s29 = scalar_lea.vmem %s0, 3
    %v30 = vld [vmem:[%s29] ss:$8 sm:$0xf]
    %31 = vrot.lane.b32.xlu0 %v30, 48
    %v32 = vpop.permute.xlu0 %31
    %vm33 = vcmask 523648
    %34 = vst.msk [vmem:[#allocation0] ss:$8 sm:$0xf] %vm33, %v32
    %s35 = scalar_lea.vmem %s0, 2
    %v36 = vld [vmem:[%s35] ss:$8 sm:$0xf]
    %37 = vrot.lane.b32.xlu0 %v36, 32
    %v38 = vpop.permute.xlu0 %37
    %vm39 = vcmask 392448
    %40 = vst.msk [vmem:[#allocation0] ss:$8 sm:$0xf] %vm39, %v38
    %s41 = scalar_lea.vmem %s0, 1
    %v42 = vld [vmem:[%s41] ss:$8 sm:$0xf]
    %43 = vrot.lane.b32.xlu0 %v42, 16
    %v44 = vpop.permute.xlu0 %43
    %vm45 = vcmask 261248
    %46 = vst.msk [vmem:[#allocation0] ss:$8 sm:$0xf] %vm45, %v44
    %s48 = sshllo.u32 0, 1
    %v50 = vld [vmem:[#allocation0] sm:%s48]
    %s51 = sshllo.u32 0, 1
    %52 = vst [vmem:[%s1] sm:%s51] %v50
    %s53 = scalar_lea.vmem [#allocation0], 8
    %v54 = vld [vmem:[%s53] sm:%s48]
    %s55 = sshllo.u32 0, 1
    %s56 = scalar_lea.vmem %s1, 1
    %57 = vst [vmem:[%s56] sm:%s55] %v54
    %s58 = scalar_lea.vmem [#allocation0], 16
    %v59 = vld [vmem:[%s58] sm:%s48]
    %s60 = sshllo.u32 0, 1
    %s61 = smul.addr 1, 2
    %s62 = scalar_lea.vmem %s1, %s61
    %63 = vst [vmem:[%s62] sm:%s60] %v59
    %s64 = scalar_lea.vmem [#allocation0], 24
    %v65 = vld [vmem:[%s64] sm:%s48]
    %s66 = sshllo.u32 0, 1
    %s67 = smul.addr 1, 3
    %s68 = scalar_lea.vmem %s1, %s67
    %69 = vst [vmem:[%s68] sm:%s66] %v65

// kernel: vae_forward.9
$region0: #{vae_forward.9}
  #allocation0 [shape = 'u32[]', space=smem, size = 0x4, offset = 0x4, fixed_abs, tag = 'smem constant byte address 0x4 - core index']
  #allocation1 [shape = 'u32[144,128]{1,0:T(1,128)}', space=vmem, size = 0x12000, scoped, tag = 'internal scratch']
  %s0 = inlined_call_operand.hbm [shape: f32[2,64], index: 0, kind: input, shape index: {}]
  %s1 = inlined_call_operand.hbm [shape: f32[16,64], index: 1, kind: input, shape index: {}]
  %s2 = inlined_call_operand.hbm [shape: f32[16,64], index: 2, kind: input, shape index: {}]
  %s3 = inlined_call_operand.hbm [shape: f32[1,16], index: 3, kind: input, shape index: {}]
  %s4 = inlined_call_operand.hbm [shape: f32[1,16], index: 4, kind: input, shape index: {}]
  %s5 = inlined_call_operand.hbm [shape: f32[2,16], index: 5, kind: input, shape index: {}]
  %s6 = inlined_call_operand.hbm [shape: f32[2,16], index: 6, kind: output, shape index: {0}]
  %s7 = inlined_call_operand.hbm [shape: f32[2,16], index: 7, kind: output, shape index: {1}]
  %s8 = inlined_call_operand.hbm [shape: f32[2,16], index: 8, kind: output, shape index: {2}]
  %9 = xla_tuple %s6, %s7, %s8
  %s10 = sld [smem:[#allocation0]]
  $region74: #{vae_forward.9} parent=0
    _
  %s12 = ssub.s32 1, %s10
  %s13 = scalar_select 0, %s12, %s10
  $region1: #{vae_forward.9} parent=0
    #allocation2 [shape = 'u8[1024]{0}', space=vmem, size = 0x400, scoped, tag = 'input window, operand 0, single buffered']
    #allocation3 [shape = 's32[1]{0}', space=sflag, size = 0x4, scoped, tag = 'scoped memory for vae_forward.9']
    #allocation4 [shape = 's32[1]{0}', space=sflag, size = 0x4, scoped, tag = 'scoped memory for vae_forward.9']
    #allocation5 [shape = 'u8[8192]{0}', space=vmem, size = 0x2000, scoped, tag = 'input window, operand 1, single buffered']
    #allocation6 [shape = 's32[1]{0}', space=sflag, size = 0x4, scoped, tag = 'scoped memory for vae_forward.9']
    #allocation7 [shape = 'u8[8192]{0}', space=vmem, size = 0x2000, scoped, tag = 'input window, operand 2, single buffered']
    #allocation8 [shape = 'u8[512]{0}', space=vmem, size = 0x400, scoped, tag = 'input window, operand 3, single buffered']
    #allocation9 [shape = 's32[1]{0}', space=sflag, size = 0x4, scoped, tag = 'scoped memory for vae_forward.9']
    #allocation10 [shape = 'u8[512]{0}', space=vmem, size = 0x400, scoped, tag = 'input window, operand 4, single buffered']
    #allocation11 [shape = 'u8[1024]{0}', space=vmem, size = 0x400, scoped, tag = 'input window, operand 5, single buffered']
    #allocation12 [shape = 's32[1]{0}', space=sflag, size = 0x4, scoped, tag = 'scoped memory for vae_forward.9']
    #allocation13 [shape = 'u8[1024]{0}', space=vmem, size = 0x400, scoped, tag = 'output window, operand 0, single buffered']
    #allocation14 [shape = 'u8[1024]{0}', space=vmem, size = 0x400, scoped, tag = 'output window, operand 1, single buffered']
    #allocation15 [shape = 's32[1]{0}', space=sflag, size = 0x4, scoped, tag = 'scoped memory for vae_forward.9']
    #allocation16 [shape = 'u8[1024]{0}', space=vmem, size = 0x400, scoped, tag = 'output window, operand 2, single buffered']
    %14 = vsyncpa [#allocation3], 0
    %15 = vsyncpa [#allocation6], 0
    %16 = vsyncpa [#allocation9], 0
    %17 = vsyncpa [#allocation12], 0
    %18 = vsyncpa [#allocation4], 0
    %19 = vsyncpa [#allocation15], 0
    // Predicated region
    $region2: #{vae_forward.9} parent=1 // pred_check
      _
    $region3: #{vae_forward.9} parent=1 // pred_check_branch
      %21 = sbr.rel (0) target = $region5
    $region4: #{vae_forward.9} parent=1 // pred_region
      %s23 = ssub.s32 32, 32
      %24 = vsyncadd [#allocation3], %s23
      %s26 = sshll.u32 [#allocation2], 4
      %s27 = int_to_ptr.vmem [resolvable:$true] %s26
      %29 = dma.hbm_to_vmem [thread:$0]  %s0, 32, %s27, [#allocation3]
    $region5: #{vae_forward.9} parent=1 // pred_fallthru
      _
    // Predicated region
    $region6: #{vae_forward.9} parent=1 // pred_check
      _
    $region7: #{vae_forward.9} parent=1 // pred_check_branch
      %31 = sbr.rel (0) target = $region9
    $region8: #{vae_forward.9} parent=1 // pred_region
      %s33 = ssub.s32 256, 256
      %34 = vsyncadd [#allocation6], %s33
      %s35 = sshll.u32 [#allocation5], 4
      %s36 = int_to_ptr.vmem [resolvable:$true] %s35
      %41 = dma.hbm_to_vmem [thread:$0]  %s1, 256, %s36, [#allocation6], 128, 128, 8
    $region9: #{vae_forward.9} parent=1 // pred_fallthru
      _
    // Predicated region
    $region10: #{vae_forward.9} parent=1 // pred_check
      _
    $region11: #{vae_forward.9} parent=1 // pred_check_branch
      %43 = sbr.rel (0) target = $region13
    $region12: #{vae_forward.9} parent=1 // pred_region
      %s45 = ssub.s32 256, 256
      %46 = vsyncadd [#allocation6], %s45
      %s47 = sshll.u32 [#allocation7], 4
      %s48 = int_to_ptr.vmem [resolvable:$true] %s47
      %53 = dma.hbm_to_vmem [thread:$0]  %s2, 256, %s48, [#allocation6], 128, 128, 8
    $region13: #{vae_forward.9} parent=1 // pred_fallthru
      _
    // Predicated region
    $region14: #{vae_forward.9} parent=1 // pred_check
      _
    $region15: #{vae_forward.9} parent=1 // pred_check_branch
      %55 = sbr.rel (0) target = $region17
    $region16: #{vae_forward.9} parent=1 // pred_region
      %s57 = ssub.s32 16, 16
      %58 = vsyncadd [#allocation9], %s57
      %s60 = sshll.u32 [#allocation8], 4
      %s61 = int_to_ptr.vmem [resolvable:$true] %s60
      %63 = dma.hbm_to_vmem [thread:$0]  %s3, 16, %s61, [#allocation9]
    $region17: #{vae_forward.9} parent=1 // pred_fallthru
      _
    // Predicated region
    $region18: #{vae_forward.9} parent=1 // pred_check
      _
    $region19: #{vae_forward.9} parent=1 // pred_check_branch
      %65 = sbr.rel (0) target = $region21
    $region20: #{vae_forward.9} parent=1 // pred_region
      %s67 = ssub.s32 16, 16
      %68 = vsyncadd [#allocation9], %s67
      %s70 = sshll.u32 [#allocation10], 4
      %s71 = int_to_ptr.vmem [resolvable:$true] %s70
      %73 = dma.hbm_to_vmem [thread:$0]  %s4, 16, %s71, [#allocation9]
    $region21: #{vae_forward.9} parent=1 // pred_fallthru
      _
    // Predicated region
    $region22: #{vae_forward.9} parent=1 // pred_check
      _
    $region23: #{vae_forward.9} parent=1 // pred_check_branch
      %75 = sbr.rel (0) target = $region25
    $region24: #{vae_forward.9} parent=1 // pred_region
      %s77 = ssub.s32 32, 32
      %78 = vsyncadd [#allocation12], %s77
      %s80 = sshll.u32 [#allocation11], 4
      %s81 = int_to_ptr.vmem [resolvable:$true] %s80
      %83 = dma.hbm_to_vmem [thread:$0]  %s5, 32, %s81, [#allocation12]
    $region25: #{vae_forward.9} parent=1 // pred_fallthru
      _
    // Predicated region
    $region26: #{vae_forward.9} parent=1 // pred_check
      _
    $region27: #{vae_forward.9} parent=1 // pred_check_branch
      %85 = sbr.rel (0) target = $region29
    $region28: #{vae_forward.9} parent=1 // pred_region
      %86 = dma.done [#allocation3], 32
    $region29: #{vae_forward.9} parent=1 // pred_fallthru
      _
    // Predicated region
    $region30: #{vae_forward.9} parent=1 // pred_check
      _
    $region31: #{vae_forward.9} parent=1 // pred_check_branch
      %88 = sbr.rel (0) target = $region33
    $region32: #{vae_forward.9} parent=1 // pred_region
      %89 = dma.done [#allocation6], 256
    $region33: #{vae_forward.9} parent=1 // pred_fallthru
      _
    // Predicated region
    $region34: #{vae_forward.9} parent=1 // pred_check
      _
    $region35: #{vae_forward.9} parent=1 // pred_check_branch
      %91 = sbr.rel (0) target = $region37
    $region36: #{vae_forward.9} parent=1 // pred_region
      %92 = dma.done [#allocation6], 256
    $region37: #{vae_forward.9} parent=1 // pred_fallthru
      _
    // Predicated region
    $region38: #{vae_forward.9} parent=1 // pred_check
      _
    $region39: #{vae_forward.9} parent=1 // pred_check_branch
      %94 = sbr.rel (0) target = $region41
    $region40: #{vae_forward.9} parent=1 // pred_region
      %95 = dma.done [#allocation9], 16
    $region41: #{vae_forward.9} parent=1 // pred_fallthru
      _
    // Predicated region
    $region42: #{vae_forward.9} parent=1 // pred_check
      _
    $region43: #{vae_forward.9} parent=1 // pred_check_branch
      %97 = sbr.rel (0) target = $region45
    $region44: #{vae_forward.9} parent=1 // pred_region
      %98 = dma.done [#allocation9], 16
    $region45: #{vae_forward.9} parent=1 // pred_fallthru
      _
    // Predicated region
    $region46: #{vae_forward.9} parent=1 // pred_check
      _
    $region47: #{vae_forward.9} parent=1 // pred_check_branch
      %100 = sbr.rel (0) target = $region49
    $region48: #{vae_forward.9} parent=1 // pred_region
      %101 = dma.done [#allocation12], 32
    $region49: #{vae_forward.9} parent=1 // pred_fallthru
      _
    %v102 = vld [vmem:[#allocation2] sm:$0x3]
    %v103 = vld [vmem:[#allocation5] sm:$0xff]
    %v104 = vld [vmem:[#allocation5 + $0x8] sm:$0xff]
    %v105 = vld [vmem:[#allocation8] sm:$0x1]
    %v107 = vlaneseq
    %v108 = vshrl.u32 %v107, 7
    %v109 = vsub.s32 0, %v108
    %v110 = vrot.slane %v105, %v109
    %vm112 = vcmask 523264
    %v114 = vsel %vm112, %v102, 0
    %v117 = vsel %vm112, %v103, 0
    %v120 = vsel %vm112, %v104, 0
    %122 = vmatprep.subr.mxu0 0.0
    %123 = vmatpush1.xpose.msra.mxu0 %v117
    %124 = vmatprep.subr.mxu0 0.0
    %125 = vmatpush1.xpose.msra.mxu0 %v120
    %126 = vmatprep.subr.mxu0 0.0
    %127 = vmatpush1.xpose.msra.mxu0 0.0
    %128 = vmatprep.subr.mxu0 0.0
    %129 = vmatpush1.xpose.msra.mxu0 0.0
    %130 = vmatprep.subr.mxu0 0.0
    %131 = vmatpush1.xpose.msra.mxu0 0.0
    %132 = vmatprep.subr.mxu0 0.0
    %133 = vmatpush1.xpose.msra.mxu0 0.0
    %134 = vmatprep.subr.mxu0 0.0
    %135 = vmatpush1.xpose.msra.mxu0 0.0
    %136 = vmatprep.subr.mxu0 0.0
    %137 = vmatpush1.xpose.msra.mxu0 0.0
    %138 = vmatprep.subr.mxu0 0.0
    %139 = vmatpush1.xpose.msra.mxu0 0.0
    %140 = vmatprep.subr.mxu0 0.0
    %141 = vmatpush1.xpose.msra.mxu0 0.0
    %142 = vmatprep.subr.mxu0 0.0
    %143 = vmatpush1.xpose.msra.mxu0 0.0
    %144 = vmatprep.subr.mxu0 0.0
    %145 = vmatpush1.xpose.msra.mxu0 0.0
    %146 = vmatprep.subr.mxu0 0.0
    %147 = vmatpush1.xpose.msra.mxu0 0.0
    %148 = vmatprep.subr.mxu0 0.0
    %149 = vmatpush1.xpose.msra.mxu0 0.0
    %150 = vmatprep.subr.mxu0 0.0
    %151 = vmatpush1.xpose.msra.mxu0 0.0
    %152 = vmatprep.subr.mxu0 0.0
    %153 = vmatpush1.xpose.msra.mxu0 0.0
    %154 = vmatprep.subr.mxu0 0.0
    %155 = vmatpush1.xpose.msra.mxu0 0.0
    %156 = vmatprep.subr.mxu0 0.0
    %157 = vmatpush1.xpose.msra.mxu0 0.0
    %158 = vmatprep.subr.mxu0 0.0
    %159 = vmatpush1.xpose.msra.mxu0 0.0
    %160 = vmatprep.subr.mxu0 0.0
    %161 = vmatpush1.xpose.msra.mxu0 0.0
    %162 = vmatprep.subr.mxu0 0.0
    %163 = vmatpush1.xpose.msra.mxu0 0.0
    %164 = vmatprep.subr.mxu0 0.0
    %165 = vmatpush1.xpose.msra.mxu0 0.0
    %166 = vmatprep.subr.mxu0 0.0
    %167 = vmatpush1.xpose.msra.mxu0 0.0
    %168 = vmatprep.subr.mxu0 0.0
    %169 = vmatpush1.xpose.msra.mxu0 0.0
    %170 = vmatprep.subr.mxu0 0.0
    %171 = vmatpush1.xpose.msra.mxu0 0.0
    %172 = vmatprep.subr.mxu0 0.0
    %173 = vmatpush1.xpose.msra.mxu0 0.0
    %174 = vmatprep.subr.mxu0 0.0
    %175 = vmatpush1.xpose.msra.mxu0 0.0
    %176 = vmatprep.subr.mxu0 0.0
    %177 = vmatpush1.xpose.msra.mxu0 0.0
    %178 = vmatprep.subr.mxu0 0.0
    %179 = vmatpush1.xpose.msra.mxu0 0.0
    %180 = vmatprep.subr.mxu0 0.0
    %181 = vmatpush1.xpose.msra.mxu0 0.0
    %182 = vmatprep.subr.mxu0 0.0
    %183 = vmatpush1.xpose.msra.mxu0 0.0
    %184 = vmatprep.subr.mxu0 0.0
    %185 = vmatpush1.xpose.msra.mxu0 0.0
    %186 = vmatprep.mubr.f32.mxu0 0.0
    %187 = vmatmul.mubr.f32.gmra.mrb[0].mxu0 %v114
    %v188 = vpop.f32.mrb[0].mxu0
    %v189 = vadd.f32 %v110, %v188
    %v190 = vpop.f32.mrb[0].mxu0
    %191 = vdwg.mxu0
    %v192 = vld [vmem:[#allocation7] sm:$0xff]
    %v193 = vld [vmem:[#allocation7 + $0x8] sm:$0xff]
    %v194 = vld [vmem:[#allocation10] sm:$0x1]
    %v196 = vlaneseq
    %v197 = vshrl.u32 %v196, 7
    %v198 = vsub.s32 0, %v197
    %v199 = vrot.slane %v194, %v198
    %v202 = vsel %vm112, %v192, 0
    %v205 = vsel %vm112, %v193, 0
    %207 = vmatprep.subr.mxu0 0.0
    %208 = vmatpush1.xpose.msra.mxu0 %v202
    %209 = vmatprep.subr.mxu0 0.0
    %210 = vmatpush1.xpose.msra.mxu0 %v205
    %211 = vmatprep.subr.mxu0 0.0
    %212 = vmatpush1.xpose.msra.mxu0 0.0
    %213 = vmatprep.subr.mxu0 0.0
    %214 = vmatpush1.xpose.msra.mxu0 0.0
    %215 = vmatprep.subr.mxu0 0.0
    %216 = vmatpush1.xpose.msra.mxu0 0.0
    %217 = vmatprep.subr.mxu0 0.0
    %218 = vmatpush1.xpose.msra.mxu0 0.0
    %219 = vmatprep.subr.mxu0 0.0
    %220 = vmatpush1.xpose.msra.mxu0 0.0
    %221 = vmatprep.subr.mxu0 0.0
    %222 = vmatpush1.xpose.msra.mxu0 0.0
    %223 = vmatprep.subr.mxu0 0.0
    %224 = vmatpush1.xpose.msra.mxu0 0.0
    %225 = vmatprep.subr.mxu0 0.0
    %226 = vmatpush1.xpose.msra.mxu0 0.0
    %227 = vmatprep.subr.mxu0 0.0
    %228 = vmatpush1.xpose.msra.mxu0 0.0
    %229 = vmatprep.subr.mxu0 0.0
    %230 = vmatpush1.xpose.msra.mxu0 0.0
    %231 = vmatprep.subr.mxu0 0.0
    %232 = vmatpush1.xpose.msra.mxu0 0.0
    %233 = vmatprep.subr.mxu0 0.0
    %234 = vmatpush1.xpose.msra.mxu0 0.0
    %235 = vmatprep.subr.mxu0 0.0
    %236 = vmatpush1.xpose.msra.mxu0 0.0
    %237 = vmatprep.subr.mxu0 0.0
    %238 = vmatpush1.xpose.msra.mxu0 0.0
    %239 = vmatprep.subr.mxu0 0.0
    %240 = vmatpush1.xpose.msra.mxu0 0.0
    %241 = vmatprep.subr.mxu0 0.0
    %242 = vmatpush1.xpose.msra.mxu0 0.0
    %243 = vmatprep.subr.mxu0 0.0
    %244 = vmatpush1.xpose.msra.mxu0 0.0
    %245 = vmatprep.subr.mxu0 0.0
    %246 = vmatpush1.xpose.msra.mxu0 0.0
    %247 = vmatprep.subr.mxu0 0.0
    %248 = vmatpush1.xpose.msra.mxu0 0.0
    %249 = vmatprep.subr.mxu0 0.0
    %250 = vmatpush1.xpose.msra.mxu0 0.0
    %251 = vmatprep.subr.mxu0 0.0
    %252 = vmatpush1.xpose.msra.mxu0 0.0
    %253 = vmatprep.subr.mxu0 0.0
    %254 = vmatpush1.xpose.msra.mxu0 0.0
    %255 = vmatprep.subr.mxu0 0.0
    %256 = vmatpush1.xpose.msra.mxu0 0.0
    %257 = vmatprep.subr.mxu0 0.0
    %258 = vmatpush1.xpose.msra.mxu0 0.0
    %259 = vmatprep.subr.mxu0 0.0
    %260 = vmatpush1.xpose.msra.mxu0 0.0
    %261 = vmatprep.subr.mxu0 0.0
    %262 = vmatpush1.xpose.msra.mxu0 0.0
    %263 = vmatprep.subr.mxu0 0.0
    %264 = vmatpush1.xpose.msra.mxu0 0.0
    %265 = vmatprep.subr.mxu0 0.0
    %266 = vmatpush1.xpose.msra.mxu0 0.0
    %267 = vmatprep.subr.mxu0 0.0
    %268 = vmatpush1.xpose.msra.mxu0 0.0
    %269 = vmatprep.subr.mxu0 0.0
    %270 = vmatpush1.xpose.msra.mxu0 0.0
    %271 = vmatprep.mubr.f32.mxu0 0.0
    %272 = vmatmul.mubr.f32.gmra.mrb[0].mxu0 %v114
    %v273 = vpop.f32.mrb[0].mxu0
    %v274 = vadd.f32 %v199, %v273
    %v275 = vpop.f32.mrb[0].mxu0
    %276 = vdwg.mxu0
    %vm277 = vcmask 123904
    %278 = vst.msk [vmem:[#allocation13] sm:$0x3] %vm277, %v189
    %279 = vst.msk [vmem:[#allocation14] sm:$0x3] %vm277, %v274
    %v280 = vmul.f32 %v274, 0.5
    %v281 = vmul.f32 %v280, 1.442695
    %v282 = vpow.pop %v281
    %v283 = vld [vmem:[#allocation11] sm:$0x3]
    %v284 = vmul.f32 %v282, %v283
    %v285 = vadd.f32 %v189, %v284
    %286 = vst.msk [vmem:[#allocation16] sm:$0x3] %vm277, %v285
    // Predicated region
    $region50: #{vae_forward.9} parent=1 // pred_check
      _
    $region51: #{vae_forward.9} parent=1 // pred_check_branch
      %288 = sbr.rel (0) target = $region53
    $region52: #{vae_forward.9} parent=1 // pred_region
      %s290 = ssub.s32 32, 32
      %291 = vsyncadd [#allocation4], %s290
      %s293 = sshll.u32 [#allocation13], 4
      %s294 = int_to_ptr.vmem [resolvable:$true] %s293
      %296 = dma.vmem_to_hbm [thread:$0]  %s294, 32, %s6, [#allocation4]
    $region53: #{vae_forward.9} parent=1 // pred_fallthru
      _
    // Predicated region
    $region54: #{vae_forward.9} parent=1 // pred_check
      _
    $region55: #{vae_forward.9} parent=1 // pred_check_branch
      %298 = sbr.rel (0) target = $region57
    $region56: #{vae_forward.9} parent=1 // pred_region
      %s300 = ssub.s32 32, 32
      %301 = vsyncadd [#allocation15], %s300
      %s303 = sshll.u32 [#allocation14], 4
      %s304 = int_to_ptr.vmem [resolvable:$true] %s303
      %306 = dma.vmem_to_hbm [thread:$0]  %s304, 32, %s7, [#allocation15]
    $region57: #{vae_forward.9} parent=1 // pred_fallthru
      _
    // Predicated region
    $region58: #{vae_forward.9} parent=1 // pred_check
      _
    $region59: #{vae_forward.9} parent=1 // pred_check_branch
      %308 = sbr.rel (0) target = $region61
    $region60: #{vae_forward.9} parent=1 // pred_region
      %s310 = ssub.s32 32, 32
      %311 = vsyncadd [#allocation15], %s310
      %s313 = sshll.u32 [#allocation16], 4
      %s314 = int_to_ptr.vmem [resolvable:$true] %s313
      %316 = dma.vmem_to_hbm [thread:$0]  %s314, 32, %s8, [#allocation15]
    $region61: #{vae_forward.9} parent=1 // pred_fallthru
      _
    // Predicated region
    $region62: #{vae_forward.9} parent=1 // pred_check
      _
    $region63: #{vae_forward.9} parent=1 // pred_check_branch
      %318 = sbr.rel (0) target = $region65
    $region64: #{vae_forward.9} parent=1 // pred_region
      %319 = dma.done [#allocation4], 32
    $region65: #{vae_forward.9} parent=1 // pred_fallthru
      _
    // Predicated region
    $region66: #{vae_forward.9} parent=1 // pred_check
      _
    $region67: #{vae_forward.9} parent=1 // pred_check_branch
      %321 = sbr.rel (0) target = $region69
    $region68: #{vae_forward.9} parent=1 // pred_region
      %322 = dma.done [#allocation15], 32
    $region69: #{vae_forward.9} parent=1 // pred_fallthru
      _
    // Predicated region
    $region70: #{vae_forward.9} parent=1 // pred_check
      _
    $region71: #{vae_forward.9} parent=1 // pred_check_branch
      %324 = sbr.rel (0) target = $region73
    $region72: #{vae_forward.9} parent=1 // pred_region
      %325 = dma.done [#allocation15], 32
    $region73: #{vae_forward.9} parent=1 // pred_fallthru
      _
    %326 = vsyncpa [#allocation3], 1
    %327 = vsyncpa [#allocation6], 1
    %328 = vsyncpa [#allocation9], 1
    %329 = vsyncpa [#allocation12], 1
    %330 = vsyncpa [#allocation4], 1
    %331 = vsyncpa [#allocation15], 1

// kernel: vae_forward.7
$region0: #{vae_forward.7}
  #allocation0 [shape = 'u32[]', space=smem, size = 0x4, offset = 0x4, fixed_abs, tag = 'smem constant byte address 0x4 - core index']
  #allocation1 [shape = 'u32[144,128]{1,0:T(1,128)}', space=vmem, size = 0x12000, scoped, tag = 'internal scratch']
  %s0 = inlined_call_operand.vmem [shape: f32[2,4,27,256], index: 0, kind: input, shape index: {}]
  %s1 = inlined_call_operand.vmem [shape: f32[32,27], index: 1, kind: input, shape index: {}]
  %s2 = inlined_call_operand.vmem [shape: f32[32,1], index: 2, kind: input, shape index: {}]
  %s3 = inlined_call_operand.vmem [shape: f32[2,32,256], index: 3, kind: output, shape index: {}]
  %s4 = sld [smem:[#allocation0]]
  $region45: #{vae_forward.7} parent=0
    _
  %s6 = ssub.s32 1, %s4
  %s7 = scalar_select 0, %s6, %s4
  loop: start=0, step=1, limit=4
  $region2: #{vae_forward.7} parent=0 // loop_pre_header
    _
  $region3: #{vae_forward.7} parent=0 // loop_header
    %s9 = sphi 0, %s13
    %p10 = scmp.ge.s32.totalorder %s9, 4
    %s16 = sphi 0, %s28
    %s17 = sphi 0, %s24
    %s18 = sphi 0, %s16
    %s19 = sphi 0, %s17
    %s20 = sphi 0, %s18
    %s21 = sphi 0, %s19
    %s33 = sphi 0, %s35
    %s36 = sphi 0, %s33
    %s37 = sphi 0, %s36
    %s53 = sphi 0, %s37
    %s57 = sphi 0, %s57
    %s59 = sphi 0, %s57
    %s60 = sphi 0, %s59
    %s74 = sphi 0, %s60
    %s78 = sphi 0, %s78
    %s80 = sphi 0, %s78
    %s81 = sphi 0, %s80
    %s95 = sphi 0, %s81
    %s103 = sphi 0, %s105
    %s106 = sphi 0, %s103
    %s107 = sphi 0, %s106
    %s123 = sphi 0, %s107
  $region4: #{vae_forward.7} parent=0 // loop_header_branch
    %12 = sbr.rel (%p10) target = $region8
  $region5: #{vae_forward.7} parent=0 // loop_body
    %s14 = ssub.s32 %s9, 1
    %s15 = ssub.s32 %s9, 2
    %s22 = sadd.s32 1, %s17
    %p23 = scmp.ge.s32.totalorder %s22, 1
    %s24 = scalar_select %p23, 0, %s22
    %s25 = sadd.s32 1, %s16
    %s26 = scalar_select %p23, %s25, %s16
    %p27 = scmp.ge.s32.totalorder %s26, 2
    %s28 = scalar_select %p27, 0, %s26
    %s29 = ssub.s32 %s16, %s28
    %s30 = ssub.s32 %s17, %s24
    %s31 = sor.u32 %s29, %s30
    %p32 = scmp.eq.s32.totalorder %s31, 0
    %s34 = sadd.s32 %s33, 1
    %s35 = scalar_select %p32, %s33, %s34
    %p38 = pneg %p32
    %p39 = scmp.eq.s32.totalorder %s9, 1
    %p40 = por %p38, %p39
    %p41 = scmp.ne.s32.totalorder %s33, %s36
    %p42 = scmp.eq.s32.totalorder %s9, 0
    %p43 = por %p41, %p42
    %p44 = scmp.ne.s32.totalorder %s33, %s36
    %p45 = scmp.eq.s32.totalorder %s14, 1
    %p46 = por %p44, %p45
    %p47 = scmp.ne.s32.totalorder %s36, %s37
    %p48 = scmp.eq.s32.totalorder %s14, 0
    %p49 = por %p47, %p48
    %p50 = scmp.ne.s32.totalorder %s36, %s37
    %p51 = scmp.eq.s32.totalorder %s15, 1
    %p52 = por %p50, %p51
    %p54 = scmp.ne.s32.totalorder %s37, %s53
    %p55 = scmp.eq.s32.totalorder %s15, 0
    %p56 = por %p54, %p55
    %s58 = sadd.s32 %s57, 1
    %p61 = scmp.eq.s32.totalorder %s9, 1
    %p62 = scmp.ne.s32.totalorder %s57, %s59
    %p63 = scmp.eq.s32.totalorder %s9, 0
    %p64 = por %p62, %p63
    %p65 = scmp.ne.s32.totalorder %s57, %s59
    %p66 = scmp.eq.s32.totalorder %s14, 1
    %p67 = por %p65, %p66
    %p68 = scmp.ne.s32.totalorder %s59, %s60
    %p69 = scmp.eq.s32.totalorder %s14, 0
    %p70 = por %p68, %p69
    %p71 = scmp.ne.s32.totalorder %s59, %s60
    %p72 = scmp.eq.s32.totalorder %s15, 1
    %p73 = por %p71, %p72
    %p75 = scmp.ne.s32.totalorder %s60, %s74
    %p76 = scmp.eq.s32.totalorder %s15, 0
    %p77 = por %p75, %p76
    %s79 = sadd.s32 %s78, 1
    %p82 = scmp.eq.s32.totalorder %s9, 1
    %p83 = scmp.ne.s32.totalorder %s78, %s80
    %p84 = scmp.eq.s32.totalorder %s9, 0
    %p85 = por %p83, %p84
    %p86 = scmp.ne.s32.totalorder %s78, %s80
    %p87 = scmp.eq.s32.totalorder %s14, 1
    %p88 = por %p86, %p87
    %p89 = scmp.ne.s32.totalorder %s80, %s81
    %p90 = scmp.eq.s32.totalorder %s14, 0
    %p91 = por %p89, %p90
    %p92 = scmp.ne.s32.totalorder %s80, %s81
    %p93 = scmp.eq.s32.totalorder %s15, 1
    %p94 = por %p92, %p93
    %p96 = scmp.ne.s32.totalorder %s81, %s95
    %p97 = scmp.eq.s32.totalorder %s15, 0
    %p98 = por %p96, %p97
    %s99 = ssub.s32 %s16, %s28
    %s100 = ssub.s32 %s17, %s24
    %s101 = sor.u32 %s99, %s100
    %p102 = scmp.eq.s32.totalorder %s101, 0
    %s104 = sadd.s32 %s103, 1
    %s105 = scalar_select %p102, %s103, %s104
    %p108 = pneg %p102
    %p109 = scmp.eq.s32.totalorder %s9, 1
    %p110 = por %p108, %p109
    %p111 = scmp.ne.s32.totalorder %s103, %s106
    %p112 = scmp.eq.s32.totalorder %s9, 0
    %p113 = por %p111, %p112
    %p114 = scmp.ne.s32.totalorder %s103, %s106
    %p115 = scmp.eq.s32.totalorder %s14, 1
    %p116 = por %p114, %p115
    %p117 = scmp.ne.s32.totalorder %s106, %s107
    %p118 = scmp.eq.s32.totalorder %s14, 0
    %p119 = por %p117, %p118
    %p120 = scmp.ne.s32.totalorder %s106, %s107
    %p121 = scmp.eq.s32.totalorder %s15, 1
    %p122 = por %p120, %p121
    %p124 = scmp.ne.s32.totalorder %s107, %s123
    %p125 = scmp.eq.s32.totalorder %s15, 0
    %p126 = por %p124, %p125
    %p127 = scmp.le.s32.totalorder 1, %s9
    %p128 = scmp.lt.s32.totalorder %s9, 3
    %p129 = pnand %p127, %p128
    %p130 = pneg %p129
    // Predicated region
    $region9: #{vae_forward.7} parent=5 // pred_check
      _
    $region10: #{vae_forward.7} parent=5 // pred_check_branch
      %132 = sbr.rel (%p129) target = $region12
    $region11: #{vae_forward.7} parent=5 // pred_region
      %s133 = ssub.s32 %s9, 1
      // Predicated region
      $region13: #{vae_forward.7} parent=11 // pred_check
        %p134 = pneg %p70
      $region14: #{vae_forward.7} parent=11 // pred_check_branch
        %136 = sbr.rel (%p134) target = $region16
      $region15: #{vae_forward.7} parent=11 // pred_region
        _
      $region16: #{vae_forward.7} parent=11 // pred_fallthru
        _
      // Predicated region
      $region17: #{vae_forward.7} parent=11 // pred_check
        %p137 = pneg %p91
      $region18: #{vae_forward.7} parent=11 // pred_check_branch
        %139 = sbr.rel (%p137) target = $region20
      $region19: #{vae_forward.7} parent=11 // pred_region
        _
      $region20: #{vae_forward.7} parent=11 // pred_fallthru
        _
    $region12: #{vae_forward.7} parent=5 // pred_fallthru
      _
    %p140 = scmp.lt.s32.totalorder %s9, 2
    // Predicated region
    $region21: #{vae_forward.7} parent=5 // pred_check
      %p141 = pneg %p140
    $region22: #{vae_forward.7} parent=5 // pred_check_branch
      %143 = sbr.rel (%p141) target = $region24
    $region23: #{vae_forward.7} parent=5 // pred_region
      // Predicated region
      $region25: #{vae_forward.7} parent=23 // pred_check
        %p144 = pneg %p43
      $region26: #{vae_forward.7} parent=23 // pred_check_branch
        %146 = sbr.rel (%p144) target = $region28
      $region27: #{vae_forward.7} parent=23 // pred_region
        %s147 = smul.u32 2, %s17
        %p148 = scmp.lt.s32.totalorder %s16, 1
        %s149 = scalar_select %p148, %s16, 1
        %p150 = scmp.lt.s32.totalorder %s147, 1
        %s151 = scalar_select %p150, %s147, 1
        %s152 = smul.addr %s149, 32
        %s153 = sadd.s32 %s151, %s152
        %s154 = smul.addr %s153, 8
        %s155 = scalar_lea.vmem %s0, %s154
        %s156 = smul.u32 2, %s17
      $region28: #{vae_forward.7} parent=23 // pred_fallthru
        _
    $region24: #{vae_forward.7} parent=5 // pred_fallthru
      _
    %p157 = scmp.le.s32.totalorder 1, %s9
    %p158 = scmp.lt.s32.totalorder %s9, 3
    %p159 = pnand %p157, %p158
    %p160 = pneg %p159
    // Predicated region
    $region29: #{vae_forward.7} parent=5 // pred_check
      _
    $region30: #{vae_forward.7} parent=5 // pred_check_branch
      %162 = sbr.rel (%p159) target = $region32
    $region31: #{vae_forward.7} parent=5 // pred_region
      %s163 = ssub.s32 %s9, 1
      %s164 = smul.u32 2, %s19
      %p165 = scmp.lt.s32.totalorder %s18, 1
      %s166 = scalar_select %p165, %s18, 1
      %p167 = scmp.lt.s32.totalorder %s164, 1
      %s168 = scalar_select %p167, %s164, 1
      %s169 = smul.addr %s166, 32
      %s170 = sadd.s32 %s168, %s169
      %s171 = smul.addr %s170, 8
      %s172 = scalar_lea.vmem %s0, %s171
      %p173 = pneg %p49
      %p174 = pneg %p46
      %p175 = pneg %p70
      %p176 = pneg %p67
      %p177 = pneg %p91
      %p178 = pneg %p88
      %p179 = pneg %p119
      %p180 = pneg %p116
      %s181 = smul.u32 2, %s19
      %p182 = scmp.lt.s32.totalorder %s18, 1
      %s183 = scalar_select %p182, %s18, 1
      %p184 = scmp.lt.s32.totalorder %s181, 1
      %s185 = scalar_select %p184, %s181, 1
      %s186 = smul.addr %s183, 8
      %s187 = sadd.s32 %s185, %s186
      %s188 = smul.addr %s187, 8
      %s189 = scalar_lea.vmem %s3, %s188
      %s190 = smul.u32 2, %s19
      %p191 = scmp.lt.s32.totalorder %s18, 1
      %s192 = scalar_select %p191, %s18, 1
      %p193 = scmp.lt.s32.totalorder %s190, 1
      %s194 = scalar_select %p193, %s190, 1
      %s195 = smul.addr %s192, 32
      %s196 = sadd.s32 %s194, %s195
      %s197 = smul.addr %s196, 8
      %s198 = scalar_lea.vmem %s0, %s197
      %s199 = smul.u32 2, %s19
      %s200 = smul.u32 2, %s19
      %p201 = scmp.lt.s32.totalorder %s18, 1
      %s202 = scalar_select %p201, %s18, 1
      %p203 = scmp.lt.s32.totalorder %s200, 1
      %s204 = scalar_select %p203, %s200, 1
      %s205 = smul.addr %s202, 8
      %s206 = sadd.s32 %s204, %s205
      %s207 = smul.addr %s206, 8
      %s208 = scalar_lea.vmem %s3, %s207
      %s209 = smul.u32 2, %s19
      %v210 = vld [vmem:[%s1] sm:$0xff]
      %v211 = vld [vmem:[%s1 + $0x8] sm:$0xff]
      %v212 = vld [vmem:[%s1 + $0x10] sm:$0xff]
      %v213 = vld [vmem:[%s1 + $0x18] sm:$0xff]
      %v214 = vld [vmem:[%s2] sm:$0xff]
      %v215 = vld [vmem:[%s2 + $0x8] sm:$0xff]
      %v216 = vld [vmem:[%s2 + $0x10] sm:$0xff]
      %v217 = vld [vmem:[%s2 + $0x18] sm:$0xff]
      %v218 = vld [vmem:[%s198] sm:$0xff]
      %v219 = vld [vmem:[%s198 + $0x8] sm:$0xff]
      %v220 = vld [vmem:[%s198 + $0x10] sm:$0xff]
      %v221 = vld [vmem:[%s198 + $0x18] sm:$0xff]
      %v222 = vld [vmem:[%s198 + $0x20] sm:$0xff]
      %v223 = vld [vmem:[%s198 + $0x28] sm:$0xff]
      %v224 = vld [vmem:[%s198 + $0x30] sm:$0x7]
      %v225 = vld [vmem:[%s198 + $0x38] sm:$0x7]
      %227 = vset.pattern.permute.xlu0 0
      %228 = vperm.xlu0 %227, %v214
      %v229 = vpop.permute.xlu0 %228
      %232 = vset.pattern.permute.xlu0 0
      %233 = vperm.xlu0 %232, %v215
      %v234 = vpop.permute.xlu0 %233
      %237 = vset.pattern.permute.xlu0 0
      %238 = vperm.xlu0 %237, %v216
      %v239 = vpop.permute.xlu0 %238
      %242 = vset.pattern.permute.xlu0 0
      %243 = vperm.xlu0 %242, %v217
      %v244 = vpop.permute.xlu0 %243
      %vm246 = vcmask 220160
      %v248 = vsel %vm246, %v210, 0
      %v251 = vsel %vm246, %v211, 0
      %v254 = vsel %vm246, %v212, 0
      %v257 = vsel %vm246, %v213, 0
      %vm259 = vcmask 1042432
      %v261 = vsel %vm259, %v224, 0
      %v264 = vsel %vm259, %v225, 0
      %266 = vmatprep.subr.mxu0 %v219
      %267 = vmatpush1.msra.mxu0 %v218
      %268 = vmatprep.subr.mxu0 %v221
      %269 = vmatpush1.msra.mxu0 %v220
      %270 = vmatprep.subr.mxu0 %v223
      %271 = vmatpush1.msra.mxu0 %v222
      %272 = vmatprep.subr.mxu0 %v264
      %273 = vmatpush1.msra.mxu0 %v261
      %274 = vmatprep.subr.mxu0 0.0
      %275 = vmatpush1.msra.mxu0 0.0
      %276 = vmatprep.subr.mxu0 0.0
      %277 = vmatpush1.msra.mxu0 0.0
      %278 = vmatprep.subr.mxu0 0.0
      %279 = vmatpush1.msra.mxu0 0.0
      %280 = vmatprep.subr.mxu0 0.0
      %281 = vmatpush1.msra.mxu0 0.0
      %282 = vmatprep.subr.mxu0 0.0
      %283 = vmatpush1.msra.mxu0 0.0
      %284 = vmatprep.subr.mxu0 0.0
      %285 = vmatpush1.msra.mxu0 0.0
      %286 = vmatprep.subr.mxu0 0.0
      %287 = vmatpush1.msra.mxu0 0.0
      %288 = vmatprep.subr.mxu0 0.0
      %289 = vmatpush1.msra.mxu0 0.0
      %290 = vmatprep.subr.mxu0 0.0
      %291 = vmatpush1.msra.mxu0 0.0
      %292 = vmatprep.subr.mxu0 0.0
      %293 = vmatpush1.msra.mxu0 0.0
      %294 = vmatprep.subr.mxu0 0.0
      %295 = vmatpush1.msra.mxu0 0.0
      %296 = vmatprep.subr.mxu0 0.0
      %297 = vmatpush1.msra.mxu0 0.0
      %298 = vmatprep.subr.mxu0 0.0
      %299 = vmatpush1.msra.mxu0 0.0
      %300 = vmatprep.subr.mxu0 0.0
      %301 = vmatpush1.msra.mxu0 0.0
      %302 = vmatprep.subr.mxu0 0.0
      %303 = vmatpush1.msra.mxu0 0.0
      %304 = vmatprep.subr.mxu0 0.0
      %305 = vmatpush1.msra.mxu0 0.0
      %306 = vmatprep.subr.mxu0 0.0
      %307 = vmatpush1.msra.mxu0 0.0
      %308 = vmatprep.subr.mxu0 0.0
      %309 = vmatpush1.msra.mxu0 0.0
      %310 = vmatprep.subr.mxu0 0.0
      %311 = vmatpush1.msra.mxu0 0.0
      %312 = vmatprep.subr.mxu0 0.0
      %313 = vmatpush1.msra.mxu0 0.0
      %314 = vmatprep.subr.mxu0 0.0
      %315 = vmatpush1.msra.mxu0 0.0
      %316 = vmatprep.subr.mxu0 0.0
      %317 = vmatpush1.msra.mxu0 0.0
      %318 = vmatprep.subr.mxu0 0.0
      %319 = vmatpush1.msra.mxu0 0.0
      %320 = vmatprep.subr.mxu0 0.0
      %321 = vmatpush1.msra.mxu0 0.0
      %322 = vmatprep.subr.mxu0 0.0
      %323 = vmatpush1.msra.mxu0 0.0
      %324 = vmatprep.subr.mxu0 0.0
      %325 = vmatpush1.msra.mxu0 0.0
      %326 = vmatprep.subr.mxu0 0.0
      %327 = vmatpush1.msra.mxu0 0.0
      %328 = vmatprep.subr.mxu0 0.0
      %329 = vmatpush1.msra.mxu0 0.0
      %330 = vmatprep.mubr.f32.mxu0 0.0
      %331 = vmatmul.mubr.f32.gmra.mrb[0].mxu0 %v248
      %v332 = vpop.f32.mrb[0].mxu0
      %v333 = vadd.f32 %v229, %v332
      %v334 = vpop.f32.mrb[0].mxu0
      %v335 = vadd.f32 %v229, %v334
      %336 = vmatprep.mubr.f32.mxu0 0.0
      %337 = vmatmul.mubr.f32.gmra.mrb[0].mxu0 %v251
      %v338 = vpop.f32.mrb[0].mxu0
      %v339 = vadd.f32 %v234, %v338
      %v340 = vpop.f32.mrb[0].mxu0
      %v341 = vadd.f32 %v234, %v340
      %342 = vmatprep.mubr.f32.mxu0 0.0
      %343 = vmatmul.mubr.f32.gmra.mrb[0].mxu0 %v254
      %v344 = vpop.f32.mrb[0].mxu0
      %v345 = vadd.f32 %v239, %v344
      %v346 = vpop.f32.mrb[0].mxu0
      %v347 = vadd.f32 %v239, %v346
      %348 = vmatprep.mubr.f32.mxu0 0.0
      %349 = vmatmul.mubr.f32.gmra.mrb[0].mxu0 %v257
      %v350 = vpop.f32.mrb[0].mxu0
      %v351 = vadd.f32 %v244, %v350
      %v352 = vpop.f32.mrb[0].mxu0
      %v353 = vadd.f32 %v244, %v352
      %354 = vdwg.mxu0
      %v355 = vmax.f32 %v333, 0.0
      %v356 = vmax.f32 %v335, 0.0
      %v357 = vmax.f32 %v339, 0.0
      %v358 = vmax.f32 %v341, 0.0
      %v359 = vmax.f32 %v345, 0.0
      %v360 = vmax.f32 %v347, 0.0
      %v361 = vmax.f32 %v351, 0.0
      %v362 = vmax.f32 %v353, 0.0
      %s363 = scalar_lea.vmem %s198, 64
      %v364 = vld [vmem:[%s363] sm:$0xff]
      %v365 = vld [vmem:[%s363 + $0x8] sm:$0xff]
      %v366 = vld [vmem:[%s363 + $0x10] sm:$0xff]
      %v367 = vld [vmem:[%s363 + $0x18] sm:$0xff]
      %v368 = vld [vmem:[%s363 + $0x20] sm:$0xff]
      %v369 = vld [vmem:[%s363 + $0x28] sm:$0xff]
      %v370 = vld [vmem:[%s363 + $0x30] sm:$0x7]
      %v371 = vld [vmem:[%s363 + $0x38] sm:$0x7]
      %v373 = vsel %vm259, %v370, 0
      %v376 = vsel %vm259, %v371, 0
      %378 = vmatprep.subr.mxu0 %v365
      %379 = vmatpush1.msra.mxu0 %v364
      %380 = vmatprep.subr.mxu0 %v367
      %381 = vmatpush1.msra.mxu0 %v366
      %382 = vmatprep.subr.mxu0 %v369
      %383 = vmatpush1.msra.mxu0 %v368
      %384 = vmatprep.subr.mxu0 %v376
      %385 = vmatpush1.msra.mxu0 %v373
      %386 = vmatprep.subr.mxu0 0.0
      %387 = vmatpush1.msra.mxu0 0.0
      %388 = vmatprep.subr.mxu0 0.0
      %389 = vmatpush1.msra.mxu0 0.0
      %390 = vmatprep.subr.mxu0 0.0
      %391 = vmatpush1.msra.mxu0 0.0
      %392 = vmatprep.subr.mxu0 0.0
      %393 = vmatpush1.msra.mxu0 0.0
      %394 = vmatprep.subr.mxu0 0.0
      %395 = vmatpush1.msra.mxu0 0.0
      %396 = vmatprep.subr.mxu0 0.0
      %397 = vmatpush1.msra.mxu0 0.0
      %398 = vmatprep.subr.mxu0 0.0
      %399 = vmatpush1.msra.mxu0 0.0
      %400 = vmatprep.subr.mxu0 0.0
      %401 = vmatpush1.msra.mxu0 0.0
      %402 = vmatprep.subr.mxu0 0.0
      %403 = vmatpush1.msra.mxu0 0.0
      %404 = vmatprep.subr.mxu0 0.0
      %405 = vmatpush1.msra.mxu0 0.0
      %406 = vmatprep.subr.mxu0 0.0
      %407 = vmatpush1.msra.mxu0 0.0
      %408 = vmatprep.subr.mxu0 0.0
      %409 = vmatpush1.msra.mxu0 0.0
      %410 = vmatprep.subr.mxu0 0.0
      %411 = vmatpush1.msra.mxu0 0.0
      %412 = vmatprep.subr.mxu0 0.0
      %413 = vmatpush1.msra.mxu0 0.0
      %414 = vmatprep.subr.mxu0 0.0
      %415 = vmatpush1.msra.mxu0 0.0
      %416 = vmatprep.subr.mxu0 0.0
      %417 = vmatpush1.msra.mxu0 0.0
      %418 = vmatprep.subr.mxu0 0.0
      %419 = vmatpush1.msra.mxu0 0.0
      %420 = vmatprep.subr.mxu0 0.0
      %421 = vmatpush1.msra.mxu0 0.0
      %422 = vmatprep.subr.mxu0 0.0
      %423 = vmatpush1.msra.mxu0 0.0
      %424 = vmatprep.subr.mxu0 0.0
      %425 = vmatpush1.msra.mxu0 0.0
      %426 = vmatprep.subr.mxu0 0.0
      %427 = vmatpush1.msra.mxu0 0.0
      %428 = vmatprep.subr.mxu0 0.0
      %429 = vmatpush1.msra.mxu0 0.0
      %430 = vmatprep.subr.mxu0 0.0
      %431 = vmatpush1.msra.mxu0 0.0
      %432 = vmatprep.subr.mxu0 0.0
      %433 = vmatpush1.msra.mxu0 0.0
      %434 = vmatprep.subr.mxu0 0.0
      %435 = vmatpush1.msra.mxu0 0.0
      %436 = vmatprep.subr.mxu0 0.0
      %437 = vmatpush1.msra.mxu0 0.0
      %438 = vmatprep.subr.mxu0 0.0
      %439 = vmatpush1.msra.mxu0 0.0
      %440 = vmatprep.subr.mxu0 0.0
      %441 = vmatpush1.msra.mxu0 0.0
      %442 = vmatprep.mubr.f32.mxu0 0.0
      %443 = vmatmul.mubr.f32.gmra.mrb[0].mxu0 %v248
      %v444 = vpop.f32.mrb[0].mxu0
      %v445 = vadd.f32 %v229, %v444
      %v446 = vpop.f32.mrb[0].mxu0
      %v447 = vadd.f32 %v229, %v446
      %448 = vmatprep.mubr.f32.mxu0 0.0
      %449 = vmatmul.mubr.f32.gmra.mrb[0].mxu0 %v251
      %v450 = vpop.f32.mrb[0].mxu0
      %v451 = vadd.f32 %v234, %v450
      %v452 = vpop.f32.mrb[0].mxu0
      %v453 = vadd.f32 %v234, %v452
      %454 = vmatprep.mubr.f32.mxu0 0.0
      %455 = vmatmul.mubr.f32.gmra.mrb[0].mxu0 %v254
      %v456 = vpop.f32.mrb[0].mxu0
      %v457 = vadd.f32 %v239, %v456
      %v458 = vpop.f32.mrb[0].mxu0
      %v459 = vadd.f32 %v239, %v458
      %460 = vmatprep.mubr.f32.mxu0 0.0
      %461 = vmatmul.mubr.f32.gmra.mrb[0].mxu0 %v257
      %v462 = vpop.f32.mrb[0].mxu0
      %v463 = vadd.f32 %v244, %v462
      %v464 = vpop.f32.mrb[0].mxu0
      %v465 = vadd.f32 %v244, %v464
      %466 = vdwg.mxu0
      %v467 = vmax.f32 %v445, 0.0
      %v468 = vmax.f32 %v447, 0.0
      %v469 = vmax.f32 %v451, 0.0
      %v470 = vmax.f32 %v453, 0.0
      %v471 = vmax.f32 %v457, 0.0
      %v472 = vmax.f32 %v459, 0.0
      %v473 = vmax.f32 %v463, 0.0
      %v474 = vmax.f32 %v465, 0.0
      %v475 = vmax.f32 %v355, %v467
      %v476 = vmax.f32 %v356, %v468
      %v477 = vmax.f32 %v357, %v469
      %v478 = vmax.f32 %v358, %v470
      %v479 = vmax.f32 %v359, %v471
      %v480 = vmax.f32 %v360, %v472
      %v481 = vmax.f32 %v361, %v473
      %v482 = vmax.f32 %v362, %v474
      %s483 = scalar_lea.vmem %s198, 128
      %v484 = vld [vmem:[%s483] sm:$0xff]
      %v485 = vld [vmem:[%s483 + $0x8] sm:$0xff]
      %v486 = vld [vmem:[%s483 + $0x10] sm:$0xff]
      %v487 = vld [vmem:[%s483 + $0x18] sm:$0xff]
      %v488 = vld [vmem:[%s483 + $0x20] sm:$0xff]
      %v489 = vld [vmem:[%s483 + $0x28] sm:$0xff]
      %v490 = vld [vmem:[%s483 + $0x30] sm:$0x7]
      %v491 = vld [vmem:[%s483 + $0x38] sm:$0x7]
      %v493 = vsel %vm259, %v490, 0
      %v496 = vsel %vm259, %v491, 0
      %498 = vmatprep.subr.mxu0 %v485
      %499 = vmatpush1.msra.mxu0 %v484
      %500 = vmatprep.subr.mxu0 %v487
      %501 = vmatpush1.msra.mxu0 %v486
      %502 = vmatprep.subr.mxu0 %v489
      %503 = vmatpush1.msra.mxu0 %v488
      %504 = vmatprep.subr.mxu0 %v496
      %505 = vmatpush1.msra.mxu0 %v493
      %506 = vmatprep.subr.mxu0 0.0
      %507 = vmatpush1.msra.mxu0 0.0
      %508 = vmatprep.subr.mxu0 0.0
      %509 = vmatpush1.msra.mxu0 0.0
      %510 = vmatprep.subr.mxu0 0.0
      %511 = vmatpush1.msra.mxu0 0.0
      %512 = vmatprep.subr.mxu0 0.0
      %513 = vmatpush1.msra.mxu0 0.0
      %514 = vmatprep.subr.mxu0 0.0
      %515 = vmatpush1.msra.mxu0 0.0
      %516 = vmatprep.subr.mxu0 0.0
      %517 = vmatpush1.msra.mxu0 0.0
      %518 = vmatprep.subr.mxu0 0.0
      %519 = vmatpush1.msra.mxu0 0.0
      %520 = vmatprep.subr.mxu0 0.0
      %521 = vmatpush1.msra.mxu0 0.0
      %522 = vmatprep.subr.mxu0 0.0
      %523 = vmatpush1.msra.mxu0 0.0
      %524 = vmatprep.subr.mxu0 0.0
      %525 = vmatpush1.msra.mxu0 0.0
      %526 = vmatprep.subr.mxu0 0.0
      %527 = vmatpush1.msra.mxu0 0.0
      %528 = vmatprep.subr.mxu0 0.0
      %529 = vmatpush1.msra.mxu0 0.0
      %530 = vmatprep.subr.mxu0 0.0
      %531 = vmatpush1.msra.mxu0 0.0
      %532 = vmatprep.subr.mxu0 0.0
      %533 = vmatpush1.msra.mxu0 0.0
      %534 = vmatprep.subr.mxu0 0.0
      %535 = vmatpush1.msra.mxu0 0.0
      %536 = vmatprep.subr.mxu0 0.0
      %537 = vmatpush1.msra.mxu0 0.0
      %538 = vmatprep.subr.mxu0 0.0
      %539 = vmatpush1.msra.mxu0 0.0
      %540 = vmatprep.subr.mxu0 0.0
      %541 = vmatpush1.msra.mxu0 0.0
      %542 = vmatprep.subr.mxu0 0.0
      %543 = vmatpush1.msra.mxu0 0.0
      %544 = vmatprep.subr.mxu0 0.0
      %545 = vmatpush1.msra.mxu0 0.0
      %546 = vmatprep.subr.mxu0 0.0
      %547 = vmatpush1.msra.mxu0 0.0
      %548 = vmatprep.subr.mxu0 0.0
      %549 = vmatpush1.msra.mxu0 0.0
      %550 = vmatprep.subr.mxu0 0.0
      %551 = vmatpush1.msra.mxu0 0.0
      %552 = vmatprep.subr.mxu0 0.0
      %553 = vmatpush1.msra.mxu0 0.0
      %554 = vmatprep.subr.mxu0 0.0
      %555 = vmatpush1.msra.mxu0 0.0
      %556 = vmatprep.subr.mxu0 0.0
      %557 = vmatpush1.msra.mxu0 0.0
      %558 = vmatprep.subr.mxu0 0.0
      %559 = vmatpush1.msra.mxu0 0.0
      %560 = vmatprep.subr.mxu0 0.0
      %561 = vmatpush1.msra.mxu0 0.0
      %562 = vmatprep.mubr.f32.mxu0 0.0
      %563 = vmatmul.mubr.f32.gmra.mrb[0].mxu0 %v248
      %v564 = vpop.f32.mrb[0].mxu0
      %v565 = vadd.f32 %v229, %v564
      %v566 = vpop.f32.mrb[0].mxu0
      %v567 = vadd.f32 %v229, %v566
      %568 = vmatprep.mubr.f32.mxu0 0.0
      %569 = vmatmul.mubr.f32.gmra.mrb[0].mxu0 %v251
      %v570 = vpop.f32.mrb[0].mxu0
      %v571 = vadd.f32 %v234, %v570
      %v572 = vpop.f32.mrb[0].mxu0
      %v573 = vadd.f32 %v234, %v572
      %574 = vmatprep.mubr.f32.mxu0 0.0
      %575 = vmatmul.mubr.f32.gmra.mrb[0].mxu0 %v254
      %v576 = vpop.f32.mrb[0].mxu0
      %v577 = vadd.f32 %v239, %v576
      %v578 = vpop.f32.mrb[0].mxu0
      %v579 = vadd.f32 %v239, %v578
      %580 = vmatprep.mubr.f32.mxu0 0.0
      %581 = vmatmul.mubr.f32.gmra.mrb[0].mxu0 %v257
      %v582 = vpop.f32.mrb[0].mxu0
      %v583 = vadd.f32 %v244, %v582
      %v584 = vpop.f32.mrb[0].mxu0
      %v585 = vadd.f32 %v244, %v584
      %586 = vdwg.mxu0
      %v587 = vmax.f32 %v565, 0.0
      %v588 = vmax.f32 %v567, 0.0
      %v589 = vmax.f32 %v571, 0.0
      %v590 = vmax.f32 %v573, 0.0
      %v591 = vmax.f32 %v577, 0.0
      %v592 = vmax.f32 %v579, 0.0
      %v593 = vmax.f32 %v583, 0.0
      %v594 = vmax.f32 %v585, 0.0
      %v595 = vmax.f32 %v475, %v587
      %v596 = vmax.f32 %v476, %v588
      %v597 = vmax.f32 %v477, %v589
      %v598 = vmax.f32 %v478, %v590
      %v599 = vmax.f32 %v479, %v591
      %v600 = vmax.f32 %v480, %v592
      %v601 = vmax.f32 %v481, %v593
      %v602 = vmax.f32 %v482, %v594
      %s603 = scalar_lea.vmem %s198, 192
      %v604 = vld [vmem:[%s603] sm:$0xff]
      %v605 = vld [vmem:[%s603 + $0x8] sm:$0xff]
      %v606 = vld [vmem:[%s603 + $0x10] sm:$0xff]
      %v607 = vld [vmem:[%s603 + $0x18] sm:$0xff]
      %v608 = vld [vmem:[%s603 + $0x20] sm:$0xff]
      %v609 = vld [vmem:[%s603 + $0x28] sm:$0xff]
      %v610 = vld [vmem:[%s603 + $0x30] sm:$0x7]
      %v611 = vld [vmem:[%s603 + $0x38] sm:$0x7]
      %v613 = vsel %vm259, %v610, 0
      %v616 = vsel %vm259, %v611, 0
      %618 = vmatprep.subr.mxu0 %v605
      %619 = vmatpush1.msra.mxu0 %v604
      %620 = vmatprep.subr.mxu0 %v607
      %621 = vmatpush1.msra.mxu0 %v606
      %622 = vmatprep.subr.mxu0 %v609
      %623 = vmatpush1.msra.mxu0 %v608
      %624 = vmatprep.subr.mxu0 %v616
      %625 = vmatpush1.msra.mxu0 %v613
      %626 = vmatprep.subr.mxu0 0.0
      %627 = vmatpush1.msra.mxu0 0.0
      %628 = vmatprep.subr.mxu0 0.0
      %629 = vmatpush1.msra.mxu0 0.0
      %630 = vmatprep.subr.mxu0 0.0
      %631 = vmatpush1.msra.mxu0 0.0
      %632 = vmatprep.subr.mxu0 0.0
      %633 = vmatpush1.msra.mxu0 0.0
      %634 = vmatprep.subr.mxu0 0.0
      %635 = vmatpush1.msra.mxu0 0.0
      %636 = vmatprep.subr.mxu0 0.0
      %637 = vmatpush1.msra.mxu0 0.0
      %638 = vmatprep.subr.mxu0 0.0
      %639 = vmatpush1.msra.mxu0 0.0
      %640 = vmatprep.subr.mxu0 0.0
      %641 = vmatpush1.msra.mxu0 0.0
      %642 = vmatprep.subr.mxu0 0.0
      %643 = vmatpush1.msra.mxu0 0.0
      %644 = vmatprep.subr.mxu0 0.0
      %645 = vmatpush1.msra.mxu0 0.0
      %646 = vmatprep.subr.mxu0 0.0
      %647 = vmatpush1.msra.mxu0 0.0
      %648 = vmatprep.subr.mxu0 0.0
      %649 = vmatpush1.msra.mxu0 0.0
      %650 = vmatprep.subr.mxu0 0.0
      %651 = vmatpush1.msra.mxu0 0.0
      %652 = vmatprep.subr.mxu0 0.0
      %653 = vmatpush1.msra.mxu0 0.0
      %654 = vmatprep.subr.mxu0 0.0
      %655 = vmatpush1.msra.mxu0 0.0
      %656 = vmatprep.subr.mxu0 0.0
      %657 = vmatpush1.msra.mxu0 0.0
      %658 = vmatprep.subr.mxu0 0.0
      %659 = vmatpush1.msra.mxu0 0.0
      %660 = vmatprep.subr.mxu0 0.0
      %661 = vmatpush1.msra.mxu0 0.0
      %662 = vmatprep.subr.mxu0 0.0
      %663 = vmatpush1.msra.mxu0 0.0
      %664 = vmatprep.subr.mxu0 0.0
      %665 = vmatpush1.msra.mxu0 0.0
      %666 = vmatprep.subr.mxu0 0.0
      %667 = vmatpush1.msra.mxu0 0.0
      %668 = vmatprep.subr.mxu0 0.0
      %669 = vmatpush1.msra.mxu0 0.0
      %670 = vmatprep.subr.mxu0 0.0
      %671 = vmatpush1.msra.mxu0 0.0
      %672 = vmatprep.subr.mxu0 0.0
      %673 = vmatpush1.msra.mxu0 0.0
      %674 = vmatprep.subr.mxu0 0.0
      %675 = vmatpush1.msra.mxu0 0.0
      %676 = vmatprep.subr.mxu0 0.0
      %677 = vmatpush1.msra.mxu0 0.0
      %678 = vmatprep.subr.mxu0 0.0
      %679 = vmatpush1.msra.mxu0 0.0
      %680 = vmatprep.subr.mxu0 0.0
      %681 = vmatpush1.msra.mxu0 0.0
      %682 = vmatprep.mubr.f32.mxu0 0.0
      %683 = vmatmul.mubr.f32.gmra.mrb[0].mxu0 %v248
      %v684 = vpop.f32.mrb[0].mxu0
      %v685 = vadd.f32 %v229, %v684
      %v686 = vpop.f32.mrb[0].mxu0
      %v687 = vadd.f32 %v229, %v686
      %688 = vmatprep.mubr.f32.mxu0 0.0
      %689 = vmatmul.mubr.f32.gmra.mrb[0].mxu0 %v251
      %v690 = vpop.f32.mrb[0].mxu0
      %v691 = vadd.f32 %v234, %v690
      %v692 = vpop.f32.mrb[0].mxu0
      %v693 = vadd.f32 %v234, %v692
      %694 = vmatprep.mubr.f32.mxu0 0.0
      %695 = vmatmul.mubr.f32.gmra.mrb[0].mxu0 %v254
      %v696 = vpop.f32.mrb[0].mxu0
      %v697 = vadd.f32 %v239, %v696
      %v698 = vpop.f32.mrb[0].mxu0
      %v699 = vadd.f32 %v239, %v698
      %700 = vmatprep.mubr.f32.mxu0 0.0
      %701 = vmatmul.mubr.f32.gmra.mrb[0].mxu0 %v257
      %v702 = vpop.f32.mrb[0].mxu0
      %v703 = vadd.f32 %v244, %v702
      %v704 = vpop.f32.mrb[0].mxu0
      %v705 = vadd.f32 %v244, %v704
      %706 = vdwg.mxu0
      %v707 = vmax.f32 %v685, 0.0
      %v708 = vmax.f32 %v687, 0.0
      %v709 = vmax.f32 %v691, 0.0
      %v710 = vmax.f32 %v693, 0.0
      %v711 = vmax.f32 %v697, 0.0
      %v712 = vmax.f32 %v699, 0.0
      %v713 = vmax.f32 %v703, 0.0
      %v714 = vmax.f32 %v705, 0.0
      %v715 = vmax.f32 %v595, %v707
      %v716 = vmax.f32 %v596, %v708
      %v717 = vmax.f32 %v597, %v709
      %v718 = vmax.f32 %v598, %v710
      %v719 = vmax.f32 %v599, %v711
      %v720 = vmax.f32 %v600, %v712
      %v721 = vmax.f32 %v601, %v713
      %v722 = vmax.f32 %v602, %v714
      %723 = vst [vmem:[%s208] sm:$0xff] %v715
      %724 = vst [vmem:[%s208 + $0x8] sm:$0xff] %v716
      %725 = vst [vmem:[%s208 + $0x10] sm:$0xff] %v717
      %726 = vst [vmem:[%s208 + $0x18] sm:$0xff] %v718
      %727 = vst [vmem:[%s208 + $0x20] sm:$0xff] %v719
      %728 = vst [vmem:[%s208 + $0x28] sm:$0xff] %v720
      %729 = vst [vmem:[%s208 + $0x30] sm:$0xff] %v721
      %730 = vst [vmem:[%s208 + $0x38] sm:$0xff] %v722
      %s731 = smul.u32 2, %s19
      %p732 = scmp.lt.s32.totalorder %s18, 1
      %s733 = scalar_select %p732, %s18, 1
      %p734 = scmp.lt.s32.totalorder %s731, 1
      %s735 = scalar_select %p734, %s731, 1
      %s736 = smul.addr %s733, 8
      %s737 = sadd.s32 %s735, %s736
      %s738 = smul.addr %s737, 8
      %s739 = scalar_lea.vmem %s3, %s738
      // Predicated region
      $region33: #{vae_forward.7} parent=31 // pred_check
        %p740 = pneg %p116
      $region34: #{vae_forward.7} parent=31 // pred_check_branch
        %742 = sbr.rel (%p740) target = $region36
      $region35: #{vae_forward.7} parent=31 // pred_region
        %s743 = smul.u32 2, %s19
      $region36: #{vae_forward.7} parent=31 // pred_fallthru
        _
    $region32: #{vae_forward.7} parent=5 // pred_fallthru
      _
    %p744 = scmp.le.s32.totalorder 2, %s9
    // Predicated region
    $region37: #{vae_forward.7} parent=5 // pred_check
      %p745 = pneg %p744
    $region38: #{vae_forward.7} parent=5 // pred_check_branch
      %747 = sbr.rel (%p745) target = $region40
    $region39: #{vae_forward.7} parent=5 // pred_region
      %s748 = ssub.s32 %s9, 2
      // Predicated region
      $region41: #{vae_forward.7} parent=39 // pred_check
        %p749 = pneg %p122
      $region42: #{vae_forward.7} parent=39 // pred_check_branch
        %751 = sbr.rel (%p749) target = $region44
      $region43: #{vae_forward.7} parent=39 // pred_region
        %s752 = smul.u32 2, %s21
        %p753 = scmp.lt.s32.totalorder %s20, 1
        %s754 = scalar_select %p753, %s20, 1
        %p755 = scmp.lt.s32.totalorder %s752, 1
        %s756 = scalar_select %p755, %s752, 1
        %s757 = smul.addr %s754, 8
        %s758 = sadd.s32 %s756, %s757
        %s759 = smul.addr %s758, 8
        %s760 = scalar_lea.vmem %s3, %s759
      $region44: #{vae_forward.7} parent=39 // pred_fallthru
        _
    $region40: #{vae_forward.7} parent=5 // pred_fallthru
      _
  $region6: #{vae_forward.7} parent=0 // loop_footer
    %s13 = sadd.s32 1, %s9
  $region7: #{vae_forward.7} parent=0 // loop_footer_branch
    %8 = sbr.rel target = $region3
  $region8: #{vae_forward.7} parent=0 // loop_exit
    _

// kernel: vae_forward.10
$region0: #{vae_forward.10}
  #allocation0 [shape = 'u32[]', space=smem, size = 0x4, offset = 0x4, fixed_abs, tag = 'smem constant byte address 0x4 - core index']
  #allocation1 [shape = 'u32[144,128]{1,0:T(1,128)}', space=vmem, size = 0x12000, scoped, tag = 'internal scratch']
  %s0 = inlined_call_operand.hbm [shape: f32[2,16], index: 0, kind: input, shape index: {}]
  %s1 = inlined_call_operand.hbm [shape: f32[64,16], index: 1, kind: input, shape index: {}]
  %s2 = inlined_call_operand.hbm [shape: f32[1,64], index: 2, kind: input, shape index: {}]
  %s3 = inlined_call_operand.hbm [shape: f32[2,64], index: 3, kind: output, shape index: {}]
  %s4 = sld [smem:[#allocation0]]
  $region42: #{vae_forward.10} parent=0
    _
  %s6 = ssub.s32 1, %s4
  %s7 = scalar_select 0, %s6, %s4
  $region1: #{vae_forward.10} parent=0
    #allocation2 [shape = 'u8[1024]{0}', space=vmem, size = 0x400, scoped, tag = 'input window, operand 0, single buffered']
    #allocation3 [shape = 's32[1]{0}', space=sflag, size = 0x4, scoped, tag = 'scoped memory for vae_forward.10']
    #allocation4 [shape = 's32[1]{0}', space=sflag, size = 0x4, scoped, tag = 'scoped memory for vae_forward.10']
    #allocation5 [shape = 'u8[32768]{0}', space=vmem, size = 0x8000, scoped, tag = 'input window, operand 1, single buffered']
    #allocation6 [shape = 's32[1]{0}', space=sflag, size = 0x4, scoped, tag = 'scoped memory for vae_forward.10']
    #allocation7 [shape = 'u8[512]{0}', space=vmem, size = 0x400, scoped, tag = 'input window, operand 2, single buffered']
    #allocation8 [shape = 'u8[1024]{0}', space=vmem, size = 0x400, scoped, tag = 'output window, operand 0, single buffered']
    %8 = vsyncpa [#allocation3], 0
    %9 = vsyncpa [#allocation6], 0
    %10 = vsyncpa [#allocation4], 0
    // Predicated region
    $region2: #{vae_forward.10} parent=1 // pred_check
      _
    $region3: #{vae_forward.10} parent=1 // pred_check_branch
      %12 = sbr.rel (0) target = $region5
    $region4: #{vae_forward.10} parent=1 // pred_region
      %s14 = ssub.s32 32, 32
      %15 = vsyncadd [#allocation3], %s14
      %s17 = sshll.u32 [#allocation2], 4
      %s18 = int_to_ptr.vmem [resolvable:$true] %s17
      %20 = dma.hbm_to_vmem [thread:$0]  %s0, 32, %s18, [#allocation3]
    $region5: #{vae_forward.10} parent=1 // pred_fallthru
      _
    // Predicated region
    $region6: #{vae_forward.10} parent=1 // pred_check
      _
    $region7: #{vae_forward.10} parent=1 // pred_check_branch
      %22 = sbr.rel (0) target = $region9
    $region8: #{vae_forward.10} parent=1 // pred_region
      %s24 = ssub.s32 1024, 1024
      %25 = vsyncadd [#allocation6], %s24
      %s26 = sshll.u32 [#allocation5], 4
      %s27 = int_to_ptr.vmem [resolvable:$true] %s26
      %32 = dma.hbm_to_vmem [thread:$0]  %s1, 1024, %s27, [#allocation6], 128, 128, 8
    $region9: #{vae_forward.10} parent=1 // pred_fallthru
      _
    // Predicated region
    $region10: #{vae_forward.10} parent=1 // pred_check
      _
    $region11: #{vae_forward.10} parent=1 // pred_check_branch
      %34 = sbr.rel (0) target = $region13
    $region12: #{vae_forward.10} parent=1 // pred_region
      %s36 = ssub.s32 16, 16
      %37 = vsyncadd [#allocation6], %s36
      %s39 = sshll.u32 [#allocation7], 4
      %s40 = int_to_ptr.vmem [resolvable:$true] %s39
      %42 = dma.hbm_to_vmem [thread:$0]  %s2, 16, %s40, [#allocation6]
    $region13: #{vae_forward.10} parent=1 // pred_fallthru
      _
    // Predicated region
    $region14: #{vae_forward.10} parent=1 // pred_check
      _
    $region15: #{vae_forward.10} parent=1 // pred_check_branch
      %44 = sbr.rel (0) target = $region17
    $region16: #{vae_forward.10} parent=1 // pred_region
      %45 = dma.done [#allocation3], 32
    $region17: #{vae_forward.10} parent=1 // pred_fallthru
      _
    // Predicated region
    $region18: #{vae_forward.10} parent=1 // pred_check
      _
    $region19: #{vae_forward.10} parent=1 // pred_check_branch
      %47 = sbr.rel (0) target = $region21
    $region20: #{vae_forward.10} parent=1 // pred_region
      %48 = dma.done [#allocation6], 1024
    $region21: #{vae_forward.10} parent=1 // pred_fallthru
      _
    // Predicated region
    $region22: #{vae_forward.10} parent=1 // pred_check
      _
    $region23: #{vae_forward.10} parent=1 // pred_check_branch
      %50 = sbr.rel (0) target = $region25
    $region24: #{vae_forward.10} parent=1 // pred_region
      %51 = dma.done [#allocation6], 16
    $region25: #{vae_forward.10} parent=1 // pred_fallthru
      _
    %p52 = scmp.eq.s32.totalorder 0, 0
    // Predicated region
    $region26: #{vae_forward.10} parent=1 // pred_check
      %p53 = pneg %p52
    $region27: #{vae_forward.10} parent=1 // pred_check_branch
      %55 = sbr.rel (%p53) target = $region29
    $region28: #{vae_forward.10} parent=1 // pred_region
      %vm56 = vcmask 517120
      %57 = vst.msk [vmem:[#allocation8] sm:$0x3] %vm56, 0.0
    $region29: #{vae_forward.10} parent=1 // pred_fallthru
      _
    %v58 = vld [vmem:[#allocation8] sm:$0x3]
    %v59 = vld [vmem:[#allocation2] sm:$0x3]
    %v60 = vld [vmem:[#allocation5] sm:$0xff]
    %v61 = vld [vmem:[#allocation5 + $0x8] sm:$0xff]
    %v62 = vld [vmem:[#allocation5 + $0x10] sm:$0xff]
    %v63 = vld [vmem:[#allocation5 + $0x18] sm:$0xff]
    %v64 = vld [vmem:[#allocation5 + $0x20] sm:$0xff]
    %v65 = vld [vmem:[#allocation5 + $0x28] sm:$0xff]
    %v66 = vld [vmem:[#allocation5 + $0x30] sm:$0xff]
    %v67 = vld [vmem:[#allocation5 + $0x38] sm:$0xff]
    %vm68 = vcmask 130048
    %v70 = vsel %vm68, %v59, 0
    %v73 = vsel %vm68, %v60, 0
    %v76 = vsel %vm68, %v61, 0
    %v79 = vsel %vm68, %v62, 0
    %v82 = vsel %vm68, %v63, 0
    %v85 = vsel %vm68, %v64, 0
    %v88 = vsel %vm68, %v65, 0
    %v91 = vsel %vm68, %v66, 0
    %v94 = vsel %vm68, %v67, 0
    %96 = vmatprep.subr.mxu0 0.0
    %97 = vmatpush1.xpose.msra.mxu0 %v73
    %98 = vmatprep.subr.mxu0 0.0
    %99 = vmatpush1.xpose.msra.mxu0 %v76
    %100 = vmatprep.subr.mxu0 0.0
    %101 = vmatpush1.xpose.msra.mxu0 %v79
    %102 = vmatprep.subr.mxu0 0.0
    %103 = vmatpush1.xpose.msra.mxu0 %v82
    %104 = vmatprep.subr.mxu0 0.0
    %105 = vmatpush1.xpose.msra.mxu0 %v85
    %106 = vmatprep.subr.mxu0 0.0
    %107 = vmatpush1.xpose.msra.mxu0 %v88
    %108 = vmatprep.subr.mxu0 0.0
    %109 = vmatpush1.xpose.msra.mxu0 %v91
    %110 = vmatprep.subr.mxu0 0.0
    %111 = vmatpush1.xpose.msra.mxu0 %v94
    %112 = vmatprep.subr.mxu0 0.0
    %113 = vmatpush1.xpose.msra.mxu0 0.0
    %114 = vmatprep.subr.mxu0 0.0
    %115 = vmatpush1.xpose.msra.mxu0 0.0
    %116 = vmatprep.subr.mxu0 0.0
    %117 = vmatpush1.xpose.msra.mxu0 0.0
    %118 = vmatprep.subr.mxu0 0.0
    %119 = vmatpush1.xpose.msra.mxu0 0.0
    %120 = vmatprep.subr.mxu0 0.0
    %121 = vmatpush1.xpose.msra.mxu0 0.0
    %122 = vmatprep.subr.mxu0 0.0
    %123 = vmatpush1.xpose.msra.mxu0 0.0
    %124 = vmatprep.subr.mxu0 0.0
    %125 = vmatpush1.xpose.msra.mxu0 0.0
    %126 = vmatprep.subr.mxu0 0.0
    %127 = vmatpush1.xpose.msra.mxu0 0.0
    %128 = vmatprep.subr.mxu0 0.0
    %129 = vmatpush1.xpose.msra.mxu0 0.0
    %130 = vmatprep.subr.mxu0 0.0
    %131 = vmatpush1.xpose.msra.mxu0 0.0
    %132 = vmatprep.subr.mxu0 0.0
    %133 = vmatpush1.xpose.msra.mxu0 0.0
    %134 = vmatprep.subr.mxu0 0.0
    %135 = vmatpush1.xpose.msra.mxu0 0.0
    %136 = vmatprep.subr.mxu0 0.0
    %137 = vmatpush1.xpose.msra.mxu0 0.0
    %138 = vmatprep.subr.mxu0 0.0
    %139 = vmatpush1.xpose.msra.mxu0 0.0
    %140 = vmatprep.subr.mxu0 0.0
    %141 = vmatpush1.xpose.msra.mxu0 0.0
    %142 = vmatprep.subr.mxu0 0.0
    %143 = vmatpush1.xpose.msra.mxu0 0.0
    %144 = vmatprep.subr.mxu0 0.0
    %145 = vmatpush1.xpose.msra.mxu0 0.0
    %146 = vmatprep.subr.mxu0 0.0
    %147 = vmatpush1.xpose.msra.mxu0 0.0
    %148 = vmatprep.subr.mxu0 0.0
    %149 = vmatpush1.xpose.msra.mxu0 0.0
    %150 = vmatprep.subr.mxu0 0.0
    %151 = vmatpush1.xpose.msra.mxu0 0.0
    %152 = vmatprep.subr.mxu0 0.0
    %153 = vmatpush1.xpose.msra.mxu0 0.0
    %154 = vmatprep.subr.mxu0 0.0
    %155 = vmatpush1.xpose.msra.mxu0 0.0
    %156 = vmatprep.subr.mxu0 0.0
    %157 = vmatpush1.xpose.msra.mxu0 0.0
    %158 = vmatprep.subr.mxu0 0.0
    %159 = vmatpush1.xpose.msra.mxu0 0.0
    %160 = vmatprep.mubr.f32.mxu0 0.0
    %161 = vmatmul.mubr.f32.gmra.mrb[0].mxu0 %v70
    %v162 = vpop.f32.mrb[0].mxu0
    %v163 = vadd.f32 0.0, %v162
    %v164 = vpop.f32.mrb[0].mxu0
    %165 = vdwg.mxu0
    %v166 = vadd.f32 %v58, %v163
    %vm167 = vcmask 517120
    %168 = vst.msk [vmem:[#allocation8] sm:$0x3] %vm167, %v166
    // Predicated region
    $region30: #{vae_forward.10} parent=1 // pred_check
      %p169 = pneg %p52
    $region31: #{vae_forward.10} parent=1 // pred_check_branch
      %171 = sbr.rel (%p169) target = $region33
    $region32: #{vae_forward.10} parent=1 // pred_region
      %v172 = vld [vmem:[#allocation8] sm:$0x3]
      %v173 = vld [vmem:[#allocation7] sm:$0x1]
      %v175 = vlaneseq
      %v176 = vshrl.u32 %v175, 7
      %v177 = vsub.s32 0, %v176
      %v178 = vrot.slane %v173, %v177
      %v180 = vadd.f32 %v172, %v178
      %v181 = vmax.f32 %v180, 0.0
      %182 = vst.msk [vmem:[#allocation8] sm:$0x3] %vm167, %v181
    $region33: #{vae_forward.10} parent=1 // pred_fallthru
      _
    // Predicated region
    $region34: #{vae_forward.10} parent=1 // pred_check
      _
    $region35: #{vae_forward.10} parent=1 // pred_check_branch
      %184 = sbr.rel (0) target = $region37
    $region36: #{vae_forward.10} parent=1 // pred_region
      %s186 = ssub.s32 32, 32
      %187 = vsyncadd [#allocation4], %s186
      %s189 = sshll.u32 [#allocation8], 4
      %s190 = int_to_ptr.vmem [resolvable:$true] %s189
      %192 = dma.vmem_to_hbm [thread:$0]  %s190, 32, %s3, [#allocation4]
    $region37: #{vae_forward.10} parent=1 // pred_fallthru
      _
    // Predicated region
    $region38: #{vae_forward.10} parent=1 // pred_check
      _
    $region39: #{vae_forward.10} parent=1 // pred_check_branch
      %194 = sbr.rel (0) target = $region41
    $region40: #{vae_forward.10} parent=1 // pred_region
      %195 = dma.done [#allocation4], 32
    $region41: #{vae_forward.10} parent=1 // pred_fallthru
      _
    %196 = vsyncpa [#allocation3], 1
    %197 = vsyncpa [#allocation6], 1
    %198 = vsyncpa [#allocation4], 1

// kernel: vae_forward.8
$region0: #{vae_forward.8}
  #allocation0 [shape = 'u32[]', space=smem, size = 0x4, offset = 0x4, fixed_abs, tag = 'smem constant byte address 0x4 - core index']
  #allocation1 [shape = 'u32[144,128]{1,0:T(1,128)}', space=vmem, size = 0x12000, scoped, tag = 'internal scratch']
  %s0 = inlined_call_operand.hbm [shape: f32[2,8192], index: 0, kind: input, shape index: {}]
  %s1 = inlined_call_operand.hbm [shape: f32[64,8192], index: 1, kind: input, shape index: {}]
  %s2 = inlined_call_operand.hbm [shape: f32[1,64], index: 2, kind: input, shape index: {}]
  %s3 = inlined_call_operand.hbm [shape: f32[2,64], index: 3, kind: output, shape index: {}]
  %s4 = sld [smem:[#allocation0]]
  $region42: #{vae_forward.8} parent=0
    _
  %s6 = ssub.s32 1, %s4
  %s7 = scalar_select 0, %s6, %s4
  $region1: #{vae_forward.8} parent=0
    #allocation2 [shape = 'u8[65536]{0}', space=vmem, size = 0x10000, scoped, tag = 'input window, operand 0, single buffered']
    #allocation3 [shape = 's32[1]{0}', space=sflag, size = 0x4, scoped, tag = 'scoped memory for vae_forward.8']
    #allocation4 [shape = 's32[1]{0}', space=sflag, size = 0x4, scoped, tag = 'scoped memory for vae_forward.8']
    #allocation5 [shape = 'u8[2097152]{0}', space=vmem, size = 0x200000, scoped, tag = 'input window, operand 1, single buffered']
    #allocation6 [shape = 's32[1]{0}', space=sflag, size = 0x4, scoped, tag = 'scoped memory for vae_forward.8']
    #allocation7 [shape = 'u8[512]{0}', space=vmem, size = 0x400, scoped, tag = 'input window, operand 2, single buffered']
    #allocation8 [shape = 'u8[1024]{0}', space=vmem, size = 0x400, scoped, tag = 'output window, operand 0, single buffered']
    %8 = vsyncpa [#allocation3], 0
    %9 = vsyncpa [#allocation6], 0
    %10 = vsyncpa [#allocation4], 0
    // Predicated region
    $region2: #{vae_forward.8} parent=1 // pred_check
      _
    $region3: #{vae_forward.8} parent=1 // pred_check_branch
      %12 = sbr.rel (0) target = $region5
    $region4: #{vae_forward.8} parent=1 // pred_region
      %s14 = ssub.s32 2048, 2048
      %15 = vsyncadd [#allocation3], %s14
      %s17 = sshll.u32 [#allocation2], 4
      %s18 = int_to_ptr.vmem [resolvable:$true] %s17
      %20 = dma.hbm_to_vmem [thread:$0]  %s0, 2048, %s18, [#allocation3]
    $region5: #{vae_forward.8} parent=1 // pred_fallthru
      _
    // Predicated region
    $region6: #{vae_forward.8} parent=1 // pred_check
      _
    $region7: #{vae_forward.8} parent=1 // pred_check_branch
      %22 = sbr.rel (0) target = $region9
    $region8: #{vae_forward.8} parent=1 // pred_region
      %s24 = ssub.s32 65536, 65536
      %25 = vsyncadd [#allocation6], %s24
      %s26 = sshll.u32 [#allocation5], 4
      %s27 = int_to_ptr.vmem [resolvable:$true] %s26
      %32 = dma.hbm_to_vmem [thread:$0]  %s1, 65536, %s27, [#allocation6], 8192, 8192, 512
    $region9: #{vae_forward.8} parent=1 // pred_fallthru
      _
    // Predicated region
    $region10: #{vae_forward.8} parent=1 // pred_check
      _
    $region11: #{vae_forward.8} parent=1 // pred_check_branch
      %34 = sbr.rel (0) target = $region13
    $region12: #{vae_forward.8} parent=1 // pred_region
      %s36 = ssub.s32 16, 16
      %37 = vsyncadd [#allocation6], %s36
      %s39 = sshll.u32 [#allocation7], 4
      %s40 = int_to_ptr.vmem [resolvable:$true] %s39
      %42 = dma.hbm_to_vmem [thread:$0]  %s2, 16, %s40, [#allocation6]
    $region13: #{vae_forward.8} parent=1 // pred_fallthru
      _
    // Predicated region
    $region14: #{vae_forward.8} parent=1 // pred_check
      _
    $region15: #{vae_forward.8} parent=1 // pred_check_branch
      %44 = sbr.rel (0) target = $region17
    $region16: #{vae_forward.8} parent=1 // pred_region
      %45 = dma.done [#allocation3], 2048
    $region17: #{vae_forward.8} parent=1 // pred_fallthru
      _
    // Predicated region
    $region18: #{vae_forward.8} parent=1 // pred_check
      _
    $region19: #{vae_forward.8} parent=1 // pred_check_branch
      %47 = sbr.rel (0) target = $region21
    $region20: #{vae_forward.8} parent=1 // pred_region
      %48 = dma.done [#allocation6], 65536
    $region21: #{vae_forward.8} parent=1 // pred_fallthru
      _
    // Predicated region
    $region22: #{vae_forward.8} parent=1 // pred_check
      _
    $region23: #{vae_forward.8} parent=1 // pred_check_branch
      %50 = sbr.rel (0) target = $region25
    $region24: #{vae_forward.8} parent=1 // pred_region
      %51 = dma.done [#allocation6], 16
    $region25: #{vae_forward.8} parent=1 // pred_fallthru
      _
    %p52 = scmp.eq.s32.totalorder 0, 0
    // Predicated region
    $region26: #{vae_forward.8} parent=1 // pred_check
      %p53 = pneg %p52
    $region27: #{vae_forward.8} parent=1 // pred_check_branch
      %55 = sbr.rel (%p53) target = $region29
    $region28: #{vae_forward.8} parent=1 // pred_region
      %vm56 = vcmask 517120
      %57 = vst.msk [vmem:[#allocation8] sm:$0x3] %vm56, 0.0
    $region29: #{vae_forward.8} parent=1 // pred_fallthru
      _
    %v58 = vld [vmem:[#allocation8] sm:$0x3]
    %v59 = vld [vmem:[#allocation2] sm:$0xff]
    %v60 = vld [vmem:[#allocation2 + $0x8] sm:$0xff]
    %v61 = vld [vmem:[#allocation2 + $0x10] sm:$0xff]
    %v62 = vld [vmem:[#allocation2 + $0x18] sm:$0xff]
    %v63 = vld [vmem:[#allocation2 + $0x20] sm:$0xff]
    %v64 = vld [vmem:[#allocation2 + $0x28] sm:$0xff]
    %v65 = vld [vmem:[#allocation2 + $0x30] sm:$0xff]
    %v66 = vld [vmem:[#allocation2 + $0x38] sm:$0xff]
    %v67 = vld [vmem:[#allocation2 + $0x40] sm:$0xff]
    %v68 = vld [vmem:[#allocation2 + $0x48] sm:$0xff]
    %v69 = vld [vmem:[#allocation2 + $0x50] sm:$0xff]
    %v70 = vld [vmem:[#allocation2 + $0x58] sm:$0xff]
    %v71 = vld [vmem:[#allocation2 + $0x60] sm:$0xff]
    %v72 = vld [vmem:[#allocation2 + $0x68] sm:$0xff]
    %v73 = vld [vmem:[#allocation2 + $0x70] sm:$0xff]
    %v74 = vld [vmem:[#allocation2 + $0x78] sm:$0xff]
    %v75 = vld [vmem:[#allocation5] sm:$0xff]
    %v76 = vld [vmem:[#allocation5 + $0x8] sm:$0xff]
    %v77 = vld [vmem:[#allocation5 + $0x10] sm:$0xff]
    %v78 = vld [vmem:[#allocation5 + $0x18] sm:$0xff]
    %v79 = vld [vmem:[#allocation5 + $0x20] sm:$0xff]
    %v80 = vld [vmem:[#allocation5 + $0x28] sm:$0xff]
    %v81 = vld [vmem:[#allocation5 + $0x30] sm:$0xff]
    %v82 = vld [vmem:[#allocation5 + $0x38] sm:$0xff]
    %v83 = vld [vmem:[#allocation5 + $0x40] sm:$0xff]
    %v84 = vld [vmem:[#allocation5 + $0x48] sm:$0xff]
    %v85 = vld [vmem:[#allocation5 + $0x50] sm:$0xff]
    %v86 = vld [vmem:[#allocation5 + $0x58] sm:$0xff]
    %v87 = vld [vmem:[#allocation5 + $0x60] sm:$0xff]
    %v88 = vld [vmem:[#allocation5 + $0x68] sm:$0xff]
    %v89 = vld [vmem:[#allocation5 + $0x70] sm:$0xff]
    %v90 = vld [vmem:[#allocation5 + $0x78] sm:$0xff]
    %v91 = vld [vmem:[#allocation5 + $0x80] sm:$0xff]
    %v92 = vld [vmem:[#allocation5 + $0x88] sm:$0xff]
    %v93 = vld [vmem:[#allocation5 + $0x90] sm:$0xff]
    %v94 = vld [vmem:[#allocation5 + $0x98] sm:$0xff]
    %v95 = vld [vmem:[#allocation5 + $0xa0] sm:$0xff]
    %v96 = vld [vmem:[#allocation5 + $0xa8] sm:$0xff]
    %v97 = vld [vmem:[#allocation5 + $0xb0] sm:$0xff]
    %v98 = vld [vmem:[#allocation5 + $0xb8] sm:$0xff]
    %v99 = vld [vmem:[#allocation5 + $0xc0] sm:$0xff]
    %v100 = vld [vmem:[#allocation5 + $0xc8] sm:$0xff]
    %v101 = vld [vmem:[#allocation5 + $0xd0] sm:$0xff]
    %v102 = vld [vmem:[#allocation5 + $0xd8] sm:$0xff]
    %v103 = vld [vmem:[#allocation5 + $0xe0] sm:$0xff]
    %v104 = vld [vmem:[#allocation5 + $0xe8] sm:$0xff]
    %v105 = vld [vmem:[#allocation5 + $0xf0] sm:$0xff]
    %v106 = vld [vmem:[#allocation5 + $0xf8] sm:$0xff]
    %v107 = vld [vmem:[#allocation5 + $0x100] sm:$0xff]
    %v108 = vld [vmem:[#allocation5 + $0x108] sm:$0xff]
    %v109 = vld [vmem:[#allocation5 + $0x110] sm:$0xff]
    %v110 = vld [vmem:[#allocation5 + $0x118] sm:$0xff]
    %v111 = vld [vmem:[#allocation5 + $0x120] sm:$0xff]
    %v112 = vld [vmem:[#allocation5 + $0x128] sm:$0xff]
    %v113 = vld [vmem:[#allocation5 + $0x130] sm:$0xff]
    %v114 = vld [vmem:[#allocation5 + $0x138] sm:$0xff]
    %v115 = vld [vmem:[#allocation5 + $0x140] sm:$0xff]
    %v116 = vld [vmem:[#allocation5 + $0x148] sm:$0xff]
    %v117 = vld [vmem:[#allocation5 + $0x150] sm:$0xff]
    %v118 = vld [vmem:[#allocation5 + $0x158] sm:$0xff]
    %v119 = vld [vmem:[#allocation5 + $0x160] sm:$0xff]
    %v120 = vld [vmem:[#allocation5 + $0x168] sm:$0xff]
    %v121 = vld [vmem:[#allocation5 + $0x170] sm:$0xff]
    %v122 = vld [vmem:[#allocation5 + $0x178] sm:$0xff]
    %v123 = vld [vmem:[#allocation5 + $0x180] sm:$0xff]
    %v124 = vld [vmem:[#allocation5 + $0x188] sm:$0xff]
    %v125 = vld [vmem:[#allocation5 + $0x190] sm:$0xff]
    %v126 = vld [vmem:[#allocation5 + $0x198] sm:$0xff]
    %v127 = vld [vmem:[#allocation5 + $0x1a0] sm:$0xff]
    %v128 = vld [vmem:[#allocation5 + $0x1a8] sm:$0xff]
    %v129 = vld [vmem:[#allocation5 + $0x1b0] sm:$0xff]
    %v130 = vld [vmem:[#allocation5 + $0x1b8] sm:$0xff]
    %v131 = vld [vmem:[#allocation5 + $0x1c0] sm:$0xff]
    %v132 = vld [vmem:[#allocation5 + $0x1c8] sm:$0xff]
    %v133 = vld [vmem:[#allocation5 + $0x1d0] sm:$0xff]
    %v134 = vld [vmem:[#allocation5 + $0x1d8] sm:$0xff]
    %v135 = vld [vmem:[#allocation5 + $0x1e0] sm:$0xff]
    %v136 = vld [vmem:[#allocation5 + $0x1e8] sm:$0xff]
    %v137 = vld [vmem:[#allocation5 + $0x1f0] sm:$0xff]
    %v138 = vld [vmem:[#allocation5 + $0x1f8] sm:$0xff]
    %v139 = vld [vmem:[#allocation5 + $0x200] sm:$0xff]
    %v140 = vld [vmem:[#allocation5 + $0x208] sm:$0xff]
    %v141 = vld [vmem:[#allocation5 + $0x210] sm:$0xff]
    %v142 = vld [vmem:[#allocation5 + $0x218] sm:$0xff]
    %v143 = vld [vmem:[#allocation5 + $0x220] sm:$0xff]
    %v144 = vld [vmem:[#allocation5 + $0x228] sm:$0xff]
    %v145 = vld [vmem:[#allocation5 + $0x230] sm:$0xff]
    %v146 = vld [vmem:[#allocation5 + $0x238] sm:$0xff]
    %v147 = vld [vmem:[#allocation5 + $0x240] sm:$0xff]
    %v148 = vld [vmem:[#allocation5 + $0x248] sm:$0xff]
    %v149 = vld [vmem:[#allocation5 + $0x250] sm:$0xff]
    %v150 = vld [vmem:[#allocation5 + $0x258] sm:$0xff]
    %v151 = vld [vmem:[#allocation5 + $0x260] sm:$0xff]
    %v152 = vld [vmem:[#allocation5 + $0x268] sm:$0xff]
    %v153 = vld [vmem:[#allocation5 + $0x270] sm:$0xff]
    %v154 = vld [vmem:[#allocation5 + $0x278] sm:$0xff]
    %v155 = vld [vmem:[#allocation5 + $0x280] sm:$0xff]
    %v156 = vld [vmem:[#allocation5 + $0x288] sm:$0xff]
    %v157 = vld [vmem:[#allocation5 + $0x290] sm:$0xff]
    %v158 = vld [vmem:[#allocation5 + $0x298] sm:$0xff]
    %v159 = vld [vmem:[#allocation5 + $0x2a0] sm:$0xff]
    %v160 = vld [vmem:[#allocation5 + $0x2a8] sm:$0xff]
    %v161 = vld [vmem:[#allocation5 + $0x2b0] sm:$0xff]
    %v162 = vld [vmem:[#allocation5 + $0x2b8] sm:$0xff]
    %v163 = vld [vmem:[#allocation5 + $0x2c0] sm:$0xff]
    %v164 = vld [vmem:[#allocation5 + $0x2c8] sm:$0xff]
    %v165 = vld [vmem:[#allocation5 + $0x2d0] sm:$0xff]
    %v166 = vld [vmem:[#allocation5 + $0x2d8] sm:$0xff]
    %v167 = vld [vmem:[#allocation5 + $0x2e0] sm:$0xff]
    %v168 = vld [vmem:[#allocation5 + $0x2e8] sm:$0xff]
    %v169 = vld [vmem:[#allocation5 + $0x2f0] sm:$0xff]
    %v170 = vld [vmem:[#allocation5 + $0x2f8] sm:$0xff]
    %v171 = vld [vmem:[#allocation5 + $0x300] sm:$0xff]
    %v172 = vld [vmem:[#allocation5 + $0x308] sm:$0xff]
    %v173 = vld [vmem:[#allocation5 + $0x310] sm:$0xff]
    %v174 = vld [vmem:[#allocation5 + $0x318] sm:$0xff]
    %v175 = vld [vmem:[#allocation5 + $0x320] sm:$0xff]
    %v176 = vld [vmem:[#allocation5 + $0x328] sm:$0xff]
    %v177 = vld [vmem:[#allocation5 + $0x330] sm:$0xff]
    %v178 = vld [vmem:[#allocation5 + $0x338] sm:$0xff]
    %v179 = vld [vmem:[#allocation5 + $0x340] sm:$0xff]
    %v180 = vld [vmem:[#allocation5 + $0x348] sm:$0xff]
    %v181 = vld [vmem:[#allocation5 + $0x350] sm:$0xff]
    %v182 = vld [vmem:[#allocation5 + $0x358] sm:$0xff]
    %v183 = vld [vmem:[#allocation5 + $0x360] sm:$0xff]
    %v184 = vld [vmem:[#allocation5 + $0x368] sm:$0xff]
    %v185 = vld [vmem:[#allocation5 + $0x370] sm:$0xff]
    %v186 = vld [vmem:[#allocation5 + $0x378] sm:$0xff]
    %v187 = vld [vmem:[#allocation5 + $0x380] sm:$0xff]
    %v188 = vld [vmem:[#allocation5 + $0x388] sm:$0xff]
    %v189 = vld [vmem:[#allocation5 + $0x390] sm:$0xff]
    %v190 = vld [vmem:[#allocation5 + $0x398] sm:$0xff]
    %v191 = vld [vmem:[#allocation5 + $0x3a0] sm:$0xff]
    %v192 = vld [vmem:[#allocation5 + $0x3a8] sm:$0xff]
    %v193 = vld [vmem:[#allocation5 + $0x3b0] sm:$0xff]
    %v194 = vld [vmem:[#allocation5 + $0x3b8] sm:$0xff]
    %v195 = vld [vmem:[#allocation5 + $0x3c0] sm:$0xff]
    %v196 = vld [vmem:[#allocation5 + $0x3c8] sm:$0xff]
    %v197 = vld [vmem:[#allocation5 + $0x3d0] sm:$0xff]
    %v198 = vld [vmem:[#allocation5 + $0x3d8] sm:$0xff]
    %v199 = vld [vmem:[#allocation5 + $0x3e0] sm:$0xff]
    %v200 = vld [vmem:[#allocation5 + $0x3e8] sm:$0xff]
    %v201 = vld [vmem:[#allocation5 + $0x3f0] sm:$0xff]
    %v202 = vld [vmem:[#allocation5 + $0x3f8] sm:$0xff]
    %v203 = vld [vmem:[#allocation5 + $0x400] sm:$0xff]
    %v204 = vld [vmem:[#allocation5 + $0x408] sm:$0xff]
    %v205 = vld [vmem:[#allocation5 + $0x410] sm:$0xff]
    %v206 = vld [vmem:[#allocation5 + $0x418] sm:$0xff]
    %v207 = vld [vmem:[#allocation5 + $0x420] sm:$0xff]
    %v208 = vld [vmem:[#allocation5 + $0x428] sm:$0xff]
    %v209 = vld [vmem:[#allocation5 + $0x430] sm:$0xff]
    %v210 = vld [vmem:[#allocation5 + $0x438] sm:$0xff]
    %v211 = vld [vmem:[#allocation5 + $0x440] sm:$0xff]
    %v212 = vld [vmem:[#allocation5 + $0x448] sm:$0xff]
    %v213 = vld [vmem:[#allocation5 + $0x450] sm:$0xff]
    %v214 = vld [vmem:[#allocation5 + $0x458] sm:$0xff]
    %v215 = vld [vmem:[#allocation5 + $0x460] sm:$0xff]
    %v216 = vld [vmem:[#allocation5 + $0x468] sm:$0xff]
    %v217 = vld [vmem:[#allocation5 + $0x470] sm:$0xff]
    %v218 = vld [vmem:[#allocation5 + $0x478] sm:$0xff]
    %v219 = vld [vmem:[#allocation5 + $0x480] sm:$0xff]
    %v220 = vld [vmem:[#allocation5 + $0x488] sm:$0xff]
    %v221 = vld [vmem:[#allocation5 + $0x490] sm:$0xff]
    %v222 = vld [vmem:[#allocation5 + $0x498] sm:$0xff]
    %v223 = vld [vmem:[#allocation5 + $0x4a0] sm:$0xff]
    %v224 = vld [vmem:[#allocation5 + $0x4a8] sm:$0xff]
    %v225 = vld [vmem:[#allocation5 + $0x4b0] sm:$0xff]
    %v226 = vld [vmem:[#allocation5 + $0x4b8] sm:$0xff]
    %v227 = vld [vmem:[#allocation5 + $0x4c0] sm:$0xff]
    %v228 = vld [vmem:[#allocation5 + $0x4c8] sm:$0xff]
    %v229 = vld [vmem:[#allocation5 + $0x4d0] sm:$0xff]
    %v230 = vld [vmem:[#allocation5 + $0x4d8] sm:$0xff]
    %v231 = vld [vmem:[#allocation5 + $0x4e0] sm:$0xff]
    %v232 = vld [vmem:[#allocation5 + $0x4e8] sm:$0xff]
    %v233 = vld [vmem:[#allocation5 + $0x4f0] sm:$0xff]
    %v234 = vld [vmem:[#allocation5 + $0x4f8] sm:$0xff]
    %v235 = vld [vmem:[#allocation5 + $0x500] sm:$0xff]
    %v236 = vld [vmem:[#allocation5 + $0x508] sm:$0xff]
    %v237 = vld [vmem:[#allocation5 + $0x510] sm:$0xff]
    %v238 = vld [vmem:[#allocation5 + $0x518] sm:$0xff]
    %v239 = vld [vmem:[#allocation5 + $0x520] sm:$0xff]
    %v240 = vld [vmem:[#allocation5 + $0x528] sm:$0xff]
    %v241 = vld [vmem:[#allocation5 + $0x530] sm:$0xff]
    %v242 = vld [vmem:[#allocation5 + $0x538] sm:$0xff]
    %v243 = vld [vmem:[#allocation5 + $0x540] sm:$0xff]
    %v244 = vld [vmem:[#allocation5 + $0x548] sm:$0xff]
    %v245 = vld [vmem:[#allocation5 + $0x550] sm:$0xff]
    %v246 = vld [vmem:[#allocation5 + $0x558] sm:$0xff]
    %v247 = vld [vmem:[#allocation5 + $0x560] sm:$0xff]
    %v248 = vld [vmem:[#allocation5 + $0x568] sm:$0xff]
    %v249 = vld [vmem:[#allocation5 + $0x570] sm:$0xff]
    %v250 = vld [vmem:[#allocation5 + $0x578] sm:$0xff]
    %v251 = vld [vmem:[#allocation5 + $0x580] sm:$0xff]
    %v252 = vld [vmem:[#allocation5 + $0x588] sm:$0xff]
    %v253 = vld [vmem:[#allocation5 + $0x590] sm:$0xff]
    %v254 = vld [vmem:[#allocation5 + $0x598] sm:$0xff]
    %v255 = vld [vmem:[#allocation5 + $0x5a0] sm:$0xff]
    %v256 = vld [vmem:[#allocation5 + $0x5a8] sm:$0xff]
    %v257 = vld [vmem:[#allocation5 + $0x5b0] sm:$0xff]
    %v258 = vld [vmem:[#allocation5 + $0x5b8] sm:$0xff]
    %v259 = vld [vmem:[#allocation5 + $0x5c0] sm:$0xff]
    %v260 = vld [vmem:[#allocation5 + $0x5c8] sm:$0xff]
    %v261 = vld [vmem:[#allocation5 + $0x5d0] sm:$0xff]
    %v262 = vld [vmem:[#allocation5 + $0x5d8] sm:$0xff]
    %v263 = vld [vmem:[#allocation5 + $0x5e0] sm:$0xff]
    %v264 = vld [vmem:[#allocation5 + $0x5e8] sm:$0xff]
    %v265 = vld [vmem:[#allocation5 + $0x5f0] sm:$0xff]
    %v266 = vld [vmem:[#allocation5 + $0x5f8] sm:$0xff]
    %v267 = vld [vmem:[#allocation5 + $0x600] sm:$0xff]
    %v268 = vld [vmem:[#allocation5 + $0x608] sm:$0xff]
    %v269 = vld [vmem:[#allocation5 + $0x610] sm:$0xff]
    %v270 = vld [vmem:[#allocation5 + $0x618] sm:$0xff]
    %v271 = vld [vmem:[#allocation5 + $0x620] sm:$0xff]
    %v272 = vld [vmem:[#allocation5 + $0x628] sm:$0xff]
    %v273 = vld [vmem:[#allocation5 + $0x630] sm:$0xff]
    %v274 = vld [vmem:[#allocation5 + $0x638] sm:$0xff]
    %v275 = vld [vmem:[#allocation5 + $0x640] sm:$0xff]
    %v276 = vld [vmem:[#allocation5 + $0x648] sm:$0xff]
    %v277 = vld [vmem:[#allocation5 + $0x650] sm:$0xff]
    %v278 = vld [vmem:[#allocation5 + $0x658] sm:$0xff]
    %v279 = vld [vmem:[#allocation5 + $0x660] sm:$0xff]
    %v280 = vld [vmem:[#allocation5 + $0x668] sm:$0xff]
    %v281 = vld [vmem:[#allocation5 + $0x670] sm:$0xff]
    %v282 = vld [vmem:[#allocation5 + $0x678] sm:$0xff]
    %v283 = vld [vmem:[#allocation5 + $0x680] sm:$0xff]
    %v284 = vld [vmem:[#allocation5 + $0x688] sm:$0xff]
    %v285 = vld [vmem:[#allocation5 + $0x690] sm:$0xff]
    %v286 = vld [vmem:[#allocation5 + $0x698] sm:$0xff]
    %v287 = vld [vmem:[#allocation5 + $0x6a0] sm:$0xff]
    %v288 = vld [vmem:[#allocation5 + $0x6a8] sm:$0xff]
    %v289 = vld [vmem:[#allocation5 + $0x6b0] sm:$0xff]
    %v290 = vld [vmem:[#allocation5 + $0x6b8] sm:$0xff]
    %v291 = vld [vmem:[#allocation5 + $0x6c0] sm:$0xff]
    %v292 = vld [vmem:[#allocation5 + $0x6c8] sm:$0xff]
    %v293 = vld [vmem:[#allocation5 + $0x6d0] sm:$0xff]
    %v294 = vld [vmem:[#allocation5 + $0x6d8] sm:$0xff]
    %v295 = vld [vmem:[#allocation5 + $0x6e0] sm:$0xff]
    %v296 = vld [vmem:[#allocation5 + $0x6e8] sm:$0xff]
    %v297 = vld [vmem:[#allocation5 + $0x6f0] sm:$0xff]
    %v298 = vld [vmem:[#allocation5 + $0x6f8] sm:$0xff]
    %v299 = vld [vmem:[#allocation5 + $0x700] sm:$0xff]
    %v300 = vld [vmem:[#allocation5 + $0x708] sm:$0xff]
    %v301 = vld [vmem:[#allocation5 + $0x710] sm:$0xff]
    %v302 = vld [vmem:[#allocation5 + $0x718] sm:$0xff]
    %v303 = vld [vmem:[#allocation5 + $0x720] sm:$0xff]
    %v304 = vld [vmem:[#allocation5 + $0x728] sm:$0xff]
    %v305 = vld [vmem:[#allocation5 + $0x730] sm:$0xff]
    %v306 = vld [vmem:[#allocation5 + $0x738] sm:$0xff]
    %v307 = vld [vmem:[#allocation5 + $0x740] sm:$0xff]
    %v308 = vld [vmem:[#allocation5 + $0x748] sm:$0xff]
    %v309 = vld [vmem:[#allocation5 + $0x750] sm:$0xff]
    %v310 = vld [vmem:[#allocation5 + $0x758] sm:$0xff]
    %v311 = vld [vmem:[#allocation5 + $0x760] sm:$0xff]
    %v312 = vld [vmem:[#allocation5 + $0x768] sm:$0xff]
    %v313 = vld [vmem:[#allocation5 + $0x770] sm:$0xff]
    %v314 = vld [vmem:[#allocation5 + $0x778] sm:$0xff]
    %v315 = vld [vmem:[#allocation5 + $0x780] sm:$0xff]
    %v316 = vld [vmem:[#allocation5 + $0x788] sm:$0xff]
    %v317 = vld [vmem:[#allocation5 + $0x790] sm:$0xff]
    %v318 = vld [vmem:[#allocation5 + $0x798] sm:$0xff]
    %v319 = vld [vmem:[#allocation5 + $0x7a0] sm:$0xff]
    %v320 = vld [vmem:[#allocation5 + $0x7a8] sm:$0xff]
    %v321 = vld [vmem:[#allocation5 + $0x7b0] sm:$0xff]
    %v322 = vld [vmem:[#allocation5 + $0x7b8] sm:$0xff]
    %v323 = vld [vmem:[#allocation5 + $0x7c0] sm:$0xff]
    %v324 = vld [vmem:[#allocation5 + $0x7c8] sm:$0xff]
    %v325 = vld [vmem:[#allocation5 + $0x7d0] sm:$0xff]
    %v326 = vld [vmem:[#allocation5 + $0x7d8] sm:$0xff]
    %v327 = vld [vmem:[#allocation5 + $0x7e0] sm:$0xff]
    %v328 = vld [vmem:[#allocation5 + $0x7e8] sm:$0xff]
    %v329 = vld [vmem:[#allocation5 + $0x7f0] sm:$0xff]
    %v330 = vld [vmem:[#allocation5 + $0x7f8] sm:$0xff]
    %v331 = vld [vmem:[#allocation5 + $0x800] sm:$0xff]
    %v332 = vld [vmem:[#allocation5 + $0x808] sm:$0xff]
    %v333 = vld [vmem:[#allocation5 + $0x810] sm:$0xff]
    %v334 = vld [vmem:[#allocation5 + $0x818] sm:$0xff]
    %v335 = vld [vmem:[#allocation5 + $0x820] sm:$0xff]
    %v336 = vld [vmem:[#allocation5 + $0x828] sm:$0xff]
    %v337 = vld [vmem:[#allocation5 + $0x830] sm:$0xff]
    %v338 = vld [vmem:[#allocation5 + $0x838] sm:$0xff]
    %v339 = vld [vmem:[#allocation5 + $0x840] sm:$0xff]
    %v340 = vld [vmem:[#allocation5 + $0x848] sm:$0xff]
    %v341 = vld [vmem:[#allocation5 + $0x850] sm:$0xff]
    %v342 = vld [vmem:[#allocation5 + $0x858] sm:$0xff]
    %v343 = vld [vmem:[#allocation5 + $0x860] sm:$0xff]
    %v344 = vld [vmem:[#allocation5 + $0x868] sm:$0xff]
    %v345 = vld [vmem:[#allocation5 + $0x870] sm:$0xff]
    %v346 = vld [vmem:[#allocation5 + $0x878] sm:$0xff]
    %v347 = vld [vmem:[#allocation5 + $0x880] sm:$0xff]
    %v348 = vld [vmem:[#allocation5 + $0x888] sm:$0xff]
    %v349 = vld [vmem:[#allocation5 + $0x890] sm:$0xff]
    %v350 = vld [vmem:[#allocation5 + $0x898] sm:$0xff]
    %v351 = vld [vmem:[#allocation5 + $0x8a0] sm:$0xff]
    %v352 = vld [vmem:[#allocation5 + $0x8a8] sm:$0xff]
    %v353 = vld [vmem:[#allocation5 + $0x8b0] sm:$0xff]
    %v354 = vld [vmem:[#allocation5 + $0x8b8] sm:$0xff]
    %v355 = vld [vmem:[#allocation5 + $0x8c0] sm:$0xff]
    %v356 = vld [vmem:[#allocation5 + $0x8c8] sm:$0xff]
    %v357 = vld [vmem:[#allocation5 + $0x8d0] sm:$0xff]
    %v358 = vld [vmem:[#allocation5 + $0x8d8] sm:$0xff]
    %v359 = vld [vmem:[#allocation5 + $0x8e0] sm:$0xff]
    %v360 = vld [vmem:[#allocation5 + $0x8e8] sm:$0xff]
    %v361 = vld [vmem:[#allocation5 + $0x8f0] sm:$0xff]
    %v362 = vld [vmem:[#allocation5 + $0x8f8] sm:$0xff]
    %v363 = vld [vmem:[#allocation5 + $0x900] sm:$0xff]
    %v364 = vld [vmem:[#allocation5 + $0x908] sm:$0xff]
    %v365 = vld [vmem:[#allocation5 + $0x910] sm:$0xff]
    %v366 = vld [vmem:[#allocation5 + $0x918] sm:$0xff]
    %v367 = vld [vmem:[#allocation5 + $0x920] sm:$0xff]
    %v368 = vld [vmem:[#allocation5 + $0x928] sm:$0xff]
    %v369 = vld [vmem:[#allocation5 + $0x930] sm:$0xff]
    %v370 = vld [vmem:[#allocation5 + $0x938] sm:$0xff]
    %v371 = vld [vmem:[#allocation5 + $0x940] sm:$0xff]
    %v372 = vld [vmem:[#allocation5 + $0x948] sm:$0xff]
    %v373 = vld [vmem:[#allocation5 + $0x950] sm:$0xff]
    %v374 = vld [vmem:[#allocation5 + $0x958] sm:$0xff]
    %v375 = vld [vmem:[#allocation5 + $0x960] sm:$0xff]
    %v376 = vld [vmem:[#allocation5 + $0x968] sm:$0xff]
    %v377 = vld [vmem:[#allocation5 + $0x970] sm:$0xff]
    %v378 = vld [vmem:[#allocation5 + $0x978] sm:$0xff]
    %v379 = vld [vmem:[#allocation5 + $0x980] sm:$0xff]
    %v380 = vld [vmem:[#allocation5 + $0x988] sm:$0xff]
    %v381 = vld [vmem:[#allocation5 + $0x990] sm:$0xff]
    %v382 = vld [vmem:[#allocation5 + $0x998] sm:$0xff]
    %v383 = vld [vmem:[#allocation5 + $0x9a0] sm:$0xff]
    %v384 = vld [vmem:[#allocation5 + $0x9a8] sm:$0xff]
    %v385 = vld [vmem:[#allocation5 + $0x9b0] sm:$0xff]
    %v386 = vld [vmem:[#allocation5 + $0x9b8] sm:$0xff]
    %v387 = vld [vmem:[#allocation5 + $0x9c0] sm:$0xff]
    %v388 = vld [vmem:[#allocation5 + $0x9c8] sm:$0xff]
    %v389 = vld [vmem:[#allocation5 + $0x9d0] sm:$0xff]
    %v390 = vld [vmem:[#allocation5 + $0x9d8] sm:$0xff]
    %v391 = vld [vmem:[#allocation5 + $0x9e0] sm:$0xff]
    %v392 = vld [vmem:[#allocation5 + $0x9e8] sm:$0xff]
    %v393 = vld [vmem:[#allocation5 + $0x9f0] sm:$0xff]
    %v394 = vld [vmem:[#allocation5 + $0x9f8] sm:$0xff]
    %v395 = vld [vmem:[#allocation5 + $0xa00] sm:$0xff]
    %v396 = vld [vmem:[#allocation5 + $0xa08] sm:$0xff]
    %v397 = vld [vmem:[#allocation5 + $0xa10] sm:$0xff]
    %v398 = vld [vmem:[#allocation5 + $0xa18] sm:$0xff]
    %v399 = vld [vmem:[#allocation5 + $0xa20] sm:$0xff]
    %v400 = vld [vmem:[#allocation5 + $0xa28] sm:$0xff]
    %v401 = vld [vmem:[#allocation5 + $0xa30] sm:$0xff]
    %v402 = vld [vmem:[#allocation5 + $0xa38] sm:$0xff]
    %v403 = vld [vmem:[#allocation5 + $0xa40] sm:$0xff]
    %v404 = vld [vmem:[#allocation5 + $0xa48] sm:$0xff]
    %v405 = vld [vmem:[#allocation5 + $0xa50] sm:$0xff]
    %v406 = vld [vmem:[#allocation5 + $0xa58] sm:$0xff]
    %v407 = vld [vmem:[#allocation5 + $0xa60] sm:$0xff]
    %v408 = vld [vmem:[#allocation5 + $0xa68] sm:$0xff]
    %v409 = vld [vmem:[#allocation5 + $0xa70] sm:$0xff]
    %v410 = vld [vmem:[#allocation5 + $0xa78] sm:$0xff]
    %v411 = vld [vmem:[#allocation5 + $0xa80] sm:$0xff]
    %v412 = vld [vmem:[#allocation5 + $0xa88] sm:$0xff]
    %v413 = vld [vmem:[#allocation5 + $0xa90] sm:$0xff]
    %v414 = vld [vmem:[#allocation5 + $0xa98] sm:$0xff]
    %v415 = vld [vmem:[#allocation5 + $0xaa0] sm:$0xff]
    %v416 = vld [vmem:[#allocation5 + $0xaa8] sm:$0xff]
    %v417 = vld [vmem:[#allocation5 + $0xab0] sm:$0xff]
    %v418 = vld [vmem:[#allocation5 + $0xab8] sm:$0xff]
    %v419 = vld [vmem:[#allocation5 + $0xac0] sm:$0xff]
    %v420 = vld [vmem:[#allocation5 + $0xac8] sm:$0xff]
    %v421 = vld [vmem:[#allocation5 + $0xad0] sm:$0xff]
    %v422 = vld [vmem:[#allocation5 + $0xad8] sm:$0xff]
    %v423 = vld [vmem:[#allocation5 + $0xae0] sm:$0xff]
    %v424 = vld [vmem:[#allocation5 + $0xae8] sm:$0xff]
    %v425 = vld [vmem:[#allocation5 + $0xaf0] sm:$0xff]
    %v426 = vld [vmem:[#allocation5 + $0xaf8] sm:$0xff]
    %v427 = vld [vmem:[#allocation5 + $0xb00] sm:$0xff]
    %v428 = vld [vmem:[#allocation5 + $0xb08] sm:$0xff]
    %v429 = vld [vmem:[#allocation5 + $0xb10] sm:$0xff]
    %v430 = vld [vmem:[#allocation5 + $0xb18] sm:$0xff]
    %v431 = vld [vmem:[#allocation5 + $0xb20] sm:$0xff]
    %v432 = vld [vmem:[#allocation5 + $0xb28] sm:$0xff]
    %v433 = vld [vmem:[#allocation5 + $0xb30] sm:$0xff]
    %v434 = vld [vmem:[#allocation5 + $0xb38] sm:$0xff]
    %v435 = vld [vmem:[#allocation5 + $0xb40] sm:$0xff]
    %v436 = vld [vmem:[#allocation5 + $0xb48] sm:$0xff]
    %v437 = vld [vmem:[#allocation5 + $0xb50] sm:$0xff]
    %v438 = vld [vmem:[#allocation5 + $0xb58] sm:$0xff]
    %v439 = vld [vmem:[#allocation5 + $0xb60] sm:$0xff]
    %v440 = vld [vmem:[#allocation5 + $0xb68] sm:$0xff]
    %v441 = vld [vmem:[#allocation5 + $0xb70] sm:$0xff]
    %v442 = vld [vmem:[#allocation5 + $0xb78] sm:$0xff]
    %v443 = vld [vmem:[#allocation5 + $0xb80] sm:$0xff]
    %v444 = vld [vmem:[#allocation5 + $0xb88] sm:$0xff]
    %v445 = vld [vmem:[#allocation5 + $0xb90] sm:$0xff]
    %v446 = vld [vmem:[#allocation5 + $0xb98] sm:$0xff]
    %v447 = vld [vmem:[#allocation5 + $0xba0] sm:$0xff]
    %v448 = vld [vmem:[#allocation5 + $0xba8] sm:$0xff]
    %v449 = vld [vmem:[#allocation5 + $0xbb0] sm:$0xff]
    %v450 = vld [vmem:[#allocation5 + $0xbb8] sm:$0xff]
    %v451 = vld [vmem:[#allocation5 + $0xbc0] sm:$0xff]
    %v452 = vld [vmem:[#allocation5 + $0xbc8] sm:$0xff]
    %v453 = vld [vmem:[#allocation5 + $0xbd0] sm:$0xff]
    %v454 = vld [vmem:[#allocation5 + $0xbd8] sm:$0xff]
    %v455 = vld [vmem:[#allocation5 + $0xbe0] sm:$0xff]
    %v456 = vld [vmem:[#allocation5 + $0xbe8] sm:$0xff]
    %v457 = vld [vmem:[#allocation5 + $0xbf0] sm:$0xff]
    %v458 = vld [vmem:[#allocation5 + $0xbf8] sm:$0xff]
    %v459 = vld [vmem:[#allocation5 + $0xc00] sm:$0xff]
    %v460 = vld [vmem:[#allocation5 + $0xc08] sm:$0xff]
    %v461 = vld [vmem:[#allocation5 + $0xc10] sm:$0xff]
    %v462 = vld [vmem:[#allocation5 + $0xc18] sm:$0xff]
    %v463 = vld [vmem:[#allocation5 + $0xc20] sm:$0xff]
    %v464 = vld [vmem:[#allocation5 + $0xc28] sm:$0xff]
    %v465 = vld [vmem:[#allocation5 + $0xc30] sm:$0xff]
    %v466 = vld [vmem:[#allocation5 + $0xc38] sm:$0xff]
    %v467 = vld [vmem:[#allocation5 + $0xc40] sm:$0xff]
    %v468 = vld [vmem:[#allocation5 + $0xc48] sm:$0xff]
    %v469 = vld [vmem:[#allocation5 + $0xc50] sm:$0xff]
    %v470 = vld [vmem:[#allocation5 + $0xc58] sm:$0xff]
    %v471 = vld [vmem:[#allocation5 + $0xc60] sm:$0xff]
    %v472 = vld [vmem:[#allocation5 + $0xc68] sm:$0xff]
    %v473 = vld [vmem:[#allocation5 + $0xc70] sm:$0xff]
    %v474 = vld [vmem:[#allocation5 + $0xc78] sm:$0xff]
    %v475 = vld [vmem:[#allocation5 + $0xc80] sm:$0xff]
    %v476 = vld [vmem:[#allocation5 + $0xc88] sm:$0xff]
    %v477 = vld [vmem:[#allocation5 + $0xc90] sm:$0xff]
    %v478 = vld [vmem:[#allocation5 + $0xc98] sm:$0xff]
    %v479 = vld [vmem:[#allocation5 + $0xca0] sm:$0xff]
    %v480 = vld [vmem:[#allocation5 + $0xca8] sm:$0xff]
    %v481 = vld [vmem:[#allocation5 + $0xcb0] sm:$0xff]
    %v482 = vld [vmem:[#allocation5 + $0xcb8] sm:$0xff]
    %v483 = vld [vmem:[#allocation5 + $0xcc0] sm:$0xff]
    %v484 = vld [vmem:[#allocation5 + $0xcc8] sm:$0xff]
    %v485 = vld [vmem:[#allocation5 + $0xcd0] sm:$0xff]
    %v486 = vld [vmem:[#allocation5 + $0xcd8] sm:$0xff]
    %v487 = vld [vmem:[#allocation5 + $0xce0] sm:$0xff]
    %v488 = vld [vmem:[#allocation5 + $0xce8] sm:$0xff]
    %v489 = vld [vmem:[#allocation5 + $0xcf0] sm:$0xff]
    %v490 = vld [vmem:[#allocation5 + $0xcf8] sm:$0xff]
    %v491 = vld [vmem:[#allocation5 + $0xd00] sm:$0xff]
    %v492 = vld [vmem:[#allocation5 + $0xd08] sm:$0xff]
    %v493 = vld [vmem:[#allocation5 + $0xd10] sm:$0xff]
    %v494 = vld [vmem:[#allocation5 + $0xd18] sm:$0xff]
    %v495 = vld [vmem:[#allocation5 + $0xd20] sm:$0xff]
    %v496 = vld [vmem:[#allocation5 + $0xd28] sm:$0xff]
    %v497 = vld [vmem:[#allocation5 + $0xd30] sm:$0xff]
    %v498 = vld [vmem:[#allocation5 + $0xd38] sm:$0xff]
    %v499 = vld [vmem:[#allocation5 + $0xd40] sm:$0xff]
    %v500 = vld [vmem:[#allocation5 + $0xd48] sm:$0xff]
    %v501 = vld [vmem:[#allocation5 + $0xd50] sm:$0xff]
    %v502 = vld [vmem:[#allocation5 + $0xd58] sm:$0xff]
    %v503 = vld [vmem:[#allocation5 + $0xd60] sm:$0xff]
    %v504 = vld [vmem:[#allocation5 + $0xd68] sm:$0xff]
    %v505 = vld [vmem:[#allocation5 + $0xd70] sm:$0xff]
    %v506 = vld [vmem:[#allocation5 + $0xd78] sm:$0xff]
    %v507 = vld [vmem:[#allocation5 + $0xd80] sm:$0xff]
    %v508 = vld [vmem:[#allocation5 + $0xd88] sm:$0xff]
    %v509 = vld [vmem:[#allocation5 + $0xd90] sm:$0xff]
    %v510 = vld [vmem:[#allocation5 + $0xd98] sm:$0xff]
    %v511 = vld [vmem:[#allocation5 + $0xda0] sm:$0xff]
    %v512 = vld [vmem:[#allocation5 + $0xda8] sm:$0xff]
    %v513 = vld [vmem:[#allocation5 + $0xdb0] sm:$0xff]
    %v514 = vld [vmem:[#allocation5 + $0xdb8] sm:$0xff]
    %v515 = vld [vmem:[#allocation5 + $0xdc0] sm:$0xff]
    %v516 = vld [vmem:[#allocation5 + $0xdc8] sm:$0xff]
    %v517 = vld [vmem:[#allocation5 + $0xdd0] sm:$0xff]
    %v518 = vld [vmem:[#allocation5 + $0xdd8] sm:$0xff]
    %v519 = vld [vmem:[#allocation5 + $0xde0] sm:$0xff]
    %v520 = vld [vmem:[#allocation5 + $0xde8] sm:$0xff]
    %v521 = vld [vmem:[#allocation5 + $0xdf0] sm:$0xff]
    %v522 = vld [vmem:[#allocation5 + $0xdf8] sm:$0xff]
    %v523 = vld [vmem:[#allocation5 + $0xe00] sm:$0xff]
    %v524 = vld [vmem:[#allocation5 + $0xe08] sm:$0xff]
    %v525 = vld [vmem:[#allocation5 + $0xe10] sm:$0xff]
    %v526 = vld [vmem:[#allocation5 + $0xe18] sm:$0xff]
    %v527 = vld [vmem:[#allocation5 + $0xe20] sm:$0xff]
    %v528 = vld [vmem:[#allocation5 + $0xe28] sm:$0xff]
    %v529 = vld [vmem:[#allocation5 + $0xe30] sm:$0xff]
    %v530 = vld [vmem:[#allocation5 + $0xe38] sm:$0xff]
    %v531 = vld [vmem:[#allocation5 + $0xe40] sm:$0xff]
    %v532 = vld [vmem:[#allocation5 + $0xe48] sm:$0xff]
    %v533 = vld [vmem:[#allocation5 + $0xe50] sm:$0xff]
    %v534 = vld [vmem:[#allocation5 + $0xe58] sm:$0xff]
    %v535 = vld [vmem:[#allocation5 + $0xe60] sm:$0xff]
    %v536 = vld [vmem:[#allocation5 + $0xe68] sm:$0xff]
    %v537 = vld [vmem:[#allocation5 + $0xe70] sm:$0xff]
    %v538 = vld [vmem:[#allocation5 + $0xe78] sm:$0xff]
    %v539 = vld [vmem:[#allocation5 + $0xe80] sm:$0xff]
    %v540 = vld [vmem:[#allocation5 + $0xe88] sm:$0xff]
    %v541 = vld [vmem:[#allocation5 + $0xe90] sm:$0xff]
    %v542 = vld [vmem:[#allocation5 + $0xe98] sm:$0xff]
    %v543 = vld [vmem:[#allocation5 + $0xea0] sm:$0xff]
    %v544 = vld [vmem:[#allocation5 + $0xea8] sm:$0xff]
    %v545 = vld [vmem:[#allocation5 + $0xeb0] sm:$0xff]
    %v546 = vld [vmem:[#allocation5 + $0xeb8] sm:$0xff]
    %v547 = vld [vmem:[#allocation5 + $0xec0] sm:$0xff]
    %v548 = vld [vmem:[#allocation5 + $0xec8] sm:$0xff]
    %v549 = vld [vmem:[#allocation5 + $0xed0] sm:$0xff]
    %v550 = vld [vmem:[#allocation5 + $0xed8] sm:$0xff]
    %v551 = vld [vmem:[#allocation5 + $0xee0] sm:$0xff]
    %v552 = vld [vmem:[#allocation5 + $0xee8] sm:$0xff]
    %v553 = vld [vmem:[#allocation5 + $0xef0] sm:$0xff]
    %v554 = vld [vmem:[#allocation5 + $0xef8] sm:$0xff]
    %v555 = vld [vmem:[#allocation5 + $0xf00] sm:$0xff]
    %v556 = vld [vmem:[#allocation5 + $0xf08] sm:$0xff]
    %v557 = vld [vmem:[#allocation5 + $0xf10] sm:$0xff]
    %v558 = vld [vmem:[#allocation5 + $0xf18] sm:$0xff]
    %v559 = vld [vmem:[#allocation5 + $0xf20] sm:$0xff]
    %v560 = vld [vmem:[#allocation5 + $0xf28] sm:$0xff]
    %v561 = vld [vmem:[#allocation5 + $0xf30] sm:$0xff]
    %v562 = vld [vmem:[#allocation5 + $0xf38] sm:$0xff]
    %v563 = vld [vmem:[#allocation5 + $0xf40] sm:$0xff]
    %v564 = vld [vmem:[#allocation5 + $0xf48] sm:$0xff]
    %v565 = vld [vmem:[#allocation5 + $0xf50] sm:$0xff]
    %v566 = vld [vmem:[#allocation5 + $0xf58] sm:$0xff]
    %v567 = vld [vmem:[#allocation5 + $0xf60] sm:$0xff]
    %v568 = vld [vmem:[#allocation5 + $0xf68] sm:$0xff]
    %v569 = vld [vmem:[#allocation5 + $0xf70] sm:$0xff]
    %v570 = vld [vmem:[#allocation5 + $0xf78] sm:$0xff]
    %v571 = vld [vmem:[#allocation5 + $0xf80] sm:$0xff]
    %v572 = vld [vmem:[#allocation5 + $0xf88] sm:$0xff]
    %v573 = vld [vmem:[#allocation5 + $0xf90] sm:$0xff]
    %v574 = vld [vmem:[#allocation5 + $0xf98] sm:$0xff]
    %v575 = vld [vmem:[#allocation5 + $0xfa0] sm:$0xff]
    %v576 = vld [vmem:[#allocation5 + $0xfa8] sm:$0xff]
    %v577 = vld [vmem:[#allocation5 + $0xfb0] sm:$0xff]
    %v578 = vld [vmem:[#allocation5 + $0xfb8] sm:$0xff]
    %v579 = vld [vmem:[#allocation5 + $0xfc0] sm:$0xff]
    %v580 = vld [vmem:[#allocation5 + $0xfc8] sm:$0xff]
    %v581 = vld [vmem:[#allocation5 + $0xfd0] sm:$0xff]
    %v582 = vld [vmem:[#allocation5 + $0xfd8] sm:$0xff]
    %v583 = vld [vmem:[#allocation5 + $0xfe0] sm:$0xff]
    %v584 = vld [vmem:[#allocation5 + $0xfe8] sm:$0xff]
    %v585 = vld [vmem:[#allocation5 + $0xff0] sm:$0xff]
    %v586 = vld [vmem:[#allocation5 + $0xff8] sm:$0xff]
    %v603 = vcombine.high %v59, %v59
    %v605 = vunpack.c.l.s4 1983009808
    %v606 = vunpack.c.0.s8 %v605
    %v607 = vlaneseq
    %v608 = vshrl.u32 %v607, 7
    %v609 = vsub.s32 %v606, %v608
    %v610 = vrot.slane %v59, %v609
    %v612 = vunpack.c.l.s4 1983009808
    %v613 = vunpack.c.0.s8 %v612
    %v614 = vlaneseq
    %v615 = vshrl.u32 %v614, 7
    %v616 = vsub.s32 %v613, %v615
    %v617 = vrot.slane %v603, %v616
    %v618 = vcombine.high %v610, %v610
    %v619 = vcombine.high %v617, %v617
    %v620 = vcombine.high %v60, %v60
    %v622 = vunpack.c.l.s4 1983009808
    %v623 = vunpack.c.0.s8 %v622
    %v624 = vlaneseq
    %v625 = vshrl.u32 %v624, 7
    %v626 = vsub.s32 %v623, %v625
    %v627 = vrot.slane %v60, %v626
    %v629 = vunpack.c.l.s4 1983009808
    %v630 = vunpack.c.0.s8 %v629
    %v631 = vlaneseq
    %v632 = vshrl.u32 %v631, 7
    %v633 = vsub.s32 %v630, %v632
    %v634 = vrot.slane %v620, %v633
    %v635 = vcombine.high %v627, %v627
    %v636 = vcombine.high %v634, %v634
    %v637 = vcombine.high %v61, %v61
    %v639 = vunpack.c.l.s4 1983009808
    %v640 = vunpack.c.0.s8 %v639
    %v641 = vlaneseq
    %v642 = vshrl.u32 %v641, 7
    %v643 = vsub.s32 %v640, %v642
    %v644 = vrot.slane %v61, %v643
    %v646 = vunpack.c.l.s4 1983009808
    %v647 = vunpack.c.0.s8 %v646
    %v648 = vlaneseq
    %v649 = vshrl.u32 %v648, 7
    %v650 = vsub.s32 %v647, %v649
    %v651 = vrot.slane %v637, %v650
    %v652 = vcombine.high %v644, %v644
    %v653 = vcombine.high %v651, %v651
    %v654 = vcombine.high %v62, %v62
    %v656 = vunpack.c.l.s4 1983009808
    %v657 = vunpack.c.0.s8 %v656
    %v658 = vlaneseq
    %v659 = vshrl.u32 %v658, 7
    %v660 = vsub.s32 %v657, %v659
    %v661 = vrot.slane %v62, %v660
    %v663 = vunpack.c.l.s4 1983009808
    %v664 = vunpack.c.0.s8 %v663
    %v665 = vlaneseq
    %v666 = vshrl.u32 %v665, 7
    %v667 = vsub.s32 %v664, %v666
    %v668 = vrot.slane %v654, %v667
    %v669 = vcombine.high %v661, %v661
    %v670 = vcombine.high %v668, %v668
    %v671 = vcombine.high %v63, %v63
    %v673 = vunpack.c.l.s4 1983009808
    %v674 = vunpack.c.0.s8 %v673
    %v675 = vlaneseq
    %v676 = vshrl.u32 %v675, 7
    %v677 = vsub.s32 %v674, %v676
    %v678 = vrot.slane %v63, %v677
    %v680 = vunpack.c.l.s4 1983009808
    %v681 = vunpack.c.0.s8 %v680
    %v682 = vlaneseq
    %v683 = vshrl.u32 %v682, 7
    %v684 = vsub.s32 %v681, %v683
    %v685 = vrot.slane %v671, %v684
    %v686 = vcombine.high %v678, %v678
    %v687 = vcombine.high %v685, %v685
    %v688 = vcombine.high %v64, %v64
    %v690 = vunpack.c.l.s4 1983009808
    %v691 = vunpack.c.0.s8 %v690
    %v692 = vlaneseq
    %v693 = vshrl.u32 %v692, 7
    %v694 = vsub.s32 %v691, %v693
    %v695 = vrot.slane %v64, %v694
    %v697 = vunpack.c.l.s4 1983009808
    %v698 = vunpack.c.0.s8 %v697
    %v699 = vlaneseq
    %v700 = vshrl.u32 %v699, 7
    %v701 = vsub.s32 %v698, %v700
    %v702 = vrot.slane %v688, %v701
    %v703 = vcombine.high %v695, %v695
    %v704 = vcombine.high %v702, %v702
    %v705 = vcombine.high %v65, %v65
    %v707 = vunpack.c.l.s4 1983009808
    %v708 = vunpack.c.0.s8 %v707
    %v709 = vlaneseq
    %v710 = vshrl.u32 %v709, 7
    %v711 = vsub.s32 %v708, %v710
    %v712 = vrot.slane %v65, %v711
    %v714 = vunpack.c.l.s4 1983009808
    %v715 = vunpack.c.0.s8 %v714
    %v716 = vlaneseq
    %v717 = vshrl.u32 %v716, 7
    %v718 = vsub.s32 %v715, %v717
    %v719 = vrot.slane %v705, %v718
    %v720 = vcombine.high %v712, %v712
    %v721 = vcombine.high %v719, %v719
    %v722 = vcombine.high %v66, %v66
    %v724 = vunpack.c.l.s4 1983009808
    %v725 = vunpack.c.0.s8 %v724
    %v726 = vlaneseq
    %v727 = vshrl.u32 %v726, 7
    %v728 = vsub.s32 %v725, %v727
    %v729 = vrot.slane %v66, %v728
    %v731 = vunpack.c.l.s4 1983009808
    %v732 = vunpack.c.0.s8 %v731
    %v733 = vlaneseq
    %v734 = vshrl.u32 %v733, 7
    %v735 = vsub.s32 %v732, %v734
    %v736 = vrot.slane %v722, %v735
    %v737 = vcombine.high %v729, %v729
    %v738 = vcombine.high %v736, %v736
    %v739 = vcombine.high %v67, %v67
    %v741 = vunpack.c.l.s4 1983009808
    %v742 = vunpack.c.0.s8 %v741
    %v743 = vlaneseq
    %v744 = vshrl.u32 %v743, 7
    %v745 = vsub.s32 %v742, %v744
    %v746 = vrot.slane %v67, %v745
    %v748 = vunpack.c.l.s4 1983009808
    %v749 = vunpack.c.0.s8 %v748
    %v750 = vlaneseq
    %v751 = vshrl.u32 %v750, 7
    %v752 = vsub.s32 %v749, %v751
    %v753 = vrot.slane %v739, %v752
    %v754 = vcombine.high %v746, %v746
    %v755 = vcombine.high %v753, %v753
    %v756 = vcombine.high %v68, %v68
    %v758 = vunpack.c.l.s4 1983009808
    %v759 = vunpack.c.0.s8 %v758
    %v760 = vlaneseq
    %v761 = vshrl.u32 %v760, 7
    %v762 = vsub.s32 %v759, %v761
    %v763 = vrot.slane %v68, %v762
    %v765 = vunpack.c.l.s4 1983009808
    %v766 = vunpack.c.0.s8 %v765
    %v767 = vlaneseq
    %v768 = vshrl.u32 %v767, 7
    %v769 = vsub.s32 %v766, %v768
    %v770 = vrot.slane %v756, %v769
    %v771 = vcombine.high %v763, %v763
    %v772 = vcombine.high %v770, %v770
    %v773 = vcombine.high %v69, %v69
    %v775 = vunpack.c.l.s4 1983009808
    %v776 = vunpack.c.0.s8 %v775
    %v777 = vlaneseq
    %v778 = vshrl.u32 %v777, 7
    %v779 = vsub.s32 %v776, %v778
    %v780 = vrot.slane %v69, %v779
    %v782 = vunpack.c.l.s4 1983009808
    %v783 = vunpack.c.0.s8 %v782
    %v784 = vlaneseq
    %v785 = vshrl.u32 %v784, 7
    %v786 = vsub.s32 %v783, %v785
    %v787 = vrot.slane %v773, %v786
    %v788 = vcombine.high %v780, %v780
    %v789 = vcombine.high %v787, %v787
    %v790 = vcombine.high %v70, %v70
    %v792 = vunpack.c.l.s4 1983009808
    %v793 = vunpack.c.0.s8 %v792
    %v794 = vlaneseq
    %v795 = vshrl.u32 %v794, 7
    %v796 = vsub.s32 %v793, %v795
    %v797 = vrot.slane %v70, %v796
    %v799 = vunpack.c.l.s4 1983009808
    %v800 = vunpack.c.0.s8 %v799
    %v801 = vlaneseq
    %v802 = vshrl.u32 %v801, 7
    %v803 = vsub.s32 %v800, %v802
    %v804 = vrot.slane %v790, %v803
    %v805 = vcombine.high %v797, %v797
    %v806 = vcombine.high %v804, %v804
    %v807 = vcombine.high %v71, %v71
    %v809 = vunpack.c.l.s4 1983009808
    %v810 = vunpack.c.0.s8 %v809
    %v811 = vlaneseq
    %v812 = vshrl.u32 %v811, 7
    %v813 = vsub.s32 %v810, %v812
    %v814 = vrot.slane %v71, %v813
    %v816 = vunpack.c.l.s4 1983009808
    %v817 = vunpack.c.0.s8 %v816
    %v818 = vlaneseq
    %v819 = vshrl.u32 %v818, 7
    %v820 = vsub.s32 %v817, %v819
    %v821 = vrot.slane %v807, %v820
    %v822 = vcombine.high %v814, %v814
    %v823 = vcombine.high %v821, %v821
    %v824 = vcombine.high %v72, %v72
    %v826 = vunpack.c.l.s4 1983009808
    %v827 = vunpack.c.0.s8 %v826
    %v828 = vlaneseq
    %v829 = vshrl.u32 %v828, 7
    %v830 = vsub.s32 %v827, %v829
    %v831 = vrot.slane %v72, %v830
    %v833 = vunpack.c.l.s4 1983009808
    %v834 = vunpack.c.0.s8 %v833
    %v835 = vlaneseq
    %v836 = vshrl.u32 %v835, 7
    %v837 = vsub.s32 %v834, %v836
    %v838 = vrot.slane %v824, %v837
    %v839 = vcombine.high %v831, %v831
    %v840 = vcombine.high %v838, %v838
    %v841 = vcombine.high %v73, %v73
    %v843 = vunpack.c.l.s4 1983009808
    %v844 = vunpack.c.0.s8 %v843
    %v845 = vlaneseq
    %v846 = vshrl.u32 %v845, 7
    %v847 = vsub.s32 %v844, %v846
    %v848 = vrot.slane %v73, %v847
    %v850 = vunpack.c.l.s4 1983009808
    %v851 = vunpack.c.0.s8 %v850
    %v852 = vlaneseq
    %v853 = vshrl.u32 %v852, 7
    %v854 = vsub.s32 %v851, %v853
    %v855 = vrot.slane %v841, %v854
    %v856 = vcombine.high %v848, %v848
    %v857 = vcombine.high %v855, %v855
    %v858 = vcombine.high %v74, %v74
    %v860 = vunpack.c.l.s4 1983009808
    %v861 = vunpack.c.0.s8 %v860
    %v862 = vlaneseq
    %v863 = vshrl.u32 %v862, 7
    %v864 = vsub.s32 %v861, %v863
    %v865 = vrot.slane %v74, %v864
    %v867 = vunpack.c.l.s4 1983009808
    %v868 = vunpack.c.0.s8 %v867
    %v869 = vlaneseq
    %v870 = vshrl.u32 %v869, 7
    %v871 = vsub.s32 %v868, %v870
    %v872 = vrot.slane %v858, %v871
    %v873 = vcombine.high %v865, %v865
    %v874 = vcombine.high %v872, %v872
    %939 = vmatprep.subr.mxu0 %v76
    %940 = vmatpush1.xpose.msra.mxu0 %v75
    %941 = vmatprep.subr.mxu0 %v140
    %942 = vmatpush1.xpose.msra.mxu0 %v139
    %943 = vmatprep.subr.mxu0 %v204
    %944 = vmatpush1.xpose.msra.mxu0 %v203
    %945 = vmatprep.subr.mxu0 %v268
    %946 = vmatpush1.xpose.msra.mxu0 %v267
    %947 = vmatprep.subr.mxu0 %v332
    %948 = vmatpush1.xpose.msra.mxu0 %v331
    %949 = vmatprep.subr.mxu0 %v396
    %950 = vmatpush1.xpose.msra.mxu0 %v395
    %951 = vmatprep.subr.mxu0 %v460
    %952 = vmatpush1.xpose.msra.mxu0 %v459
    %953 = vmatprep.subr.mxu0 %v524
    %954 = vmatpush1.xpose.msra.mxu0 %v523
    %955 = vmatprep.subr.mxu0 0.0
    %956 = vmatpush1.xpose.msra.mxu0 0.0
    %957 = vmatprep.subr.mxu0 0.0
    %958 = vmatpush1.xpose.msra.mxu0 0.0
    %959 = vmatprep.subr.mxu0 0.0
    %960 = vmatpush1.xpose.msra.mxu0 0.0
    %961 = vmatprep.subr.mxu0 0.0
    %962 = vmatpush1.xpose.msra.mxu0 0.0
    %963 = vmatprep.subr.mxu0 0.0
    %964 = vmatpush1.xpose.msra.mxu0 0.0
    %965 = vmatprep.subr.mxu0 0.0
    %966 = vmatpush1.xpose.msra.mxu0 0.0
    %967 = vmatprep.subr.mxu0 0.0
    %968 = vmatpush1.xpose.msra.mxu0 0.0
    %969 = vmatprep.subr.mxu0 0.0
    %970 = vmatpush1.xpose.msra.mxu0 0.0
    %971 = vmatprep.subr.mxu0 0.0
    %972 = vmatpush1.xpose.msra.mxu0 0.0
    %973 = vmatprep.subr.mxu0 0.0
    %974 = vmatpush1.xpose.msra.mxu0 0.0
    %975 = vmatprep.subr.mxu0 0.0
    %976 = vmatpush1.xpose.msra.mxu0 0.0
    %977 = vmatprep.subr.mxu0 0.0
    %978 = vmatpush1.xpose.msra.mxu0 0.0
    %979 = vmatprep.subr.mxu0 0.0
    %980 = vmatpush1.xpose.msra.mxu0 0.0
    %981 = vmatprep.subr.mxu0 0.0
    %982 = vmatpush1.xpose.msra.mxu0 0.0
    %983 = vmatprep.subr.mxu0 0.0
    %984 = vmatpush1.xpose.msra.mxu0 0.0
    %985 = vmatprep.subr.mxu0 0.0
    %986 = vmatpush1.xpose.msra.mxu0 0.0
    %987 = vmatprep.subr.mxu0 0.0
    %988 = vmatpush1.xpose.msra.mxu0 0.0
    %989 = vmatprep.subr.mxu0 0.0
    %990 = vmatpush1.xpose.msra.mxu0 0.0
    %991 = vmatprep.subr.mxu0 0.0
    %992 = vmatpush1.xpose.msra.mxu0 0.0
    %993 = vmatprep.subr.mxu0 0.0
    %994 = vmatpush1.xpose.msra.mxu0 0.0
    %995 = vmatprep.subr.mxu0 0.0
    %996 = vmatpush1.xpose.msra.mxu0 0.0
    %997 = vmatprep.subr.mxu0 0.0
    %998 = vmatpush1.xpose.msra.mxu0 0.0
    %999 = vmatprep.subr.mxu0 0.0
    %1000 = vmatpush1.xpose.msra.mxu0 0.0
    %1001 = vmatprep.subr.mxu0 0.0
    %1002 = vmatpush1.xpose.msra.mxu0 0.0
    %1003 = vmatprep.mubr.f32.mxu0 %v618
    %1004 = vmatmul.mubr.f32.gmra.mrb[0].mxu0 %v610
    %v1005 = vpop.f32.mrb[0].mxu0
    %v1006 = vadd.f32 0.0, %v1005
    %v1007 = vpop.f32.mrb[0].mxu0
    %1008 = vdwg.mxu0
    %1009 = vmatprep.subr.mxu0 %v78
    %1010 = vmatpush1.xpose.msra.mxu0 %v77
    %1011 = vmatprep.subr.mxu0 %v142
    %1012 = vmatpush1.xpose.msra.mxu0 %v141
    %1013 = vmatprep.subr.mxu0 %v206
    %1014 = vmatpush1.xpose.msra.mxu0 %v205
    %1015 = vmatprep.subr.mxu0 %v270
    %1016 = vmatpush1.xpose.msra.mxu0 %v269
    %1017 = vmatprep.subr.mxu0 %v334
    %1018 = vmatpush1.xpose.msra.mxu0 %v333
    %1019 = vmatprep.subr.mxu0 %v398
    %1020 = vmatpush1.xpose.msra.mxu0 %v397
    %1021 = vmatprep.subr.mxu0 %v462
    %1022 = vmatpush1.xpose.msra.mxu0 %v461
    %1023 = vmatprep.subr.mxu0 %v526
    %1024 = vmatpush1.xpose.msra.mxu0 %v525
    %1025 = vmatprep.subr.mxu0 0.0
    %1026 = vmatpush1.xpose.msra.mxu0 0.0
    %1027 = vmatprep.subr.mxu0 0.0
    %1028 = vmatpush1.xpose.msra.mxu0 0.0
    %1029 = vmatprep.subr.mxu0 0.0
    %1030 = vmatpush1.xpose.msra.mxu0 0.0
    %1031 = vmatprep.subr.mxu0 0.0
    %1032 = vmatpush1.xpose.msra.mxu0 0.0
    %1033 = vmatprep.subr.mxu0 0.0
    %1034 = vmatpush1.xpose.msra.mxu0 0.0
    %1035 = vmatprep.subr.mxu0 0.0
    %1036 = vmatpush1.xpose.msra.mxu0 0.0
    %1037 = vmatprep.subr.mxu0 0.0
    %1038 = vmatpush1.xpose.msra.mxu0 0.0
    %1039 = vmatprep.subr.mxu0 0.0
    %1040 = vmatpush1.xpose.msra.mxu0 0.0
    %1041 = vmatprep.subr.mxu0 0.0
    %1042 = vmatpush1.xpose.msra.mxu0 0.0
    %1043 = vmatprep.subr.mxu0 0.0
    %1044 = vmatpush1.xpose.msra.mxu0 0.0
    %1045 = vmatprep.subr.mxu0 0.0
    %1046 = vmatpush1.xpose.msra.mxu0 0.0
    %1047 = vmatprep.subr.mxu0 0.0
    %1048 = vmatpush1.xpose.msra.mxu0 0.0
    %1049 = vmatprep.subr.mxu0 0.0
    %1050 = vmatpush1.xpose.msra.mxu0 0.0
    %1051 = vmatprep.subr.mxu0 0.0
    %1052 = vmatpush1.xpose.msra.mxu0 0.0
    %1053 = vmatprep.subr.mxu0 0.0
    %1054 = vmatpush1.xpose.msra.mxu0 0.0
    %1055 = vmatprep.subr.mxu0 0.0
    %1056 = vmatpush1.xpose.msra.mxu0 0.0
    %1057 = vmatprep.subr.mxu0 0.0
    %1058 = vmatpush1.xpose.msra.mxu0 0.0
    %1059 = vmatprep.subr.mxu0 0.0
    %1060 = vmatpush1.xpose.msra.mxu0 0.0
    %1061 = vmatprep.subr.mxu0 0.0
    %1062 = vmatpush1.xpose.msra.mxu0 0.0
    %1063 = vmatprep.subr.mxu0 0.0
    %1064 = vmatpush1.xpose.msra.mxu0 0.0
    %1065 = vmatprep.subr.mxu0 0.0
    %1066 = vmatpush1.xpose.msra.mxu0 0.0
    %1067 = vmatprep.subr.mxu0 0.0
    %1068 = vmatpush1.xpose.msra.mxu0 0.0
    %1069 = vmatprep.subr.mxu0 0.0
    %1070 = vmatpush1.xpose.msra.mxu0 0.0
    %1071 = vmatprep.subr.mxu0 0.0
    %1072 = vmatpush1.xpose.msra.mxu0 0.0
    %1073 = vmatprep.mubr.f32.mxu0 %v619
    %1074 = vmatmul.mubr.f32.gmra.mrb[0].mxu0 %v617
    %v1075 = vpop.f32.mrb[0].mxu0
    %v1076 = vadd.f32 %v1006, %v1075
    %v1077 = vpop.f32.mrb[0].mxu0
    %1078 = vdwg.mxu0
    %1079 = vmatprep.subr.mxu0 %v80
    %1080 = vmatpush1.xpose.msra.mxu0 %v79
    %1081 = vmatprep.subr.mxu0 %v144
    %1082 = vmatpush1.xpose.msra.mxu0 %v143
    %1083 = vmatprep.subr.mxu0 %v208
    %1084 = vmatpush1.xpose.msra.mxu0 %v207
    %1085 = vmatprep.subr.mxu0 %v272
    %1086 = vmatpush1.xpose.msra.mxu0 %v271
    %1087 = vmatprep.subr.mxu0 %v336
    %1088 = vmatpush1.xpose.msra.mxu0 %v335
    %1089 = vmatprep.subr.mxu0 %v400
    %1090 = vmatpush1.xpose.msra.mxu0 %v399
    %1091 = vmatprep.subr.mxu0 %v464
    %1092 = vmatpush1.xpose.msra.mxu0 %v463
    %1093 = vmatprep.subr.mxu0 %v528
    %1094 = vmatpush1.xpose.msra.mxu0 %v527
    %1095 = vmatprep.subr.mxu0 0.0
    %1096 = vmatpush1.xpose.msra.mxu0 0.0
    %1097 = vmatprep.subr.mxu0 0.0
    %1098 = vmatpush1.xpose.msra.mxu0 0.0
    %1099 = vmatprep.subr.mxu0 0.0
    %1100 = vmatpush1.xpose.msra.mxu0 0.0
    %1101 = vmatprep.subr.mxu0 0.0
    %1102 = vmatpush1.xpose.msra.mxu0 0.0
    %1103 = vmatprep.subr.mxu0 0.0
    %1104 = vmatpush1.xpose.msra.mxu0 0.0
    %1105 = vmatprep.subr.mxu0 0.0
    %1106 = vmatpush1.xpose.msra.mxu0 0.0
    %1107 = vmatprep.subr.mxu0 0.0
    %1108 = vmatpush1.xpose.msra.mxu0 0.0
    %1109 = vmatprep.subr.mxu0 0.0
    %1110 = vmatpush1.xpose.msra.mxu0 0.0
    %1111 = vmatprep.subr.mxu0 0.0
    %1112 = vmatpush1.xpose.msra.mxu0 0.0
    %1113 = vmatprep.subr.mxu0 0.0
    %1114 = vmatpush1.xpose.msra.mxu0 0.0
    %1115 = vmatprep.subr.mxu0 0.0
    %1116 = vmatpush1.xpose.msra.mxu0 0.0
    %1117 = vmatprep.subr.mxu0 0.0
    %1118 = vmatpush1.xpose.msra.mxu0 0.0
    %1119 = vmatprep.subr.mxu0 0.0
    %1120 = vmatpush1.xpose.msra.mxu0 0.0
    %1121 = vmatprep.subr.mxu0 0.0
    %1122 = vmatpush1.xpose.msra.mxu0 0.0
    %1123 = vmatprep.subr.mxu0 0.0
    %1124 = vmatpush1.xpose.msra.mxu0 0.0
    %1125 = vmatprep.subr.mxu0 0.0
    %1126 = vmatpush1.xpose.msra.mxu0 0.0
    %1127 = vmatprep.subr.mxu0 0.0
    %1128 = vmatpush1.xpose.msra.mxu0 0.0
    %1129 = vmatprep.subr.mxu0 0.0
    %1130 = vmatpush1.xpose.msra.mxu0 0.0
    %1131 = vmatprep.subr.mxu0 0.0
    %1132 = vmatpush1.xpose.msra.mxu0 0.0
    %1133 = vmatprep.subr.mxu0 0.0
    %1134 = vmatpush1.xpose.msra.mxu0 0.0
    %1135 = vmatprep.subr.mxu0 0.0
    %1136 = vmatpush1.xpose.msra.mxu0 0.0
    %1137 = vmatprep.subr.mxu0 0.0
    %1138 = vmatpush1.xpose.msra.mxu0 0.0
    %1139 = vmatprep.subr.mxu0 0.0
    %1140 = vmatpush1.xpose.msra.mxu0 0.0
    %1141 = vmatprep.subr.mxu0 0.0
    %1142 = vmatpush1.xpose.msra.mxu0 0.0
    %1143 = vmatprep.mubr.f32.mxu0 %v635
    %1144 = vmatmul.mubr.f32.gmra.mrb[0].mxu0 %v627
    %v1145 = vpop.f32.mrb[0].mxu0
    %v1146 = vadd.f32 %v1076, %v1145
    %v1147 = vpop.f32.mrb[0].mxu0
    %1148 = vdwg.mxu0
    %1149 = vmatprep.subr.mxu0 %v82
    %1150 = vmatpush1.xpose.msra.mxu0 %v81
    %1151 = vmatprep.subr.mxu0 %v146
    %1152 = vmatpush1.xpose.msra.mxu0 %v145
    %1153 = vmatprep.subr.mxu0 %v210
    %1154 = vmatpush1.xpose.msra.mxu0 %v209
    %1155 = vmatprep.subr.mxu0 %v274
    %1156 = vmatpush1.xpose.msra.mxu0 %v273
    %1157 = vmatprep.subr.mxu0 %v338
    %1158 = vmatpush1.xpose.msra.mxu0 %v337
    %1159 = vmatprep.subr.mxu0 %v402
    %1160 = vmatpush1.xpose.msra.mxu0 %v401
    %1161 = vmatprep.subr.mxu0 %v466
    %1162 = vmatpush1.xpose.msra.mxu0 %v465
    %1163 = vmatprep.subr.mxu0 %v530
    %1164 = vmatpush1.xpose.msra.mxu0 %v529
    %1165 = vmatprep.subr.mxu0 0.0
    %1166 = vmatpush1.xpose.msra.mxu0 0.0
    %1167 = vmatprep.subr.mxu0 0.0
    %1168 = vmatpush1.xpose.msra.mxu0 0.0
    %1169 = vmatprep.subr.mxu0 0.0
    %1170 = vmatpush1.xpose.msra.mxu0 0.0
    %1171 = vmatprep.subr.mxu0 0.0
    %1172 = vmatpush1.xpose.msra.mxu0 0.0
    %1173 = vmatprep.subr.mxu0 0.0
    %1174 = vmatpush1.xpose.msra.mxu0 0.0
    %1175 = vmatprep.subr.mxu0 0.0
    %1176 = vmatpush1.xpose.msra.mxu0 0.0
    %1177 = vmatprep.subr.mxu0 0.0
    %1178 = vmatpush1.xpose.msra.mxu0 0.0
    %1179 = vmatprep.subr.mxu0 0.0
    %1180 = vmatpush1.xpose.msra.mxu0 0.0
    %1181 = vmatprep.subr.mxu0 0.0
    %1182 = vmatpush1.xpose.msra.mxu0 0.0
    %1183 = vmatprep.subr.mxu0 0.0
    %1184 = vmatpush1.xpose.msra.mxu0 0.0
    %1185 = vmatprep.subr.mxu0 0.0
    %1186 = vmatpush1.xpose.msra.mxu0 0.0
    %1187 = vmatprep.subr.mxu0 0.0
    %1188 = vmatpush1.xpose.msra.mxu0 0.0
    %1189 = vmatprep.subr.mxu0 0.0
    %1190 = vmatpush1.xpose.msra.mxu0 0.0
    %1191 = vmatprep.subr.mxu0 0.0
    %1192 = vmatpush1.xpose.msra.mxu0 0.0
    %1193 = vmatprep.subr.mxu0 0.0
    %1194 = vmatpush1.xpose.msra.mxu0 0.0
    %1195 = vmatprep.subr.mxu0 0.0
    %1196 = vmatpush1.xpose.msra.mxu0 0.0
    %1197 = vmatprep.subr.mxu0 0.0
    %1198 = vmatpush1.xpose.msra.mxu0 0.0
    %1199 = vmatprep.subr.mxu0 0.0
    %1200 = vmatpush1.xpose.msra.mxu0 0.0
    %1201 = vmatprep.subr.mxu0 0.0
    %1202 = vmatpush1.xpose.msra.mxu0 0.0
    %1203 = vmatprep.subr.mxu0 0.0
    %1204 = vmatpush1.xpose.msra.mxu0 0.0
    %1205 = vmatprep.subr.mxu0 0.0
    %1206 = vmatpush1.xpose.msra.mxu0 0.0
    %1207 = vmatprep.subr.mxu0 0.0
    %1208 = vmatpush1.xpose.msra.mxu0 0.0
    %1209 = vmatprep.subr.mxu0 0.0
    %1210 = vmatpush1.xpose.msra.mxu0 0.0
    %1211 = vmatprep.subr.mxu0 0.0
    %1212 = vmatpush1.xpose.msra.mxu0 0.0
    %1213 = vmatprep.mubr.f32.mxu0 %v636
    %1214 = vmatmul.mubr.f32.gmra.mrb[0].mxu0 %v634
    %v1215 = vpop.f32.mrb[0].mxu0
    %v1216 = vadd.f32 %v1146, %v1215
    %v1217 = vpop.f32.mrb[0].mxu0
    %1218 = vdwg.mxu0
    %1219 = vmatprep.subr.mxu0 %v84
    %1220 = vmatpush1.xpose.msra.mxu0 %v83
    %1221 = vmatprep.subr.mxu0 %v148
    %1222 = vmatpush1.xpose.msra.mxu0 %v147
    %1223 = vmatprep.subr.mxu0 %v212
    %1224 = vmatpush1.xpose.msra.mxu0 %v211
    %1225 = vmatprep.subr.mxu0 %v276
    %1226 = vmatpush1.xpose.msra.mxu0 %v275
    %1227 = vmatprep.subr.mxu0 %v340
    %1228 = vmatpush1.xpose.msra.mxu0 %v339
    %1229 = vmatprep.subr.mxu0 %v404
    %1230 = vmatpush1.xpose.msra.mxu0 %v403
    %1231 = vmatprep.subr.mxu0 %v468
    %1232 = vmatpush1.xpose.msra.mxu0 %v467
    %1233 = vmatprep.subr.mxu0 %v532
    %1234 = vmatpush1.xpose.msra.mxu0 %v531
    %1235 = vmatprep.subr.mxu0 0.0
    %1236 = vmatpush1.xpose.msra.mxu0 0.0
    %1237 = vmatprep.subr.mxu0 0.0
    %1238 = vmatpush1.xpose.msra.mxu0 0.0
    %1239 = vmatprep.subr.mxu0 0.0
    %1240 = vmatpush1.xpose.msra.mxu0 0.0
    %1241 = vmatprep.subr.mxu0 0.0
    %1242 = vmatpush1.xpose.msra.mxu0 0.0
    %1243 = vmatprep.subr.mxu0 0.0
    %1244 = vmatpush1.xpose.msra.mxu0 0.0
    %1245 = vmatprep.subr.mxu0 0.0
    %1246 = vmatpush1.xpose.msra.mxu0 0.0
    %1247 = vmatprep.subr.mxu0 0.0
    %1248 = vmatpush1.xpose.msra.mxu0 0.0
    %1249 = vmatprep.subr.mxu0 0.0
    %1250 = vmatpush1.xpose.msra.mxu0 0.0
    %1251 = vmatprep.subr.mxu0 0.0
    %1252 = vmatpush1.xpose.msra.mxu0 0.0
    %1253 = vmatprep.subr.mxu0 0.0
    %1254 = vmatpush1.xpose.msra.mxu0 0.0
    %1255 = vmatprep.subr.mxu0 0.0
    %1256 = vmatpush1.xpose.msra.mxu0 0.0
    %1257 = vmatprep.subr.mxu0 0.0
    %1258 = vmatpush1.xpose.msra.mxu0 0.0
    %1259 = vmatprep.subr.mxu0 0.0
    %1260 = vmatpush1.xpose.msra.mxu0 0.0
    %1261 = vmatprep.subr.mxu0 0.0
    %1262 = vmatpush1.xpose.msra.mxu0 0.0
    %1263 = vmatprep.subr.mxu0 0.0
    %1264 = vmatpush1.xpose.msra.mxu0 0.0
    %1265 = vmatprep.subr.mxu0 0.0
    %1266 = vmatpush1.xpose.msra.mxu0 0.0
    %1267 = vmatprep.subr.mxu0 0.0
    %1268 = vmatpush1.xpose.msra.mxu0 0.0
    %1269 = vmatprep.subr.mxu0 0.0
    %1270 = vmatpush1.xpose.msra.mxu0 0.0
    %1271 = vmatprep.subr.mxu0 0.0
    %1272 = vmatpush1.xpose.msra.mxu0 0.0
    %1273 = vmatprep.subr.mxu0 0.0
    %1274 = vmatpush1.xpose.msra.mxu0 0.0
    %1275 = vmatprep.subr.mxu0 0.0
    %1276 = vmatpush1.xpose.msra.mxu0 0.0
    %1277 = vmatprep.subr.mxu0 0.0
    %1278 = vmatpush1.xpose.msra.mxu0 0.0
    %1279 = vmatprep.subr.mxu0 0.0
    %1280 = vmatpush1.xpose.msra.mxu0 0.0
    %1281 = vmatprep.subr.mxu0 0.0
    %1282 = vmatpush1.xpose.msra.mxu0 0.0
    %1283 = vmatprep.mubr.f32.mxu0 %v652
    %1284 = vmatmul.mubr.f32.gmra.mrb[0].mxu0 %v644
    %v1285 = vpop.f32.mrb[0].mxu0
    %v1286 = vadd.f32 %v1216, %v1285
    %v1287 = vpop.f32.mrb[0].mxu0
    %1288 = vdwg.mxu0
    %1289 = vmatprep.subr.mxu0 %v86
    %1290 = vmatpush1.xpose.msra.mxu0 %v85
    %1291 = vmatprep.subr.mxu0 %v150
    %1292 = vmatpush1.xpose.msra.mxu0 %v149
    %1293 = vmatprep.subr.mxu0 %v214
    %1294 = vmatpush1.xpose.msra.mxu0 %v213
    %1295 = vmatprep.subr.mxu0 %v278
    %1296 = vmatpush1.xpose.msra.mxu0 %v277
    %1297 = vmatprep.subr.mxu0 %v342
    %1298 = vmatpush1.xpose.msra.mxu0 %v341
    %1299 = vmatprep.subr.mxu0 %v406
    %1300 = vmatpush1.xpose.msra.mxu0 %v405
    %1301 = vmatprep.subr.mxu0 %v470
    %1302 = vmatpush1.xpose.msra.mxu0 %v469
    %1303 = vmatprep.subr.mxu0 %v534
    %1304 = vmatpush1.xpose.msra.mxu0 %v533
    %1305 = vmatprep.subr.mxu0 0.0
    %1306 = vmatpush1.xpose.msra.mxu0 0.0
    %1307 = vmatprep.subr.mxu0 0.0
    %1308 = vmatpush1.xpose.msra.mxu0 0.0
    %1309 = vmatprep.subr.mxu0 0.0
    %1310 = vmatpush1.xpose.msra.mxu0 0.0
    %1311 = vmatprep.subr.mxu0 0.0
    %1312 = vmatpush1.xpose.msra.mxu0 0.0
    %1313 = vmatprep.subr.mxu0 0.0
    %1314 = vmatpush1.xpose.msra.mxu0 0.0
    %1315 = vmatprep.subr.mxu0 0.0
    %1316 = vmatpush1.xpose.msra.mxu0 0.0
    %1317 = vmatprep.subr.mxu0 0.0
    %1318 = vmatpush1.xpose.msra.mxu0 0.0
    %1319 = vmatprep.subr.mxu0 0.0
    %1320 = vmatpush1.xpose.msra.mxu0 0.0
    %1321 = vmatprep.subr.mxu0 0.0
    %1322 = vmatpush1.xpose.msra.mxu0 0.0
    %1323 = vmatprep.subr.mxu0 0.0
    %1324 = vmatpush1.xpose.msra.mxu0 0.0
    %1325 = vmatprep.subr.mxu0 0.0
    %1326 = vmatpush1.xpose.msra.mxu0 0.0
    %1327 = vmatprep.subr.mxu0 0.0
    %1328 = vmatpush1.xpose.msra.mxu0 0.0
    %1329 = vmatprep.subr.mxu0 0.0
    %1330 = vmatpush1.xpose.msra.mxu0 0.0
    %1331 = vmatprep.subr.mxu0 0.0
    %1332 = vmatpush1.xpose.msra.mxu0 0.0
    %1333 = vmatprep.subr.mxu0 0.0
    %1334 = vmatpush1.xpose.msra.mxu0 0.0
    %1335 = vmatprep.subr.mxu0 0.0
    %1336 = vmatpush1.xpose.msra.mxu0 0.0
    %1337 = vmatprep.subr.mxu0 0.0
    %1338 = vmatpush1.xpose.msra.mxu0 0.0
    %1339 = vmatprep.subr.mxu0 0.0
    %1340 = vmatpush1.xpose.msra.mxu0 0.0
    %1341 = vmatprep.subr.mxu0 0.0
    %1342 = vmatpush1.xpose.msra.mxu0 0.0
    %1343 = vmatprep.subr.mxu0 0.0
    %1344 = vmatpush1.xpose.msra.mxu0 0.0
    %1345 = vmatprep.subr.mxu0 0.0
    %1346 = vmatpush1.xpose.msra.mxu0 0.0
    %1347 = vmatprep.subr.mxu0 0.0
    %1348 = vmatpush1.xpose.msra.mxu0 0.0
    %1349 = vmatprep.subr.mxu0 0.0
    %1350 = vmatpush1.xpose.msra.mxu0 0.0
    %1351 = vmatprep.subr.mxu0 0.0
    %1352 = vmatpush1.xpose.msra.mxu0 0.0
    %1353 = vmatprep.mubr.f32.mxu0 %v653
    %1354 = vmatmul.mubr.f32.gmra.mrb[0].mxu0 %v651
    %v1355 = vpop.f32.mrb[0].mxu0
    %v1356 = vadd.f32 %v1286, %v1355
    %v1357 = vpop.f32.mrb[0].mxu0
    %1358 = vdwg.mxu0
    %1359 = vmatprep.subr.mxu0 %v88
    %1360 = vmatpush1.xpose.msra.mxu0 %v87
    %1361 = vmatprep.subr.mxu0 %v152
    %1362 = vmatpush1.xpose.msra.mxu0 %v151
    %1363 = vmatprep.subr.mxu0 %v216
    %1364 = vmatpush1.xpose.msra.mxu0 %v215
    %1365 = vmatprep.subr.mxu0 %v280
    %1366 = vmatpush1.xpose.msra.mxu0 %v279
    %1367 = vmatprep.subr.mxu0 %v344
    %1368 = vmatpush1.xpose.msra.mxu0 %v343
    %1369 = vmatprep.subr.mxu0 %v408
    %1370 = vmatpush1.xpose.msra.mxu0 %v407
    %1371 = vmatprep.subr.mxu0 %v472
    %1372 = vmatpush1.xpose.msra.mxu0 %v471
    %1373 = vmatprep.subr.mxu0 %v536
    %1374 = vmatpush1.xpose.msra.mxu0 %v535
    %1375 = vmatprep.subr.mxu0 0.0
    %1376 = vmatpush1.xpose.msra.mxu0 0.0
    %1377 = vmatprep.subr.mxu0 0.0
    %1378 = vmatpush1.xpose.msra.mxu0 0.0
    %1379 = vmatprep.subr.mxu0 0.0
    %1380 = vmatpush1.xpose.msra.mxu0 0.0
    %1381 = vmatprep.subr.mxu0 0.0
    %1382 = vmatpush1.xpose.msra.mxu0 0.0
    %1383 = vmatprep.subr.mxu0 0.0
    %1384 = vmatpush1.xpose.msra.mxu0 0.0
    %1385 = vmatprep.subr.mxu0 0.0
    %1386 = vmatpush1.xpose.msra.mxu0 0.0
    %1387 = vmatprep.subr.mxu0 0.0
    %1388 = vmatpush1.xpose.msra.mxu0 0.0
    %1389 = vmatprep.subr.mxu0 0.0
    %1390 = vmatpush1.xpose.msra.mxu0 0.0
    %1391 = vmatprep.subr.mxu0 0.0
    %1392 = vmatpush1.xpose.msra.mxu0 0.0
    %1393 = vmatprep.subr.mxu0 0.0
    %1394 = vmatpush1.xpose.msra.mxu0 0.0
    %1395 = vmatprep.subr.mxu0 0.0
    %1396 = vmatpush1.xpose.msra.mxu0 0.0
    %1397 = vmatprep.subr.mxu0 0.0
    %1398 = vmatpush1.xpose.msra.mxu0 0.0
    %1399 = vmatprep.subr.mxu0 0.0
    %1400 = vmatpush1.xpose.msra.mxu0 0.0
    %1401 = vmatprep.subr.mxu0 0.0
    %1402 = vmatpush1.xpose.msra.mxu0 0.0
    %1403 = vmatprep.subr.mxu0 0.0
    %1404 = vmatpush1.xpose.msra.mxu0 0.0
    %1405 = vmatprep.subr.mxu0 0.0
    %1406 = vmatpush1.xpose.msra.mxu0 0.0
    %1407 = vmatprep.subr.mxu0 0.0
    %1408 = vmatpush1.xpose.msra.mxu0 0.0
    %1409 = vmatprep.subr.mxu0 0.0
    %1410 = vmatpush1.xpose.msra.mxu0 0.0
    %1411 = vmatprep.subr.mxu0 0.0
    %1412 = vmatpush1.xpose.msra.mxu0 0.0
    %1413 = vmatprep.subr.mxu0 0.0
    %1414 = vmatpush1.xpose.msra.mxu0 0.0
    %1415 = vmatprep.subr.mxu0 0.0
    %1416 = vmatpush1.xpose.msra.mxu0 0.0
    %1417 = vmatprep.subr.mxu0 0.0
    %1418 = vmatpush1.xpose.msra.mxu0 0.0
    %1419 = vmatprep.subr.mxu0 0.0
    %1420 = vmatpush1.xpose.msra.mxu0 0.0
    %1421 = vmatprep.subr.mxu0 0.0
    %1422 = vmatpush1.xpose.msra.mxu0 0.0
    %1423 = vmatprep.mubr.f32.mxu0 %v669
    %1424 = vmatmul.mubr.f32.gmra.mrb[0].mxu0 %v661
    %v1425 = vpop.f32.mrb[0].mxu0
    %v1426 = vadd.f32 %v1356, %v1425
    %v1427 = vpop.f32.mrb[0].mxu0
    %1428 = vdwg.mxu0
    %1429 = vmatprep.subr.mxu0 %v90
    %1430 = vmatpush1.xpose.msra.mxu0 %v89
    %1431 = vmatprep.subr.mxu0 %v154
    %1432 = vmatpush1.xpose.msra.mxu0 %v153
    %1433 = vmatprep.subr.mxu0 %v218
    %1434 = vmatpush1.xpose.msra.mxu0 %v217
    %1435 = vmatprep.subr.mxu0 %v282
    %1436 = vmatpush1.xpose.msra.mxu0 %v281
    %1437 = vmatprep.subr.mxu0 %v346
    %1438 = vmatpush1.xpose.msra.mxu0 %v345
    %1439 = vmatprep.subr.mxu0 %v410
    %1440 = vmatpush1.xpose.msra.mxu0 %v409
    %1441 = vmatprep.subr.mxu0 %v474
    %1442 = vmatpush1.xpose.msra.mxu0 %v473
    %1443 = vmatprep.subr.mxu0 %v538
    %1444 = vmatpush1.xpose.msra.mxu0 %v537
    %1445 = vmatprep.subr.mxu0 0.0
    %1446 = vmatpush1.xpose.msra.mxu0 0.0
    %1447 = vmatprep.subr.mxu0 0.0
    %1448 = vmatpush1.xpose.msra.mxu0 0.0
    %1449 = vmatprep.subr.mxu0 0.0
    %1450 = vmatpush1.xpose.msra.mxu0 0.0
    %1451 = vmatprep.subr.mxu0 0.0
    %1452 = vmatpush1.xpose.msra.mxu0 0.0
    %1453 = vmatprep.subr.mxu0 0.0
    %1454 = vmatpush1.xpose.msra.mxu0 0.0
    %1455 = vmatprep.subr.mxu0 0.0
    %1456 = vmatpush1.xpose.msra.mxu0 0.0
    %1457 = vmatprep.subr.mxu0 0.0
    %1458 = vmatpush1.xpose.msra.mxu0 0.0
    %1459 = vmatprep.subr.mxu0 0.0
    %1460 = vmatpush1.xpose.msra.mxu0 0.0
    %1461 = vmatprep.subr.mxu0 0.0
    %1462 = vmatpush1.xpose.msra.mxu0 0.0
    %1463 = vmatprep.subr.mxu0 0.0
    %1464 = vmatpush1.xpose.msra.mxu0 0.0
    %1465 = vmatprep.subr.mxu0 0.0
    %1466 = vmatpush1.xpose.msra.mxu0 0.0
    %1467 = vmatprep.subr.mxu0 0.0
    %1468 = vmatpush1.xpose.msra.mxu0 0.0
    %1469 = vmatprep.subr.mxu0 0.0
    %1470 = vmatpush1.xpose.msra.mxu0 0.0
    %1471 = vmatprep.subr.mxu0 0.0
    %1472 = vmatpush1.xpose.msra.mxu0 0.0
    %1473 = vmatprep.subr.mxu0 0.0
    %1474 = vmatpush1.xpose.msra.mxu0 0.0
    %1475 = vmatprep.subr.mxu0 0.0
    %1476 = vmatpush1.xpose.msra.mxu0 0.0
    %1477 = vmatprep.subr.mxu0 0.0
    %1478 = vmatpush1.xpose.msra.mxu0 0.0
    %1479 = vmatprep.subr.mxu0 0.0
    %1480 = vmatpush1.xpose.msra.mxu0 0.0
    %1481 = vmatprep.subr.mxu0 0.0
    %1482 = vmatpush1.xpose.msra.mxu0 0.0
    %1483 = vmatprep.subr.mxu0 0.0
    %1484 = vmatpush1.xpose.msra.mxu0 0.0
    %1485 = vmatprep.subr.mxu0 0.0
    %1486 = vmatpush1.xpose.msra.mxu0 0.0
    %1487 = vmatprep.subr.mxu0 0.0
    %1488 = vmatpush1.xpose.msra.mxu0 0.0
    %1489 = vmatprep.subr.mxu0 0.0
    %1490 = vmatpush1.xpose.msra.mxu0 0.0
    %1491 = vmatprep.subr.mxu0 0.0
    %1492 = vmatpush1.xpose.msra.mxu0 0.0
    %1493 = vmatprep.mubr.f32.mxu0 %v670
    %1494 = vmatmul.mubr.f32.gmra.mrb[0].mxu0 %v668
    %v1495 = vpop.f32.mrb[0].mxu0
    %v1496 = vadd.f32 %v1426, %v1495
    %v1497 = vpop.f32.mrb[0].mxu0
    %1498 = vdwg.mxu0
    %1499 = vmatprep.subr.mxu0 %v92
    %1500 = vmatpush1.xpose.msra.mxu0 %v91
    %1501 = vmatprep.subr.mxu0 %v156
    %1502 = vmatpush1.xpose.msra.mxu0 %v155
    %1503 = vmatprep.subr.mxu0 %v220
    %1504 = vmatpush1.xpose.msra.mxu0 %v219
    %1505 = vmatprep.subr.mxu0 %v284
    %1506 = vmatpush1.xpose.msra.mxu0 %v283
    %1507 = vmatprep.subr.mxu0 %v348
    %1508 = vmatpush1.xpose.msra.mxu0 %v347
    %1509 = vmatprep.subr.mxu0 %v412
    %1510 = vmatpush1.xpose.msra.mxu0 %v411
    %1511 = vmatprep.subr.mxu0 %v476
    %1512 = vmatpush1.xpose.msra.mxu0 %v475
    %1513 = vmatprep.subr.mxu0 %v540
    %1514 = vmatpush1.xpose.msra.mxu0 %v539
    %1515 = vmatprep.subr.mxu0 0.0
    %1516 = vmatpush1.xpose.msra.mxu0 0.0
    %1517 = vmatprep.subr.mxu0 0.0
    %1518 = vmatpush1.xpose.msra.mxu0 0.0
    %1519 = vmatprep.subr.mxu0 0.0
    %1520 = vmatpush1.xpose.msra.mxu0 0.0
    %1521 = vmatprep.subr.mxu0 0.0
    %1522 = vmatpush1.xpose.msra.mxu0 0.0
    %1523 = vmatprep.subr.mxu0 0.0
    %1524 = vmatpush1.xpose.msra.mxu0 0.0
    %1525 = vmatprep.subr.mxu0 0.0
    %1526 = vmatpush1.xpose.msra.mxu0 0.0
    %1527 = vmatprep.subr.mxu0 0.0
    %1528 = vmatpush1.xpose.msra.mxu0 0.0
    %1529 = vmatprep.subr.mxu0 0.0
    %1530 = vmatpush1.xpose.msra.mxu0 0.0
    %1531 = vmatprep.subr.mxu0 0.0
    %1532 = vmatpush1.xpose.msra.mxu0 0.0
    %1533 = vmatprep.subr.mxu0 0.0
    %1534 = vmatpush1.xpose.msra.mxu0 0.0
    %1535 = vmatprep.subr.mxu0 0.0
    %1536 = vmatpush1.xpose.msra.mxu0 0.0
    %1537 = vmatprep.subr.mxu0 0.0
    %1538 = vmatpush1.xpose.msra.mxu0 0.0
    %1539 = vmatprep.subr.mxu0 0.0
    %1540 = vmatpush1.xpose.msra.mxu0 0.0
    %1541 = vmatprep.subr.mxu0 0.0
    %1542 = vmatpush1.xpose.msra.mxu0 0.0
    %1543 = vmatprep.subr.mxu0 0.0
    %1544 = vmatpush1.xpose.msra.mxu0 0.0
    %1545 = vmatprep.subr.mxu0 0.0
    %1546 = vmatpush1.xpose.msra.mxu0 0.0
    %1547 = vmatprep.subr.mxu0 0.0
    %1548 = vmatpush1.xpose.msra.mxu0 0.0
    %1549 = vmatprep.subr.mxu0 0.0
    %1550 = vmatpush1.xpose.msra.mxu0 0.0
    %1551 = vmatprep.subr.mxu0 0.0
    %1552 = vmatpush1.xpose.msra.mxu0 0.0
    %1553 = vmatprep.subr.mxu0 0.0
    %1554 = vmatpush1.xpose.msra.mxu0 0.0
    %1555 = vmatprep.subr.mxu0 0.0
    %1556 = vmatpush1.xpose.msra.mxu0 0.0
    %1557 = vmatprep.subr.mxu0 0.0
    %1558 = vmatpush1.xpose.msra.mxu0 0.0
    %1559 = vmatprep.subr.mxu0 0.0
    %1560 = vmatpush1.xpose.msra.mxu0 0.0
    %1561 = vmatprep.subr.mxu0 0.0
    %1562 = vmatpush1.xpose.msra.mxu0 0.0
    %1563 = vmatprep.mubr.f32.mxu0 %v686
    %1564 = vmatmul.mubr.f32.gmra.mrb[0].mxu0 %v678
    %v1565 = vpop.f32.mrb[0].mxu0
    %v1566 = vadd.f32 %v1496, %v1565
    %v1567 = vpop.f32.mrb[0].mxu0
    %1568 = vdwg.mxu0
    %1569 = vmatprep.subr.mxu0 %v94
    %1570 = vmatpush1.xpose.msra.mxu0 %v93
    %1571 = vmatprep.subr.mxu0 %v158
    %1572 = vmatpush1.xpose.msra.mxu0 %v157
    %1573 = vmatprep.subr.mxu0 %v222
    %1574 = vmatpush1.xpose.msra.mxu0 %v221
    %1575 = vmatprep.subr.mxu0 %v286
    %1576 = vmatpush1.xpose.msra.mxu0 %v285
    %1577 = vmatprep.subr.mxu0 %v350
    %1578 = vmatpush1.xpose.msra.mxu0 %v349
    %1579 = vmatprep.subr.mxu0 %v414
    %1580 = vmatpush1.xpose.msra.mxu0 %v413
    %1581 = vmatprep.subr.mxu0 %v478
    %1582 = vmatpush1.xpose.msra.mxu0 %v477
    %1583 = vmatprep.subr.mxu0 %v542
    %1584 = vmatpush1.xpose.msra.mxu0 %v541
    %1585 = vmatprep.subr.mxu0 0.0
    %1586 = vmatpush1.xpose.msra.mxu0 0.0
    %1587 = vmatprep.subr.mxu0 0.0
    %1588 = vmatpush1.xpose.msra.mxu0 0.0
    %1589 = vmatprep.subr.mxu0 0.0
    %1590 = vmatpush1.xpose.msra.mxu0 0.0
    %1591 = vmatprep.subr.mxu0 0.0
    %1592 = vmatpush1.xpose.msra.mxu0 0.0
    %1593 = vmatprep.subr.mxu0 0.0
    %1594 = vmatpush1.xpose.msra.mxu0 0.0
    %1595 = vmatprep.subr.mxu0 0.0
    %1596 = vmatpush1.xpose.msra.mxu0 0.0
    %1597 = vmatprep.subr.mxu0 0.0
    %1598 = vmatpush1.xpose.msra.mxu0 0.0
    %1599 = vmatprep.subr.mxu0 0.0
    %1600 = vmatpush1.xpose.msra.mxu0 0.0
    %1601 = vmatprep.subr.mxu0 0.0
    %1602 = vmatpush1.xpose.msra.mxu0 0.0
    %1603 = vmatprep.subr.mxu0 0.0
    %1604 = vmatpush1.xpose.msra.mxu0 0.0
    %1605 = vmatprep.subr.mxu0 0.0
    %1606 = vmatpush1.xpose.msra.mxu0 0.0
    %1607 = vmatprep.subr.mxu0 0.0
    %1608 = vmatpush1.xpose.msra.mxu0 0.0
    %1609 = vmatprep.subr.mxu0 0.0
    %1610 = vmatpush1.xpose.msra.mxu0 0.0
    %1611 = vmatprep.subr.mxu0 0.0
    %1612 = vmatpush1.xpose.msra.mxu0 0.0
    %1613 = vmatprep.subr.mxu0 0.0
    %1614 = vmatpush1.xpose.msra.mxu0 0.0
    %1615 = vmatprep.subr.mxu0 0.0
    %1616 = vmatpush1.xpose.msra.mxu0 0.0
    %1617 = vmatprep.subr.mxu0 0.0
    %1618 = vmatpush1.xpose.msra.mxu0 0.0
    %1619 = vmatprep.subr.mxu0 0.0
    %1620 = vmatpush1.xpose.msra.mxu0 0.0
    %1621 = vmatprep.subr.mxu0 0.0
    %1622 = vmatpush1.xpose.msra.mxu0 0.0
    %1623 = vmatprep.subr.mxu0 0.0
    %1624 = vmatpush1.xpose.msra.mxu0 0.0
    %1625 = vmatprep.subr.mxu0 0.0
    %1626 = vmatpush1.xpose.msra.mxu0 0.0
    %1627 = vmatprep.subr.mxu0 0.0
    %1628 = vmatpush1.xpose.msra.mxu0 0.0
    %1629 = vmatprep.subr.mxu0 0.0
    %1630 = vmatpush1.xpose.msra.mxu0 0.0
    %1631 = vmatprep.subr.mxu0 0.0
    %1632 = vmatpush1.xpose.msra.mxu0 0.0
    %1633 = vmatprep.mubr.f32.mxu0 %v687
    %1634 = vmatmul.mubr.f32.gmra.mrb[0].mxu0 %v685
    %v1635 = vpop.f32.mrb[0].mxu0
    %v1636 = vadd.f32 %v1566, %v1635
    %v1637 = vpop.f32.mrb[0].mxu0
    %1638 = vdwg.mxu0
    %1639 = vmatprep.subr.mxu0 %v96
    %1640 = vmatpush1.xpose.msra.mxu0 %v95
    %1641 = vmatprep.subr.mxu0 %v160
    %1642 = vmatpush1.xpose.msra.mxu0 %v159
    %1643 = vmatprep.subr.mxu0 %v224
    %1644 = vmatpush1.xpose.msra.mxu0 %v223
    %1645 = vmatprep.subr.mxu0 %v288
    %1646 = vmatpush1.xpose.msra.mxu0 %v287
    %1647 = vmatprep.subr.mxu0 %v352
    %1648 = vmatpush1.xpose.msra.mxu0 %v351
    %1649 = vmatprep.subr.mxu0 %v416
    %1650 = vmatpush1.xpose.msra.mxu0 %v415
    %1651 = vmatprep.subr.mxu0 %v480
    %1652 = vmatpush1.xpose.msra.mxu0 %v479
    %1653 = vmatprep.subr.mxu0 %v544
    %1654 = vmatpush1.xpose.msra.mxu0 %v543
    %1655 = vmatprep.subr.mxu0 0.0
    %1656 = vmatpush1.xpose.msra.mxu0 0.0
    %1657 = vmatprep.subr.mxu0 0.0
    %1658 = vmatpush1.xpose.msra.mxu0 0.0
    %1659 = vmatprep.subr.mxu0 0.0
    %1660 = vmatpush1.xpose.msra.mxu0 0.0
    %1661 = vmatprep.subr.mxu0 0.0
    %1662 = vmatpush1.xpose.msra.mxu0 0.0
    %1663 = vmatprep.subr.mxu0 0.0
    %1664 = vmatpush1.xpose.msra.mxu0 0.0
    %1665 = vmatprep.subr.mxu0 0.0
    %1666 = vmatpush1.xpose.msra.mxu0 0.0
    %1667 = vmatprep.subr.mxu0 0.0
    %1668 = vmatpush1.xpose.msra.mxu0 0.0
    %1669 = vmatprep.subr.mxu0 0.0
    %1670 = vmatpush1.xpose.msra.mxu0 0.0
    %1671 = vmatprep.subr.mxu0 0.0
    %1672 = vmatpush1.xpose.msra.mxu0 0.0
    %1673 = vmatprep.subr.mxu0 0.0
    %1674 = vmatpush1.xpose.msra.mxu0 0.0
    %1675 = vmatprep.subr.mxu0 0.0
    %1676 = vmatpush1.xpose.msra.mxu0 0.0
    %1677 = vmatprep.subr.mxu0 0.0
    %1678 = vmatpush1.xpose.msra.mxu0 0.0
    %1679 = vmatprep.subr.mxu0 0.0
    %1680 = vmatpush1.xpose.msra.mxu0 0.0
    %1681 = vmatprep.subr.mxu0 0.0
    %1682 = vmatpush1.xpose.msra.mxu0 0.0
    %1683 = vmatprep.subr.mxu0 0.0
    %1684 = vmatpush1.xpose.msra.mxu0 0.0
    %1685 = vmatprep.subr.mxu0 0.0
    %1686 = vmatpush1.xpose.msra.mxu0 0.0
    %1687 = vmatprep.subr.mxu0 0.0
    %1688 = vmatpush1.xpose.msra.mxu0 0.0
    %1689 = vmatprep.subr.mxu0 0.0
    %1690 = vmatpush1.xpose.msra.mxu0 0.0
    %1691 = vmatprep.subr.mxu0 0.0
    %1692 = vmatpush1.xpose.msra.mxu0 0.0
    %1693 = vmatprep.subr.mxu0 0.0
    %1694 = vmatpush1.xpose.msra.mxu0 0.0
    %1695 = vmatprep.subr.mxu0 0.0
    %1696 = vmatpush1.xpose.msra.mxu0 0.0
    %1697 = vmatprep.subr.mxu0 0.0
    %1698 = vmatpush1.xpose.msra.mxu0 0.0
    %1699 = vmatprep.subr.mxu0 0.0
    %1700 = vmatpush1.xpose.msra.mxu0 0.0
    %1701 = vmatprep.subr.mxu0 0.0
    %1702 = vmatpush1.xpose.msra.mxu0 0.0
    %1703 = vmatprep.mubr.f32.mxu0 %v703
    %1704 = vmatmul.mubr.f32.gmra.mrb[0].mxu0 %v695
    %v1705 = vpop.f32.mrb[0].mxu0
    %v1706 = vadd.f32 %v1636, %v1705
    %v1707 = vpop.f32.mrb[0].mxu0
    %1708 = vdwg.mxu0
    %1709 = vmatprep.subr.mxu0 %v98
    %1710 = vmatpush1.xpose.msra.mxu0 %v97
    %1711 = vmatprep.subr.mxu0 %v162
    %1712 = vmatpush1.xpose.msra.mxu0 %v161
    %1713 = vmatprep.subr.mxu0 %v226
    %1714 = vmatpush1.xpose.msra.mxu0 %v225
    %1715 = vmatprep.subr.mxu0 %v290
    %1716 = vmatpush1.xpose.msra.mxu0 %v289
    %1717 = vmatprep.subr.mxu0 %v354
    %1718 = vmatpush1.xpose.msra.mxu0 %v353
    %1719 = vmatprep.subr.mxu0 %v418
    %1720 = vmatpush1.xpose.msra.mxu0 %v417
    %1721 = vmatprep.subr.mxu0 %v482
    %1722 = vmatpush1.xpose.msra.mxu0 %v481
    %1723 = vmatprep.subr.mxu0 %v546
    %1724 = vmatpush1.xpose.msra.mxu0 %v545
    %1725 = vmatprep.subr.mxu0 0.0
    %1726 = vmatpush1.xpose.msra.mxu0 0.0
    %1727 = vmatprep.subr.mxu0 0.0
    %1728 = vmatpush1.xpose.msra.mxu0 0.0
    %1729 = vmatprep.subr.mxu0 0.0
    %1730 = vmatpush1.xpose.msra.mxu0 0.0
    %1731 = vmatprep.subr.mxu0 0.0
    %1732 = vmatpush1.xpose.msra.mxu0 0.0
    %1733 = vmatprep.subr.mxu0 0.0
    %1734 = vmatpush1.xpose.msra.mxu0 0.0
    %1735 = vmatprep.subr.mxu0 0.0
    %1736 = vmatpush1.xpose.msra.mxu0 0.0
    %1737 = vmatprep.subr.mxu0 0.0
    %1738 = vmatpush1.xpose.msra.mxu0 0.0
    %1739 = vmatprep.subr.mxu0 0.0
    %1740 = vmatpush1.xpose.msra.mxu0 0.0
    %1741 = vmatprep.subr.mxu0 0.0
    %1742 = vmatpush1.xpose.msra.mxu0 0.0
    %1743 = vmatprep.subr.mxu0 0.0
    %1744 = vmatpush1.xpose.msra.mxu0 0.0
    %1745 = vmatprep.subr.mxu0 0.0
    %1746 = vmatpush1.xpose.msra.mxu0 0.0
    %1747 = vmatprep.subr.mxu0 0.0
    %1748 = vmatpush1.xpose.msra.mxu0 0.0
    %1749 = vmatprep.subr.mxu0 0.0
    %1750 = vmatpush1.xpose.msra.mxu0 0.0
    %1751 = vmatprep.subr.mxu0 0.0
    %1752 = vmatpush1.xpose.msra.mxu0 0.0
    %1753 = vmatprep.subr.mxu0 0.0
    %1754 = vmatpush1.xpose.msra.mxu0 0.0
    %1755 = vmatprep.subr.mxu0 0.0
    %1756 = vmatpush1.xpose.msra.mxu0 0.0
    %1757 = vmatprep.subr.mxu0 0.0
    %1758 = vmatpush1.xpose.msra.mxu0 0.0
    %1759 = vmatprep.subr.mxu0 0.0
    %1760 = vmatpush1.xpose.msra.mxu0 0.0
    %1761 = vmatprep.subr.mxu0 0.0
    %1762 = vmatpush1.xpose.msra.mxu0 0.0
    %1763 = vmatprep.subr.mxu0 0.0
    %1764 = vmatpush1.xpose.msra.mxu0 0.0
    %1765 = vmatprep.subr.mxu0 0.0
    %1766 = vmatpush1.xpose.msra.mxu0 0.0
    %1767 = vmatprep.subr.mxu0 0.0
    %1768 = vmatpush1.xpose.msra.mxu0 0.0
    %1769 = vmatprep.subr.mxu0 0.0
    %1770 = vmatpush1.xpose.msra.mxu0 0.0
    %1771 = vmatprep.subr.mxu0 0.0
    %1772 = vmatpush1.xpose.msra.mxu0 0.0
    %1773 = vmatprep.mubr.f32.mxu0 %v704
    %1774 = vmatmul.mubr.f32.gmra.mrb[0].mxu0 %v702
    %v1775 = vpop.f32.mrb[0].mxu0
    %v1776 = vadd.f32 %v1706, %v1775
    %v1777 = vpop.f32.mrb[0].mxu0
    %1778 = vdwg.mxu0
    %1779 = vmatprep.subr.mxu0 %v100
    %1780 = vmatpush1.xpose.msra.mxu0 %v99
    %1781 = vmatprep.subr.mxu0 %v164
    %1782 = vmatpush1.xpose.msra.mxu0 %v163
    %1783 = vmatprep.subr.mxu0 %v228
    %1784 = vmatpush1.xpose.msra.mxu0 %v227
    %1785 = vmatprep.subr.mxu0 %v292
    %1786 = vmatpush1.xpose.msra.mxu0 %v291
    %1787 = vmatprep.subr.mxu0 %v356
    %1788 = vmatpush1.xpose.msra.mxu0 %v355
    %1789 = vmatprep.subr.mxu0 %v420
    %1790 = vmatpush1.xpose.msra.mxu0 %v419
    %1791 = vmatprep.subr.mxu0 %v484
    %1792 = vmatpush1.xpose.msra.mxu0 %v483
    %1793 = vmatprep.subr.mxu0 %v548
    %1794 = vmatpush1.xpose.msra.mxu0 %v547
    %1795 = vmatprep.subr.mxu0 0.0
    %1796 = vmatpush1.xpose.msra.mxu0 0.0
    %1797 = vmatprep.subr.mxu0 0.0
    %1798 = vmatpush1.xpose.msra.mxu0 0.0
    %1799 = vmatprep.subr.mxu0 0.0
    %1800 = vmatpush1.xpose.msra.mxu0 0.0
    %1801 = vmatprep.subr.mxu0 0.0
    %1802 = vmatpush1.xpose.msra.mxu0 0.0
    %1803 = vmatprep.subr.mxu0 0.0
    %1804 = vmatpush1.xpose.msra.mxu0 0.0
    %1805 = vmatprep.subr.mxu0 0.0
    %1806 = vmatpush1.xpose.msra.mxu0 0.0
    %1807 = vmatprep.subr.mxu0 0.0
    %1808 = vmatpush1.xpose.msra.mxu0 0.0
    %1809 = vmatprep.subr.mxu0 0.0
    %1810 = vmatpush1.xpose.msra.mxu0 0.0
    %1811 = vmatprep.subr.mxu0 0.0
    %1812 = vmatpush1.xpose.msra.mxu0 0.0
    %1813 = vmatprep.subr.mxu0 0.0
    %1814 = vmatpush1.xpose.msra.mxu0 0.0
    %1815 = vmatprep.subr.mxu0 0.0
    %1816 = vmatpush1.xpose.msra.mxu0 0.0
    %1817 = vmatprep.subr.mxu0 0.0
    %1818 = vmatpush1.xpose.msra.mxu0 0.0
    %1819 = vmatprep.subr.mxu0 0.0
    %1820 = vmatpush1.xpose.msra.mxu0 0.0
    %1821 = vmatprep.subr.mxu0 0.0
    %1822 = vmatpush1.xpose.msra.mxu0 0.0
    %1823 = vmatprep.subr.mxu0 0.0
    %1824 = vmatpush1.xpose.msra.mxu0 0.0
    %1825 = vmatprep.subr.mxu0 0.0
    %1826 = vmatpush1.xpose.msra.mxu0 0.0
    %1827 = vmatprep.subr.mxu0 0.0
    %1828 = vmatpush1.xpose.msra.mxu0 0.0
    %1829 = vmatprep.subr.mxu0 0.0
    %1830 = vmatpush1.xpose.msra.mxu0 0.0
    %1831 = vmatprep.subr.mxu0 0.0
    %1832 = vmatpush1.xpose.msra.mxu0 0.0
    %1833 = vmatprep.subr.mxu0 0.0
    %1834 = vmatpush1.xpose.msra.mxu0 0.0
    %1835 = vmatprep.subr.mxu0 0.0
    %1836 = vmatpush1.xpose.msra.mxu0 0.0
    %1837 = vmatprep.subr.mxu0 0.0
    %1838 = vmatpush1.xpose.msra.mxu0 0.0
    %1839 = vmatprep.subr.mxu0 0.0
    %1840 = vmatpush1.xpose.msra.mxu0 0.0
    %1841 = vmatprep.subr.mxu0 0.0
    %1842 = vmatpush1.xpose.msra.mxu0 0.0
    %1843 = vmatprep.mubr.f32.mxu0 %v720
    %1844 = vmatmul.mubr.f32.gmra.mrb[0].mxu0 %v712
    %v1845 = vpop.f32.mrb[0].mxu0
    %v1846 = vadd.f32 %v1776, %v1845
    %v1847 = vpop.f32.mrb[0].mxu0
    %1848 = vdwg.mxu0
    %1849 = vmatprep.subr.mxu0 %v102
    %1850 = vmatpush1.xpose.msra.mxu0 %v101
    %1851 = vmatprep.subr.mxu0 %v166
    %1852 = vmatpush1.xpose.msra.mxu0 %v165
    %1853 = vmatprep.subr.mxu0 %v230
    %1854 = vmatpush1.xpose.msra.mxu0 %v229
    %1855 = vmatprep.subr.mxu0 %v294
    %1856 = vmatpush1.xpose.msra.mxu0 %v293
    %1857 = vmatprep.subr.mxu0 %v358
    %1858 = vmatpush1.xpose.msra.mxu0 %v357
    %1859 = vmatprep.subr.mxu0 %v422
    %1860 = vmatpush1.xpose.msra.mxu0 %v421
    %1861 = vmatprep.subr.mxu0 %v486
    %1862 = vmatpush1.xpose.msra.mxu0 %v485
    %1863 = vmatprep.subr.mxu0 %v550
    %1864 = vmatpush1.xpose.msra.mxu0 %v549
    %1865 = vmatprep.subr.mxu0 0.0
    %1866 = vmatpush1.xpose.msra.mxu0 0.0
    %1867 = vmatprep.subr.mxu0 0.0
    %1868 = vmatpush1.xpose.msra.mxu0 0.0
    %1869 = vmatprep.subr.mxu0 0.0
    %1870 = vmatpush1.xpose.msra.mxu0 0.0
    %1871 = vmatprep.subr.mxu0 0.0
    %1872 = vmatpush1.xpose.msra.mxu0 0.0
    %1873 = vmatprep.subr.mxu0 0.0
    %1874 = vmatpush1.xpose.msra.mxu0 0.0
    %1875 = vmatprep.subr.mxu0 0.0
    %1876 = vmatpush1.xpose.msra.mxu0 0.0
    %1877 = vmatprep.subr.mxu0 0.0
    %1878 = vmatpush1.xpose.msra.mxu0 0.0
    %1879 = vmatprep.subr.mxu0 0.0
    %1880 = vmatpush1.xpose.msra.mxu0 0.0
    %1881 = vmatprep.subr.mxu0 0.0
    %1882 = vmatpush1.xpose.msra.mxu0 0.0
    %1883 = vmatprep.subr.mxu0 0.0
    %1884 = vmatpush1.xpose.msra.mxu0 0.0
    %1885 = vmatprep.subr.mxu0 0.0
    %1886 = vmatpush1.xpose.msra.mxu0 0.0
    %1887 = vmatprep.subr.mxu0 0.0
    %1888 = vmatpush1.xpose.msra.mxu0 0.0
    %1889 = vmatprep.subr.mxu0 0.0
    %1890 = vmatpush1.xpose.msra.mxu0 0.0
    %1891 = vmatprep.subr.mxu0 0.0
    %1892 = vmatpush1.xpose.msra.mxu0 0.0
    %1893 = vmatprep.subr.mxu0 0.0
    %1894 = vmatpush1.xpose.msra.mxu0 0.0
    %1895 = vmatprep.subr.mxu0 0.0
    %1896 = vmatpush1.xpose.msra.mxu0 0.0
    %1897 = vmatprep.subr.mxu0 0.0
    %1898 = vmatpush1.xpose.msra.mxu0 0.0
    %1899 = vmatprep.subr.mxu0 0.0
    %1900 = vmatpush1.xpose.msra.mxu0 0.0
    %1901 = vmatprep.subr.mxu0 0.0
    %1902 = vmatpush1.xpose.msra.mxu0 0.0
    %1903 = vmatprep.subr.mxu0 0.0
    %1904 = vmatpush1.xpose.msra.mxu0 0.0
    %1905 = vmatprep.subr.mxu0 0.0
    %1906 = vmatpush1.xpose.msra.mxu0 0.0
    %1907 = vmatprep.subr.mxu0 0.0
    %1908 = vmatpush1.xpose.msra.mxu0 0.0
    %1909 = vmatprep.subr.mxu0 0.0
    %1910 = vmatpush1.xpose.msra.mxu0 0.0
    %1911 = vmatprep.subr.mxu0 0.0
    %1912 = vmatpush1.xpose.msra.mxu0 0.0
    %1913 = vmatprep.mubr.f32.mxu0 %v721
    %1914 = vmatmul.mubr.f32.gmra.mrb[0].mxu0 %v719
    %v1915 = vpop.f32.mrb[0].mxu0
    %v1916 = vadd.f32 %v1846, %v1915
    %v1917 = vpop.f32.mrb[0].mxu0
    %1918 = vdwg.mxu0
    %1919 = vmatprep.subr.mxu0 %v104
    %1920 = vmatpush1.xpose.msra.mxu0 %v103
    %1921 = vmatprep.subr.mxu0 %v168
    %1922 = vmatpush1.xpose.msra.mxu0 %v167
    %1923 = vmatprep.subr.mxu0 %v232
    %1924 = vmatpush1.xpose.msra.mxu0 %v231
    %1925 = vmatprep.subr.mxu0 %v296
    %1926 = vmatpush1.xpose.msra.mxu0 %v295
    %1927 = vmatprep.subr.mxu0 %v360
    %1928 = vmatpush1.xpose.msra.mxu0 %v359
    %1929 = vmatprep.subr.mxu0 %v424
    %1930 = vmatpush1.xpose.msra.mxu0 %v423
    %1931 = vmatprep.subr.mxu0 %v488
    %1932 = vmatpush1.xpose.msra.mxu0 %v487
    %1933 = vmatprep.subr.mxu0 %v552
    %1934 = vmatpush1.xpose.msra.mxu0 %v551
    %1935 = vmatprep.subr.mxu0 0.0
    %1936 = vmatpush1.xpose.msra.mxu0 0.0
    %1937 = vmatprep.subr.mxu0 0.0
    %1938 = vmatpush1.xpose.msra.mxu0 0.0
    %1939 = vmatprep.subr.mxu0 0.0
    %1940 = vmatpush1.xpose.msra.mxu0 0.0
    %1941 = vmatprep.subr.mxu0 0.0
    %1942 = vmatpush1.xpose.msra.mxu0 0.0
    %1943 = vmatprep.subr.mxu0 0.0
    %1944 = vmatpush1.xpose.msra.mxu0 0.0
    %1945 = vmatprep.subr.mxu0 0.0
    %1946 = vmatpush1.xpose.msra.mxu0 0.0
    %1947 = vmatprep.subr.mxu0 0.0
    %1948 = vmatpush1.xpose.msra.mxu0 0.0
    %1949 = vmatprep.subr.mxu0 0.0
    %1950 = vmatpush1.xpose.msra.mxu0 0.0
    %1951 = vmatprep.subr.mxu0 0.0
    %1952 = vmatpush1.xpose.msra.mxu0 0.0
    %1953 = vmatprep.subr.mxu0 0.0
    %1954 = vmatpush1.xpose.msra.mxu0 0.0
    %1955 = vmatprep.subr.mxu0 0.0
    %1956 = vmatpush1.xpose.msra.mxu0 0.0
    %1957 = vmatprep.subr.mxu0 0.0
    %1958 = vmatpush1.xpose.msra.mxu0 0.0
    %1959 = vmatprep.subr.mxu0 0.0
    %1960 = vmatpush1.xpose.msra.mxu0 0.0
    %1961 = vmatprep.subr.mxu0 0.0
    %1962 = vmatpush1.xpose.msra.mxu0 0.0
    %1963 = vmatprep.subr.mxu0 0.0
    %1964 = vmatpush1.xpose.msra.mxu0 0.0
    %1965 = vmatprep.subr.mxu0 0.0
    %1966 = vmatpush1.xpose.msra.mxu0 0.0
    %1967 = vmatprep.subr.mxu0 0.0
    %1968 = vmatpush1.xpose.msra.mxu0 0.0
    %1969 = vmatprep.subr.mxu0 0.0
    %1970 = vmatpush1.xpose.msra.mxu0 0.0
    %1971 = vmatprep.subr.mxu0 0.0
    %1972 = vmatpush1.xpose.msra.mxu0 0.0
    %1973 = vmatprep.subr.mxu0 0.0
    %1974 = vmatpush1.xpose.msra.mxu0 0.0
    %1975 = vmatprep.subr.mxu0 0.0
    %1976 = vmatpush1.xpose.msra.mxu0 0.0
    %1977 = vmatprep.subr.mxu0 0.0
    %1978 = vmatpush1.xpose.msra.mxu0 0.0
    %1979 = vmatprep.subr.mxu0 0.0
    %1980 = vmatpush1.xpose.msra.mxu0 0.0
    %1981 = vmatprep.subr.mxu0 0.0
    %1982 = vmatpush1.xpose.msra.mxu0 0.0
    %1983 = vmatprep.mubr.f32.mxu0 %v737
    %1984 = vmatmul.mubr.f32.gmra.mrb[0].mxu0 %v729
    %v1985 = vpop.f32.mrb[0].mxu0
    %v1986 = vadd.f32 %v1916, %v1985
    %v1987 = vpop.f32.mrb[0].mxu0
    %1988 = vdwg.mxu0
    %1989 = vmatprep.subr.mxu0 %v106
    %1990 = vmatpush1.xpose.msra.mxu0 %v105
    %1991 = vmatprep.subr.mxu0 %v170
    %1992 = vmatpush1.xpose.msra.mxu0 %v169
    %1993 = vmatprep.subr.mxu0 %v234
    %1994 = vmatpush1.xpose.msra.mxu0 %v233
    %1995 = vmatprep.subr.mxu0 %v298
    %1996 = vmatpush1.xpose.msra.mxu0 %v297
    %1997 = vmatprep.subr.mxu0 %v362
    %1998 = vmatpush1.xpose.msra.mxu0 %v361
    %1999 = vmatprep.subr.mxu0 %v426
    %2000 = vmatpush1.xpose.msra.mxu0 %v425
    %2001 = vmatprep.subr.mxu0 %v490
    %2002 = vmatpush1.xpose.msra.mxu0 %v489
    %2003 = vmatprep.subr.mxu0 %v554
    %2004 = vmatpush1.xpose.msra.mxu0 %v553
    %2005 = vmatprep.subr.mxu0 0.0
    %2006 = vmatpush1.xpose.msra.mxu0 0.0
    %2007 = vmatprep.subr.mxu0 0.0
    %2008 = vmatpush1.xpose.msra.mxu0 0.0
    %2009 = vmatprep.subr.mxu0 0.0
    %2010 = vmatpush1.xpose.msra.mxu0 0.0
    %2011 = vmatprep.subr.mxu0 0.0
    %2012 = vmatpush1.xpose.msra.mxu0 0.0
    %2013 = vmatprep.subr.mxu0 0.0
    %2014 = vmatpush1.xpose.msra.mxu0 0.0
    %2015 = vmatprep.subr.mxu0 0.0
    %2016 = vmatpush1.xpose.msra.mxu0 0.0
    %2017 = vmatprep.subr.mxu0 0.0
    %2018 = vmatpush1.xpose.msra.mxu0 0.0
    %2019 = vmatprep.subr.mxu0 0.0
    %2020 = vmatpush1.xpose.msra.mxu0 0.0
    %2021 = vmatprep.subr.mxu0 0.0
    %2022 = vmatpush1.xpose.msra.mxu0 0.0
    %2023 = vmatprep.subr.mxu0 0.0
    %2024 = vmatpush1.xpose.msra.mxu0 0.0
    %2025 = vmatprep.subr.mxu0 0.0
    %2026 = vmatpush1.xpose.msra.mxu0 0.0
    %2027 = vmatprep.subr.mxu0 0.0
    %2028 = vmatpush1.xpose.msra.mxu0 0.0
    %2029 = vmatprep.subr.mxu0 0.0
    %2030 = vmatpush1.xpose.msra.mxu0 0.0
    %2031 = vmatprep.subr.mxu0 0.0
    %2032 = vmatpush1.xpose.msra.mxu0 0.0
    %2033 = vmatprep.subr.mxu0 0.0
    %2034 = vmatpush1.xpose.msra.mxu0 0.0
    %2035 = vmatprep.subr.mxu0 0.0
    %2036 = vmatpush1.xpose.msra.mxu0 0.0
    %2037 = vmatprep.subr.mxu0 0.0
    %2038 = vmatpush1.xpose.msra.mxu0 0.0
    %2039 = vmatprep.subr.mxu0 0.0
    %2040 = vmatpush1.xpose.msra.mxu0 0.0
    %2041 = vmatprep.subr.mxu0 0.0
    %2042 = vmatpush1.xpose.msra.mxu0 0.0
    %2043 = vmatprep.subr.mxu0 0.0
    %2044 = vmatpush1.xpose.msra.mxu0 0.0
    %2045 = vmatprep.subr.mxu0 0.0
    %2046 = vmatpush1.xpose.msra.mxu0 0.0
    %2047 = vmatprep.subr.mxu0 0.0
    %2048 = vmatpush1.xpose.msra.mxu0 0.0
    %2049 = vmatprep.subr.mxu0 0.0
    %2050 = vmatpush1.xpose.msra.mxu0 0.0
    %2051 = vmatprep.subr.mxu0 0.0
    %2052 = vmatpush1.xpose.msra.mxu0 0.0
    %2053 = vmatprep.mubr.f32.mxu0 %v738
    %2054 = vmatmul.mubr.f32.gmra.mrb[0].mxu0 %v736
    %v2055 = vpop.f32.mrb[0].mxu0
    %v2056 = vadd.f32 %v1986, %v2055
    %v2057 = vpop.f32.mrb[0].mxu0
    %2058 = vdwg.mxu0
    %2059 = vmatprep.subr.mxu0 %v108
    %2060 = vmatpush1.xpose.msra.mxu0 %v107
    %2061 = vmatprep.subr.mxu0 %v172
    %2062 = vmatpush1.xpose.msra.mxu0 %v171
    %2063 = vmatprep.subr.mxu0 %v236
    %2064 = vmatpush1.xpose.msra.mxu0 %v235
    %2065 = vmatprep.subr.mxu0 %v300
    %2066 = vmatpush1.xpose.msra.mxu0 %v299
    %2067 = vmatprep.subr.mxu0 %v364
    %2068 = vmatpush1.xpose.msra.mxu0 %v363
    %2069 = vmatprep.subr.mxu0 %v428
    %2070 = vmatpush1.xpose.msra.mxu0 %v427
    %2071 = vmatprep.subr.mxu0 %v492
    %2072 = vmatpush1.xpose.msra.mxu0 %v491
    %2073 = vmatprep.subr.mxu0 %v556
    %2074 = vmatpush1.xpose.msra.mxu0 %v555
    %2075 = vmatprep.subr.mxu0 0.0
    %2076 = vmatpush1.xpose.msra.mxu0 0.0
    %2077 = vmatprep.subr.mxu0 0.0
    %2078 = vmatpush1.xpose.msra.mxu0 0.0
    %2079 = vmatprep.subr.mxu0 0.0
    %2080 = vmatpush1.xpose.msra.mxu0 0.0
    %2081 = vmatprep.subr.mxu0 0.0
    %2082 = vmatpush1.xpose.msra.mxu0 0.0
    %2083 = vmatprep.subr.mxu0 0.0
    %2084 = vmatpush1.xpose.msra.mxu0 0.0
    %2085 = vmatprep.subr.mxu0 0.0
    %2086 = vmatpush1.xpose.msra.mxu0 0.0
    %2087 = vmatprep.subr.mxu0 0.0
    %2088 = vmatpush1.xpose.msra.mxu0 0.0
    %2089 = vmatprep.subr.mxu0 0.0
    %2090 = vmatpush1.xpose.msra.mxu0 0.0
    %2091 = vmatprep.subr.mxu0 0.0
    %2092 = vmatpush1.xpose.msra.mxu0 0.0
    %2093 = vmatprep.subr.mxu0 0.0
    %2094 = vmatpush1.xpose.msra.mxu0 0.0
    %2095 = vmatprep.subr.mxu0 0.0
    %2096 = vmatpush1.xpose.msra.mxu0 0.0
    %2097 = vmatprep.subr.mxu0 0.0
    %2098 = vmatpush1.xpose.msra.mxu0 0.0
    %2099 = vmatprep.subr.mxu0 0.0
    %2100 = vmatpush1.xpose.msra.mxu0 0.0
    %2101 = vmatprep.subr.mxu0 0.0
    %2102 = vmatpush1.xpose.msra.mxu0 0.0
    %2103 = vmatprep.subr.mxu0 0.0
    %2104 = vmatpush1.xpose.msra.mxu0 0.0
    %2105 = vmatprep.subr.mxu0 0.0
    %2106 = vmatpush1.xpose.msra.mxu0 0.0
    %2107 = vmatprep.subr.mxu0 0.0
    %2108 = vmatpush1.xpose.msra.mxu0 0.0
    %2109 = vmatprep.subr.mxu0 0.0
    %2110 = vmatpush1.xpose.msra.mxu0 0.0
    %2111 = vmatprep.subr.mxu0 0.0
    %2112 = vmatpush1.xpose.msra.mxu0 0.0
    %2113 = vmatprep.subr.mxu0 0.0
    %2114 = vmatpush1.xpose.msra.mxu0 0.0
    %2115 = vmatprep.subr.mxu0 0.0
    %2116 = vmatpush1.xpose.msra.mxu0 0.0
    %2117 = vmatprep.subr.mxu0 0.0
    %2118 = vmatpush1.xpose.msra.mxu0 0.0
    %2119 = vmatprep.subr.mxu0 0.0
    %2120 = vmatpush1.xpose.msra.mxu0 0.0
    %2121 = vmatprep.subr.mxu0 0.0
    %2122 = vmatpush1.xpose.msra.mxu0 0.0
    %2123 = vmatprep.mubr.f32.mxu0 %v754
    %2124 = vmatmul.mubr.f32.gmra.mrb[0].mxu0 %v746
    %v2125 = vpop.f32.mrb[0].mxu0
    %v2126 = vadd.f32 %v2056, %v2125
    %v2127 = vpop.f32.mrb[0].mxu0
    %2128 = vdwg.mxu0
    %2129 = vmatprep.subr.mxu0 %v110
    %2130 = vmatpush1.xpose.msra.mxu0 %v109
    %2131 = vmatprep.subr.mxu0 %v174
    %2132 = vmatpush1.xpose.msra.mxu0 %v173
    %2133 = vmatprep.subr.mxu0 %v238
    %2134 = vmatpush1.xpose.msra.mxu0 %v237
    %2135 = vmatprep.subr.mxu0 %v302
    %2136 = vmatpush1.xpose.msra.mxu0 %v301
    %2137 = vmatprep.subr.mxu0 %v366
    %2138 = vmatpush1.xpose.msra.mxu0 %v365
    %2139 = vmatprep.subr.mxu0 %v430
    %2140 = vmatpush1.xpose.msra.mxu0 %v429
    %2141 = vmatprep.subr.mxu0 %v494
    %2142 = vmatpush1.xpose.msra.mxu0 %v493
    %2143 = vmatprep.subr.mxu0 %v558
    %2144 = vmatpush1.xpose.msra.mxu0 %v557
    %2145 = vmatprep.subr.mxu0 0.0
    %2146 = vmatpush1.xpose.msra.mxu0 0.0
    %2147 = vmatprep.subr.mxu0 0.0
    %2148 = vmatpush1.xpose.msra.mxu0 0.0
    %2149 = vmatprep.subr.mxu0 0.0
    %2150 = vmatpush1.xpose.msra.mxu0 0.0
    %2151 = vmatprep.subr.mxu0 0.0
    %2152 = vmatpush1.xpose.msra.mxu0 0.0
    %2153 = vmatprep.subr.mxu0 0.0
    %2154 = vmatpush1.xpose.msra.mxu0 0.0
    %2155 = vmatprep.subr.mxu0 0.0
    %2156 = vmatpush1.xpose.msra.mxu0 0.0
    %2157 = vmatprep.subr.mxu0 0.0
    %2158 = vmatpush1.xpose.msra.mxu0 0.0
    %2159 = vmatprep.subr.mxu0 0.0
    %2160 = vmatpush1.xpose.msra.mxu0 0.0
    %2161 = vmatprep.subr.mxu0 0.0
    %2162 = vmatpush1.xpose.msra.mxu0 0.0
    %2163 = vmatprep.subr.mxu0 0.0
    %2164 = vmatpush1.xpose.msra.mxu0 0.0
    %2165 = vmatprep.subr.mxu0 0.0
    %2166 = vmatpush1.xpose.msra.mxu0 0.0
    %2167 = vmatprep.subr.mxu0 0.0
    %2168 = vmatpush1.xpose.msra.mxu0 0.0
    %2169 = vmatprep.subr.mxu0 0.0
    %2170 = vmatpush1.xpose.msra.mxu0 0.0
    %2171 = vmatprep.subr.mxu0 0.0
    %2172 = vmatpush1.xpose.msra.mxu0 0.0
    %2173 = vmatprep.subr.mxu0 0.0
    %2174 = vmatpush1.xpose.msra.mxu0 0.0
    %2175 = vmatprep.subr.mxu0 0.0
    %2176 = vmatpush1.xpose.msra.mxu0 0.0
    %2177 = vmatprep.subr.mxu0 0.0
    %2178 = vmatpush1.xpose.msra.mxu0 0.0
    %2179 = vmatprep.subr.mxu0 0.0
    %2180 = vmatpush1.xpose.msra.mxu0 0.0
    %2181 = vmatprep.subr.mxu0 0.0
    %2182 = vmatpush1.xpose.msra.mxu0 0.0
    %2183 = vmatprep.subr.mxu0 0.0
    %2184 = vmatpush1.xpose.msra.mxu0 0.0
    %2185 = vmatprep.subr.mxu0 0.0
    %2186 = vmatpush1.xpose.msra.mxu0 0.0
    %2187 = vmatprep.subr.mxu0 0.0
    %2188 = vmatpush1.xpose.msra.mxu0 0.0
    %2189 = vmatprep.subr.mxu0 0.0
    %2190 = vmatpush1.xpose.msra.mxu0 0.0
    %2191 = vmatprep.subr.mxu0 0.0
    %2192 = vmatpush1.xpose.msra.mxu0 0.0
    %2193 = vmatprep.mubr.f32.mxu0 %v755
    %2194 = vmatmul.mubr.f32.gmra.mrb[0].mxu0 %v753
    %v2195 = vpop.f32.mrb[0].mxu0
    %v2196 = vadd.f32 %v2126, %v2195
    %v2197 = vpop.f32.mrb[0].mxu0
    %2198 = vdwg.mxu0
    %2199 = vmatprep.subr.mxu0 %v112
    %2200 = vmatpush1.xpose.msra.mxu0 %v111
    %2201 = vmatprep.subr.mxu0 %v176
    %2202 = vmatpush1.xpose.msra.mxu0 %v175
    %2203 = vmatprep.subr.mxu0 %v240
    %2204 = vmatpush1.xpose.msra.mxu0 %v239
    %2205 = vmatprep.subr.mxu0 %v304
    %2206 = vmatpush1.xpose.msra.mxu0 %v303
    %2207 = vmatprep.subr.mxu0 %v368
    %2208 = vmatpush1.xpose.msra.mxu0 %v367
    %2209 = vmatprep.subr.mxu0 %v432
    %2210 = vmatpush1.xpose.msra.mxu0 %v431
    %2211 = vmatprep.subr.mxu0 %v496
    %2212 = vmatpush1.xpose.msra.mxu0 %v495
    %2213 = vmatprep.subr.mxu0 %v560
    %2214 = vmatpush1.xpose.msra.mxu0 %v559
    %2215 = vmatprep.subr.mxu0 0.0
    %2216 = vmatpush1.xpose.msra.mxu0 0.0
    %2217 = vmatprep.subr.mxu0 0.0
    %2218 = vmatpush1.xpose.msra.mxu0 0.0
    %2219 = vmatprep.subr.mxu0 0.0
    %2220 = vmatpush1.xpose.msra.mxu0 0.0
    %2221 = vmatprep.subr.mxu0 0.0
    %2222 = vmatpush1.xpose.msra.mxu0 0.0
    %2223 = vmatprep.subr.mxu0 0.0
    %2224 = vmatpush1.xpose.msra.mxu0 0.0
    %2225 = vmatprep.subr.mxu0 0.0
    %2226 = vmatpush1.xpose.msra.mxu0 0.0
    %2227 = vmatprep.subr.mxu0 0.0
    %2228 = vmatpush1.xpose.msra.mxu0 0.0
    %2229 = vmatprep.subr.mxu0 0.0
    %2230 = vmatpush1.xpose.msra.mxu0 0.0
    %2231 = vmatprep.subr.mxu0 0.0
    %2232 = vmatpush1.xpose.msra.mxu0 0.0
    %2233 = vmatprep.subr.mxu0 0.0
    %2234 = vmatpush1.xpose.msra.mxu0 0.0
    %2235 = vmatprep.subr.mxu0 0.0
    %2236 = vmatpush1.xpose.msra.mxu0 0.0
    %2237 = vmatprep.subr.mxu0 0.0
    %2238 = vmatpush1.xpose.msra.mxu0 0.0
    %2239 = vmatprep.subr.mxu0 0.0
    %2240 = vmatpush1.xpose.msra.mxu0 0.0
    %2241 = vmatprep.subr.mxu0 0.0
    %2242 = vmatpush1.xpose.msra.mxu0 0.0
    %2243 = vmatprep.subr.mxu0 0.0
    %2244 = vmatpush1.xpose.msra.mxu0 0.0
    %2245 = vmatprep.subr.mxu0 0.0
    %2246 = vmatpush1.xpose.msra.mxu0 0.0
    %2247 = vmatprep.subr.mxu0 0.0
    %2248 = vmatpush1.xpose.msra.mxu0 0.0
    %2249 = vmatprep.subr.mxu0 0.0
    %2250 = vmatpush1.xpose.msra.mxu0 0.0
    %2251 = vmatprep.subr.mxu0 0.0
    %2252 = vmatpush1.xpose.msra.mxu0 0.0
    %2253 = vmatprep.subr.mxu0 0.0
    %2254 = vmatpush1.xpose.msra.mxu0 0.0
    %2255 = vmatprep.subr.mxu0 0.0
    %2256 = vmatpush1.xpose.msra.mxu0 0.0
    %2257 = vmatprep.subr.mxu0 0.0
    %2258 = vmatpush1.xpose.msra.mxu0 0.0
    %2259 = vmatprep.subr.mxu0 0.0
    %2260 = vmatpush1.xpose.msra.mxu0 0.0
    %2261 = vmatprep.subr.mxu0 0.0
    %2262 = vmatpush1.xpose.msra.mxu0 0.0
    %2263 = vmatprep.mubr.f32.mxu0 %v771
    %2264 = vmatmul.mubr.f32.gmra.mrb[0].mxu0 %v763
    %v2265 = vpop.f32.mrb[0].mxu0
    %v2266 = vadd.f32 %v2196, %v2265
    %v2267 = vpop.f32.mrb[0].mxu0
    %2268 = vdwg.mxu0
    %2269 = vmatprep.subr.mxu0 %v114
    %2270 = vmatpush1.xpose.msra.mxu0 %v113
    %2271 = vmatprep.subr.mxu0 %v178
    %2272 = vmatpush1.xpose.msra.mxu0 %v177
    %2273 = vmatprep.subr.mxu0 %v242
    %2274 = vmatpush1.xpose.msra.mxu0 %v241
    %2275 = vmatprep.subr.mxu0 %v306
    %2276 = vmatpush1.xpose.msra.mxu0 %v305
    %2277 = vmatprep.subr.mxu0 %v370
    %2278 = vmatpush1.xpose.msra.mxu0 %v369
    %2279 = vmatprep.subr.mxu0 %v434
    %2280 = vmatpush1.xpose.msra.mxu0 %v433
    %2281 = vmatprep.subr.mxu0 %v498
    %2282 = vmatpush1.xpose.msra.mxu0 %v497
    %2283 = vmatprep.subr.mxu0 %v562
    %2284 = vmatpush1.xpose.msra.mxu0 %v561
    %2285 = vmatprep.subr.mxu0 0.0
    %2286 = vmatpush1.xpose.msra.mxu0 0.0
    %2287 = vmatprep.subr.mxu0 0.0
    %2288 = vmatpush1.xpose.msra.mxu0 0.0
    %2289 = vmatprep.subr.mxu0 0.0
    %2290 = vmatpush1.xpose.msra.mxu0 0.0
    %2291 = vmatprep.subr.mxu0 0.0
    %2292 = vmatpush1.xpose.msra.mxu0 0.0
    %2293 = vmatprep.subr.mxu0 0.0
    %2294 = vmatpush1.xpose.msra.mxu0 0.0
    %2295 = vmatprep.subr.mxu0 0.0
    %2296 = vmatpush1.xpose.msra.mxu0 0.0
    %2297 = vmatprep.subr.mxu0 0.0
    %2298 = vmatpush1.xpose.msra.mxu0 0.0
    %2299 = vmatprep.subr.mxu0 0.0
    %2300 = vmatpush1.xpose.msra.mxu0 0.0
    %2301 = vmatprep.subr.mxu0 0.0
    %2302 = vmatpush1.xpose.msra.mxu0 0.0
    %2303 = vmatprep.subr.mxu0 0.0
    %2304 = vmatpush1.xpose.msra.mxu0 0.0
    %2305 = vmatprep.subr.mxu0 0.0
    %2306 = vmatpush1.xpose.msra.mxu0 0.0
    %2307 = vmatprep.subr.mxu0 0.0
    %2308 = vmatpush1.xpose.msra.mxu0 0.0
    %2309 = vmatprep.subr.mxu0 0.0
    %2310 = vmatpush1.xpose.msra.mxu0 0.0
    %2311 = vmatprep.subr.mxu0 0.0
    %2312 = vmatpush1.xpose.msra.mxu0 0.0
    %2313 = vmatprep.subr.mxu0 0.0
    %2314 = vmatpush1.xpose.msra.mxu0 0.0
    %2315 = vmatprep.subr.mxu0 0.0
    %2316 = vmatpush1.xpose.msra.mxu0 0.0
    %2317 = vmatprep.subr.mxu0 0.0
    %2318 = vmatpush1.xpose.msra.mxu0 0.0
    %2319 = vmatprep.subr.mxu0 0.0
    %2320 = vmatpush1.xpose.msra.mxu0 0.0
    %2321 = vmatprep.subr.mxu0 0.0
    %2322 = vmatpush1.xpose.msra.mxu0 0.0
    %2323 = vmatprep.subr.mxu0 0.0
    %2324 = vmatpush1.xpose.msra.mxu0 0.0
    %2325 = vmatprep.subr.mxu0 0.0
    %2326 = vmatpush1.xpose.msra.mxu0 0.0
    %2327 = vmatprep.subr.mxu0 0.0
    %2328 = vmatpush1.xpose.msra.mxu0 0.0
    %2329 = vmatprep.subr.mxu0 0.0
    %2330 = vmatpush1.xpose.msra.mxu0 0.0
    %2331 = vmatprep.subr.mxu0 0.0
    %2332 = vmatpush1.xpose.msra.mxu0 0.0
    %2333 = vmatprep.mubr.f32.mxu0 %v772
    %2334 = vmatmul.mubr.f32.gmra.mrb[0].mxu0 %v770
    %v2335 = vpop.f32.mrb[0].mxu0
    %v2336 = vadd.f32 %v2266, %v2335
    %v2337 = vpop.f32.mrb[0].mxu0
    %2338 = vdwg.mxu0
    %2339 = vmatprep.subr.mxu0 %v116
    %2340 = vmatpush1.xpose.msra.mxu0 %v115
    %2341 = vmatprep.subr.mxu0 %v180
    %2342 = vmatpush1.xpose.msra.mxu0 %v179
    %2343 = vmatprep.subr.mxu0 %v244
    %2344 = vmatpush1.xpose.msra.mxu0 %v243
    %2345 = vmatprep.subr.mxu0 %v308
    %2346 = vmatpush1.xpose.msra.mxu0 %v307
    %2347 = vmatprep.subr.mxu0 %v372
    %2348 = vmatpush1.xpose.msra.mxu0 %v371
    %2349 = vmatprep.subr.mxu0 %v436
    %2350 = vmatpush1.xpose.msra.mxu0 %v435
    %2351 = vmatprep.subr.mxu0 %v500
    %2352 = vmatpush1.xpose.msra.mxu0 %v499
    %2353 = vmatprep.subr.mxu0 %v564
    %2354 = vmatpush1.xpose.msra.mxu0 %v563
    %2355 = vmatprep.subr.mxu0 0.0
    %2356 = vmatpush1.xpose.msra.mxu0 0.0
    %2357 = vmatprep.subr.mxu0 0.0
    %2358 = vmatpush1.xpose.msra.mxu0 0.0
    %2359 = vmatprep.subr.mxu0 0.0
    %2360 = vmatpush1.xpose.msra.mxu0 0.0
    %2361 = vmatprep.subr.mxu0 0.0
    %2362 = vmatpush1.xpose.msra.mxu0 0.0
    %2363 = vmatprep.subr.mxu0 0.0
    %2364 = vmatpush1.xpose.msra.mxu0 0.0
    %2365 = vmatprep.subr.mxu0 0.0
    %2366 = vmatpush1.xpose.msra.mxu0 0.0
    %2367 = vmatprep.subr.mxu0 0.0
    %2368 = vmatpush1.xpose.msra.mxu0 0.0
    %2369 = vmatprep.subr.mxu0 0.0
    %2370 = vmatpush1.xpose.msra.mxu0 0.0
    %2371 = vmatprep.subr.mxu0 0.0
    %2372 = vmatpush1.xpose.msra.mxu0 0.0
    %2373 = vmatprep.subr.mxu0 0.0
    %2374 = vmatpush1.xpose.msra.mxu0 0.0
    %2375 = vmatprep.subr.mxu0 0.0
    %2376 = vmatpush1.xpose.msra.mxu0 0.0
    %2377 = vmatprep.subr.mxu0 0.0
    %2378 = vmatpush1.xpose.msra.mxu0 0.0
    %2379 = vmatprep.subr.mxu0 0.0
    %2380 = vmatpush1.xpose.msra.mxu0 0.0
    %2381 = vmatprep.subr.mxu0 0.0
    %2382 = vmatpush1.xpose.msra.mxu0 0.0
    %2383 = vmatprep.subr.mxu0 0.0
    %2384 = vmatpush1.xpose.msra.mxu0 0.0
    %2385 = vmatprep.subr.mxu0 0.0
    %2386 = vmatpush1.xpose.msra.mxu0 0.0
    %2387 = vmatprep.subr.mxu0 0.0
    %2388 = vmatpush1.xpose.msra.mxu0 0.0
    %2389 = vmatprep.subr.mxu0 0.0
    %2390 = vmatpush1.xpose.msra.mxu0 0.0
    %2391 = vmatprep.subr.mxu0 0.0
    %2392 = vmatpush1.xpose.msra.mxu0 0.0
    %2393 = vmatprep.subr.mxu0 0.0
    %2394 = vmatpush1.xpose.msra.mxu0 0.0
    %2395 = vmatprep.subr.mxu0 0.0
    %2396 = vmatpush1.xpose.msra.mxu0 0.0
    %2397 = vmatprep.subr.mxu0 0.0
    %2398 = vmatpush1.xpose.msra.mxu0 0.0
    %2399 = vmatprep.subr.mxu0 0.0
    %2400 = vmatpush1.xpose.msra.mxu0 0.0
    %2401 = vmatprep.subr.mxu0 0.0
    %2402 = vmatpush1.xpose.msra.mxu0 0.0
    %2403 = vmatprep.mubr.f32.mxu0 %v788
    %2404 = vmatmul.mubr.f32.gmra.mrb[0].mxu0 %v780
    %v2405 = vpop.f32.mrb[0].mxu0
    %v2406 = vadd.f32 %v2336, %v2405
    %v2407 = vpop.f32.mrb[0].mxu0
    %2408 = vdwg.mxu0
    %2409 = vmatprep.subr.mxu0 %v118
    %2410 = vmatpush1.xpose.msra.mxu0 %v117
    %2411 = vmatprep.subr.mxu0 %v182
    %2412 = vmatpush1.xpose.msra.mxu0 %v181
    %2413 = vmatprep.subr.mxu0 %v246
    %2414 = vmatpush1.xpose.msra.mxu0 %v245
    %2415 = vmatprep.subr.mxu0 %v310
    %2416 = vmatpush1.xpose.msra.mxu0 %v309
    %2417 = vmatprep.subr.mxu0 %v374
    %2418 = vmatpush1.xpose.msra.mxu0 %v373
    %2419 = vmatprep.subr.mxu0 %v438
    %2420 = vmatpush1.xpose.msra.mxu0 %v437
    %2421 = vmatprep.subr.mxu0 %v502
    %2422 = vmatpush1.xpose.msra.mxu0 %v501
    %2423 = vmatprep.subr.mxu0 %v566
    %2424 = vmatpush1.xpose.msra.mxu0 %v565
    %2425 = vmatprep.subr.mxu0 0.0
    %2426 = vmatpush1.xpose.msra.mxu0 0.0
    %2427 = vmatprep.subr.mxu0 0.0
    %2428 = vmatpush1.xpose.msra.mxu0 0.0
    %2429 = vmatprep.subr.mxu0 0.0
    %2430 = vmatpush1.xpose.msra.mxu0 0.0
    %2431 = vmatprep.subr.mxu0 0.0
    %2432 = vmatpush1.xpose.msra.mxu0 0.0
    %2433 = vmatprep.subr.mxu0 0.0
    %2434 = vmatpush1.xpose.msra.mxu0 0.0
    %2435 = vmatprep.subr.mxu0 0.0
    %2436 = vmatpush1.xpose.msra.mxu0 0.0
    %2437 = vmatprep.subr.mxu0 0.0
    %2438 = vmatpush1.xpose.msra.mxu0 0.0
    %2439 = vmatprep.subr.mxu0 0.0
    %2440 = vmatpush1.xpose.msra.mxu0 0.0
    %2441 = vmatprep.subr.mxu0 0.0
    %2442 = vmatpush1.xpose.msra.mxu0 0.0
    %2443 = vmatprep.subr.mxu0 0.0
    %2444 = vmatpush1.xpose.msra.mxu0 0.0
    %2445 = vmatprep.subr.mxu0 0.0
    %2446 = vmatpush1.xpose.msra.mxu0 0.0
    %2447 = vmatprep.subr.mxu0 0.0
    %2448 = vmatpush1.xpose.msra.mxu0 0.0
    %2449 = vmatprep.subr.mxu0 0.0
    %2450 = vmatpush1.xpose.msra.mxu0 0.0
    %2451 = vmatprep.subr.mxu0 0.0
    %2452 = vmatpush1.xpose.msra.mxu0 0.0
    %2453 = vmatprep.subr.mxu0 0.0
    %2454 = vmatpush1.xpose.msra.mxu0 0.0
    %2455 = vmatprep.subr.mxu0 0.0
    %2456 = vmatpush1.xpose.msra.mxu0 0.0
    %2457 = vmatprep.subr.mxu0 0.0
    %2458 = vmatpush1.xpose.msra.mxu0 0.0
    %2459 = vmatprep.subr.mxu0 0.0
    %2460 = vmatpush1.xpose.msra.mxu0 0.0
    %2461 = vmatprep.subr.mxu0 0.0
    %2462 = vmatpush1.xpose.msra.mxu0 0.0
    %2463 = vmatprep.subr.mxu0 0.0
    %2464 = vmatpush1.xpose.msra.mxu0 0.0
    %2465 = vmatprep.subr.mxu0 0.0
    %2466 = vmatpush1.xpose.msra.mxu0 0.0
    %2467 = vmatprep.subr.mxu0 0.0
    %2468 = vmatpush1.xpose.msra.mxu0 0.0
    %2469 = vmatprep.subr.mxu0 0.0
    %2470 = vmatpush1.xpose.msra.mxu0 0.0
    %2471 = vmatprep.subr.mxu0 0.0
    %2472 = vmatpush1.xpose.msra.mxu0 0.0
    %2473 = vmatprep.mubr.f32.mxu0 %v789
    %2474 = vmatmul.mubr.f32.gmra.mrb[0].mxu0 %v787
    %v2475 = vpop.f32.mrb[0].mxu0
    %v2476 = vadd.f32 %v2406, %v2475
    %v2477 = vpop.f32.mrb[0].mxu0
    %2478 = vdwg.mxu0
    %2479 = vmatprep.subr.mxu0 %v120
    %2480 = vmatpush1.xpose.msra.mxu0 %v119
    %2481 = vmatprep.subr.mxu0 %v184
    %2482 = vmatpush1.xpose.msra.mxu0 %v183
    %2483 = vmatprep.subr.mxu0 %v248
    %2484 = vmatpush1.xpose.msra.mxu0 %v247
    %2485 = vmatprep.subr.mxu0 %v312
    %2486 = vmatpush1.xpose.msra.mxu0 %v311
    %2487 = vmatprep.subr.mxu0 %v376
    %2488 = vmatpush1.xpose.msra.mxu0 %v375
    %2489 = vmatprep.subr.mxu0 %v440
    %2490 = vmatpush1.xpose.msra.mxu0 %v439
    %2491 = vmatprep.subr.mxu0 %v504
    %2492 = vmatpush1.xpose.msra.mxu0 %v503
    %2493 = vmatprep.subr.mxu0 %v568
    %2494 = vmatpush1.xpose.msra.mxu0 %v567
    %2495 = vmatprep.subr.mxu0 0.0
    %2496 = vmatpush1.xpose.msra.mxu0 0.0
    %2497 = vmatprep.subr.mxu0 0.0
    %2498 = vmatpush1.xpose.msra.mxu0 0.0
    %2499 = vmatprep.subr.mxu0 0.0
    %2500 = vmatpush1.xpose.msra.mxu0 0.0
    %2501 = vmatprep.subr.mxu0 0.0
    %2502 = vmatpush1.xpose.msra.mxu0 0.0
    %2503 = vmatprep.subr.mxu0 0.0
    %2504 = vmatpush1.xpose.msra.mxu0 0.0
    %2505 = vmatprep.subr.mxu0 0.0
    %2506 = vmatpush1.xpose.msra.mxu0 0.0
    %2507 = vmatprep.subr.mxu0 0.0
    %2508 = vmatpush1.xpose.msra.mxu0 0.0
    %2509 = vmatprep.subr.mxu0 0.0
    %2510 = vmatpush1.xpose.msra.mxu0 0.0
    %2511 = vmatprep.subr.mxu0 0.0
    %2512 = vmatpush1.xpose.msra.mxu0 0.0
    %2513 = vmatprep.subr.mxu0 0.0
    %2514 = vmatpush1.xpose.msra.mxu0 0.0
    %2515 = vmatprep.subr.mxu0 0.0
    %2516 = vmatpush1.xpose.msra.mxu0 0.0
    %2517 = vmatprep.subr.mxu0 0.0
    %2518 = vmatpush1.xpose.msra.mxu0 0.0
    %2519 = vmatprep.subr.mxu0 0.0
    %2520 = vmatpush1.xpose.msra.mxu0 0.0
    %2521 = vmatprep.subr.mxu0 0.0
    %2522 = vmatpush1.xpose.msra.mxu0 0.0
    %2523 = vmatprep.subr.mxu0 0.0
    %2524 = vmatpush1.xpose.msra.mxu0 0.0
    %2525 = vmatprep.subr.mxu0 0.0
    %2526 = vmatpush1.xpose.msra.mxu0 0.0
    %2527 = vmatprep.subr.mxu0 0.0
    %2528 = vmatpush1.xpose.msra.mxu0 0.0
    %2529 = vmatprep.subr.mxu0 0.0
    %2530 = vmatpush1.xpose.msra.mxu0 0.0
    %2531 = vmatprep.subr.mxu0 0.0
    %2532 = vmatpush1.xpose.msra.mxu0 0.0
    %2533 = vmatprep.subr.mxu0 0.0
    %2534 = vmatpush1.xpose.msra.mxu0 0.0
    %2535 = vmatprep.subr.mxu0 0.0
    %2536 = vmatpush1.xpose.msra.mxu0 0.0
    %2537 = vmatprep.subr.mxu0 0.0
    %2538 = vmatpush1.xpose.msra.mxu0 0.0
    %2539 = vmatprep.subr.mxu0 0.0
    %2540 = vmatpush1.xpose.msra.mxu0 0.0
    %2541 = vmatprep.subr.mxu0 0.0
    %2542 = vmatpush1.xpose.msra.mxu0 0.0
    %2543 = vmatprep.mubr.f32.mxu0 %v805
    %2544 = vmatmul.mubr.f32.gmra.mrb[0].mxu0 %v797
    %v2545 = vpop.f32.mrb[0].mxu0
    %v2546 = vadd.f32 %v2476, %v2545
    %v2547 = vpop.f32.mrb[0].mxu0
    %2548 = vdwg.mxu0
    %2549 = vmatprep.subr.mxu0 %v122
    %2550 = vmatpush1.xpose.msra.mxu0 %v121
    %2551 = vmatprep.subr.mxu0 %v186
    %2552 = vmatpush1.xpose.msra.mxu0 %v185
    %2553 = vmatprep.subr.mxu0 %v250
    %2554 = vmatpush1.xpose.msra.mxu0 %v249
    %2555 = vmatprep.subr.mxu0 %v314
    %2556 = vmatpush1.xpose.msra.mxu0 %v313
    %2557 = vmatprep.subr.mxu0 %v378
    %2558 = vmatpush1.xpose.msra.mxu0 %v377
    %2559 = vmatprep.subr.mxu0 %v442
    %2560 = vmatpush1.xpose.msra.mxu0 %v441
    %2561 = vmatprep.subr.mxu0 %v506
    %2562 = vmatpush1.xpose.msra.mxu0 %v505
    %2563 = vmatprep.subr.mxu0 %v570
    %2564 = vmatpush1.xpose.msra.mxu0 %v569
    %2565 = vmatprep.subr.mxu0 0.0
    %2566 = vmatpush1.xpose.msra.mxu0 0.0
    %2567 = vmatprep.subr.mxu0 0.0
    %2568 = vmatpush1.xpose.msra.mxu0 0.0
    %2569 = vmatprep.subr.mxu0 0.0
    %2570 = vmatpush1.xpose.msra.mxu0 0.0
    %2571 = vmatprep.subr.mxu0 0.0
    %2572 = vmatpush1.xpose.msra.mxu0 0.0
    %2573 = vmatprep.subr.mxu0 0.0
    %2574 = vmatpush1.xpose.msra.mxu0 0.0
    %2575 = vmatprep.subr.mxu0 0.0
    %2576 = vmatpush1.xpose.msra.mxu0 0.0
    %2577 = vmatprep.subr.mxu0 0.0
    %2578 = vmatpush1.xpose.msra.mxu0 0.0
    %2579 = vmatprep.subr.mxu0 0.0
    %2580 = vmatpush1.xpose.msra.mxu0 0.0
    %2581 = vmatprep.subr.mxu0 0.0
    %2582 = vmatpush1.xpose.msra.mxu0 0.0
    %2583 = vmatprep.subr.mxu0 0.0
    %2584 = vmatpush1.xpose.msra.mxu0 0.0
    %2585 = vmatprep.subr.mxu0 0.0
    %2586 = vmatpush1.xpose.msra.mxu0 0.0
    %2587 = vmatprep.subr.mxu0 0.0
    %2588 = vmatpush1.xpose.msra.mxu0 0.0
    %2589 = vmatprep.subr.mxu0 0.0
    %2590 = vmatpush1.xpose.msra.mxu0 0.0
    %2591 = vmatprep.subr.mxu0 0.0
    %2592 = vmatpush1.xpose.msra.mxu0 0.0
    %2593 = vmatprep.subr.mxu0 0.0
    %2594 = vmatpush1.xpose.msra.mxu0 0.0
    %2595 = vmatprep.subr.mxu0 0.0
    %2596 = vmatpush1.xpose.msra.mxu0 0.0
    %2597 = vmatprep.subr.mxu0 0.0
    %2598 = vmatpush1.xpose.msra.mxu0 0.0
    %2599 = vmatprep.subr.mxu0 0.0
    %2600 = vmatpush1.xpose.msra.mxu0 0.0
    %2601 = vmatprep.subr.mxu0 0.0
    %2602 = vmatpush1.xpose.msra.mxu0 0.0
    %2603 = vmatprep.subr.mxu0 0.0
    %2604 = vmatpush1.xpose.msra.mxu0 0.0
    %2605 = vmatprep.subr.mxu0 0.0
    %2606 = vmatpush1.xpose.msra.mxu0 0.0
    %2607 = vmatprep.subr.mxu0 0.0
    %2608 = vmatpush1.xpose.msra.mxu0 0.0
    %2609 = vmatprep.subr.mxu0 0.0
    %2610 = vmatpush1.xpose.msra.mxu0 0.0
    %2611 = vmatprep.subr.mxu0 0.0
    %2612 = vmatpush1.xpose.msra.mxu0 0.0
    %2613 = vmatprep.mubr.f32.mxu0 %v806
    %2614 = vmatmul.mubr.f32.gmra.mrb[0].mxu0 %v804
    %v2615 = vpop.f32.mrb[0].mxu0
    %v2616 = vadd.f32 %v2546, %v2615
    %v2617 = vpop.f32.mrb[0].mxu0
    %2618 = vdwg.mxu0
    %2619 = vmatprep.subr.mxu0 %v124
    %2620 = vmatpush1.xpose.msra.mxu0 %v123
    %2621 = vmatprep.subr.mxu0 %v188
    %2622 = vmatpush1.xpose.msra.mxu0 %v187
    %2623 = vmatprep.subr.mxu0 %v252
    %2624 = vmatpush1.xpose.msra.mxu0 %v251
    %2625 = vmatprep.subr.mxu0 %v316
    %2626 = vmatpush1.xpose.msra.mxu0 %v315
    %2627 = vmatprep.subr.mxu0 %v380
    %2628 = vmatpush1.xpose.msra.mxu0 %v379
    %2629 = vmatprep.subr.mxu0 %v444
    %2630 = vmatpush1.xpose.msra.mxu0 %v443
    %2631 = vmatprep.subr.mxu0 %v508
    %2632 = vmatpush1.xpose.msra.mxu0 %v507
    %2633 = vmatprep.subr.mxu0 %v572
    %2634 = vmatpush1.xpose.msra.mxu0 %v571
    %2635 = vmatprep.subr.mxu0 0.0
    %2636 = vmatpush1.xpose.msra.mxu0 0.0
    %2637 = vmatprep.subr.mxu0 0.0
    %2638 = vmatpush1.xpose.msra.mxu0 0.0
    %2639 = vmatprep.subr.mxu0 0.0
    %2640 = vmatpush1.xpose.msra.mxu0 0.0
    %2641 = vmatprep.subr.mxu0 0.0
    %2642 = vmatpush1.xpose.msra.mxu0 0.0
    %2643 = vmatprep.subr.mxu0 0.0
    %2644 = vmatpush1.xpose.msra.mxu0 0.0
    %2645 = vmatprep.subr.mxu0 0.0
    %2646 = vmatpush1.xpose.msra.mxu0 0.0
    %2647 = vmatprep.subr.mxu0 0.0
    %2648 = vmatpush1.xpose.msra.mxu0 0.0
    %2649 = vmatprep.subr.mxu0 0.0
    %2650 = vmatpush1.xpose.msra.mxu0 0.0
    %2651 = vmatprep.subr.mxu0 0.0
    %2652 = vmatpush1.xpose.msra.mxu0 0.0
    %2653 = vmatprep.subr.mxu0 0.0
    %2654 = vmatpush1.xpose.msra.mxu0 0.0
    %2655 = vmatprep.subr.mxu0 0.0
    %2656 = vmatpush1.xpose.msra.mxu0 0.0
    %2657 = vmatprep.subr.mxu0 0.0
    %2658 = vmatpush1.xpose.msra.mxu0 0.0
    %2659 = vmatprep.subr.mxu0 0.0
    %2660 = vmatpush1.xpose.msra.mxu0 0.0
    %2661 = vmatprep.subr.mxu0 0.0
    %2662 = vmatpush1.xpose.msra.mxu0 0.0
    %2663 = vmatprep.subr.mxu0 0.0
    %2664 = vmatpush1.xpose.msra.mxu0 0.0
    %2665 = vmatprep.subr.mxu0 0.0
    %2666 = vmatpush1.xpose.msra.mxu0 0.0
    %2667 = vmatprep.subr.mxu0 0.0
    %2668 = vmatpush1.xpose.msra.mxu0 0.0
    %2669 = vmatprep.subr.mxu0 0.0
    %2670 = vmatpush1.xpose.msra.mxu0 0.0
    %2671 = vmatprep.subr.mxu0 0.0
    %2672 = vmatpush1.xpose.msra.mxu0 0.0
    %2673 = vmatprep.subr.mxu0 0.0
    %2674 = vmatpush1.xpose.msra.mxu0 0.0
    %2675 = vmatprep.subr.mxu0 0.0
    %2676 = vmatpush1.xpose.msra.mxu0 0.0
    %2677 = vmatprep.subr.mxu0 0.0
    %2678 = vmatpush1.xpose.msra.mxu0 0.0
    %2679 = vmatprep.subr.mxu0 0.0
    %2680 = vmatpush1.xpose.msra.mxu0 0.0
    %2681 = vmatprep.subr.mxu0 0.0
    %2682 = vmatpush1.xpose.msra.mxu0 0.0
    %2683 = vmatprep.mubr.f32.mxu0 %v822
    %2684 = vmatmul.mubr.f32.gmra.mrb[0].mxu0 %v814
    %v2685 = vpop.f32.mrb[0].mxu0
    %v2686 = vadd.f32 %v2616, %v2685
    %v2687 = vpop.f32.mrb[0].mxu0
    %2688 = vdwg.mxu0
    %2689 = vmatprep.subr.mxu0 %v126
    %2690 = vmatpush1.xpose.msra.mxu0 %v125
    %2691 = vmatprep.subr.mxu0 %v190
    %2692 = vmatpush1.xpose.msra.mxu0 %v189
    %2693 = vmatprep.subr.mxu0 %v254
    %2694 = vmatpush1.xpose.msra.mxu0 %v253
    %2695 = vmatprep.subr.mxu0 %v318
    %2696 = vmatpush1.xpose.msra.mxu0 %v317
    %2697 = vmatprep.subr.mxu0 %v382
    %2698 = vmatpush1.xpose.msra.mxu0 %v381
    %2699 = vmatprep.subr.mxu0 %v446
    %2700 = vmatpush1.xpose.msra.mxu0 %v445
    %2701 = vmatprep.subr.mxu0 %v510
    %2702 = vmatpush1.xpose.msra.mxu0 %v509
    %2703 = vmatprep.subr.mxu0 %v574
    %2704 = vmatpush1.xpose.msra.mxu0 %v573
    %2705 = vmatprep.subr.mxu0 0.0
    %2706 = vmatpush1.xpose.msra.mxu0 0.0
    %2707 = vmatprep.subr.mxu0 0.0
    %2708 = vmatpush1.xpose.msra.mxu0 0.0
    %2709 = vmatprep.subr.mxu0 0.0
    %2710 = vmatpush1.xpose.msra.mxu0 0.0
    %2711 = vmatprep.subr.mxu0 0.0
    %2712 = vmatpush1.xpose.msra.mxu0 0.0
    %2713 = vmatprep.subr.mxu0 0.0
    %2714 = vmatpush1.xpose.msra.mxu0 0.0
    %2715 = vmatprep.subr.mxu0 0.0
    %2716 = vmatpush1.xpose.msra.mxu0 0.0
    %2717 = vmatprep.subr.mxu0 0.0
    %2718 = vmatpush1.xpose.msra.mxu0 0.0
    %2719 = vmatprep.subr.mxu0 0.0
    %2720 = vmatpush1.xpose.msra.mxu0 0.0
    %2721 = vmatprep.subr.mxu0 0.0
    %2722 = vmatpush1.xpose.msra.mxu0 0.0
    %2723 = vmatprep.subr.mxu0 0.0
    %2724 = vmatpush1.xpose.msra.mxu0 0.0
    %2725 = vmatprep.subr.mxu0 0.0
    %2726 = vmatpush1.xpose.msra.mxu0 0.0
    %2727 = vmatprep.subr.mxu0 0.0
    %2728 = vmatpush1.xpose.msra.mxu0 0.0
    %2729 = vmatprep.subr.mxu0 0.0
    %2730 = vmatpush1.xpose.msra.mxu0 0.0
    %2731 = vmatprep.subr.mxu0 0.0
    %2732 = vmatpush1.xpose.msra.mxu0 0.0
    %2733 = vmatprep.subr.mxu0 0.0
    %2734 = vmatpush1.xpose.msra.mxu0 0.0
    %2735 = vmatprep.subr.mxu0 0.0
    %2736 = vmatpush1.xpose.msra.mxu0 0.0
    %2737 = vmatprep.subr.mxu0 0.0
    %2738 = vmatpush1.xpose.msra.mxu0 0.0
    %2739 = vmatprep.subr.mxu0 0.0
    %2740 = vmatpush1.xpose.msra.mxu0 0.0
    %2741 = vmatprep.subr.mxu0 0.0
    %2742 = vmatpush1.xpose.msra.mxu0 0.0
    %2743 = vmatprep.subr.mxu0 0.0
    %2744 = vmatpush1.xpose.msra.mxu0 0.0
    %2745 = vmatprep.subr.mxu0 0.0
    %2746 = vmatpush1.xpose.msra.mxu0 0.0
    %2747 = vmatprep.subr.mxu0 0.0
    %2748 = vmatpush1.xpose.msra.mxu0 0.0
    %2749 = vmatprep.subr.mxu0 0.0
    %2750 = vmatpush1.xpose.msra.mxu0 0.0
    %2751 = vmatprep.subr.mxu0 0.0
    %2752 = vmatpush1.xpose.msra.mxu0 0.0
    %2753 = vmatprep.mubr.f32.mxu0 %v823
    %2754 = vmatmul.mubr.f32.gmra.mrb[0].mxu0 %v821
    %v2755 = vpop.f32.mrb[0].mxu0
    %v2756 = vadd.f32 %v2686, %v2755
    %v2757 = vpop.f32.mrb[0].mxu0
    %2758 = vdwg.mxu0
    %2759 = vmatprep.subr.mxu0 %v128
    %2760 = vmatpush1.xpose.msra.mxu0 %v127
    %2761 = vmatprep.subr.mxu0 %v192
    %2762 = vmatpush1.xpose.msra.mxu0 %v191
    %2763 = vmatprep.subr.mxu0 %v256
    %2764 = vmatpush1.xpose.msra.mxu0 %v255
    %2765 = vmatprep.subr.mxu0 %v320
    %2766 = vmatpush1.xpose.msra.mxu0 %v319
    %2767 = vmatprep.subr.mxu0 %v384
    %2768 = vmatpush1.xpose.msra.mxu0 %v383
    %2769 = vmatprep.subr.mxu0 %v448
    %2770 = vmatpush1.xpose.msra.mxu0 %v447
    %2771 = vmatprep.subr.mxu0 %v512
    %2772 = vmatpush1.xpose.msra.mxu0 %v511
    %2773 = vmatprep.subr.mxu0 %v576
    %2774 = vmatpush1.xpose.msra.mxu0 %v575
    %2775 = vmatprep.subr.mxu0 0.0
    %2776 = vmatpush1.xpose.msra.mxu0 0.0
    %2777 = vmatprep.subr.mxu0 0.0
    %2778 = vmatpush1.xpose.msra.mxu0 0.0
    %2779 = vmatprep.subr.mxu0 0.0
    %2780 = vmatpush1.xpose.msra.mxu0 0.0
    %2781 = vmatprep.subr.mxu0 0.0
    %2782 = vmatpush1.xpose.msra.mxu0 0.0
    %2783 = vmatprep.subr.mxu0 0.0
    %2784 = vmatpush1.xpose.msra.mxu0 0.0
    %2785 = vmatprep.subr.mxu0 0.0
    %2786 = vmatpush1.xpose.msra.mxu0 0.0
    %2787 = vmatprep.subr.mxu0 0.0
    %2788 = vmatpush1.xpose.msra.mxu0 0.0
    %2789 = vmatprep.subr.mxu0 0.0
    %2790 = vmatpush1.xpose.msra.mxu0 0.0
    %2791 = vmatprep.subr.mxu0 0.0
    %2792 = vmatpush1.xpose.msra.mxu0 0.0
    %2793 = vmatprep.subr.mxu0 0.0
    %2794 = vmatpush1.xpose.msra.mxu0 0.0
    %2795 = vmatprep.subr.mxu0 0.0
    %2796 = vmatpush1.xpose.msra.mxu0 0.0
    %2797 = vmatprep.subr.mxu0 0.0
    %2798 = vmatpush1.xpose.msra.mxu0 0.0
    %2799 = vmatprep.subr.mxu0 0.0
    %2800 = vmatpush1.xpose.msra.mxu0 0.0
    %2801 = vmatprep.subr.mxu0 0.0
    %2802 = vmatpush1.xpose.msra.mxu0 0.0
    %2803 = vmatprep.subr.mxu0 0.0
    %2804 = vmatpush1.xpose.msra.mxu0 0.0
    %2805 = vmatprep.subr.mxu0 0.0
    %2806 = vmatpush1.xpose.msra.mxu0 0.0
    %2807 = vmatprep.subr.mxu0 0.0
    %2808 = vmatpush1.xpose.msra.mxu0 0.0
    %2809 = vmatprep.subr.mxu0 0.0
    %2810 = vmatpush1.xpose.msra.mxu0 0.0
    %2811 = vmatprep.subr.mxu0 0.0
    %2812 = vmatpush1.xpose.msra.mxu0 0.0
    %2813 = vmatprep.subr.mxu0 0.0
    %2814 = vmatpush1.xpose.msra.mxu0 0.0
    %2815 = vmatprep.subr.mxu0 0.0
    %2816 = vmatpush1.xpose.msra.mxu0 0.0
    %2817 = vmatprep.subr.mxu0 0.0
    %2818 = vmatpush1.xpose.msra.mxu0 0.0
    %2819 = vmatprep.subr.mxu0 0.0
    %2820 = vmatpush1.xpose.msra.mxu0 0.0
    %2821 = vmatprep.subr.mxu0 0.0
    %2822 = vmatpush1.xpose.msra.mxu0 0.0
    %2823 = vmatprep.mubr.f32.mxu0 %v839
    %2824 = vmatmul.mubr.f32.gmra.mrb[0].mxu0 %v831
    %v2825 = vpop.f32.mrb[0].mxu0
    %v2826 = vadd.f32 %v2756, %v2825
    %v2827 = vpop.f32.mrb[0].mxu0
    %2828 = vdwg.mxu0
    %2829 = vmatprep.subr.mxu0 %v130
    %2830 = vmatpush1.xpose.msra.mxu0 %v129
    %2831 = vmatprep.subr.mxu0 %v194
    %2832 = vmatpush1.xpose.msra.mxu0 %v193
    %2833 = vmatprep.subr.mxu0 %v258
    %2834 = vmatpush1.xpose.msra.mxu0 %v257
    %2835 = vmatprep.subr.mxu0 %v322
    %2836 = vmatpush1.xpose.msra.mxu0 %v321
    %2837 = vmatprep.subr.mxu0 %v386
    %2838 = vmatpush1.xpose.msra.mxu0 %v385
    %2839 = vmatprep.subr.mxu0 %v450
    %2840 = vmatpush1.xpose.msra.mxu0 %v449
    %2841 = vmatprep.subr.mxu0 %v514
    %2842 = vmatpush1.xpose.msra.mxu0 %v513
    %2843 = vmatprep.subr.mxu0 %v578
    %2844 = vmatpush1.xpose.msra.mxu0 %v577
    %2845 = vmatprep.subr.mxu0 0.0
    %2846 = vmatpush1.xpose.msra.mxu0 0.0
    %2847 = vmatprep.subr.mxu0 0.0
    %2848 = vmatpush1.xpose.msra.mxu0 0.0
    %2849 = vmatprep.subr.mxu0 0.0
    %2850 = vmatpush1.xpose.msra.mxu0 0.0
    %2851 = vmatprep.subr.mxu0 0.0
    %2852 = vmatpush1.xpose.msra.mxu0 0.0
    %2853 = vmatprep.subr.mxu0 0.0
    %2854 = vmatpush1.xpose.msra.mxu0 0.0
    %2855 = vmatprep.subr.mxu0 0.0
    %2856 = vmatpush1.xpose.msra.mxu0 0.0
    %2857 = vmatprep.subr.mxu0 0.0
    %2858 = vmatpush1.xpose.msra.mxu0 0.0
    %2859 = vmatprep.subr.mxu0 0.0
    %2860 = vmatpush1.xpose.msra.mxu0 0.0
    %2861 = vmatprep.subr.mxu0 0.0
    %2862 = vmatpush1.xpose.msra.mxu0 0.0
    %2863 = vmatprep.subr.mxu0 0.0
    %2864 = vmatpush1.xpose.msra.mxu0 0.0
    %2865 = vmatprep.subr.mxu0 0.0
    %2866 = vmatpush1.xpose.msra.mxu0 0.0
    %2867 = vmatprep.subr.mxu0 0.0
    %2868 = vmatpush1.xpose.msra.mxu0 0.0
    %2869 = vmatprep.subr.mxu0 0.0
    %2870 = vmatpush1.xpose.msra.mxu0 0.0
    %2871 = vmatprep.subr.mxu0 0.0
    %2872 = vmatpush1.xpose.msra.mxu0 0.0
    %2873 = vmatprep.subr.mxu0 0.0
    %2874 = vmatpush1.xpose.msra.mxu0 0.0
    %2875 = vmatprep.subr.mxu0 0.0
    %2876 = vmatpush1.xpose.msra.mxu0 0.0
    %2877 = vmatprep.subr.mxu0 0.0
    %2878 = vmatpush1.xpose.msra.mxu0 0.0
    %2879 = vmatprep.subr.mxu0 0.0
    %2880 = vmatpush1.xpose.msra.mxu0 0.0
    %2881 = vmatprep.subr.mxu0 0.0
    %2882 = vmatpush1.xpose.msra.mxu0 0.0
    %2883 = vmatprep.subr.mxu0 0.0
    %2884 = vmatpush1.xpose.msra.mxu0 0.0
    %2885 = vmatprep.subr.mxu0 0.0
    %2886 = vmatpush1.xpose.msra.mxu0 0.0
    %2887 = vmatprep.subr.mxu0 0.0
    %2888 = vmatpush1.xpose.msra.mxu0 0.0
    %2889 = vmatprep.subr.mxu0 0.0
    %2890 = vmatpush1.xpose.msra.mxu0 0.0
    %2891 = vmatprep.subr.mxu0 0.0
    %2892 = vmatpush1.xpose.msra.mxu0 0.0
    %2893 = vmatprep.mubr.f32.mxu0 %v840
    %2894 = vmatmul.mubr.f32.gmra.mrb[0].mxu0 %v838
    %v2895 = vpop.f32.mrb[0].mxu0
    %v2896 = vadd.f32 %v2826, %v2895
    %v2897 = vpop.f32.mrb[0].mxu0
    %2898 = vdwg.mxu0
    %2899 = vmatprep.subr.mxu0 %v132
    %2900 = vmatpush1.xpose.msra.mxu0 %v131
    %2901 = vmatprep.subr.mxu0 %v196
    %2902 = vmatpush1.xpose.msra.mxu0 %v195
    %2903 = vmatprep.subr.mxu0 %v260
    %2904 = vmatpush1.xpose.msra.mxu0 %v259
    %2905 = vmatprep.subr.mxu0 %v324
    %2906 = vmatpush1.xpose.msra.mxu0 %v323
    %2907 = vmatprep.subr.mxu0 %v388
    %2908 = vmatpush1.xpose.msra.mxu0 %v387
    %2909 = vmatprep.subr.mxu0 %v452
    %2910 = vmatpush1.xpose.msra.mxu0 %v451
    %2911 = vmatprep.subr.mxu0 %v516
    %2912 = vmatpush1.xpose.msra.mxu0 %v515
    %2913 = vmatprep.subr.mxu0 %v580
    %2914 = vmatpush1.xpose.msra.mxu0 %v579
    %2915 = vmatprep.subr.mxu0 0.0
    %2916 = vmatpush1.xpose.msra.mxu0 0.0
    %2917 = vmatprep.subr.mxu0 0.0
    %2918 = vmatpush1.xpose.msra.mxu0 0.0
    %2919 = vmatprep.subr.mxu0 0.0
    %2920 = vmatpush1.xpose.msra.mxu0 0.0
    %2921 = vmatprep.subr.mxu0 0.0
    %2922 = vmatpush1.xpose.msra.mxu0 0.0
    %2923 = vmatprep.subr.mxu0 0.0
    %2924 = vmatpush1.xpose.msra.mxu0 0.0
    %2925 = vmatprep.subr.mxu0 0.0
    %2926 = vmatpush1.xpose.msra.mxu0 0.0
    %2927 = vmatprep.subr.mxu0 0.0
    %2928 = vmatpush1.xpose.msra.mxu0 0.0
    %2929 = vmatprep.subr.mxu0 0.0
    %2930 = vmatpush1.xpose.msra.mxu0 0.0
    %2931 = vmatprep.subr.mxu0 0.0
    %2932 = vmatpush1.xpose.msra.mxu0 0.0
    %2933 = vmatprep.subr.mxu0 0.0
    %2934 = vmatpush1.xpose.msra.mxu0 0.0
    %2935 = vmatprep.subr.mxu0 0.0
    %2936 = vmatpush1.xpose.msra.mxu0 0.0
    %2937 = vmatprep.subr.mxu0 0.0
    %2938 = vmatpush1.xpose.msra.mxu0 0.0
    %2939 = vmatprep.subr.mxu0 0.0
    %2940 = vmatpush1.xpose.msra.mxu0 0.0
    %2941 = vmatprep.subr.mxu0 0.0
    %2942 = vmatpush1.xpose.msra.mxu0 0.0
    %2943 = vmatprep.subr.mxu0 0.0
    %2944 = vmatpush1.xpose.msra.mxu0 0.0
    %2945 = vmatprep.subr.mxu0 0.0
    %2946 = vmatpush1.xpose.msra.mxu0 0.0
    %2947 = vmatprep.subr.mxu0 0.0
    %2948 = vmatpush1.xpose.msra.mxu0 0.0
    %2949 = vmatprep.subr.mxu0 0.0
    %2950 = vmatpush1.xpose.msra.mxu0 0.0
    %2951 = vmatprep.subr.mxu0 0.0
    %2952 = vmatpush1.xpose.msra.mxu0 0.0
    %2953 = vmatprep.subr.mxu0 0.0
    %2954 = vmatpush1.xpose.msra.mxu0 0.0
    %2955 = vmatprep.subr.mxu0 0.0
    %2956 = vmatpush1.xpose.msra.mxu0 0.0
    %2957 = vmatprep.subr.mxu0 0.0
    %2958 = vmatpush1.xpose.msra.mxu0 0.0
    %2959 = vmatprep.subr.mxu0 0.0
    %2960 = vmatpush1.xpose.msra.mxu0 0.0
    %2961 = vmatprep.subr.mxu0 0.0
    %2962 = vmatpush1.xpose.msra.mxu0 0.0
    %2963 = vmatprep.mubr.f32.mxu0 %v856
    %2964 = vmatmul.mubr.f32.gmra.mrb[0].mxu0 %v848
    %v2965 = vpop.f32.mrb[0].mxu0
    %v2966 = vadd.f32 %v2896, %v2965
    %v2967 = vpop.f32.mrb[0].mxu0
    %2968 = vdwg.mxu0
    %2969 = vmatprep.subr.mxu0 %v134
    %2970 = vmatpush1.xpose.msra.mxu0 %v133
    %2971 = vmatprep.subr.mxu0 %v198
    %2972 = vmatpush1.xpose.msra.mxu0 %v197
    %2973 = vmatprep.subr.mxu0 %v262
    %2974 = vmatpush1.xpose.msra.mxu0 %v261
    %2975 = vmatprep.subr.mxu0 %v326
    %2976 = vmatpush1.xpose.msra.mxu0 %v325
    %2977 = vmatprep.subr.mxu0 %v390
    %2978 = vmatpush1.xpose.msra.mxu0 %v389
    %2979 = vmatprep.subr.mxu0 %v454
    %2980 = vmatpush1.xpose.msra.mxu0 %v453
    %2981 = vmatprep.subr.mxu0 %v518
    %2982 = vmatpush1.xpose.msra.mxu0 %v517
    %2983 = vmatprep.subr.mxu0 %v582
    %2984 = vmatpush1.xpose.msra.mxu0 %v581
    %2985 = vmatprep.subr.mxu0 0.0
    %2986 = vmatpush1.xpose.msra.mxu0 0.0
    %2987 = vmatprep.subr.mxu0 0.0
    %2988 = vmatpush1.xpose.msra.mxu0 0.0
    %2989 = vmatprep.subr.mxu0 0.0
    %2990 = vmatpush1.xpose.msra.mxu0 0.0
    %2991 = vmatprep.subr.mxu0 0.0
    %2992 = vmatpush1.xpose.msra.mxu0 0.0
    %2993 = vmatprep.subr.mxu0 0.0
    %2994 = vmatpush1.xpose.msra.mxu0 0.0
    %2995 = vmatprep.subr.mxu0 0.0
    %2996 = vmatpush1.xpose.msra.mxu0 0.0
    %2997 = vmatprep.subr.mxu0 0.0
    %2998 = vmatpush1.xpose.msra.mxu0 0.0
    %2999 = vmatprep.subr.mxu0 0.0
    %3000 = vmatpush1.xpose.msra.mxu0 0.0
    %3001 = vmatprep.subr.mxu0 0.0
    %3002 = vmatpush1.xpose.msra.mxu0 0.0
    %3003 = vmatprep.subr.mxu0 0.0
    %3004 = vmatpush1.xpose.msra.mxu0 0.0
    %3005 = vmatprep.subr.mxu0 0.0
    %3006 = vmatpush1.xpose.msra.mxu0 0.0
    %3007 = vmatprep.subr.mxu0 0.0
    %3008 = vmatpush1.xpose.msra.mxu0 0.0
    %3009 = vmatprep.subr.mxu0 0.0
    %3010 = vmatpush1.xpose.msra.mxu0 0.0
    %3011 = vmatprep.subr.mxu0 0.0
    %3012 = vmatpush1.xpose.msra.mxu0 0.0
    %3013 = vmatprep.subr.mxu0 0.0
    %3014 = vmatpush1.xpose.msra.mxu0 0.0
    %3015 = vmatprep.subr.mxu0 0.0
    %3016 = vmatpush1.xpose.msra.mxu0 0.0
    %3017 = vmatprep.subr.mxu0 0.0
    %3018 = vmatpush1.xpose.msra.mxu0 0.0
    %3019 = vmatprep.subr.mxu0 0.0
    %3020 = vmatpush1.xpose.msra.mxu0 0.0
    %3021 = vmatprep.subr.mxu0 0.0
    %3022 = vmatpush1.xpose.msra.mxu0 0.0
    %3023 = vmatprep.subr.mxu0 0.0
    %3024 = vmatpush1.xpose.msra.mxu0 0.0
    %3025 = vmatprep.subr.mxu0 0.0
    %3026 = vmatpush1.xpose.msra.mxu0 0.0
    %3027 = vmatprep.subr.mxu0 0.0
    %3028 = vmatpush1.xpose.msra.mxu0 0.0
    %3029 = vmatprep.subr.mxu0 0.0
    %3030 = vmatpush1.xpose.msra.mxu0 0.0
    %3031 = vmatprep.subr.mxu0 0.0
    %3032 = vmatpush1.xpose.msra.mxu0 0.0
    %3033 = vmatprep.mubr.f32.mxu0 %v857
    %3034 = vmatmul.mubr.f32.gmra.mrb[0].mxu0 %v855
    %v3035 = vpop.f32.mrb[0].mxu0
    %v3036 = vadd.f32 %v2966, %v3035
    %v3037 = vpop.f32.mrb[0].mxu0
    %3038 = vdwg.mxu0
    %3039 = vmatprep.subr.mxu0 %v136
    %3040 = vmatpush1.xpose.msra.mxu0 %v135
    %3041 = vmatprep.subr.mxu0 %v200
    %3042 = vmatpush1.xpose.msra.mxu0 %v199
    %3043 = vmatprep.subr.mxu0 %v264
    %3044 = vmatpush1.xpose.msra.mxu0 %v263
    %3045 = vmatprep.subr.mxu0 %v328
    %3046 = vmatpush1.xpose.msra.mxu0 %v327
    %3047 = vmatprep.subr.mxu0 %v392
    %3048 = vmatpush1.xpose.msra.mxu0 %v391
    %3049 = vmatprep.subr.mxu0 %v456
    %3050 = vmatpush1.xpose.msra.mxu0 %v455
    %3051 = vmatprep.subr.mxu0 %v520
    %3052 = vmatpush1.xpose.msra.mxu0 %v519
    %3053 = vmatprep.subr.mxu0 %v584
    %3054 = vmatpush1.xpose.msra.mxu0 %v583
    %3055 = vmatprep.subr.mxu0 0.0
    %3056 = vmatpush1.xpose.msra.mxu0 0.0
    %3057 = vmatprep.subr.mxu0 0.0
    %3058 = vmatpush1.xpose.msra.mxu0 0.0
    %3059 = vmatprep.subr.mxu0 0.0
    %3060 = vmatpush1.xpose.msra.mxu0 0.0
    %3061 = vmatprep.subr.mxu0 0.0
    %3062 = vmatpush1.xpose.msra.mxu0 0.0
    %3063 = vmatprep.subr.mxu0 0.0
    %3064 = vmatpush1.xpose.msra.mxu0 0.0
    %3065 = vmatprep.subr.mxu0 0.0
    %3066 = vmatpush1.xpose.msra.mxu0 0.0
    %3067 = vmatprep.subr.mxu0 0.0
    %3068 = vmatpush1.xpose.msra.mxu0 0.0
    %3069 = vmatprep.subr.mxu0 0.0
    %3070 = vmatpush1.xpose.msra.mxu0 0.0
    %3071 = vmatprep.subr.mxu0 0.0
    %3072 = vmatpush1.xpose.msra.mxu0 0.0
    %3073 = vmatprep.subr.mxu0 0.0
    %3074 = vmatpush1.xpose.msra.mxu0 0.0
    %3075 = vmatprep.subr.mxu0 0.0
    %3076 = vmatpush1.xpose.msra.mxu0 0.0
    %3077 = vmatprep.subr.mxu0 0.0
    %3078 = vmatpush1.xpose.msra.mxu0 0.0
    %3079 = vmatprep.subr.mxu0 0.0
    %3080 = vmatpush1.xpose.msra.mxu0 0.0
    %3081 = vmatprep.subr.mxu0 0.0
    %3082 = vmatpush1.xpose.msra.mxu0 0.0
    %3083 = vmatprep.subr.mxu0 0.0
    %3084 = vmatpush1.xpose.msra.mxu0 0.0
    %3085 = vmatprep.subr.mxu0 0.0
    %3086 = vmatpush1.xpose.msra.mxu0 0.0
    %3087 = vmatprep.subr.mxu0 0.0
    %3088 = vmatpush1.xpose.msra.mxu0 0.0
    %3089 = vmatprep.subr.mxu0 0.0
    %3090 = vmatpush1.xpose.msra.mxu0 0.0
    %3091 = vmatprep.subr.mxu0 0.0
    %3092 = vmatpush1.xpose.msra.mxu0 0.0
    %3093 = vmatprep.subr.mxu0 0.0
    %3094 = vmatpush1.xpose.msra.mxu0 0.0
    %3095 = vmatprep.subr.mxu0 0.0
    %3096 = vmatpush1.xpose.msra.mxu0 0.0
    %3097 = vmatprep.subr.mxu0 0.0
    %3098 = vmatpush1.xpose.msra.mxu0 0.0
    %3099 = vmatprep.subr.mxu0 0.0
    %3100 = vmatpush1.xpose.msra.mxu0 0.0
    %3101 = vmatprep.subr.mxu0 0.0
    %3102 = vmatpush1.xpose.msra.mxu0 0.0
    %3103 = vmatprep.mubr.f32.mxu0 %v873
    %3104 = vmatmul.mubr.f32.gmra.mrb[0].mxu0 %v865
    %v3105 = vpop.f32.mrb[0].mxu0
    %v3106 = vadd.f32 %v3036, %v3105
    %v3107 = vpop.f32.mrb[0].mxu0
    %3108 = vdwg.mxu0
    %3109 = vmatprep.subr.mxu0 %v138
    %3110 = vmatpush1.xpose.msra.mxu0 %v137
    %3111 = vmatprep.subr.mxu0 %v202
    %3112 = vmatpush1.xpose.msra.mxu0 %v201
    %3113 = vmatprep.subr.mxu0 %v266
    %3114 = vmatpush1.xpose.msra.mxu0 %v265
    %3115 = vmatprep.subr.mxu0 %v330
    %3116 = vmatpush1.xpose.msra.mxu0 %v329
    %3117 = vmatprep.subr.mxu0 %v394
    %3118 = vmatpush1.xpose.msra.mxu0 %v393
    %3119 = vmatprep.subr.mxu0 %v458
    %3120 = vmatpush1.xpose.msra.mxu0 %v457
    %3121 = vmatprep.subr.mxu0 %v522
    %3122 = vmatpush1.xpose.msra.mxu0 %v521
    %3123 = vmatprep.subr.mxu0 %v586
    %3124 = vmatpush1.xpose.msra.mxu0 %v585
    %3125 = vmatprep.subr.mxu0 0.0
    %3126 = vmatpush1.xpose.msra.mxu0 0.0
    %3127 = vmatprep.subr.mxu0 0.0
    %3128 = vmatpush1.xpose.msra.mxu0 0.0
    %3129 = vmatprep.subr.mxu0 0.0
    %3130 = vmatpush1.xpose.msra.mxu0 0.0
    %3131 = vmatprep.subr.mxu0 0.0
    %3132 = vmatpush1.xpose.msra.mxu0 0.0
    %3133 = vmatprep.subr.mxu0 0.0
    %3134 = vmatpush1.xpose.msra.mxu0 0.0
    %3135 = vmatprep.subr.mxu0 0.0
    %3136 = vmatpush1.xpose.msra.mxu0 0.0
    %3137 = vmatprep.subr.mxu0 0.0
    %3138 = vmatpush1.xpose.msra.mxu0 0.0
    %3139 = vmatprep.subr.mxu0 0.0
    %3140 = vmatpush1.xpose.msra.mxu0 0.0
    %3141 = vmatprep.subr.mxu0 0.0
    %3142 = vmatpush1.xpose.msra.mxu0 0.0
    %3143 = vmatprep.subr.mxu0 0.0
    %3144 = vmatpush1.xpose.msra.mxu0 0.0
    %3145 = vmatprep.subr.mxu0 0.0
    %3146 = vmatpush1.xpose.msra.mxu0 0.0
    %3147 = vmatprep.subr.mxu0 0.0
    %3148 = vmatpush1.xpose.msra.mxu0 0.0
    %3149 = vmatprep.subr.mxu0 0.0
    %3150 = vmatpush1.xpose.msra.mxu0 0.0
    %3151 = vmatprep.subr.mxu0 0.0
    %3152 = vmatpush1.xpose.msra.mxu0 0.0
    %3153 = vmatprep.subr.mxu0 0.0
    %3154 = vmatpush1.xpose.msra.mxu0 0.0
    %3155 = vmatprep.subr.mxu0 0.0
    %3156 = vmatpush1.xpose.msra.mxu0 0.0
    %3157 = vmatprep.subr.mxu0 0.0
    %3158 = vmatpush1.xpose.msra.mxu0 0.0
    %3159 = vmatprep.subr.mxu0 0.0
    %3160 = vmatpush1.xpose.msra.mxu0 0.0
    %3161 = vmatprep.subr.mxu0 0.0
    %3162 = vmatpush1.xpose.msra.mxu0 0.0
    %3163 = vmatprep.subr.mxu0 0.0
    %3164 = vmatpush1.xpose.msra.mxu0 0.0
    %3165 = vmatprep.subr.mxu0 0.0
    %3166 = vmatpush1.xpose.msra.mxu0 0.0
    %3167 = vmatprep.subr.mxu0 0.0
    %3168 = vmatpush1.xpose.msra.mxu0 0.0
    %3169 = vmatprep.subr.mxu0 0.0
    %3170 = vmatpush1.xpose.msra.mxu0 0.0
    %3171 = vmatprep.subr.mxu0 0.0
    %3172 = vmatpush1.xpose.msra.mxu0 0.0
    %3173 = vmatprep.mubr.f32.mxu0 %v874
    %3174 = vmatmul.mubr.f32.gmra.mrb[0].mxu0 %v872
    %v3175 = vpop.f32.mrb[0].mxu0
    %v3176 = vadd.f32 %v3106, %v3175
    %v3177 = vpop.f32.mrb[0].mxu0
    %3178 = vdwg.mxu0
    %v3179 = vadd.f32 %v58, %v3176
    %vm3180 = vcmask 517120
    %3181 = vst.msk [vmem:[#allocation8] sm:$0x3] %vm3180, %v3179
    // Predicated region
    $region30: #{vae_forward.8} parent=1 // pred_check
      %p3182 = pneg %p52
    $region31: #{vae_forward.8} parent=1 // pred_check_branch
      %3184 = sbr.rel (%p3182) target = $region33
    $region32: #{vae_forward.8} parent=1 // pred_region
      %v3185 = vld [vmem:[#allocation8] sm:$0x3]
      %v3186 = vld [vmem:[#allocation7] sm:$0x1]
      %v3188 = vlaneseq
      %v3189 = vshrl.u32 %v3188, 7
      %v3190 = vsub.s32 0, %v3189
      %v3191 = vrot.slane %v3186, %v3190
      %v3193 = vadd.f32 %v3185, %v3191
      %v3194 = vmax.f32 %v3193, 0.0
      %3195 = vst.msk [vmem:[#allocation8] sm:$0x3] %vm3180, %v3194
    $region33: #{vae_forward.8} parent=1 // pred_fallthru
      _
    // Predicated region
    $region34: #{vae_forward.8} parent=1 // pred_check
      _
    $region35: #{vae_forward.8} parent=1 // pred_check_branch
      %3197 = sbr.rel (0) target = $region37
    $region36: #{vae_forward.8} parent=1 // pred_region
      %s3199 = ssub.s32 32, 32
      %3200 = vsyncadd [#allocation4], %s3199
      %s3202 = sshll.u32 [#allocation8], 4
      %s3203 = int_to_ptr.vmem [resolvable:$true] %s3202
      %3205 = dma.vmem_to_hbm [thread:$0]  %s3203, 32, %s3, [#allocation4]
    $region37: #{vae_forward.8} parent=1 // pred_fallthru
      _
    // Predicated region
    $region38: #{vae_forward.8} parent=1 // pred_check
      _
    $region39: #{vae_forward.8} parent=1 // pred_check_branch
      %3207 = sbr.rel (0) target = $region41
    $region40: #{vae_forward.8} parent=1 // pred_region
      %3208 = dma.done [#allocation4], 32
    $region41: #{vae_forward.8} parent=1 // pred_fallthru
      _
    %3209 = vsyncpa [#allocation3], 1
    %3210 = vsyncpa [#allocation6], 1
    %3211 = vsyncpa [#allocation4], 1

// kernel: vae_forward.12
$region0: #{vae_forward.12}
  #allocation0 [shape = 'u32[]', space=smem, size = 0x4, offset = 0x4, fixed_abs, tag = 'smem constant byte address 0x4 - core index']
  #allocation1 [shape = 'u32[144,128]{1,0:T(1,128)}', space=vmem, size = 0x12000, scoped, tag = 'internal scratch']
  %s0 = inlined_call_operand.vmem [shape: f32[2,32,256], index: 0, kind: input, shape index: {}]
  %s1 = inlined_call_operand.hbm [shape: f32[128,32], index: 1, kind: input, shape index: {}]
  %s2 = inlined_call_operand.hbm [shape: f32[128,1], index: 2, kind: input, shape index: {}]
  %s3 = inlined_call_operand.vmem [shape: f32[2,128,256], index: 3, kind: output, shape index: {}]
  %s4 = sld [smem:[#allocation0]]
  $region53: #{vae_forward.12} parent=0
    _
  %s6 = ssub.s32 1, %s4
  %s7 = scalar_select 0, %s6, %s4
  $region1: #{vae_forward.12} parent=0
    #allocation2 [shape = 'u8[65536]{0}', space=vmem, size = 0x10000, scoped, tag = 'input window, operand 1, single buffered']
    #allocation3 [shape = 's32[2]{0}', space=sflag, size = 0x8, scoped, tag = 'scoped memory for vae_forward.12']
    #allocation4 [shape = 'u8[65536]{0}', space=vmem, size = 0x10000, scoped, tag = 'input window, operand 2, single buffered']
    #allocation5 [shape = 's32[1]{0}', space=sflag, size = 0x4, scoped, tag = 'scoped memory for vae_forward.12']
    %8 = vsyncpa [#allocation3], 0
    %9 = vsyncpa [#allocation5], 0
    loop: start=0, step=1, limit=4
    $region2: #{vae_forward.12} parent=1 // loop_pre_header
      _
    $region3: #{vae_forward.12} parent=1 // loop_header
      %s11 = sphi 0, %s15
      %p12 = scmp.ge.s32.totalorder %s11, 4
      %s18 = sphi 0, %s30
      %s19 = sphi 0, %s26
      %s20 = sphi 0, %s18
      %s21 = sphi 0, %s19
      %s22 = sphi 0, %s20
      %s23 = sphi 0, %s21
      %s35 = sphi 0, %s37
      %s38 = sphi 0, %s35
      %s39 = sphi 0, %s38
      %s55 = sphi 0, %s39
      %s59 = sphi 0, %s59
      %s61 = sphi 0, %s59
      %s62 = sphi 0, %s61
      %s76 = sphi 0, %s62
      %s80 = sphi 0, %s80
      %s82 = sphi 0, %s80
      %s83 = sphi 0, %s82
      %s97 = sphi 0, %s83
      %s105 = sphi 0, %s107
      %s108 = sphi 0, %s105
      %s109 = sphi 0, %s108
      %s125 = sphi 0, %s109
    $region4: #{vae_forward.12} parent=1 // loop_header_branch
      %14 = sbr.rel (%p12) target = $region8
    $region5: #{vae_forward.12} parent=1 // loop_body
      %s16 = ssub.s32 %s11, 1
      %s17 = ssub.s32 %s11, 2
      %s24 = sadd.s32 1, %s19
      %p25 = scmp.ge.s32.totalorder %s24, 1
      %s26 = scalar_select %p25, 0, %s24
      %s27 = sadd.s32 1, %s18
      %s28 = scalar_select %p25, %s27, %s18
      %p29 = scmp.ge.s32.totalorder %s28, 2
      %s30 = scalar_select %p29, 0, %s28
      %s31 = ssub.s32 %s18, %s30
      %s32 = ssub.s32 %s19, %s26
      %s33 = sor.u32 %s31, %s32
      %p34 = scmp.eq.s32.totalorder %s33, 0
      %s36 = sadd.s32 %s35, 1
      %s37 = scalar_select %p34, %s35, %s36
      %p40 = pneg %p34
      %p41 = scmp.eq.s32.totalorder %s11, 1
      %p42 = por %p40, %p41
      %p43 = scmp.ne.s32.totalorder %s35, %s38
      %p44 = scmp.eq.s32.totalorder %s11, 0
      %p45 = por %p43, %p44
      %p46 = scmp.ne.s32.totalorder %s35, %s38
      %p47 = scmp.eq.s32.totalorder %s16, 1
      %p48 = por %p46, %p47
      %p49 = scmp.ne.s32.totalorder %s38, %s39
      %p50 = scmp.eq.s32.totalorder %s16, 0
      %p51 = por %p49, %p50
      %p52 = scmp.ne.s32.totalorder %s38, %s39
      %p53 = scmp.eq.s32.totalorder %s17, 1
      %p54 = por %p52, %p53
      %p56 = scmp.ne.s32.totalorder %s39, %s55
      %p57 = scmp.eq.s32.totalorder %s17, 0
      %p58 = por %p56, %p57
      %s60 = sadd.s32 %s59, 1
      %p63 = scmp.eq.s32.totalorder %s11, 1
      %p64 = scmp.ne.s32.totalorder %s59, %s61
      %p65 = scmp.eq.s32.totalorder %s11, 0
      %p66 = por %p64, %p65
      %p67 = scmp.ne.s32.totalorder %s59, %s61
      %p68 = scmp.eq.s32.totalorder %s16, 1
      %p69 = por %p67, %p68
      %p70 = scmp.ne.s32.totalorder %s61, %s62
      %p71 = scmp.eq.s32.totalorder %s16, 0
      %p72 = por %p70, %p71
      %p73 = scmp.ne.s32.totalorder %s61, %s62
      %p74 = scmp.eq.s32.totalorder %s17, 1
      %p75 = por %p73, %p74
      %p77 = scmp.ne.s32.totalorder %s62, %s76
      %p78 = scmp.eq.s32.totalorder %s17, 0
      %p79 = por %p77, %p78
      %s81 = sadd.s32 %s80, 1
      %p84 = scmp.eq.s32.totalorder %s11, 1
      %p85 = scmp.ne.s32.totalorder %s80, %s82
      %p86 = scmp.eq.s32.totalorder %s11, 0
      %p87 = por %p85, %p86
      %p88 = scmp.ne.s32.totalorder %s80, %s82
      %p89 = scmp.eq.s32.totalorder %s16, 1
      %p90 = por %p88, %p89
      %p91 = scmp.ne.s32.totalorder %s82, %s83
      %p92 = scmp.eq.s32.totalorder %s16, 0
      %p93 = por %p91, %p92
      %p94 = scmp.ne.s32.totalorder %s82, %s83
      %p95 = scmp.eq.s32.totalorder %s17, 1
      %p96 = por %p94, %p95
      %p98 = scmp.ne.s32.totalorder %s83, %s97
      %p99 = scmp.eq.s32.totalorder %s17, 0
      %p100 = por %p98, %p99
      %s101 = ssub.s32 %s18, %s30
      %s102 = ssub.s32 %s19, %s26
      %s103 = sor.u32 %s101, %s102
      %p104 = scmp.eq.s32.totalorder %s103, 0
      %s106 = sadd.s32 %s105, 1
      %s107 = scalar_select %p104, %s105, %s106
      %p110 = pneg %p104
      %p111 = scmp.eq.s32.totalorder %s11, 1
      %p112 = por %p110, %p111
      %p113 = scmp.ne.s32.totalorder %s105, %s108
      %p114 = scmp.eq.s32.totalorder %s11, 0
      %p115 = por %p113, %p114
      %p116 = scmp.ne.s32.totalorder %s105, %s108
      %p117 = scmp.eq.s32.totalorder %s16, 1
      %p118 = por %p116, %p117
      %p119 = scmp.ne.s32.totalorder %s108, %s109
      %p120 = scmp.eq.s32.totalorder %s16, 0
      %p121 = por %p119, %p120
      %p122 = scmp.ne.s32.totalorder %s108, %s109
      %p123 = scmp.eq.s32.totalorder %s17, 1
      %p124 = por %p122, %p123
      %p126 = scmp.ne.s32.totalorder %s109, %s125
      %p127 = scmp.eq.s32.totalorder %s17, 0
      %p128 = por %p126, %p127
      %p129 = scmp.le.s32.totalorder 1, %s11
      %p130 = scmp.lt.s32.totalorder %s11, 3
      %p131 = pnand %p129, %p130
      %p132 = pneg %p131
      // Predicated region
      $region9: #{vae_forward.12} parent=5 // pred_check
        _
      $region10: #{vae_forward.12} parent=5 // pred_check_branch
        %134 = sbr.rel (%p131) target = $region12
      $region11: #{vae_forward.12} parent=5 // pred_region
        %s135 = ssub.s32 %s11, 1
        // Predicated region
        $region13: #{vae_forward.12} parent=11 // pred_check
          %p136 = pneg %p72
        $region14: #{vae_forward.12} parent=11 // pred_check_branch
          %138 = sbr.rel (%p136) target = $region16
        $region15: #{vae_forward.12} parent=11 // pred_region
          %s140 = ssub.s32 2048, 2048
          %141 = vsyncadd [#allocation3], %s140
          %s142 = sshll.u32 [#allocation2], 4
          %s143 = int_to_ptr.vmem [resolvable:$true] %s142
          %148 = dma.hbm_to_vmem [thread:$0]  %s1, 2048, %s143, [#allocation3], 128, 128, 8
        $region16: #{vae_forward.12} parent=11 // pred_fallthru
          _
        // Predicated region
        $region17: #{vae_forward.12} parent=11 // pred_check
          %p149 = pneg %p93
        $region18: #{vae_forward.12} parent=11 // pred_check_branch
          %151 = sbr.rel (%p149) target = $region20
        $region19: #{vae_forward.12} parent=11 // pred_region
          %s153 = ssub.s32 2048, 2048
          %154 = vsyncadd [#allocation5], %s153
          %s155 = sshll.u32 [#allocation4], 4
          %s156 = int_to_ptr.vmem [resolvable:$true] %s155
          %161 = dma.hbm_to_vmem [thread:$0]  %s2, 2048, %s156, [#allocation5], 128, 128, 8
        $region20: #{vae_forward.12} parent=11 // pred_fallthru
          _
      $region12: #{vae_forward.12} parent=5 // pred_fallthru
        _
      %p162 = scmp.lt.s32.totalorder %s11, 2
      // Predicated region
      $region21: #{vae_forward.12} parent=5 // pred_check
        %p163 = pneg %p162
      $region22: #{vae_forward.12} parent=5 // pred_check_branch
        %165 = sbr.rel (%p163) target = $region24
      $region23: #{vae_forward.12} parent=5 // pred_region
        // Predicated region
        $region25: #{vae_forward.12} parent=23 // pred_check
          %p166 = pneg %p45
        $region26: #{vae_forward.12} parent=23 // pred_check_branch
          %168 = sbr.rel (%p166) target = $region28
        $region27: #{vae_forward.12} parent=23 // pred_region
          %s169 = smul.u32 2, %s19
          %p170 = scmp.lt.s32.totalorder %s18, 1
          %s171 = scalar_select %p170, %s18, 1
          %p172 = scmp.lt.s32.totalorder %s169, 1
          %s173 = scalar_select %p172, %s169, 1
          %s174 = smul.addr %s171, 8
          %s175 = sadd.s32 %s173, %s174
          %s176 = smul.addr %s175, 8
          %s177 = scalar_lea.vmem %s0, %s176
          %s178 = smul.u32 2, %s19
        $region28: #{vae_forward.12} parent=23 // pred_fallthru
          _
      $region24: #{vae_forward.12} parent=5 // pred_fallthru
        _
      %p179 = scmp.le.s32.totalorder 1, %s11
      %p180 = scmp.lt.s32.totalorder %s11, 3
      %p181 = pnand %p179, %p180
      %p182 = pneg %p181
      // Predicated region
      $region29: #{vae_forward.12} parent=5 // pred_check
        _
      $region30: #{vae_forward.12} parent=5 // pred_check_branch
        %184 = sbr.rel (%p181) target = $region32
      $region31: #{vae_forward.12} parent=5 // pred_region
        %s185 = ssub.s32 %s11, 1
        // Predicated region
        $region33: #{vae_forward.12} parent=31 // pred_check
          %p186 = pneg %p72
        $region34: #{vae_forward.12} parent=31 // pred_check_branch
          %188 = sbr.rel (%p186) target = $region36
        $region35: #{vae_forward.12} parent=31 // pred_region
          %189 = dma.done [#allocation3], 2048
        $region36: #{vae_forward.12} parent=31 // pred_fallthru
          _
        // Predicated region
        $region37: #{vae_forward.12} parent=31 // pred_check
          %p190 = pneg %p93
        $region38: #{vae_forward.12} parent=31 // pred_check_branch
          %192 = sbr.rel (%p190) target = $region40
        $region39: #{vae_forward.12} parent=31 // pred_region
          %193 = dma.done [#allocation5], 2048
        $region40: #{vae_forward.12} parent=31 // pred_fallthru
          _
        %s194 = smul.u32 2, %s21
        %p195 = scmp.lt.s32.totalorder %s20, 1
        %s196 = scalar_select %p195, %s20, 1
        %p197 = scmp.lt.s32.totalorder %s194, 1
        %s198 = scalar_select %p197, %s194, 1
        %s199 = smul.addr %s196, 8
        %s200 = sadd.s32 %s198, %s199
        %s201 = smul.addr %s200, 8
        %s202 = scalar_lea.vmem %s0, %s201
        %p203 = pneg %p51
        %p204 = pneg %p48
        %p205 = pneg %p72
        %p206 = pneg %p69
        %p207 = pneg %p93
        %p208 = pneg %p90
        %p209 = pneg %p121
        %p210 = pneg %p118
        %s211 = smul.u32 2, %s21
        %p212 = scmp.lt.s32.totalorder %s20, 1
        %s213 = scalar_select %p212, %s20, 1
        %p214 = scmp.lt.s32.totalorder %s211, 1
        %s215 = scalar_select %p214, %s211, 1
        %s216 = smul.addr %s213, 32
        %s217 = sadd.s32 %s215, %s216
        %s218 = smul.addr %s217, 8
        %s219 = scalar_lea.vmem %s3, %s218
        %s220 = smul.u32 2, %s21
        %p221 = scmp.lt.s32.totalorder %s20, 1
        %s222 = scalar_select %p221, %s20, 1
        %p223 = scmp.lt.s32.totalorder %s220, 1
        %s224 = scalar_select %p223, %s220, 1
        %s225 = smul.addr %s222, 8
        %s226 = sadd.s32 %s224, %s225
        %s227 = smul.addr %s226, 8
        %s228 = scalar_lea.vmem %s0, %s227
        %s229 = smul.u32 2, %s21
        %s230 = smul.u32 2, %s21
        %p231 = scmp.lt.s32.totalorder %s20, 1
        %s232 = scalar_select %p231, %s20, 1
        %p233 = scmp.lt.s32.totalorder %s230, 1
        %s234 = scalar_select %p233, %s230, 1
        %s235 = smul.addr %s232, 32
        %s236 = sadd.s32 %s234, %s235
        %s237 = smul.addr %s236, 8
        %s238 = scalar_lea.vmem %s3, %s237
        %s239 = smul.u32 2, %s21
        %v240 = vld [vmem:[#allocation2] sm:$0xff]
        %v241 = vld [vmem:[#allocation2 + $0x8] sm:$0xff]
        %v242 = vld [vmem:[#allocation2 + $0x10] sm:$0xff]
        %v243 = vld [vmem:[#allocation2 + $0x18] sm:$0xff]
        %v244 = vld [vmem:[#allocation2 + $0x20] sm:$0xff]
        %v245 = vld [vmem:[#allocation2 + $0x28] sm:$0xff]
        %v246 = vld [vmem:[#allocation2 + $0x30] sm:$0xff]
        %v247 = vld [vmem:[#allocation2 + $0x38] sm:$0xff]
        %v248 = vld [vmem:[#allocation2 + $0x40] sm:$0xff]
        %v249 = vld [vmem:[#allocation2 + $0x48] sm:$0xff]
        %v250 = vld [vmem:[#allocation2 + $0x50] sm:$0xff]
        %v251 = vld [vmem:[#allocation2 + $0x58] sm:$0xff]
        %v252 = vld [vmem:[#allocation2 + $0x60] sm:$0xff]
        %v253 = vld [vmem:[#allocation2 + $0x68] sm:$0xff]
        %v254 = vld [vmem:[#allocation2 + $0x70] sm:$0xff]
        %v255 = vld [vmem:[#allocation2 + $0x78] sm:$0xff]
        %v256 = vld [vmem:[%s228] sm:$0xff]
        %v257 = vld [vmem:[%s228 + $0x8] sm:$0xff]
        %v258 = vld [vmem:[%s228 + $0x10] sm:$0xff]
        %v259 = vld [vmem:[%s228 + $0x18] sm:$0xff]
        %v260 = vld [vmem:[%s228 + $0x20] sm:$0xff]
        %v261 = vld [vmem:[%s228 + $0x28] sm:$0xff]
        %v262 = vld [vmem:[%s228 + $0x30] sm:$0xff]
        %v263 = vld [vmem:[%s228 + $0x38] sm:$0xff]
        %v264 = vld [vmem:[#allocation4] sm:$0xff]
        %v265 = vld [vmem:[#allocation4 + $0x8] sm:$0xff]
        %v266 = vld [vmem:[#allocation4 + $0x10] sm:$0xff]
        %v267 = vld [vmem:[#allocation4 + $0x18] sm:$0xff]
        %v268 = vld [vmem:[#allocation4 + $0x20] sm:$0xff]
        %v269 = vld [vmem:[#allocation4 + $0x28] sm:$0xff]
        %v270 = vld [vmem:[#allocation4 + $0x30] sm:$0xff]
        %v271 = vld [vmem:[#allocation4 + $0x38] sm:$0xff]
        %v272 = vld [vmem:[#allocation4 + $0x40] sm:$0xff]
        %v273 = vld [vmem:[#allocation4 + $0x48] sm:$0xff]
        %v274 = vld [vmem:[#allocation4 + $0x50] sm:$0xff]
        %v275 = vld [vmem:[#allocation4 + $0x58] sm:$0xff]
        %v276 = vld [vmem:[#allocation4 + $0x60] sm:$0xff]
        %v277 = vld [vmem:[#allocation4 + $0x68] sm:$0xff]
        %v278 = vld [vmem:[#allocation4 + $0x70] sm:$0xff]
        %v279 = vld [vmem:[#allocation4 + $0x78] sm:$0xff]
        %281 = vset.pattern.permute.xlu0 0
        %282 = vperm.xlu0 %281, %v264
        %v283 = vpop.permute.xlu0 %282
        %286 = vset.pattern.permute.xlu0 0
        %287 = vperm.xlu0 %286, %v265
        %v288 = vpop.permute.xlu0 %287
        %291 = vset.pattern.permute.xlu0 0
        %292 = vperm.xlu0 %291, %v266
        %v293 = vpop.permute.xlu0 %292
        %296 = vset.pattern.permute.xlu0 0
        %297 = vperm.xlu0 %296, %v267
        %v298 = vpop.permute.xlu0 %297
        %301 = vset.pattern.permute.xlu0 0
        %302 = vperm.xlu0 %301, %v268
        %v303 = vpop.permute.xlu0 %302
        %306 = vset.pattern.permute.xlu0 0
        %307 = vperm.xlu0 %306, %v269
        %v308 = vpop.permute.xlu0 %307
        %311 = vset.pattern.permute.xlu0 0
        %312 = vperm.xlu0 %311, %v270
        %v313 = vpop.permute.xlu0 %312
        %316 = vset.pattern.permute.xlu0 0
        %317 = vperm.xlu0 %316, %v271
        %v318 = vpop.permute.xlu0 %317
        %321 = vset.pattern.permute.xlu0 0
        %322 = vperm.xlu0 %321, %v272
        %v323 = vpop.permute.xlu0 %322
        %326 = vset.pattern.permute.xlu0 0
        %327 = vperm.xlu0 %326, %v273
        %v328 = vpop.permute.xlu0 %327
        %331 = vset.pattern.permute.xlu0 0
        %332 = vperm.xlu0 %331, %v274
        %v333 = vpop.permute.xlu0 %332
        %336 = vset.pattern.permute.xlu0 0
        %337 = vperm.xlu0 %336, %v275
        %v338 = vpop.permute.xlu0 %337
        %341 = vset.pattern.permute.xlu0 0
        %342 = vperm.xlu0 %341, %v276
        %v343 = vpop.permute.xlu0 %342
        %346 = vset.pattern.permute.xlu0 0
        %347 = vperm.xlu0 %346, %v277
        %v348 = vpop.permute.xlu0 %347
        %351 = vset.pattern.permute.xlu0 0
        %352 = vperm.xlu0 %351, %v278
        %v353 = vpop.permute.xlu0 %352
        %356 = vset.pattern.permute.xlu0 0
        %357 = vperm.xlu0 %356, %v279
        %v358 = vpop.permute.xlu0 %357
        %vm360 = vcmask 261120
        %v362 = vsel %vm360, %v240, 0
        %v365 = vsel %vm360, %v241, 0
        %v368 = vsel %vm360, %v242, 0
        %v371 = vsel %vm360, %v243, 0
        %v374 = vsel %vm360, %v244, 0
        %v377 = vsel %vm360, %v245, 0
        %v380 = vsel %vm360, %v246, 0
        %v383 = vsel %vm360, %v247, 0
        %v386 = vsel %vm360, %v248, 0
        %v389 = vsel %vm360, %v249, 0
        %v392 = vsel %vm360, %v250, 0
        %v395 = vsel %vm360, %v251, 0
        %v398 = vsel %vm360, %v252, 0
        %v401 = vsel %vm360, %v253, 0
        %v404 = vsel %vm360, %v254, 0
        %v407 = vsel %vm360, %v255, 0
        %409 = vmatprep.subr.mxu0 %v257
        %410 = vmatpush1.msra.mxu0 %v256
        %411 = vmatprep.subr.mxu0 %v259
        %412 = vmatpush1.msra.mxu0 %v258
        %413 = vmatprep.subr.mxu0 %v261
        %414 = vmatpush1.msra.mxu0 %v260
        %415 = vmatprep.subr.mxu0 %v263
        %416 = vmatpush1.msra.mxu0 %v262
        %417 = vmatprep.subr.mxu0 0.0
        %418 = vmatpush1.msra.mxu0 0.0
        %419 = vmatprep.subr.mxu0 0.0
        %420 = vmatpush1.msra.mxu0 0.0
        %421 = vmatprep.subr.mxu0 0.0
        %422 = vmatpush1.msra.mxu0 0.0
        %423 = vmatprep.subr.mxu0 0.0
        %424 = vmatpush1.msra.mxu0 0.0
        %425 = vmatprep.subr.mxu0 0.0
        %426 = vmatpush1.msra.mxu0 0.0
        %427 = vmatprep.subr.mxu0 0.0
        %428 = vmatpush1.msra.mxu0 0.0
        %429 = vmatprep.subr.mxu0 0.0
        %430 = vmatpush1.msra.mxu0 0.0
        %431 = vmatprep.subr.mxu0 0.0
        %432 = vmatpush1.msra.mxu0 0.0
        %433 = vmatprep.subr.mxu0 0.0
        %434 = vmatpush1.msra.mxu0 0.0
        %435 = vmatprep.subr.mxu0 0.0
        %436 = vmatpush1.msra.mxu0 0.0
        %437 = vmatprep.subr.mxu0 0.0
        %438 = vmatpush1.msra.mxu0 0.0
        %439 = vmatprep.subr.mxu0 0.0
        %440 = vmatpush1.msra.mxu0 0.0
        %441 = vmatprep.subr.mxu0 0.0
        %442 = vmatpush1.msra.mxu0 0.0
        %443 = vmatprep.subr.mxu0 0.0
        %444 = vmatpush1.msra.mxu0 0.0
        %445 = vmatprep.subr.mxu0 0.0
        %446 = vmatpush1.msra.mxu0 0.0
        %447 = vmatprep.subr.mxu0 0.0
        %448 = vmatpush1.msra.mxu0 0.0
        %449 = vmatprep.subr.mxu0 0.0
        %450 = vmatpush1.msra.mxu0 0.0
        %451 = vmatprep.subr.mxu0 0.0
        %452 = vmatpush1.msra.mxu0 0.0
        %453 = vmatprep.subr.mxu0 0.0
        %454 = vmatpush1.msra.mxu0 0.0
        %455 = vmatprep.subr.mxu0 0.0
        %456 = vmatpush1.msra.mxu0 0.0
        %457 = vmatprep.subr.mxu0 0.0
        %458 = vmatpush1.msra.mxu0 0.0
        %459 = vmatprep.subr.mxu0 0.0
        %460 = vmatpush1.msra.mxu0 0.0
        %461 = vmatprep.subr.mxu0 0.0
        %462 = vmatpush1.msra.mxu0 0.0
        %463 = vmatprep.subr.mxu0 0.0
        %464 = vmatpush1.msra.mxu0 0.0
        %465 = vmatprep.subr.mxu0 0.0
        %466 = vmatpush1.msra.mxu0 0.0
        %467 = vmatprep.subr.mxu0 0.0
        %468 = vmatpush1.msra.mxu0 0.0
        %469 = vmatprep.subr.mxu0 0.0
        %470 = vmatpush1.msra.mxu0 0.0
        %471 = vmatprep.subr.mxu0 0.0
        %472 = vmatpush1.msra.mxu0 0.0
        %473 = vmatprep.mubr.f32.mxu0 0.0
        %474 = vmatmul.mubr.f32.gmra.mrb[0].mxu0 %v362
        %v475 = vpop.f32.mrb[0].mxu0
        %v476 = vadd.f32 %v283, %v475
        %v477 = vpop.f32.mrb[0].mxu0
        %v478 = vadd.f32 %v283, %v477
        %479 = vmatprep.mubr.f32.mxu0 0.0
        %480 = vmatmul.mubr.f32.gmra.mrb[0].mxu0 %v365
        %v481 = vpop.f32.mrb[0].mxu0
        %v482 = vadd.f32 %v288, %v481
        %v483 = vpop.f32.mrb[0].mxu0
        %v484 = vadd.f32 %v288, %v483
        %485 = vmatprep.mubr.f32.mxu0 0.0
        %486 = vmatmul.mubr.f32.gmra.mrb[0].mxu0 %v368
        %v487 = vpop.f32.mrb[0].mxu0
        %v488 = vadd.f32 %v293, %v487
        %v489 = vpop.f32.mrb[0].mxu0
        %v490 = vadd.f32 %v293, %v489
        %491 = vmatprep.mubr.f32.mxu0 0.0
        %492 = vmatmul.mubr.f32.gmra.mrb[0].mxu0 %v371
        %v493 = vpop.f32.mrb[0].mxu0
        %v494 = vadd.f32 %v298, %v493
        %v495 = vpop.f32.mrb[0].mxu0
        %v496 = vadd.f32 %v298, %v495
        %497 = vmatprep.mubr.f32.mxu0 0.0
        %498 = vmatmul.mubr.f32.gmra.mrb[0].mxu0 %v374
        %v499 = vpop.f32.mrb[0].mxu0
        %v500 = vadd.f32 %v303, %v499
        %v501 = vpop.f32.mrb[0].mxu0
        %v502 = vadd.f32 %v303, %v501
        %503 = vmatprep.mubr.f32.mxu0 0.0
        %504 = vmatmul.mubr.f32.gmra.mrb[0].mxu0 %v377
        %v505 = vpop.f32.mrb[0].mxu0
        %v506 = vadd.f32 %v308, %v505
        %v507 = vpop.f32.mrb[0].mxu0
        %v508 = vadd.f32 %v308, %v507
        %509 = vmatprep.mubr.f32.mxu0 0.0
        %510 = vmatmul.mubr.f32.gmra.mrb[0].mxu0 %v380
        %v511 = vpop.f32.mrb[0].mxu0
        %v512 = vadd.f32 %v313, %v511
        %v513 = vpop.f32.mrb[0].mxu0
        %v514 = vadd.f32 %v313, %v513
        %515 = vmatprep.mubr.f32.mxu0 0.0
        %516 = vmatmul.mubr.f32.gmra.mrb[0].mxu0 %v383
        %v517 = vpop.f32.mrb[0].mxu0
        %v518 = vadd.f32 %v318, %v517
        %v519 = vpop.f32.mrb[0].mxu0
        %v520 = vadd.f32 %v318, %v519
        %521 = vmatprep.mubr.f32.mxu0 0.0
        %522 = vmatmul.mubr.f32.gmra.mrb[0].mxu0 %v386
        %v523 = vpop.f32.mrb[0].mxu0
        %v524 = vadd.f32 %v323, %v523
        %v525 = vpop.f32.mrb[0].mxu0
        %v526 = vadd.f32 %v323, %v525
        %527 = vmatprep.mubr.f32.mxu0 0.0
        %528 = vmatmul.mubr.f32.gmra.mrb[0].mxu0 %v389
        %v529 = vpop.f32.mrb[0].mxu0
        %v530 = vadd.f32 %v328, %v529
        %v531 = vpop.f32.mrb[0].mxu0
        %v532 = vadd.f32 %v328, %v531
        %533 = vmatprep.mubr.f32.mxu0 0.0
        %534 = vmatmul.mubr.f32.gmra.mrb[0].mxu0 %v392
        %v535 = vpop.f32.mrb[0].mxu0
        %v536 = vadd.f32 %v333, %v535
        %v537 = vpop.f32.mrb[0].mxu0
        %v538 = vadd.f32 %v333, %v537
        %539 = vmatprep.mubr.f32.mxu0 0.0
        %540 = vmatmul.mubr.f32.gmra.mrb[0].mxu0 %v395
        %v541 = vpop.f32.mrb[0].mxu0
        %v542 = vadd.f32 %v338, %v541
        %v543 = vpop.f32.mrb[0].mxu0
        %v544 = vadd.f32 %v338, %v543
        %545 = vmatprep.mubr.f32.mxu0 0.0
        %546 = vmatmul.mubr.f32.gmra.mrb[0].mxu0 %v398
        %v547 = vpop.f32.mrb[0].mxu0
        %v548 = vadd.f32 %v343, %v547
        %v549 = vpop.f32.mrb[0].mxu0
        %v550 = vadd.f32 %v343, %v549
        %551 = vmatprep.mubr.f32.mxu0 0.0
        %552 = vmatmul.mubr.f32.gmra.mrb[0].mxu0 %v401
        %v553 = vpop.f32.mrb[0].mxu0
        %v554 = vadd.f32 %v348, %v553
        %v555 = vpop.f32.mrb[0].mxu0
        %v556 = vadd.f32 %v348, %v555
        %557 = vmatprep.mubr.f32.mxu0 0.0
        %558 = vmatmul.mubr.f32.gmra.mrb[0].mxu0 %v404
        %v559 = vpop.f32.mrb[0].mxu0
        %v560 = vadd.f32 %v353, %v559
        %v561 = vpop.f32.mrb[0].mxu0
        %v562 = vadd.f32 %v353, %v561
        %563 = vmatprep.mubr.f32.mxu0 0.0
        %564 = vmatmul.mubr.f32.gmra.mrb[0].mxu0 %v407
        %v565 = vpop.f32.mrb[0].mxu0
        %v566 = vadd.f32 %v358, %v565
        %v567 = vpop.f32.mrb[0].mxu0
        %v568 = vadd.f32 %v358, %v567
        %569 = vdwg.mxu0
        %v570 = vmax.f32 %v476, 0.0
        %v571 = vmax.f32 %v478, 0.0
        %v572 = vmax.f32 %v482, 0.0
        %v573 = vmax.f32 %v484, 0.0
        %v574 = vmax.f32 %v488, 0.0
        %v575 = vmax.f32 %v490, 0.0
        %v576 = vmax.f32 %v494, 0.0
        %v577 = vmax.f32 %v496, 0.0
        %v578 = vmax.f32 %v500, 0.0
        %v579 = vmax.f32 %v502, 0.0
        %v580 = vmax.f32 %v506, 0.0
        %v581 = vmax.f32 %v508, 0.0
        %v582 = vmax.f32 %v512, 0.0
        %v583 = vmax.f32 %v514, 0.0
        %v584 = vmax.f32 %v518, 0.0
        %v585 = vmax.f32 %v520, 0.0
        %v586 = vmax.f32 %v524, 0.0
        %v587 = vmax.f32 %v526, 0.0
        %v588 = vmax.f32 %v530, 0.0
        %v589 = vmax.f32 %v532, 0.0
        %v590 = vmax.f32 %v536, 0.0
        %v591 = vmax.f32 %v538, 0.0
        %v592 = vmax.f32 %v542, 0.0
        %v593 = vmax.f32 %v544, 0.0
        %v594 = vmax.f32 %v548, 0.0
        %v595 = vmax.f32 %v550, 0.0
        %v596 = vmax.f32 %v554, 0.0
        %v597 = vmax.f32 %v556, 0.0
        %v598 = vmax.f32 %v560, 0.0
        %v599 = vmax.f32 %v562, 0.0
        %v600 = vmax.f32 %v566, 0.0
        %v601 = vmax.f32 %v568, 0.0
        %602 = vst [vmem:[%s238] sm:$0xff] %v570
        %603 = vst [vmem:[%s238 + $0x8] sm:$0xff] %v571
        %604 = vst [vmem:[%s238 + $0x10] sm:$0xff] %v572
        %605 = vst [vmem:[%s238 + $0x18] sm:$0xff] %v573
        %606 = vst [vmem:[%s238 + $0x20] sm:$0xff] %v574
        %607 = vst [vmem:[%s238 + $0x28] sm:$0xff] %v575
        %608 = vst [vmem:[%s238 + $0x30] sm:$0xff] %v576
        %609 = vst [vmem:[%s238 + $0x38] sm:$0xff] %v577
        %610 = vst [vmem:[%s238 + $0x40] sm:$0xff] %v578
        %611 = vst [vmem:[%s238 + $0x48] sm:$0xff] %v579
        %612 = vst [vmem:[%s238 + $0x50] sm:$0xff] %v580
        %613 = vst [vmem:[%s238 + $0x58] sm:$0xff] %v581
        %614 = vst [vmem:[%s238 + $0x60] sm:$0xff] %v582
        %615 = vst [vmem:[%s238 + $0x68] sm:$0xff] %v583
        %616 = vst [vmem:[%s238 + $0x70] sm:$0xff] %v584
        %617 = vst [vmem:[%s238 + $0x78] sm:$0xff] %v585
        %618 = vst [vmem:[%s238 + $0x80] sm:$0xff] %v586
        %619 = vst [vmem:[%s238 + $0x88] sm:$0xff] %v587
        %620 = vst [vmem:[%s238 + $0x90] sm:$0xff] %v588
        %621 = vst [vmem:[%s238 + $0x98] sm:$0xff] %v589
        %622 = vst [vmem:[%s238 + $0xa0] sm:$0xff] %v590
        %623 = vst [vmem:[%s238 + $0xa8] sm:$0xff] %v591
        %624 = vst [vmem:[%s238 + $0xb0] sm:$0xff] %v592
        %625 = vst [vmem:[%s238 + $0xb8] sm:$0xff] %v593
        %626 = vst [vmem:[%s238 + $0xc0] sm:$0xff] %v594
        %627 = vst [vmem:[%s238 + $0xc8] sm:$0xff] %v595
        %628 = vst [vmem:[%s238 + $0xd0] sm:$0xff] %v596
        %629 = vst [vmem:[%s238 + $0xd8] sm:$0xff] %v597
        %630 = vst [vmem:[%s238 + $0xe0] sm:$0xff] %v598
        %631 = vst [vmem:[%s238 + $0xe8] sm:$0xff] %v599
        %632 = vst [vmem:[%s238 + $0xf0] sm:$0xff] %v600
        %633 = vst [vmem:[%s238 + $0xf8] sm:$0xff] %v601
        %s634 = smul.u32 2, %s21
        %p635 = scmp.lt.s32.totalorder %s20, 1
        %s636 = scalar_select %p635, %s20, 1
        %p637 = scmp.lt.s32.totalorder %s634, 1
        %s638 = scalar_select %p637, %s634, 1
        %s639 = smul.addr %s636, 32
        %s640 = sadd.s32 %s638, %s639
        %s641 = smul.addr %s640, 8
        %s642 = scalar_lea.vmem %s3, %s641
        // Predicated region
        $region41: #{vae_forward.12} parent=31 // pred_check
          %p643 = pneg %p118
        $region42: #{vae_forward.12} parent=31 // pred_check_branch
          %645 = sbr.rel (%p643) target = $region44
        $region43: #{vae_forward.12} parent=31 // pred_region
          %s646 = smul.u32 2, %s21
        $region44: #{vae_forward.12} parent=31 // pred_fallthru
          _
      $region32: #{vae_forward.12} parent=5 // pred_fallthru
        _
      %p647 = scmp.le.s32.totalorder 2, %s11
      // Predicated region
      $region45: #{vae_forward.12} parent=5 // pred_check
        %p648 = pneg %p647
      $region46: #{vae_forward.12} parent=5 // pred_check_branch
        %650 = sbr.rel (%p648) target = $region48
      $region47: #{vae_forward.12} parent=5 // pred_region
        %s651 = ssub.s32 %s11, 2
        // Predicated region
        $region49: #{vae_forward.12} parent=47 // pred_check
          %p652 = pneg %p124
        $region50: #{vae_forward.12} parent=47 // pred_check_branch
          %654 = sbr.rel (%p652) target = $region52
        $region51: #{vae_forward.12} parent=47 // pred_region
          %s655 = smul.u32 2, %s23
          %p656 = scmp.lt.s32.totalorder %s22, 1
          %s657 = scalar_select %p656, %s22, 1
          %p658 = scmp.lt.s32.totalorder %s655, 1
          %s659 = scalar_select %p658, %s655, 1
          %s660 = smul.addr %s657, 32
          %s661 = sadd.s32 %s659, %s660
          %s662 = smul.addr %s661, 8
          %s663 = scalar_lea.vmem %s3, %s662
        $region52: #{vae_forward.12} parent=47 // pred_fallthru
          _
      $region48: #{vae_forward.12} parent=5 // pred_fallthru
        _
    $region6: #{vae_forward.12} parent=1 // loop_footer
      %s15 = sadd.s32 1, %s11
    $region7: #{vae_forward.12} parent=1 // loop_footer_branch
      %10 = sbr.rel target = $region3
    $region8: #{vae_forward.12} parent=1 // loop_exit
      _
    %664 = vsyncpa [#allocation3], 1
    %s665 = scalar_lea.sflag [#allocation3], 1
    %666 = vsyncpa %s665, 1
    %667 = vsyncpa [#allocation5], 1

// kernel: vae_forward.11
$region0: #{vae_forward.11}
  #allocation0 [shape = 'u32[]', space=smem, size = 0x4, offset = 0x4, fixed_abs, tag = 'smem constant byte address 0x4 - core index']
  #allocation1 [shape = 'u32[144,128]{1,0:T(1,128)}', space=vmem, size = 0x12000, scoped, tag = 'internal scratch']
  %s0 = inlined_call_operand.hbm [shape: f32[2,64], index: 0, kind: input, shape index: {}]
  %s1 = inlined_call_operand.hbm [shape: f32[8192,64], index: 1, kind: input, shape index: {}]
  %s2 = inlined_call_operand.hbm [shape: f32[1,8192], index: 2, kind: input, shape index: {}]
  %s3 = inlined_call_operand.hbm [shape: f32[2,8192], index: 3, kind: output, shape index: {}]
  %s4 = sld [smem:[#allocation0]]
  $region65: #{vae_forward.11} parent=0
    _
  %s6 = ssub.s32 1, %s4
  %s7 = scalar_select 0, %s6, %s4
  $region1: #{vae_forward.11} parent=0
    #allocation2 [shape = 'u8[1024]{0}', space=vmem, size = 0x400, scoped, tag = 'input window, operand 0, single buffered']
    #allocation3 [shape = 's32[2]{0}', space=sflag, size = 0x8, scoped, tag = 'scoped memory for vae_forward.11']
    #allocation4 [shape = 's32[2]{0}', space=sflag, size = 0x8, scoped, tag = 'scoped memory for vae_forward.11']
    #allocation5 [shape = 'u8[4194304]{0}', space=vmem, size = 0x400000, scoped, tag = 'input window, operand 1']
    #allocation6 [shape = 's32[2]{0}', space=sflag, size = 0x8, scoped, tag = 'scoped memory for vae_forward.11']
    #allocation7 [shape = 'u8[32768]{0}', space=vmem, size = 0x8000, scoped, tag = 'input window, operand 2']
    #allocation8 [shape = 'u8[65536]{0}', space=vmem, size = 0x10000, scoped, tag = 'output window, operand 0']
    %8 = vsyncpa [#allocation3], 0
    %9 = vsyncpa [#allocation6], 0
    %s10 = scalar_lea.sflag [#allocation6], 1
    %11 = vsyncpa %s10, 0
    %12 = vsyncpa [#allocation4], 0
    %s13 = scalar_lea.sflag [#allocation4], 1
    %14 = vsyncpa %s13, 0
    loop: start=0, step=1, limit=4
    $region2: #{vae_forward.11} parent=1 // loop_pre_header
      _
    $region3: #{vae_forward.11} parent=1 // loop_header
      %s16 = sphi 0, %s20
      %p17 = scmp.ge.s32.totalorder %s16, 4
      %s23 = sphi 0, %s35
      %s24 = sphi 0, %s31
      %s25 = sphi 0, %s23
      %s26 = sphi 0, %s24
      %s27 = sphi 0, %s25
      %s28 = sphi 0, %s26
      %s38 = sphi 0, %s40
      %s41 = sphi 0, %s38
      %s42 = sphi 0, %s41
      %s58 = sphi 0, %s42
      %s66 = sphi 0, %s68
      %s69 = sphi 0, %s66
      %s70 = sphi 0, %s69
      %s86 = sphi 0, %s70
      %s92 = sphi 0, %s94
      %s95 = sphi 0, %s92
      %s96 = sphi 0, %s95
      %s112 = sphi 0, %s96
      %s118 = sphi 0, %s120
      %s121 = sphi 0, %s118
      %s122 = sphi 0, %s121
      %s138 = sphi 0, %s122
    $region4: #{vae_forward.11} parent=1 // loop_header_branch
      %19 = sbr.rel (%p17) target = $region8
    $region5: #{vae_forward.11} parent=1 // loop_body
      %s21 = ssub.s32 %s16, 1
      %s22 = ssub.s32 %s16, 2
      %s29 = sadd.s32 1, %s24
      %p30 = scmp.ge.s32.totalorder %s29, 1
      %s31 = scalar_select %p30, 0, %s29
      %s32 = sadd.s32 1, %s23
      %s33 = scalar_select %p30, %s32, %s23
      %p34 = scmp.ge.s32.totalorder %s33, 2
      %s35 = scalar_select %p34, 0, %s33
      %s36 = ssub.s32 %s24, %s31
      %p37 = scmp.eq.s32.totalorder %s36, 0
      %s39 = sadd.s32 %s38, 1
      %s40 = scalar_select %p37, %s38, %s39
      %p43 = pneg %p37
      %p44 = scmp.eq.s32.totalorder %s16, 1
      %p45 = por %p43, %p44
      %p46 = scmp.ne.s32.totalorder %s38, %s41
      %p47 = scmp.eq.s32.totalorder %s16, 0
      %p48 = por %p46, %p47
      %p49 = scmp.ne.s32.totalorder %s38, %s41
      %p50 = scmp.eq.s32.totalorder %s21, 1
      %p51 = por %p49, %p50
      %p52 = scmp.ne.s32.totalorder %s41, %s42
      %p53 = scmp.eq.s32.totalorder %s21, 0
      %p54 = por %p52, %p53
      %p55 = scmp.ne.s32.totalorder %s41, %s42
      %p56 = scmp.eq.s32.totalorder %s22, 1
      %p57 = por %p55, %p56
      %p59 = scmp.ne.s32.totalorder %s42, %s58
      %p60 = scmp.eq.s32.totalorder %s22, 0
      %p61 = por %p59, %p60
      %s62 = ssub.s32 %s23, %s35
      %s63 = ssub.s32 %s24, %s31
      %s64 = sor.u32 %s62, %s63
      %p65 = scmp.eq.s32.totalorder %s64, 0
      %s67 = sadd.s32 %s66, 1
      %s68 = scalar_select %p65, %s66, %s67
      %p71 = pneg %p65
      %p72 = scmp.eq.s32.totalorder %s16, 1
      %p73 = por %p71, %p72
      %p74 = scmp.ne.s32.totalorder %s66, %s69
      %p75 = scmp.eq.s32.totalorder %s16, 0
      %p76 = por %p74, %p75
      %p77 = scmp.ne.s32.totalorder %s66, %s69
      %p78 = scmp.eq.s32.totalorder %s21, 1
      %p79 = por %p77, %p78
      %p80 = scmp.ne.s32.totalorder %s69, %s70
      %p81 = scmp.eq.s32.totalorder %s21, 0
      %p82 = por %p80, %p81
      %p83 = scmp.ne.s32.totalorder %s69, %s70
      %p84 = scmp.eq.s32.totalorder %s22, 1
      %p85 = por %p83, %p84
      %p87 = scmp.ne.s32.totalorder %s70, %s86
      %p88 = scmp.eq.s32.totalorder %s22, 0
      %p89 = por %p87, %p88
      %s90 = ssub.s32 %s23, %s35
      %p91 = scmp.eq.s32.totalorder %s90, 0
      %s93 = sadd.s32 %s92, 1
      %s94 = scalar_select %p91, %s92, %s93
      %p97 = pneg %p91
      %p98 = scmp.eq.s32.totalorder %s16, 1
      %p99 = por %p97, %p98
      %p100 = scmp.ne.s32.totalorder %s92, %s95
      %p101 = scmp.eq.s32.totalorder %s16, 0
      %p102 = por %p100, %p101
      %p103 = scmp.ne.s32.totalorder %s92, %s95
      %p104 = scmp.eq.s32.totalorder %s21, 1
      %p105 = por %p103, %p104
      %p106 = scmp.ne.s32.totalorder %s95, %s96
      %p107 = scmp.eq.s32.totalorder %s21, 0
      %p108 = por %p106, %p107
      %p109 = scmp.ne.s32.totalorder %s95, %s96
      %p110 = scmp.eq.s32.totalorder %s22, 1
      %p111 = por %p109, %p110
      %p113 = scmp.ne.s32.totalorder %s96, %s112
      %p114 = scmp.eq.s32.totalorder %s22, 0
      %p115 = por %p113, %p114
      %s116 = ssub.s32 %s23, %s35
      %p117 = scmp.eq.s32.totalorder %s116, 0
      %s119 = sadd.s32 %s118, 1
      %s120 = scalar_select %p117, %s118, %s119
      %p123 = pneg %p117
      %p124 = scmp.eq.s32.totalorder %s16, 1
      %p125 = por %p123, %p124
      %p126 = scmp.ne.s32.totalorder %s118, %s121
      %p127 = scmp.eq.s32.totalorder %s16, 0
      %p128 = por %p126, %p127
      %p129 = scmp.ne.s32.totalorder %s118, %s121
      %p130 = scmp.eq.s32.totalorder %s21, 1
      %p131 = por %p129, %p130
      %p132 = scmp.ne.s32.totalorder %s121, %s122
      %p133 = scmp.eq.s32.totalorder %s21, 0
      %p134 = por %p132, %p133
      %p135 = scmp.ne.s32.totalorder %s121, %s122
      %p136 = scmp.eq.s32.totalorder %s22, 1
      %p137 = por %p135, %p136
      %p139 = scmp.ne.s32.totalorder %s122, %s138
      %p140 = scmp.eq.s32.totalorder %s22, 0
      %p141 = por %p139, %p140
      %p142 = scmp.le.s32.totalorder 1, %s16
      %p143 = scmp.lt.s32.totalorder %s16, 3
      %p144 = pnand %p142, %p143
      %p145 = pneg %p144
      // Predicated region
      $region9: #{vae_forward.11} parent=5 // pred_check
        _
      $region10: #{vae_forward.11} parent=5 // pred_check_branch
        %147 = sbr.rel (%p144) target = $region12
      $region11: #{vae_forward.11} parent=5 // pred_region
        %s148 = ssub.s32 %s16, 1
        // Predicated region
        $region13: #{vae_forward.11} parent=11 // pred_check
          %p149 = pneg %p54
        $region14: #{vae_forward.11} parent=11 // pred_check_branch
          %151 = sbr.rel (%p149) target = $region16
        $region15: #{vae_forward.11} parent=11 // pred_region
          %s153 = ssub.s32 32, 32
          %154 = vsyncadd [#allocation3], %s153
          %s155 = smul.addr %s26, 32
          %s156 = scalar_lea.hbm %s0, %s155
          %s158 = sshll.u32 [#allocation2], 4
          %s159 = int_to_ptr.vmem [resolvable:$true] %s158
          %161 = dma.hbm_to_vmem [thread:$0]  %s156, 32, %s159, [#allocation3]
        $region16: #{vae_forward.11} parent=11 // pred_fallthru
          _
      $region12: #{vae_forward.11} parent=5 // pred_fallthru
        _
      %p162 = scmp.lt.s32.totalorder %s16, 2
      // Predicated region
      $region17: #{vae_forward.11} parent=5 // pred_check
        %p163 = pneg %p162
      $region18: #{vae_forward.11} parent=5 // pred_check_branch
        %165 = sbr.rel (%p163) target = $region20
      $region19: #{vae_forward.11} parent=5 // pred_region
        // Predicated region
        $region21: #{vae_forward.11} parent=19 // pred_check
          %p166 = pneg %p76
        $region22: #{vae_forward.11} parent=19 // pred_check_branch
          %168 = sbr.rel (%p166) target = $region24
        $region23: #{vae_forward.11} parent=19 // pred_region
          %s169 = sand.u32 %s16, 1
          %s170 = scalar_lea.sflag [#allocation6], %s169
          %s171 = sand.u32 %s66, 1
          %s172 = smul.addr %s171, 4096
          %s173 = scalar_lea.vmem [#allocation5], %s172
          %s174 = smul.u32 512, %s23
          %s176 = ssub.s32 65536, 65536
          %177 = vsyncadd %s170, %s176
          %s178 = sadd.s32 %s24, %s174
          %s179 = smul.addr %s178, 128
          %s180 = scalar_lea.hbm %s1, %s179
          %s181 = sshll.u32 %s173, 4
          %s182 = int_to_ptr.vmem [resolvable:$true] %s181
          %187 = dma.hbm_to_vmem [thread:$0]  %s180, 65536, %s182, %s170, 128, 128, 8
        $region24: #{vae_forward.11} parent=19 // pred_fallthru
          _
        // Predicated region
        $region25: #{vae_forward.11} parent=19 // pred_check
          %p188 = pneg %p102
        $region26: #{vae_forward.11} parent=19 // pred_check_branch
          %190 = sbr.rel (%p188) target = $region28
        $region27: #{vae_forward.11} parent=19 // pred_region
          %s191 = sand.u32 %s16, 1
          %s192 = scalar_lea.sflag [#allocation6], %s191
          %s193 = sand.u32 %s92, 1
          %s194 = smul.addr %s193, 32
          %s195 = scalar_lea.vmem [#allocation7], %s194
          %s196 = smul.u32 32, %s23
          %s198 = ssub.s32 512, 512
          %199 = vsyncadd %s192, %s198
          %s200 = smul.addr %s196, 16
          %s201 = scalar_lea.hbm %s2, %s200
          %s203 = sshll.u32 %s195, 4
          %s204 = int_to_ptr.vmem [resolvable:$true] %s203
          %206 = dma.hbm_to_vmem [thread:$0]  %s201, 512, %s204, %s192
        $region28: #{vae_forward.11} parent=19 // pred_fallthru
          _
      $region20: #{vae_forward.11} parent=5 // pred_fallthru
        _
      %p207 = scmp.le.s32.totalorder 1, %s16
      %p208 = scmp.lt.s32.totalorder %s16, 3
      %p209 = pnand %p207, %p208
      %p210 = pneg %p209
      // Predicated region
      $region29: #{vae_forward.11} parent=5 // pred_check
        _
      $region30: #{vae_forward.11} parent=5 // pred_check_branch
        %212 = sbr.rel (%p209) target = $region32
      $region31: #{vae_forward.11} parent=5 // pred_region
        %s213 = ssub.s32 %s16, 1
        // Predicated region
        $region33: #{vae_forward.11} parent=31 // pred_check
          %p214 = pneg %p54
        $region34: #{vae_forward.11} parent=31 // pred_check_branch
          %216 = sbr.rel (%p214) target = $region36
        $region35: #{vae_forward.11} parent=31 // pred_region
          %217 = dma.done [#allocation3], 32
        $region36: #{vae_forward.11} parent=31 // pred_fallthru
          _
        %s218 = sand.u32 %s21, 1
        %s219 = scalar_lea.sflag [#allocation6], %s218
        %s220 = sand.u32 %s69, 1
        %s221 = smul.addr %s220, 4096
        %s222 = scalar_lea.vmem [#allocation5], %s221
        // Predicated region
        $region37: #{vae_forward.11} parent=31 // pred_check
          %p223 = pneg %p82
        $region38: #{vae_forward.11} parent=31 // pred_check_branch
          %225 = sbr.rel (%p223) target = $region40
        $region39: #{vae_forward.11} parent=31 // pred_region
          %226 = dma.done %s219, 65536
        $region40: #{vae_forward.11} parent=31 // pred_fallthru
          _
        %s227 = sand.u32 %s21, 1
        %s228 = scalar_lea.sflag [#allocation6], %s227
        %s229 = sand.u32 %s95, 1
        %s230 = smul.addr %s229, 32
        %s231 = scalar_lea.vmem [#allocation7], %s230
        // Predicated region
        $region41: #{vae_forward.11} parent=31 // pred_check
          %p232 = pneg %p108
        $region42: #{vae_forward.11} parent=31 // pred_check_branch
          %234 = sbr.rel (%p232) target = $region44
        $region43: #{vae_forward.11} parent=31 // pred_region
          %235 = dma.done %s228, 512
        $region44: #{vae_forward.11} parent=31 // pred_fallthru
          _
        %p236 = pneg %p54
        %p237 = pneg %p51
        %s238 = sand.u32 %s21, 1
        %s239 = scalar_lea.sflag [#allocation6], %s238
        %s240 = sand.u32 %s69, 1
        %s241 = smul.addr %s240, 4096
        %s242 = scalar_lea.vmem [#allocation5], %s241
        %p243 = pneg %p82
        %p244 = pneg %p79
        %s245 = sand.u32 %s21, 1
        %s246 = scalar_lea.sflag [#allocation6], %s245
        %s247 = sand.u32 %s95, 1
        %s248 = smul.addr %s247, 32
        %s249 = scalar_lea.vmem [#allocation7], %s248
        %p250 = pneg %p108
        %p251 = pneg %p105
        %p252 = pneg %p134
        %p253 = pneg %p131
        %s254 = sand.u32 %s121, 1
        %s255 = scalar_lea.sflag [#allocation4], %s254
        %s256 = sand.u32 %s121, 1
        %s257 = smul.addr %s256, 64
        %s258 = scalar_lea.vmem [#allocation8], %s257
        %s259 = smul.u32 512, %s25
        %s260 = smul.u32 32, %s25
        %s261 = smul.u32 32, %s25
        %p262 = scmp.eq.s32.totalorder %s26, 0
        // Predicated region
        $region45: #{vae_forward.11} parent=31 // pred_check
          %p263 = pneg %p262
        $region46: #{vae_forward.11} parent=31 // pred_check_branch
          %265 = sbr.rel (%p263) target = $region48
        $region47: #{vae_forward.11} parent=31 // pred_region
          %266 = vst [vmem:[%s258] sm:$0xff] 0.0
          %267 = vst [vmem:[%s258 + $0x8] sm:$0xff] 0.0
          %268 = vst [vmem:[%s258 + $0x10] sm:$0xff] 0.0
          %269 = vst [vmem:[%s258 + $0x18] sm:$0xff] 0.0
          %270 = vst [vmem:[%s258 + $0x20] sm:$0xff] 0.0
          %271 = vst [vmem:[%s258 + $0x28] sm:$0xff] 0.0
          %272 = vst [vmem:[%s258 + $0x30] sm:$0xff] 0.0
          %273 = vst [vmem:[%s258 + $0x38] sm:$0xff] 0.0
        $region48: #{vae_forward.11} parent=31 // pred_fallthru
          _
        %v274 = vld [vmem:[%s258] sm:$0xff]
        %v275 = vld [vmem:[%s258 + $0x8] sm:$0xff]
        %v276 = vld [vmem:[%s258 + $0x10] sm:$0xff]
        %v277 = vld [vmem:[%s258 + $0x18] sm:$0xff]
        %v278 = vld [vmem:[%s258 + $0x20] sm:$0xff]
        %v279 = vld [vmem:[%s258 + $0x28] sm:$0xff]
        %v280 = vld [vmem:[%s258 + $0x30] sm:$0xff]
        %v281 = vld [vmem:[%s258 + $0x38] sm:$0xff]
        %v282 = vld [vmem:[#allocation2] sm:$0x3]
        %v283 = vld [vmem:[%s222] sm:$0xff]
        %v284 = vld [vmem:[%s222 + $0x8] sm:$0xff]
        %v285 = vld [vmem:[%s222 + $0x10] sm:$0xff]
        %v286 = vld [vmem:[%s222 + $0x18] sm:$0xff]
        %v287 = vld [vmem:[%s222 + $0x20] sm:$0xff]
        %v288 = vld [vmem:[%s222 + $0x28] sm:$0xff]
        %v289 = vld [vmem:[%s222 + $0x30] sm:$0xff]
        %v290 = vld [vmem:[%s222 + $0x38] sm:$0xff]
        %v291 = vld [vmem:[%s222 + $0x40] sm:$0xff]
        %v292 = vld [vmem:[%s222 + $0x48] sm:$0xff]
        %v293 = vld [vmem:[%s222 + $0x50] sm:$0xff]
        %v294 = vld [vmem:[%s222 + $0x58] sm:$0xff]
        %v295 = vld [vmem:[%s222 + $0x60] sm:$0xff]
        %v296 = vld [vmem:[%s222 + $0x68] sm:$0xff]
        %v297 = vld [vmem:[%s222 + $0x70] sm:$0xff]
        %v298 = vld [vmem:[%s222 + $0x78] sm:$0xff]
        %v299 = vld [vmem:[%s222 + $0x80] sm:$0xff]
        %v300 = vld [vmem:[%s222 + $0x88] sm:$0xff]
        %v301 = vld [vmem:[%s222 + $0x90] sm:$0xff]
        %v302 = vld [vmem:[%s222 + $0x98] sm:$0xff]
        %v303 = vld [vmem:[%s222 + $0xa0] sm:$0xff]
        %v304 = vld [vmem:[%s222 + $0xa8] sm:$0xff]
        %v305 = vld [vmem:[%s222 + $0xb0] sm:$0xff]
        %v306 = vld [vmem:[%s222 + $0xb8] sm:$0xff]
        %v307 = vld [vmem:[%s222 + $0xc0] sm:$0xff]
        %v308 = vld [vmem:[%s222 + $0xc8] sm:$0xff]
        %v309 = vld [vmem:[%s222 + $0xd0] sm:$0xff]
        %v310 = vld [vmem:[%s222 + $0xd8] sm:$0xff]
        %v311 = vld [vmem:[%s222 + $0xe0] sm:$0xff]
        %v312 = vld [vmem:[%s222 + $0xe8] sm:$0xff]
        %v313 = vld [vmem:[%s222 + $0xf0] sm:$0xff]
        %v314 = vld [vmem:[%s222 + $0xf8] sm:$0xff]
        %v315 = vld [vmem:[%s222 + $0x100] sm:$0xff]
        %v316 = vld [vmem:[%s222 + $0x108] sm:$0xff]
        %v317 = vld [vmem:[%s222 + $0x110] sm:$0xff]
        %v318 = vld [vmem:[%s222 + $0x118] sm:$0xff]
        %v319 = vld [vmem:[%s222 + $0x120] sm:$0xff]
        %v320 = vld [vmem:[%s222 + $0x128] sm:$0xff]
        %v321 = vld [vmem:[%s222 + $0x130] sm:$0xff]
        %v322 = vld [vmem:[%s222 + $0x138] sm:$0xff]
        %v323 = vld [vmem:[%s222 + $0x140] sm:$0xff]
        %v324 = vld [vmem:[%s222 + $0x148] sm:$0xff]
        %v325 = vld [vmem:[%s222 + $0x150] sm:$0xff]
        %v326 = vld [vmem:[%s222 + $0x158] sm:$0xff]
        %v327 = vld [vmem:[%s222 + $0x160] sm:$0xff]
        %v328 = vld [vmem:[%s222 + $0x168] sm:$0xff]
        %v329 = vld [vmem:[%s222 + $0x170] sm:$0xff]
        %v330 = vld [vmem:[%s222 + $0x178] sm:$0xff]
        %v331 = vld [vmem:[%s222 + $0x180] sm:$0xff]
        %v332 = vld [vmem:[%s222 + $0x188] sm:$0xff]
        %v333 = vld [vmem:[%s222 + $0x190] sm:$0xff]
        %v334 = vld [vmem:[%s222 + $0x198] sm:$0xff]
        %v335 = vld [vmem:[%s222 + $0x1a0] sm:$0xff]
        %v336 = vld [vmem:[%s222 + $0x1a8] sm:$0xff]
        %v337 = vld [vmem:[%s222 + $0x1b0] sm:$0xff]
        %v338 = vld [vmem:[%s222 + $0x1b8] sm:$0xff]
        %v339 = vld [vmem:[%s222 + $0x1c0] sm:$0xff]
        %v340 = vld [vmem:[%s222 + $0x1c8] sm:$0xff]
        %v341 = vld [vmem:[%s222 + $0x1d0] sm:$0xff]
        %v342 = vld [vmem:[%s222 + $0x1d8] sm:$0xff]
        %v343 = vld [vmem:[%s222 + $0x1e0] sm:$0xff]
        %v344 = vld [vmem:[%s222 + $0x1e8] sm:$0xff]
        %v345 = vld [vmem:[%s222 + $0x1f0] sm:$0xff]
        %v346 = vld [vmem:[%s222 + $0x1f8] sm:$0xff]
        %v347 = vld [vmem:[%s222 + $0x200] sm:$0xff]
        %v348 = vld [vmem:[%s222 + $0x208] sm:$0xff]
        %v349 = vld [vmem:[%s222 + $0x210] sm:$0xff]
        %v350 = vld [vmem:[%s222 + $0x218] sm:$0xff]
        %v351 = vld [vmem:[%s222 + $0x220] sm:$0xff]
        %v352 = vld [vmem:[%s222 + $0x228] sm:$0xff]
        %v353 = vld [vmem:[%s222 + $0x230] sm:$0xff]
        %v354 = vld [vmem:[%s222 + $0x238] sm:$0xff]
        %v355 = vld [vmem:[%s222 + $0x240] sm:$0xff]
        %v356 = vld [vmem:[%s222 + $0x248] sm:$0xff]
        %v357 = vld [vmem:[%s222 + $0x250] sm:$0xff]
        %v358 = vld [vmem:[%s222 + $0x258] sm:$0xff]
        %v359 = vld [vmem:[%s222 + $0x260] sm:$0xff]
        %v360 = vld [vmem:[%s222 + $0x268] sm:$0xff]
        %v361 = vld [vmem:[%s222 + $0x270] sm:$0xff]
        %v362 = vld [vmem:[%s222 + $0x278] sm:$0xff]
        %v363 = vld [vmem:[%s222 + $0x280] sm:$0xff]
        %v364 = vld [vmem:[%s222 + $0x288] sm:$0xff]
        %v365 = vld [vmem:[%s222 + $0x290] sm:$0xff]
        %v366 = vld [vmem:[%s222 + $0x298] sm:$0xff]
        %v367 = vld [vmem:[%s222 + $0x2a0] sm:$0xff]
        %v368 = vld [vmem:[%s222 + $0x2a8] sm:$0xff]
        %v369 = vld [vmem:[%s222 + $0x2b0] sm:$0xff]
        %v370 = vld [vmem:[%s222 + $0x2b8] sm:$0xff]
        %v371 = vld [vmem:[%s222 + $0x2c0] sm:$0xff]
        %v372 = vld [vmem:[%s222 + $0x2c8] sm:$0xff]
        %v373 = vld [vmem:[%s222 + $0x2d0] sm:$0xff]
        %v374 = vld [vmem:[%s222 + $0x2d8] sm:$0xff]
        %v375 = vld [vmem:[%s222 + $0x2e0] sm:$0xff]
        %v376 = vld [vmem:[%s222 + $0x2e8] sm:$0xff]
        %v377 = vld [vmem:[%s222 + $0x2f0] sm:$0xff]
        %v378 = vld [vmem:[%s222 + $0x2f8] sm:$0xff]
        %v379 = vld [vmem:[%s222 + $0x300] sm:$0xff]
        %v380 = vld [vmem:[%s222 + $0x308] sm:$0xff]
        %v381 = vld [vmem:[%s222 + $0x310] sm:$0xff]
        %v382 = vld [vmem:[%s222 + $0x318] sm:$0xff]
        %v383 = vld [vmem:[%s222 + $0x320] sm:$0xff]
        %v384 = vld [vmem:[%s222 + $0x328] sm:$0xff]
        %v385 = vld [vmem:[%s222 + $0x330] sm:$0xff]
        %v386 = vld [vmem:[%s222 + $0x338] sm:$0xff]
        %v387 = vld [vmem:[%s222 + $0x340] sm:$0xff]
        %v388 = vld [vmem:[%s222 + $0x348] sm:$0xff]
        %v389 = vld [vmem:[%s222 + $0x350] sm:$0xff]
        %v390 = vld [vmem:[%s222 + $0x358] sm:$0xff]
        %v391 = vld [vmem:[%s222 + $0x360] sm:$0xff]
        %v392 = vld [vmem:[%s222 + $0x368] sm:$0xff]
        %v393 = vld [vmem:[%s222 + $0x370] sm:$0xff]
        %v394 = vld [vmem:[%s222 + $0x378] sm:$0xff]
        %v395 = vld [vmem:[%s222 + $0x380] sm:$0xff]
        %v396 = vld [vmem:[%s222 + $0x388] sm:$0xff]
        %v397 = vld [vmem:[%s222 + $0x390] sm:$0xff]
        %v398 = vld [vmem:[%s222 + $0x398] sm:$0xff]
        %v399 = vld [vmem:[%s222 + $0x3a0] sm:$0xff]
        %v400 = vld [vmem:[%s222 + $0x3a8] sm:$0xff]
        %v401 = vld [vmem:[%s222 + $0x3b0] sm:$0xff]
        %v402 = vld [vmem:[%s222 + $0x3b8] sm:$0xff]
        %v403 = vld [vmem:[%s222 + $0x3c0] sm:$0xff]
        %v404 = vld [vmem:[%s222 + $0x3c8] sm:$0xff]
        %v405 = vld [vmem:[%s222 + $0x3d0] sm:$0xff]
        %v406 = vld [vmem:[%s222 + $0x3d8] sm:$0xff]
        %v407 = vld [vmem:[%s222 + $0x3e0] sm:$0xff]
        %v408 = vld [vmem:[%s222 + $0x3e8] sm:$0xff]
        %v409 = vld [vmem:[%s222 + $0x3f0] sm:$0xff]
        %v410 = vld [vmem:[%s222 + $0x3f8] sm:$0xff]
        %v411 = vld [vmem:[%s222 + $0x400] sm:$0xff]
        %v412 = vld [vmem:[%s222 + $0x408] sm:$0xff]
        %v413 = vld [vmem:[%s222 + $0x410] sm:$0xff]
        %v414 = vld [vmem:[%s222 + $0x418] sm:$0xff]
        %v415 = vld [vmem:[%s222 + $0x420] sm:$0xff]
        %v416 = vld [vmem:[%s222 + $0x428] sm:$0xff]
        %v417 = vld [vmem:[%s222 + $0x430] sm:$0xff]
        %v418 = vld [vmem:[%s222 + $0x438] sm:$0xff]
        %v419 = vld [vmem:[%s222 + $0x440] sm:$0xff]
        %v420 = vld [vmem:[%s222 + $0x448] sm:$0xff]
        %v421 = vld [vmem:[%s222 + $0x450] sm:$0xff]
        %v422 = vld [vmem:[%s222 + $0x458] sm:$0xff]
        %v423 = vld [vmem:[%s222 + $0x460] sm:$0xff]
        %v424 = vld [vmem:[%s222 + $0x468] sm:$0xff]
        %v425 = vld [vmem:[%s222 + $0x470] sm:$0xff]
        %v426 = vld [vmem:[%s222 + $0x478] sm:$0xff]
        %v427 = vld [vmem:[%s222 + $0x480] sm:$0xff]
        %v428 = vld [vmem:[%s222 + $0x488] sm:$0xff]
        %v429 = vld [vmem:[%s222 + $0x490] sm:$0xff]
        %v430 = vld [vmem:[%s222 + $0x498] sm:$0xff]
        %v431 = vld [vmem:[%s222 + $0x4a0] sm:$0xff]
        %v432 = vld [vmem:[%s222 + $0x4a8] sm:$0xff]
        %v433 = vld [vmem:[%s222 + $0x4b0] sm:$0xff]
        %v434 = vld [vmem:[%s222 + $0x4b8] sm:$0xff]
        %v435 = vld [vmem:[%s222 + $0x4c0] sm:$0xff]
        %v436 = vld [vmem:[%s222 + $0x4c8] sm:$0xff]
        %v437 = vld [vmem:[%s222 + $0x4d0] sm:$0xff]
        %v438 = vld [vmem:[%s222 + $0x4d8] sm:$0xff]
        %v439 = vld [vmem:[%s222 + $0x4e0] sm:$0xff]
        %v440 = vld [vmem:[%s222 + $0x4e8] sm:$0xff]
        %v441 = vld [vmem:[%s222 + $0x4f0] sm:$0xff]
        %v442 = vld [vmem:[%s222 + $0x4f8] sm:$0xff]
        %v443 = vld [vmem:[%s222 + $0x500] sm:$0xff]
        %v444 = vld [vmem:[%s222 + $0x508] sm:$0xff]
        %v445 = vld [vmem:[%s222 + $0x510] sm:$0xff]
        %v446 = vld [vmem:[%s222 + $0x518] sm:$0xff]
        %v447 = vld [vmem:[%s222 + $0x520] sm:$0xff]
        %v448 = vld [vmem:[%s222 + $0x528] sm:$0xff]
        %v449 = vld [vmem:[%s222 + $0x530] sm:$0xff]
        %v450 = vld [vmem:[%s222 + $0x538] sm:$0xff]
        %v451 = vld [vmem:[%s222 + $0x540] sm:$0xff]
        %v452 = vld [vmem:[%s222 + $0x548] sm:$0xff]
        %v453 = vld [vmem:[%s222 + $0x550] sm:$0xff]
        %v454 = vld [vmem:[%s222 + $0x558] sm:$0xff]
        %v455 = vld [vmem:[%s222 + $0x560] sm:$0xff]
        %v456 = vld [vmem:[%s222 + $0x568] sm:$0xff]
        %v457 = vld [vmem:[%s222 + $0x570] sm:$0xff]
        %v458 = vld [vmem:[%s222 + $0x578] sm:$0xff]
        %v459 = vld [vmem:[%s222 + $0x580] sm:$0xff]
        %v460 = vld [vmem:[%s222 + $0x588] sm:$0xff]
        %v461 = vld [vmem:[%s222 + $0x590] sm:$0xff]
        %v462 = vld [vmem:[%s222 + $0x598] sm:$0xff]
        %v463 = vld [vmem:[%s222 + $0x5a0] sm:$0xff]
        %v464 = vld [vmem:[%s222 + $0x5a8] sm:$0xff]
        %v465 = vld [vmem:[%s222 + $0x5b0] sm:$0xff]
        %v466 = vld [vmem:[%s222 + $0x5b8] sm:$0xff]
        %v467 = vld [vmem:[%s222 + $0x5c0] sm:$0xff]
        %v468 = vld [vmem:[%s222 + $0x5c8] sm:$0xff]
        %v469 = vld [vmem:[%s222 + $0x5d0] sm:$0xff]
        %v470 = vld [vmem:[%s222 + $0x5d8] sm:$0xff]
        %v471 = vld [vmem:[%s222 + $0x5e0] sm:$0xff]
        %v472 = vld [vmem:[%s222 + $0x5e8] sm:$0xff]
        %v473 = vld [vmem:[%s222 + $0x5f0] sm:$0xff]
        %v474 = vld [vmem:[%s222 + $0x5f8] sm:$0xff]
        %v475 = vld [vmem:[%s222 + $0x600] sm:$0xff]
        %v476 = vld [vmem:[%s222 + $0x608] sm:$0xff]
        %v477 = vld [vmem:[%s222 + $0x610] sm:$0xff]
        %v478 = vld [vmem:[%s222 + $0x618] sm:$0xff]
        %v479 = vld [vmem:[%s222 + $0x620] sm:$0xff]
        %v480 = vld [vmem:[%s222 + $0x628] sm:$0xff]
        %v481 = vld [vmem:[%s222 + $0x630] sm:$0xff]
        %v482 = vld [vmem:[%s222 + $0x638] sm:$0xff]
        %v483 = vld [vmem:[%s222 + $0x640] sm:$0xff]
        %v484 = vld [vmem:[%s222 + $0x648] sm:$0xff]
        %v485 = vld [vmem:[%s222 + $0x650] sm:$0xff]
        %v486 = vld [vmem:[%s222 + $0x658] sm:$0xff]
        %v487 = vld [vmem:[%s222 + $0x660] sm:$0xff]
        %v488 = vld [vmem:[%s222 + $0x668] sm:$0xff]
        %v489 = vld [vmem:[%s222 + $0x670] sm:$0xff]
        %v490 = vld [vmem:[%s222 + $0x678] sm:$0xff]
        %v491 = vld [vmem:[%s222 + $0x680] sm:$0xff]
        %v492 = vld [vmem:[%s222 + $0x688] sm:$0xff]
        %v493 = vld [vmem:[%s222 + $0x690] sm:$0xff]
        %v494 = vld [vmem:[%s222 + $0x698] sm:$0xff]
        %v495 = vld [vmem:[%s222 + $0x6a0] sm:$0xff]
        %v496 = vld [vmem:[%s222 + $0x6a8] sm:$0xff]
        %v497 = vld [vmem:[%s222 + $0x6b0] sm:$0xff]
        %v498 = vld [vmem:[%s222 + $0x6b8] sm:$0xff]
        %v499 = vld [vmem:[%s222 + $0x6c0] sm:$0xff]
        %v500 = vld [vmem:[%s222 + $0x6c8] sm:$0xff]
        %v501 = vld [vmem:[%s222 + $0x6d0] sm:$0xff]
        %v502 = vld [vmem:[%s222 + $0x6d8] sm:$0xff]
        %v503 = vld [vmem:[%s222 + $0x6e0] sm:$0xff]
        %v504 = vld [vmem:[%s222 + $0x6e8] sm:$0xff]
        %v505 = vld [vmem:[%s222 + $0x6f0] sm:$0xff]
        %v506 = vld [vmem:[%s222 + $0x6f8] sm:$0xff]
        %v507 = vld [vmem:[%s222 + $0x700] sm:$0xff]
        %v508 = vld [vmem:[%s222 + $0x708] sm:$0xff]
        %v509 = vld [vmem:[%s222 + $0x710] sm:$0xff]
        %v510 = vld [vmem:[%s222 + $0x718] sm:$0xff]
        %v511 = vld [vmem:[%s222 + $0x720] sm:$0xff]
        %v512 = vld [vmem:[%s222 + $0x728] sm:$0xff]
        %v513 = vld [vmem:[%s222 + $0x730] sm:$0xff]
        %v514 = vld [vmem:[%s222 + $0x738] sm:$0xff]
        %v515 = vld [vmem:[%s222 + $0x740] sm:$0xff]
        %v516 = vld [vmem:[%s222 + $0x748] sm:$0xff]
        %v517 = vld [vmem:[%s222 + $0x750] sm:$0xff]
        %v518 = vld [vmem:[%s222 + $0x758] sm:$0xff]
        %v519 = vld [vmem:[%s222 + $0x760] sm:$0xff]
        %v520 = vld [vmem:[%s222 + $0x768] sm:$0xff]
        %v521 = vld [vmem:[%s222 + $0x770] sm:$0xff]
        %v522 = vld [vmem:[%s222 + $0x778] sm:$0xff]
        %v523 = vld [vmem:[%s222 + $0x780] sm:$0xff]
        %v524 = vld [vmem:[%s222 + $0x788] sm:$0xff]
        %v525 = vld [vmem:[%s222 + $0x790] sm:$0xff]
        %v526 = vld [vmem:[%s222 + $0x798] sm:$0xff]
        %v527 = vld [vmem:[%s222 + $0x7a0] sm:$0xff]
        %v528 = vld [vmem:[%s222 + $0x7a8] sm:$0xff]
        %v529 = vld [vmem:[%s222 + $0x7b0] sm:$0xff]
        %v530 = vld [vmem:[%s222 + $0x7b8] sm:$0xff]
        %v531 = vld [vmem:[%s222 + $0x7c0] sm:$0xff]
        %v532 = vld [vmem:[%s222 + $0x7c8] sm:$0xff]
        %v533 = vld [vmem:[%s222 + $0x7d0] sm:$0xff]
        %v534 = vld [vmem:[%s222 + $0x7d8] sm:$0xff]
        %v535 = vld [vmem:[%s222 + $0x7e0] sm:$0xff]
        %v536 = vld [vmem:[%s222 + $0x7e8] sm:$0xff]
        %v537 = vld [vmem:[%s222 + $0x7f0] sm:$0xff]
        %v538 = vld [vmem:[%s222 + $0x7f8] sm:$0xff]
        %v539 = vld [vmem:[%s222 + $0x800] sm:$0xff]
        %v540 = vld [vmem:[%s222 + $0x808] sm:$0xff]
        %v541 = vld [vmem:[%s222 + $0x810] sm:$0xff]
        %v542 = vld [vmem:[%s222 + $0x818] sm:$0xff]
        %v543 = vld [vmem:[%s222 + $0x820] sm:$0xff]
        %v544 = vld [vmem:[%s222 + $0x828] sm:$0xff]
        %v545 = vld [vmem:[%s222 + $0x830] sm:$0xff]
        %v546 = vld [vmem:[%s222 + $0x838] sm:$0xff]
        %v547 = vld [vmem:[%s222 + $0x840] sm:$0xff]
        %v548 = vld [vmem:[%s222 + $0x848] sm:$0xff]
        %v549 = vld [vmem:[%s222 + $0x850] sm:$0xff]
        %v550 = vld [vmem:[%s222 + $0x858] sm:$0xff]
        %v551 = vld [vmem:[%s222 + $0x860] sm:$0xff]
        %v552 = vld [vmem:[%s222 + $0x868] sm:$0xff]
        %v553 = vld [vmem:[%s222 + $0x870] sm:$0xff]
        %v554 = vld [vmem:[%s222 + $0x878] sm:$0xff]
        %v555 = vld [vmem:[%s222 + $0x880] sm:$0xff]
        %v556 = vld [vmem:[%s222 + $0x888] sm:$0xff]
        %v557 = vld [vmem:[%s222 + $0x890] sm:$0xff]
        %v558 = vld [vmem:[%s222 + $0x898] sm:$0xff]
        %v559 = vld [vmem:[%s222 + $0x8a0] sm:$0xff]
        %v560 = vld [vmem:[%s222 + $0x8a8] sm:$0xff]
        %v561 = vld [vmem:[%s222 + $0x8b0] sm:$0xff]
        %v562 = vld [vmem:[%s222 + $0x8b8] sm:$0xff]
        %v563 = vld [vmem:[%s222 + $0x8c0] sm:$0xff]
        %v564 = vld [vmem:[%s222 + $0x8c8] sm:$0xff]
        %v565 = vld [vmem:[%s222 + $0x8d0] sm:$0xff]
        %v566 = vld [vmem:[%s222 + $0x8d8] sm:$0xff]
        %v567 = vld [vmem:[%s222 + $0x8e0] sm:$0xff]
        %v568 = vld [vmem:[%s222 + $0x8e8] sm:$0xff]
        %v569 = vld [vmem:[%s222 + $0x8f0] sm:$0xff]
        %v570 = vld [vmem:[%s222 + $0x8f8] sm:$0xff]
        %v571 = vld [vmem:[%s222 + $0x900] sm:$0xff]
        %v572 = vld [vmem:[%s222 + $0x908] sm:$0xff]
        %v573 = vld [vmem:[%s222 + $0x910] sm:$0xff]
        %v574 = vld [vmem:[%s222 + $0x918] sm:$0xff]
        %v575 = vld [vmem:[%s222 + $0x920] sm:$0xff]
        %v576 = vld [vmem:[%s222 + $0x928] sm:$0xff]
        %v577 = vld [vmem:[%s222 + $0x930] sm:$0xff]
        %v578 = vld [vmem:[%s222 + $0x938] sm:$0xff]
        %v579 = vld [vmem:[%s222 + $0x940] sm:$0xff]
        %v580 = vld [vmem:[%s222 + $0x948] sm:$0xff]
        %v581 = vld [vmem:[%s222 + $0x950] sm:$0xff]
        %v582 = vld [vmem:[%s222 + $0x958] sm:$0xff]
        %v583 = vld [vmem:[%s222 + $0x960] sm:$0xff]
        %v584 = vld [vmem:[%s222 + $0x968] sm:$0xff]
        %v585 = vld [vmem:[%s222 + $0x970] sm:$0xff]
        %v586 = vld [vmem:[%s222 + $0x978] sm:$0xff]
        %v587 = vld [vmem:[%s222 + $0x980] sm:$0xff]
        %v588 = vld [vmem:[%s222 + $0x988] sm:$0xff]
        %v589 = vld [vmem:[%s222 + $0x990] sm:$0xff]
        %v590 = vld [vmem:[%s222 + $0x998] sm:$0xff]
        %v591 = vld [vmem:[%s222 + $0x9a0] sm:$0xff]
        %v592 = vld [vmem:[%s222 + $0x9a8] sm:$0xff]
        %v593 = vld [vmem:[%s222 + $0x9b0] sm:$0xff]
        %v594 = vld [vmem:[%s222 + $0x9b8] sm:$0xff]
        %v595 = vld [vmem:[%s222 + $0x9c0] sm:$0xff]
        %v596 = vld [vmem:[%s222 + $0x9c8] sm:$0xff]
        %v597 = vld [vmem:[%s222 + $0x9d0] sm:$0xff]
        %v598 = vld [vmem:[%s222 + $0x9d8] sm:$0xff]
        %v599 = vld [vmem:[%s222 + $0x9e0] sm:$0xff]
        %v600 = vld [vmem:[%s222 + $0x9e8] sm:$0xff]
        %v601 = vld [vmem:[%s222 + $0x9f0] sm:$0xff]
        %v602 = vld [vmem:[%s222 + $0x9f8] sm:$0xff]
        %v603 = vld [vmem:[%s222 + $0xa00] sm:$0xff]
        %v604 = vld [vmem:[%s222 + $0xa08] sm:$0xff]
        %v605 = vld [vmem:[%s222 + $0xa10] sm:$0xff]
        %v606 = vld [vmem:[%s222 + $0xa18] sm:$0xff]
        %v607 = vld [vmem:[%s222 + $0xa20] sm:$0xff]
        %v608 = vld [vmem:[%s222 + $0xa28] sm:$0xff]
        %v609 = vld [vmem:[%s222 + $0xa30] sm:$0xff]
        %v610 = vld [vmem:[%s222 + $0xa38] sm:$0xff]
        %v611 = vld [vmem:[%s222 + $0xa40] sm:$0xff]
        %v612 = vld [vmem:[%s222 + $0xa48] sm:$0xff]
        %v613 = vld [vmem:[%s222 + $0xa50] sm:$0xff]
        %v614 = vld [vmem:[%s222 + $0xa58] sm:$0xff]
        %v615 = vld [vmem:[%s222 + $0xa60] sm:$0xff]
        %v616 = vld [vmem:[%s222 + $0xa68] sm:$0xff]
        %v617 = vld [vmem:[%s222 + $0xa70] sm:$0xff]
        %v618 = vld [vmem:[%s222 + $0xa78] sm:$0xff]
        %v619 = vld [vmem:[%s222 + $0xa80] sm:$0xff]
        %v620 = vld [vmem:[%s222 + $0xa88] sm:$0xff]
        %v621 = vld [vmem:[%s222 + $0xa90] sm:$0xff]
        %v622 = vld [vmem:[%s222 + $0xa98] sm:$0xff]
        %v623 = vld [vmem:[%s222 + $0xaa0] sm:$0xff]
        %v624 = vld [vmem:[%s222 + $0xaa8] sm:$0xff]
        %v625 = vld [vmem:[%s222 + $0xab0] sm:$0xff]
        %v626 = vld [vmem:[%s222 + $0xab8] sm:$0xff]
        %v627 = vld [vmem:[%s222 + $0xac0] sm:$0xff]
        %v628 = vld [vmem:[%s222 + $0xac8] sm:$0xff]
        %v629 = vld [vmem:[%s222 + $0xad0] sm:$0xff]
        %v630 = vld [vmem:[%s222 + $0xad8] sm:$0xff]
        %v631 = vld [vmem:[%s222 + $0xae0] sm:$0xff]
        %v632 = vld [vmem:[%s222 + $0xae8] sm:$0xff]
        %v633 = vld [vmem:[%s222 + $0xaf0] sm:$0xff]
        %v634 = vld [vmem:[%s222 + $0xaf8] sm:$0xff]
        %v635 = vld [vmem:[%s222 + $0xb00] sm:$0xff]
        %v636 = vld [vmem:[%s222 + $0xb08] sm:$0xff]
        %v637 = vld [vmem:[%s222 + $0xb10] sm:$0xff]
        %v638 = vld [vmem:[%s222 + $0xb18] sm:$0xff]
        %v639 = vld [vmem:[%s222 + $0xb20] sm:$0xff]
        %v640 = vld [vmem:[%s222 + $0xb28] sm:$0xff]
        %v641 = vld [vmem:[%s222 + $0xb30] sm:$0xff]
        %v642 = vld [vmem:[%s222 + $0xb38] sm:$0xff]
        %v643 = vld [vmem:[%s222 + $0xb40] sm:$0xff]
        %v644 = vld [vmem:[%s222 + $0xb48] sm:$0xff]
        %v645 = vld [vmem:[%s222 + $0xb50] sm:$0xff]
        %v646 = vld [vmem:[%s222 + $0xb58] sm:$0xff]
        %v647 = vld [vmem:[%s222 + $0xb60] sm:$0xff]
        %v648 = vld [vmem:[%s222 + $0xb68] sm:$0xff]
        %v649 = vld [vmem:[%s222 + $0xb70] sm:$0xff]
        %v650 = vld [vmem:[%s222 + $0xb78] sm:$0xff]
        %v651 = vld [vmem:[%s222 + $0xb80] sm:$0xff]
        %v652 = vld [vmem:[%s222 + $0xb88] sm:$0xff]
        %v653 = vld [vmem:[%s222 + $0xb90] sm:$0xff]
        %v654 = vld [vmem:[%s222 + $0xb98] sm:$0xff]
        %v655 = vld [vmem:[%s222 + $0xba0] sm:$0xff]
        %v656 = vld [vmem:[%s222 + $0xba8] sm:$0xff]
        %v657 = vld [vmem:[%s222 + $0xbb0] sm:$0xff]
        %v658 = vld [vmem:[%s222 + $0xbb8] sm:$0xff]
        %v659 = vld [vmem:[%s222 + $0xbc0] sm:$0xff]
        %v660 = vld [vmem:[%s222 + $0xbc8] sm:$0xff]
        %v661 = vld [vmem:[%s222 + $0xbd0] sm:$0xff]
        %v662 = vld [vmem:[%s222 + $0xbd8] sm:$0xff]
        %v663 = vld [vmem:[%s222 + $0xbe0] sm:$0xff]
        %v664 = vld [vmem:[%s222 + $0xbe8] sm:$0xff]
        %v665 = vld [vmem:[%s222 + $0xbf0] sm:$0xff]
        %v666 = vld [vmem:[%s222 + $0xbf8] sm:$0xff]
        %v667 = vld [vmem:[%s222 + $0xc00] sm:$0xff]
        %v668 = vld [vmem:[%s222 + $0xc08] sm:$0xff]
        %v669 = vld [vmem:[%s222 + $0xc10] sm:$0xff]
        %v670 = vld [vmem:[%s222 + $0xc18] sm:$0xff]
        %v671 = vld [vmem:[%s222 + $0xc20] sm:$0xff]
        %v672 = vld [vmem:[%s222 + $0xc28] sm:$0xff]
        %v673 = vld [vmem:[%s222 + $0xc30] sm:$0xff]
        %v674 = vld [vmem:[%s222 + $0xc38] sm:$0xff]
        %v675 = vld [vmem:[%s222 + $0xc40] sm:$0xff]
        %v676 = vld [vmem:[%s222 + $0xc48] sm:$0xff]
        %v677 = vld [vmem:[%s222 + $0xc50] sm:$0xff]
        %v678 = vld [vmem:[%s222 + $0xc58] sm:$0xff]
        %v679 = vld [vmem:[%s222 + $0xc60] sm:$0xff]
        %v680 = vld [vmem:[%s222 + $0xc68] sm:$0xff]
        %v681 = vld [vmem:[%s222 + $0xc70] sm:$0xff]
        %v682 = vld [vmem:[%s222 + $0xc78] sm:$0xff]
        %v683 = vld [vmem:[%s222 + $0xc80] sm:$0xff]
        %v684 = vld [vmem:[%s222 + $0xc88] sm:$0xff]
        %v685 = vld [vmem:[%s222 + $0xc90] sm:$0xff]
        %v686 = vld [vmem:[%s222 + $0xc98] sm:$0xff]
        %v687 = vld [vmem:[%s222 + $0xca0] sm:$0xff]
        %v688 = vld [vmem:[%s222 + $0xca8] sm:$0xff]
        %v689 = vld [vmem:[%s222 + $0xcb0] sm:$0xff]
        %v690 = vld [vmem:[%s222 + $0xcb8] sm:$0xff]
        %v691 = vld [vmem:[%s222 + $0xcc0] sm:$0xff]
        %v692 = vld [vmem:[%s222 + $0xcc8] sm:$0xff]
        %v693 = vld [vmem:[%s222 + $0xcd0] sm:$0xff]
        %v694 = vld [vmem:[%s222 + $0xcd8] sm:$0xff]
        %v695 = vld [vmem:[%s222 + $0xce0] sm:$0xff]
        %v696 = vld [vmem:[%s222 + $0xce8] sm:$0xff]
        %v697 = vld [vmem:[%s222 + $0xcf0] sm:$0xff]
        %v698 = vld [vmem:[%s222 + $0xcf8] sm:$0xff]
        %v699 = vld [vmem:[%s222 + $0xd00] sm:$0xff]
        %v700 = vld [vmem:[%s222 + $0xd08] sm:$0xff]
        %v701 = vld [vmem:[%s222 + $0xd10] sm:$0xff]
        %v702 = vld [vmem:[%s222 + $0xd18] sm:$0xff]
        %v703 = vld [vmem:[%s222 + $0xd20] sm:$0xff]
        %v704 = vld [vmem:[%s222 + $0xd28] sm:$0xff]
        %v705 = vld [vmem:[%s222 + $0xd30] sm:$0xff]
        %v706 = vld [vmem:[%s222 + $0xd38] sm:$0xff]
        %v707 = vld [vmem:[%s222 + $0xd40] sm:$0xff]
        %v708 = vld [vmem:[%s222 + $0xd48] sm:$0xff]
        %v709 = vld [vmem:[%s222 + $0xd50] sm:$0xff]
        %v710 = vld [vmem:[%s222 + $0xd58] sm:$0xff]
        %v711 = vld [vmem:[%s222 + $0xd60] sm:$0xff]
        %v712 = vld [vmem:[%s222 + $0xd68] sm:$0xff]
        %v713 = vld [vmem:[%s222 + $0xd70] sm:$0xff]
        %v714 = vld [vmem:[%s222 + $0xd78] sm:$0xff]
        %v715 = vld [vmem:[%s222 + $0xd80] sm:$0xff]
        %v716 = vld [vmem:[%s222 + $0xd88] sm:$0xff]
        %v717 = vld [vmem:[%s222 + $0xd90] sm:$0xff]
        %v718 = vld [vmem:[%s222 + $0xd98] sm:$0xff]
        %v719 = vld [vmem:[%s222 + $0xda0] sm:$0xff]
        %v720 = vld [vmem:[%s222 + $0xda8] sm:$0xff]
        %v721 = vld [vmem:[%s222 + $0xdb0] sm:$0xff]
        %v722 = vld [vmem:[%s222 + $0xdb8] sm:$0xff]
        %v723 = vld [vmem:[%s222 + $0xdc0] sm:$0xff]
        %v724 = vld [vmem:[%s222 + $0xdc8] sm:$0xff]
        %v725 = vld [vmem:[%s222 + $0xdd0] sm:$0xff]
        %v726 = vld [vmem:[%s222 + $0xdd8] sm:$0xff]
        %v727 = vld [vmem:[%s222 + $0xde0] sm:$0xff]
        %v728 = vld [vmem:[%s222 + $0xde8] sm:$0xff]
        %v729 = vld [vmem:[%s222 + $0xdf0] sm:$0xff]
        %v730 = vld [vmem:[%s222 + $0xdf8] sm:$0xff]
        %v731 = vld [vmem:[%s222 + $0xe00] sm:$0xff]
        %v732 = vld [vmem:[%s222 + $0xe08] sm:$0xff]
        %v733 = vld [vmem:[%s222 + $0xe10] sm:$0xff]
        %v734 = vld [vmem:[%s222 + $0xe18] sm:$0xff]
        %v735 = vld [vmem:[%s222 + $0xe20] sm:$0xff]
        %v736 = vld [vmem:[%s222 + $0xe28] sm:$0xff]
        %v737 = vld [vmem:[%s222 + $0xe30] sm:$0xff]
        %v738 = vld [vmem:[%s222 + $0xe38] sm:$0xff]
        %v739 = vld [vmem:[%s222 + $0xe40] sm:$0xff]
        %v740 = vld [vmem:[%s222 + $0xe48] sm:$0xff]
        %v741 = vld [vmem:[%s222 + $0xe50] sm:$0xff]
        %v742 = vld [vmem:[%s222 + $0xe58] sm:$0xff]
        %v743 = vld [vmem:[%s222 + $0xe60] sm:$0xff]
        %v744 = vld [vmem:[%s222 + $0xe68] sm:$0xff]
        %v745 = vld [vmem:[%s222 + $0xe70] sm:$0xff]
        %v746 = vld [vmem:[%s222 + $0xe78] sm:$0xff]
        %v747 = vld [vmem:[%s222 + $0xe80] sm:$0xff]
        %v748 = vld [vmem:[%s222 + $0xe88] sm:$0xff]
        %v749 = vld [vmem:[%s222 + $0xe90] sm:$0xff]
        %v750 = vld [vmem:[%s222 + $0xe98] sm:$0xff]
        %v751 = vld [vmem:[%s222 + $0xea0] sm:$0xff]
        %v752 = vld [vmem:[%s222 + $0xea8] sm:$0xff]
        %v753 = vld [vmem:[%s222 + $0xeb0] sm:$0xff]
        %v754 = vld [vmem:[%s222 + $0xeb8] sm:$0xff]
        %v755 = vld [vmem:[%s222 + $0xec0] sm:$0xff]
        %v756 = vld [vmem:[%s222 + $0xec8] sm:$0xff]
        %v757 = vld [vmem:[%s222 + $0xed0] sm:$0xff]
        %v758 = vld [vmem:[%s222 + $0xed8] sm:$0xff]
        %v759 = vld [vmem:[%s222 + $0xee0] sm:$0xff]
        %v760 = vld [vmem:[%s222 + $0xee8] sm:$0xff]
        %v761 = vld [vmem:[%s222 + $0xef0] sm:$0xff]
        %v762 = vld [vmem:[%s222 + $0xef8] sm:$0xff]
        %v763 = vld [vmem:[%s222 + $0xf00] sm:$0xff]
        %v764 = vld [vmem:[%s222 + $0xf08] sm:$0xff]
        %v765 = vld [vmem:[%s222 + $0xf10] sm:$0xff]
        %v766 = vld [vmem:[%s222 + $0xf18] sm:$0xff]
        %v767 = vld [vmem:[%s222 + $0xf20] sm:$0xff]
        %v768 = vld [vmem:[%s222 + $0xf28] sm:$0xff]
        %v769 = vld [vmem:[%s222 + $0xf30] sm:$0xff]
        %v770 = vld [vmem:[%s222 + $0xf38] sm:$0xff]
        %v771 = vld [vmem:[%s222 + $0xf40] sm:$0xff]
        %v772 = vld [vmem:[%s222 + $0xf48] sm:$0xff]
        %v773 = vld [vmem:[%s222 + $0xf50] sm:$0xff]
        %v774 = vld [vmem:[%s222 + $0xf58] sm:$0xff]
        %v775 = vld [vmem:[%s222 + $0xf60] sm:$0xff]
        %v776 = vld [vmem:[%s222 + $0xf68] sm:$0xff]
        %v777 = vld [vmem:[%s222 + $0xf70] sm:$0xff]
        %v778 = vld [vmem:[%s222 + $0xf78] sm:$0xff]
        %v779 = vld [vmem:[%s222 + $0xf80] sm:$0xff]
        %v780 = vld [vmem:[%s222 + $0xf88] sm:$0xff]
        %v781 = vld [vmem:[%s222 + $0xf90] sm:$0xff]
        %v782 = vld [vmem:[%s222 + $0xf98] sm:$0xff]
        %v783 = vld [vmem:[%s222 + $0xfa0] sm:$0xff]
        %v784 = vld [vmem:[%s222 + $0xfa8] sm:$0xff]
        %v785 = vld [vmem:[%s222 + $0xfb0] sm:$0xff]
        %v786 = vld [vmem:[%s222 + $0xfb8] sm:$0xff]
        %v787 = vld [vmem:[%s222 + $0xfc0] sm:$0xff]
        %v788 = vld [vmem:[%s222 + $0xfc8] sm:$0xff]
        %v789 = vld [vmem:[%s222 + $0xfd0] sm:$0xff]
        %v790 = vld [vmem:[%s222 + $0xfd8] sm:$0xff]
        %v791 = vld [vmem:[%s222 + $0xfe0] sm:$0xff]
        %v792 = vld [vmem:[%s222 + $0xfe8] sm:$0xff]
        %v793 = vld [vmem:[%s222 + $0xff0] sm:$0xff]
        %v794 = vld [vmem:[%s222 + $0xff8] sm:$0xff]
        %vm795 = vcmask 523264
        %v797 = vsel %vm795, %v282, 0
        %v800 = vsel %vm795, %v283, 0
        %v803 = vsel %vm795, %v284, 0
        %v806 = vsel %vm795, %v285, 0
        %v809 = vsel %vm795, %v286, 0
        %v812 = vsel %vm795, %v287, 0
        %v815 = vsel %vm795, %v288, 0
        %v818 = vsel %vm795, %v289, 0
        %v821 = vsel %vm795, %v290, 0
        %v824 = vsel %vm795, %v291, 0
        %v827 = vsel %vm795, %v292, 0
        %v830 = vsel %vm795, %v293, 0
        %v833 = vsel %vm795, %v294, 0
        %v836 = vsel %vm795, %v295, 0
        %v839 = vsel %vm795, %v296, 0
        %v842 = vsel %vm795, %v297, 0
        %v845 = vsel %vm795, %v298, 0
        %v848 = vsel %vm795, %v299, 0
        %v851 = vsel %vm795, %v300, 0
        %v854 = vsel %vm795, %v301, 0
        %v857 = vsel %vm795, %v302, 0
        %v860 = vsel %vm795, %v303, 0
        %v863 = vsel %vm795, %v304, 0
        %v866 = vsel %vm795, %v305, 0
        %v869 = vsel %vm795, %v306, 0
        %v872 = vsel %vm795, %v307, 0
        %v875 = vsel %vm795, %v308, 0
        %v878 = vsel %vm795, %v309, 0
        %v881 = vsel %vm795, %v310, 0
        %v884 = vsel %vm795, %v311, 0
        %v887 = vsel %vm795, %v312, 0
        %v890 = vsel %vm795, %v313, 0
        %v893 = vsel %vm795, %v314, 0
        %v896 = vsel %vm795, %v315, 0
        %v899 = vsel %vm795, %v316, 0
        %v902 = vsel %vm795, %v317, 0
        %v905 = vsel %vm795, %v318, 0
        %v908 = vsel %vm795, %v319, 0
        %v911 = vsel %vm795, %v320, 0
        %v914 = vsel %vm795, %v321, 0
        %v917 = vsel %vm795, %v322, 0
        %v920 = vsel %vm795, %v323, 0
        %v923 = vsel %vm795, %v324, 0
        %v926 = vsel %vm795, %v325, 0
        %v929 = vsel %vm795, %v326, 0
        %v932 = vsel %vm795, %v327, 0
        %v935 = vsel %vm795, %v328, 0
        %v938 = vsel %vm795, %v329, 0
        %v941 = vsel %vm795, %v330, 0
        %v944 = vsel %vm795, %v331, 0
        %v947 = vsel %vm795, %v332, 0
        %v950 = vsel %vm795, %v333, 0
        %v953 = vsel %vm795, %v334, 0
        %v956 = vsel %vm795, %v335, 0
        %v959 = vsel %vm795, %v336, 0
        %v962 = vsel %vm795, %v337, 0
        %v965 = vsel %vm795, %v338, 0
        %v968 = vsel %vm795, %v339, 0
        %v971 = vsel %vm795, %v340, 0
        %v974 = vsel %vm795, %v341, 0
        %v977 = vsel %vm795, %v342, 0
        %v980 = vsel %vm795, %v343, 0
        %v983 = vsel %vm795, %v344, 0
        %v986 = vsel %vm795, %v345, 0
        %v989 = vsel %vm795, %v346, 0
        %v992 = vsel %vm795, %v347, 0
        %v995 = vsel %vm795, %v348, 0
        %v998 = vsel %vm795, %v349, 0
        %v1001 = vsel %vm795, %v350, 0
        %v1004 = vsel %vm795, %v351, 0
        %v1007 = vsel %vm795, %v352, 0
        %v1010 = vsel %vm795, %v353, 0
        %v1013 = vsel %vm795, %v354, 0
        %v1016 = vsel %vm795, %v355, 0
        %v1019 = vsel %vm795, %v356, 0
        %v1022 = vsel %vm795, %v357, 0
        %v1025 = vsel %vm795, %v358, 0
        %v1028 = vsel %vm795, %v359, 0
        %v1031 = vsel %vm795, %v360, 0
        %v1034 = vsel %vm795, %v361, 0
        %v1037 = vsel %vm795, %v362, 0
        %v1040 = vsel %vm795, %v363, 0
        %v1043 = vsel %vm795, %v364, 0
        %v1046 = vsel %vm795, %v365, 0
        %v1049 = vsel %vm795, %v366, 0
        %v1052 = vsel %vm795, %v367, 0
        %v1055 = vsel %vm795, %v368, 0
        %v1058 = vsel %vm795, %v369, 0
        %v1061 = vsel %vm795, %v370, 0
        %v1064 = vsel %vm795, %v371, 0
        %v1067 = vsel %vm795, %v372, 0
        %v1070 = vsel %vm795, %v373, 0
        %v1073 = vsel %vm795, %v374, 0
        %v1076 = vsel %vm795, %v375, 0
        %v1079 = vsel %vm795, %v376, 0
        %v1082 = vsel %vm795, %v377, 0
        %v1085 = vsel %vm795, %v378, 0
        %v1088 = vsel %vm795, %v379, 0
        %v1091 = vsel %vm795, %v380, 0
        %v1094 = vsel %vm795, %v381, 0
        %v1097 = vsel %vm795, %v382, 0
        %v1100 = vsel %vm795, %v383, 0
        %v1103 = vsel %vm795, %v384, 0
        %v1106 = vsel %vm795, %v385, 0
        %v1109 = vsel %vm795, %v386, 0
        %v1112 = vsel %vm795, %v387, 0
        %v1115 = vsel %vm795, %v388, 0
        %v1118 = vsel %vm795, %v389, 0
        %v1121 = vsel %vm795, %v390, 0
        %v1124 = vsel %vm795, %v391, 0
        %v1127 = vsel %vm795, %v392, 0
        %v1130 = vsel %vm795, %v393, 0
        %v1133 = vsel %vm795, %v394, 0
        %v1136 = vsel %vm795, %v395, 0
        %v1139 = vsel %vm795, %v396, 0
        %v1142 = vsel %vm795, %v397, 0
        %v1145 = vsel %vm795, %v398, 0
        %v1148 = vsel %vm795, %v399, 0
        %v1151 = vsel %vm795, %v400, 0
        %v1154 = vsel %vm795, %v401, 0
        %v1157 = vsel %vm795, %v402, 0
        %v1160 = vsel %vm795, %v403, 0
        %v1163 = vsel %vm795, %v404, 0
        %v1166 = vsel %vm795, %v405, 0
        %v1169 = vsel %vm795, %v406, 0
        %v1172 = vsel %vm795, %v407, 0
        %v1175 = vsel %vm795, %v408, 0
        %v1178 = vsel %vm795, %v409, 0
        %v1181 = vsel %vm795, %v410, 0
        %v1184 = vsel %vm795, %v411, 0
        %v1187 = vsel %vm795, %v412, 0
        %v1190 = vsel %vm795, %v413, 0
        %v1193 = vsel %vm795, %v414, 0
        %v1196 = vsel %vm795, %v415, 0
        %v1199 = vsel %vm795, %v416, 0
        %v1202 = vsel %vm795, %v417, 0
        %v1205 = vsel %vm795, %v418, 0
        %v1208 = vsel %vm795, %v419, 0
        %v1211 = vsel %vm795, %v420, 0
        %v1214 = vsel %vm795, %v421, 0
        %v1217 = vsel %vm795, %v422, 0
        %v1220 = vsel %vm795, %v423, 0
        %v1223 = vsel %vm795, %v424, 0
        %v1226 = vsel %vm795, %v425, 0
        %v1229 = vsel %vm795, %v426, 0
        %v1232 = vsel %vm795, %v427, 0
        %v1235 = vsel %vm795, %v428, 0
        %v1238 = vsel %vm795, %v429, 0
        %v1241 = vsel %vm795, %v430, 0
        %v1244 = vsel %vm795, %v431, 0
        %v1247 = vsel %vm795, %v432, 0
        %v1250 = vsel %vm795, %v433, 0
        %v1253 = vsel %vm795, %v434, 0
        %v1256 = vsel %vm795, %v435, 0
        %v1259 = vsel %vm795, %v436, 0
        %v1262 = vsel %vm795, %v437, 0
        %v1265 = vsel %vm795, %v438, 0
        %v1268 = vsel %vm795, %v439, 0
        %v1271 = vsel %vm795, %v440, 0
        %v1274 = vsel %vm795, %v441, 0
        %v1277 = vsel %vm795, %v442, 0
        %v1280 = vsel %vm795, %v443, 0
        %v1283 = vsel %vm795, %v444, 0
        %v1286 = vsel %vm795, %v445, 0
        %v1289 = vsel %vm795, %v446, 0
        %v1292 = vsel %vm795, %v447, 0
        %v1295 = vsel %vm795, %v448, 0
        %v1298 = vsel %vm795, %v449, 0
        %v1301 = vsel %vm795, %v450, 0
        %v1304 = vsel %vm795, %v451, 0
        %v1307 = vsel %vm795, %v452, 0
        %v1310 = vsel %vm795, %v453, 0
        %v1313 = vsel %vm795, %v454, 0
        %v1316 = vsel %vm795, %v455, 0
        %v1319 = vsel %vm795, %v456, 0
        %v1322 = vsel %vm795, %v457, 0
        %v1325 = vsel %vm795, %v458, 0
        %v1328 = vsel %vm795, %v459, 0
        %v1331 = vsel %vm795, %v460, 0
        %v1334 = vsel %vm795, %v461, 0
        %v1337 = vsel %vm795, %v462, 0
        %v1340 = vsel %vm795, %v463, 0
        %v1343 = vsel %vm795, %v464, 0
        %v1346 = vsel %vm795, %v465, 0
        %v1349 = vsel %vm795, %v466, 0
        %v1352 = vsel %vm795, %v467, 0
        %v1355 = vsel %vm795, %v468, 0
        %v1358 = vsel %vm795, %v469, 0
        %v1361 = vsel %vm795, %v470, 0
        %v1364 = vsel %vm795, %v471, 0
        %v1367 = vsel %vm795, %v472, 0
        %v1370 = vsel %vm795, %v473, 0
        %v1373 = vsel %vm795, %v474, 0
        %v1376 = vsel %vm795, %v475, 0
        %v1379 = vsel %vm795, %v476, 0
        %v1382 = vsel %vm795, %v477, 0
        %v1385 = vsel %vm795, %v478, 0
        %v1388 = vsel %vm795, %v479, 0
        %v1391 = vsel %vm795, %v480, 0
        %v1394 = vsel %vm795, %v481, 0
        %v1397 = vsel %vm795, %v482, 0
        %v1400 = vsel %vm795, %v483, 0
        %v1403 = vsel %vm795, %v484, 0
        %v1406 = vsel %vm795, %v485, 0
        %v1409 = vsel %vm795, %v486, 0
        %v1412 = vsel %vm795, %v487, 0
        %v1415 = vsel %vm795, %v488, 0
        %v1418 = vsel %vm795, %v489, 0
        %v1421 = vsel %vm795, %v490, 0
        %v1424 = vsel %vm795, %v491, 0
        %v1427 = vsel %vm795, %v492, 0
        %v1430 = vsel %vm795, %v493, 0
        %v1433 = vsel %vm795, %v494, 0
        %v1436 = vsel %vm795, %v495, 0
        %v1439 = vsel %vm795, %v496, 0
        %v1442 = vsel %vm795, %v497, 0
        %v1445 = vsel %vm795, %v498, 0
        %v1448 = vsel %vm795, %v499, 0
        %v1451 = vsel %vm795, %v500, 0
        %v1454 = vsel %vm795, %v501, 0
        %v1457 = vsel %vm795, %v502, 0
        %v1460 = vsel %vm795, %v503, 0
        %v1463 = vsel %vm795, %v504, 0
        %v1466 = vsel %vm795, %v505, 0
        %v1469 = vsel %vm795, %v506, 0
        %v1472 = vsel %vm795, %v507, 0
        %v1475 = vsel %vm795, %v508, 0
        %v1478 = vsel %vm795, %v509, 0
        %v1481 = vsel %vm795, %v510, 0
        %v1484 = vsel %vm795, %v511, 0
        %v1487 = vsel %vm795, %v512, 0
        %v1490 = vsel %vm795, %v513, 0
        %v1493 = vsel %vm795, %v514, 0
        %v1496 = vsel %vm795, %v515, 0
        %v1499 = vsel %vm795, %v516, 0
        %v1502 = vsel %vm795, %v517, 0
        %v1505 = vsel %vm795, %v518, 0
        %v1508 = vsel %vm795, %v519, 0
        %v1511 = vsel %vm795, %v520, 0
        %v1514 = vsel %vm795, %v521, 0
        %v1517 = vsel %vm795, %v522, 0
        %v1520 = vsel %vm795, %v523, 0
        %v1523 = vsel %vm795, %v524, 0
        %v1526 = vsel %vm795, %v525, 0
        %v1529 = vsel %vm795, %v526, 0
        %v1532 = vsel %vm795, %v527, 0
        %v1535 = vsel %vm795, %v528, 0
        %v1538 = vsel %vm795, %v529, 0
        %v1541 = vsel %vm795, %v530, 0
        %v1544 = vsel %vm795, %v531, 0
        %v1547 = vsel %vm795, %v532, 0
        %v1550 = vsel %vm795, %v533, 0
        %v1553 = vsel %vm795, %v534, 0
        %v1556 = vsel %vm795, %v535, 0
        %v1559 = vsel %vm795, %v536, 0
        %v1562 = vsel %vm795, %v537, 0
        %v1565 = vsel %vm795, %v538, 0
        %v1568 = vsel %vm795, %v539, 0
        %v1571 = vsel %vm795, %v540, 0
        %v1574 = vsel %vm795, %v541, 0
        %v1577 = vsel %vm795, %v542, 0
        %v1580 = vsel %vm795, %v543, 0
        %v1583 = vsel %vm795, %v544, 0
        %v1586 = vsel %vm795, %v545, 0
        %v1589 = vsel %vm795, %v546, 0
        %v1592 = vsel %vm795, %v547, 0
        %v1595 = vsel %vm795, %v548, 0
        %v1598 = vsel %vm795, %v549, 0
        %v1601 = vsel %vm795, %v550, 0
        %v1604 = vsel %vm795, %v551, 0
        %v1607 = vsel %vm795, %v552, 0
        %v1610 = vsel %vm795, %v553, 0
        %v1613 = vsel %vm795, %v554, 0
        %v1616 = vsel %vm795, %v555, 0
        %v1619 = vsel %vm795, %v556, 0
        %v1622 = vsel %vm795, %v557, 0
        %v1625 = vsel %vm795, %v558, 0
        %v1628 = vsel %vm795, %v559, 0
        %v1631 = vsel %vm795, %v560, 0
        %v1634 = vsel %vm795, %v561, 0
        %v1637 = vsel %vm795, %v562, 0
        %v1640 = vsel %vm795, %v563, 0
        %v1643 = vsel %vm795, %v564, 0
        %v1646 = vsel %vm795, %v565, 0
        %v1649 = vsel %vm795, %v566, 0
        %v1652 = vsel %vm795, %v567, 0
        %v1655 = vsel %vm795, %v568, 0
        %v1658 = vsel %vm795, %v569, 0
        %v1661 = vsel %vm795, %v570, 0
        %v1664 = vsel %vm795, %v571, 0
        %v1667 = vsel %vm795, %v572, 0
        %v1670 = vsel %vm795, %v573, 0
        %v1673 = vsel %vm795, %v574, 0
        %v1676 = vsel %vm795, %v575, 0
        %v1679 = vsel %vm795, %v576, 0
        %v1682 = vsel %vm795, %v577, 0
        %v1685 = vsel %vm795, %v578, 0
        %v1688 = vsel %vm795, %v579, 0
        %v1691 = vsel %vm795, %v580, 0
        %v1694 = vsel %vm795, %v581, 0
        %v1697 = vsel %vm795, %v582, 0
        %v1700 = vsel %vm795, %v583, 0
        %v1703 = vsel %vm795, %v584, 0
        %v1706 = vsel %vm795, %v585, 0
        %v1709 = vsel %vm795, %v586, 0
        %v1712 = vsel %vm795, %v587, 0
        %v1715 = vsel %vm795, %v588, 0
        %v1718 = vsel %vm795, %v589, 0
        %v1721 = vsel %vm795, %v590, 0
        %v1724 = vsel %vm795, %v591, 0
        %v1727 = vsel %vm795, %v592, 0
        %v1730 = vsel %vm795, %v593, 0
        %v1733 = vsel %vm795, %v594, 0
        %v1736 = vsel %vm795, %v595, 0
        %v1739 = vsel %vm795, %v596, 0
        %v1742 = vsel %vm795, %v597, 0
        %v1745 = vsel %vm795, %v598, 0
        %v1748 = vsel %vm795, %v599, 0
        %v1751 = vsel %vm795, %v600, 0
        %v1754 = vsel %vm795, %v601, 0
        %v1757 = vsel %vm795, %v602, 0
        %v1760 = vsel %vm795, %v603, 0
        %v1763 = vsel %vm795, %v604, 0
        %v1766 = vsel %vm795, %v605, 0
        %v1769 = vsel %vm795, %v606, 0
        %v1772 = vsel %vm795, %v607, 0
        %v1775 = vsel %vm795, %v608, 0
        %v1778 = vsel %vm795, %v609, 0
        %v1781 = vsel %vm795, %v610, 0
        %v1784 = vsel %vm795, %v611, 0
        %v1787 = vsel %vm795, %v612, 0
        %v1790 = vsel %vm795, %v613, 0
        %v1793 = vsel %vm795, %v614, 0
        %v1796 = vsel %vm795, %v615, 0
        %v1799 = vsel %vm795, %v616, 0
        %v1802 = vsel %vm795, %v617, 0
        %v1805 = vsel %vm795, %v618, 0
        %v1808 = vsel %vm795, %v619, 0
        %v1811 = vsel %vm795, %v620, 0
        %v1814 = vsel %vm795, %v621, 0
        %v1817 = vsel %vm795, %v622, 0
        %v1820 = vsel %vm795, %v623, 0
        %v1823 = vsel %vm795, %v624, 0
        %v1826 = vsel %vm795, %v625, 0
        %v1829 = vsel %vm795, %v626, 0
        %v1832 = vsel %vm795, %v627, 0
        %v1835 = vsel %vm795, %v628, 0
        %v1838 = vsel %vm795, %v629, 0
        %v1841 = vsel %vm795, %v630, 0
        %v1844 = vsel %vm795, %v631, 0
        %v1847 = vsel %vm795, %v632, 0
        %v1850 = vsel %vm795, %v633, 0
        %v1853 = vsel %vm795, %v634, 0
        %v1856 = vsel %vm795, %v635, 0
        %v1859 = vsel %vm795, %v636, 0
        %v1862 = vsel %vm795, %v637, 0
        %v1865 = vsel %vm795, %v638, 0
        %v1868 = vsel %vm795, %v639, 0
        %v1871 = vsel %vm795, %v640, 0
        %v1874 = vsel %vm795, %v641, 0
        %v1877 = vsel %vm795, %v642, 0
        %v1880 = vsel %vm795, %v643, 0
        %v1883 = vsel %vm795, %v644, 0
        %v1886 = vsel %vm795, %v645, 0
        %v1889 = vsel %vm795, %v646, 0
        %v1892 = vsel %vm795, %v647, 0
        %v1895 = vsel %vm795, %v648, 0
        %v1898 = vsel %vm795, %v649, 0
        %v1901 = vsel %vm795, %v650, 0
        %v1904 = vsel %vm795, %v651, 0
        %v1907 = vsel %vm795, %v652, 0
        %v1910 = vsel %vm795, %v653, 0
        %v1913 = vsel %vm795, %v654, 0
        %v1916 = vsel %vm795, %v655, 0
        %v1919 = vsel %vm795, %v656, 0
        %v1922 = vsel %vm795, %v657, 0
        %v1925 = vsel %vm795, %v658, 0
        %v1928 = vsel %vm795, %v659, 0
        %v1931 = vsel %vm795, %v660, 0
        %v1934 = vsel %vm795, %v661, 0
        %v1937 = vsel %vm795, %v662, 0
        %v1940 = vsel %vm795, %v663, 0
        %v1943 = vsel %vm795, %v664, 0
        %v1946 = vsel %vm795, %v665, 0
        %v1949 = vsel %vm795, %v666, 0
        %v1952 = vsel %vm795, %v667, 0
        %v1955 = vsel %vm795, %v668, 0
        %v1958 = vsel %vm795, %v669, 0
        %v1961 = vsel %vm795, %v670, 0
        %v1964 = vsel %vm795, %v671, 0
        %v1967 = vsel %vm795, %v672, 0
        %v1970 = vsel %vm795, %v673, 0
        %v1973 = vsel %vm795, %v674, 0
        %v1976 = vsel %vm795, %v675, 0
        %v1979 = vsel %vm795, %v676, 0
        %v1982 = vsel %vm795, %v677, 0
        %v1985 = vsel %vm795, %v678, 0
        %v1988 = vsel %vm795, %v679, 0
        %v1991 = vsel %vm795, %v680, 0
        %v1994 = vsel %vm795, %v681, 0
        %v1997 = vsel %vm795, %v682, 0
        %v2000 = vsel %vm795, %v683, 0
        %v2003 = vsel %vm795, %v684, 0
        %v2006 = vsel %vm795, %v685, 0
        %v2009 = vsel %vm795, %v686, 0
        %v2012 = vsel %vm795, %v687, 0
        %v2015 = vsel %vm795, %v688, 0
        %v2018 = vsel %vm795, %v689, 0
        %v2021 = vsel %vm795, %v690, 0
        %v2024 = vsel %vm795, %v691, 0
        %v2027 = vsel %vm795, %v692, 0
        %v2030 = vsel %vm795, %v693, 0
        %v2033 = vsel %vm795, %v694, 0
        %v2036 = vsel %vm795, %v695, 0
        %v2039 = vsel %vm795, %v696, 0
        %v2042 = vsel %vm795, %v697, 0
        %v2045 = vsel %vm795, %v698, 0
        %v2048 = vsel %vm795, %v699, 0
        %v2051 = vsel %vm795, %v700, 0
        %v2054 = vsel %vm795, %v701, 0
        %v2057 = vsel %vm795, %v702, 0
        %v2060 = vsel %vm795, %v703, 0
        %v2063 = vsel %vm795, %v704, 0
        %v2066 = vsel %vm795, %v705, 0
        %v2069 = vsel %vm795, %v706, 0
        %v2072 = vsel %vm795, %v707, 0
        %v2075 = vsel %vm795, %v708, 0
        %v2078 = vsel %vm795, %v709, 0
        %v2081 = vsel %vm795, %v710, 0
        %v2084 = vsel %vm795, %v711, 0
        %v2087 = vsel %vm795, %v712, 0
        %v2090 = vsel %vm795, %v713, 0
        %v2093 = vsel %vm795, %v714, 0
        %v2096 = vsel %vm795, %v715, 0
        %v2099 = vsel %vm795, %v716, 0
        %v2102 = vsel %vm795, %v717, 0
        %v2105 = vsel %vm795, %v718, 0
        %v2108 = vsel %vm795, %v719, 0
        %v2111 = vsel %vm795, %v720, 0
        %v2114 = vsel %vm795, %v721, 0
        %v2117 = vsel %vm795, %v722, 0
        %v2120 = vsel %vm795, %v723, 0
        %v2123 = vsel %vm795, %v724, 0
        %v2126 = vsel %vm795, %v725, 0
        %v2129 = vsel %vm795, %v726, 0
        %v2132 = vsel %vm795, %v727, 0
        %v2135 = vsel %vm795, %v728, 0
        %v2138 = vsel %vm795, %v729, 0
        %v2141 = vsel %vm795, %v730, 0
        %v2144 = vsel %vm795, %v731, 0
        %v2147 = vsel %vm795, %v732, 0
        %v2150 = vsel %vm795, %v733, 0
        %v2153 = vsel %vm795, %v734, 0
        %v2156 = vsel %vm795, %v735, 0
        %v2159 = vsel %vm795, %v736, 0
        %v2162 = vsel %vm795, %v737, 0
        %v2165 = vsel %vm795, %v738, 0
        %v2168 = vsel %vm795, %v739, 0
        %v2171 = vsel %vm795, %v740, 0
        %v2174 = vsel %vm795, %v741, 0
        %v2177 = vsel %vm795, %v742, 0
        %v2180 = vsel %vm795, %v743, 0
        %v2183 = vsel %vm795, %v744, 0
        %v2186 = vsel %vm795, %v745, 0
        %v2189 = vsel %vm795, %v746, 0
        %v2192 = vsel %vm795, %v747, 0
        %v2195 = vsel %vm795, %v748, 0
        %v2198 = vsel %vm795, %v749, 0
        %v2201 = vsel %vm795, %v750, 0
        %v2204 = vsel %vm795, %v751, 0
        %v2207 = vsel %vm795, %v752, 0
        %v2210 = vsel %vm795, %v753, 0
        %v2213 = vsel %vm795, %v754, 0
        %v2216 = vsel %vm795, %v755, 0
        %v2219 = vsel %vm795, %v756, 0
        %v2222 = vsel %vm795, %v757, 0
        %v2225 = vsel %vm795, %v758, 0
        %v2228 = vsel %vm795, %v759, 0
        %v2231 = vsel %vm795, %v760, 0
        %v2234 = vsel %vm795, %v761, 0
        %v2237 = vsel %vm795, %v762, 0
        %v2240 = vsel %vm795, %v763, 0
        %v2243 = vsel %vm795, %v764, 0
        %v2246 = vsel %vm795, %v765, 0
        %v2249 = vsel %vm795, %v766, 0
        %v2252 = vsel %vm795, %v767, 0
        %v2255 = vsel %vm795, %v768, 0
        %v2258 = vsel %vm795, %v769, 0
        %v2261 = vsel %vm795, %v770, 0
        %v2264 = vsel %vm795, %v771, 0
        %v2267 = vsel %vm795, %v772, 0
        %v2270 = vsel %vm795, %v773, 0
        %v2273 = vsel %vm795, %v774, 0
        %v2276 = vsel %vm795, %v775, 0
        %v2279 = vsel %vm795, %v776, 0
        %v2282 = vsel %vm795, %v777, 0
        %v2285 = vsel %vm795, %v778, 0
        %v2288 = vsel %vm795, %v779, 0
        %v2291 = vsel %vm795, %v780, 0
        %v2294 = vsel %vm795, %v781, 0
        %v2297 = vsel %vm795, %v782, 0
        %v2300 = vsel %vm795, %v783, 0
        %v2303 = vsel %vm795, %v784, 0
        %v2306 = vsel %vm795, %v785, 0
        %v2309 = vsel %vm795, %v786, 0
        %v2312 = vsel %vm795, %v787, 0
        %v2315 = vsel %vm795, %v788, 0
        %v2318 = vsel %vm795, %v789, 0
        %v2321 = vsel %vm795, %v790, 0
        %v2324 = vsel %vm795, %v791, 0
        %v2327 = vsel %vm795, %v792, 0
        %v2330 = vsel %vm795, %v793, 0
        %v2333 = vsel %vm795, %v794, 0
        %2335 = vmatprep.subr.mxu0 0.0
        %2336 = vmatpush1.xpose.msra.mxu0 %v800
        %2337 = vmatprep.subr.mxu0 0.0
        %2338 = vmatpush1.xpose.msra.mxu0 %v803
        %2339 = vmatprep.subr.mxu0 0.0
        %2340 = vmatpush1.xpose.msra.mxu0 %v806
        %2341 = vmatprep.subr.mxu0 0.0
        %2342 = vmatpush1.xpose.msra.mxu0 %v809
        %2343 = vmatprep.subr.mxu0 0.0
        %2344 = vmatpush1.xpose.msra.mxu0 %v812
        %2345 = vmatprep.subr.mxu0 0.0
        %2346 = vmatpush1.xpose.msra.mxu0 %v815
        %2347 = vmatprep.subr.mxu0 0.0
        %2348 = vmatpush1.xpose.msra.mxu0 %v818
        %2349 = vmatprep.subr.mxu0 0.0
        %2350 = vmatpush1.xpose.msra.mxu0 %v821
        %2351 = vmatprep.subr.mxu0 0.0
        %2352 = vmatpush1.xpose.msra.mxu0 %v824
        %2353 = vmatprep.subr.mxu0 0.0
        %2354 = vmatpush1.xpose.msra.mxu0 %v827
        %2355 = vmatprep.subr.mxu0 0.0
        %2356 = vmatpush1.xpose.msra.mxu0 %v830
        %2357 = vmatprep.subr.mxu0 0.0
        %2358 = vmatpush1.xpose.msra.mxu0 %v833
        %2359 = vmatprep.subr.mxu0 0.0
        %2360 = vmatpush1.xpose.msra.mxu0 %v836
        %2361 = vmatprep.subr.mxu0 0.0
        %2362 = vmatpush1.xpose.msra.mxu0 %v839
        %2363 = vmatprep.subr.mxu0 0.0
        %2364 = vmatpush1.xpose.msra.mxu0 %v842
        %2365 = vmatprep.subr.mxu0 0.0
        %2366 = vmatpush1.xpose.msra.mxu0 %v845
        %2367 = vmatprep.subr.mxu0 0.0
        %2368 = vmatpush1.xpose.msra.mxu0 %v848
        %2369 = vmatprep.subr.mxu0 0.0
        %2370 = vmatpush1.xpose.msra.mxu0 %v851
        %2371 = vmatprep.subr.mxu0 0.0
        %2372 = vmatpush1.xpose.msra.mxu0 %v854
        %2373 = vmatprep.subr.mxu0 0.0
        %2374 = vmatpush1.xpose.msra.mxu0 %v857
        %2375 = vmatprep.subr.mxu0 0.0
        %2376 = vmatpush1.xpose.msra.mxu0 %v860
        %2377 = vmatprep.subr.mxu0 0.0
        %2378 = vmatpush1.xpose.msra.mxu0 %v863
        %2379 = vmatprep.subr.mxu0 0.0
        %2380 = vmatpush1.xpose.msra.mxu0 %v866
        %2381 = vmatprep.subr.mxu0 0.0
        %2382 = vmatpush1.xpose.msra.mxu0 %v869
        %2383 = vmatprep.subr.mxu0 0.0
        %2384 = vmatpush1.xpose.msra.mxu0 %v872
        %2385 = vmatprep.subr.mxu0 0.0
        %2386 = vmatpush1.xpose.msra.mxu0 %v875
        %2387 = vmatprep.subr.mxu0 0.0
        %2388 = vmatpush1.xpose.msra.mxu0 %v878
        %2389 = vmatprep.subr.mxu0 0.0
        %2390 = vmatpush1.xpose.msra.mxu0 %v881
        %2391 = vmatprep.subr.mxu0 0.0
        %2392 = vmatpush1.xpose.msra.mxu0 %v884
        %2393 = vmatprep.subr.mxu0 0.0
        %2394 = vmatpush1.xpose.msra.mxu0 %v887
        %2395 = vmatprep.subr.mxu0 0.0
        %2396 = vmatpush1.xpose.msra.mxu0 %v890
        %2397 = vmatprep.subr.mxu0 0.0
        %2398 = vmatpush1.xpose.msra.mxu0 %v893
        %2399 = vmatprep.mubr.f32.mxu0 0.0
        %2400 = vmatmul.mubr.f32.gmra.mrb[0].mxu0 %v797
        %v2401 = vpop.f32.mrb[0].mxu0
        %v2402 = vadd.f32 0.0, %v2401
        %v2403 = vpop.f32.mrb[0].mxu0
        %v2404 = vadd.f32 0.0, %v2403
        %2405 = vdwg.mxu0
        %2406 = vmatprep.subr.mxu0 0.0
        %2407 = vmatpush1.xpose.msra.mxu0 %v896
        %2408 = vmatprep.subr.mxu0 0.0
        %2409 = vmatpush1.xpose.msra.mxu0 %v899
        %2410 = vmatprep.subr.mxu0 0.0
        %2411 = vmatpush1.xpose.msra.mxu0 %v902
        %2412 = vmatprep.subr.mxu0 0.0
        %2413 = vmatpush1.xpose.msra.mxu0 %v905
        %2414 = vmatprep.subr.mxu0 0.0
        %2415 = vmatpush1.xpose.msra.mxu0 %v908
        %2416 = vmatprep.subr.mxu0 0.0
        %2417 = vmatpush1.xpose.msra.mxu0 %v911
        %2418 = vmatprep.subr.mxu0 0.0
        %2419 = vmatpush1.xpose.msra.mxu0 %v914
        %2420 = vmatprep.subr.mxu0 0.0
        %2421 = vmatpush1.xpose.msra.mxu0 %v917
        %2422 = vmatprep.subr.mxu0 0.0
        %2423 = vmatpush1.xpose.msra.mxu0 %v920
        %2424 = vmatprep.subr.mxu0 0.0
        %2425 = vmatpush1.xpose.msra.mxu0 %v923
        %2426 = vmatprep.subr.mxu0 0.0
        %2427 = vmatpush1.xpose.msra.mxu0 %v926
        %2428 = vmatprep.subr.mxu0 0.0
        %2429 = vmatpush1.xpose.msra.mxu0 %v929
        %2430 = vmatprep.subr.mxu0 0.0
        %2431 = vmatpush1.xpose.msra.mxu0 %v932
        %2432 = vmatprep.subr.mxu0 0.0
        %2433 = vmatpush1.xpose.msra.mxu0 %v935
        %2434 = vmatprep.subr.mxu0 0.0
        %2435 = vmatpush1.xpose.msra.mxu0 %v938
        %2436 = vmatprep.subr.mxu0 0.0
        %2437 = vmatpush1.xpose.msra.mxu0 %v941
        %2438 = vmatprep.subr.mxu0 0.0
        %2439 = vmatpush1.xpose.msra.mxu0 %v944
        %2440 = vmatprep.subr.mxu0 0.0
        %2441 = vmatpush1.xpose.msra.mxu0 %v947
        %2442 = vmatprep.subr.mxu0 0.0
        %2443 = vmatpush1.xpose.msra.mxu0 %v950
        %2444 = vmatprep.subr.mxu0 0.0
        %2445 = vmatpush1.xpose.msra.mxu0 %v953
        %2446 = vmatprep.subr.mxu0 0.0
        %2447 = vmatpush1.xpose.msra.mxu0 %v956
        %2448 = vmatprep.subr.mxu0 0.0
        %2449 = vmatpush1.xpose.msra.mxu0 %v959
        %2450 = vmatprep.subr.mxu0 0.0
        %2451 = vmatpush1.xpose.msra.mxu0 %v962
        %2452 = vmatprep.subr.mxu0 0.0
        %2453 = vmatpush1.xpose.msra.mxu0 %v965
        %2454 = vmatprep.subr.mxu0 0.0
        %2455 = vmatpush1.xpose.msra.mxu0 %v968
        %2456 = vmatprep.subr.mxu0 0.0
        %2457 = vmatpush1.xpose.msra.mxu0 %v971
        %2458 = vmatprep.subr.mxu0 0.0
        %2459 = vmatpush1.xpose.msra.mxu0 %v974
        %2460 = vmatprep.subr.mxu0 0.0
        %2461 = vmatpush1.xpose.msra.mxu0 %v977
        %2462 = vmatprep.subr.mxu0 0.0
        %2463 = vmatpush1.xpose.msra.mxu0 %v980
        %2464 = vmatprep.subr.mxu0 0.0
        %2465 = vmatpush1.xpose.msra.mxu0 %v983
        %2466 = vmatprep.subr.mxu0 0.0
        %2467 = vmatpush1.xpose.msra.mxu0 %v986
        %2468 = vmatprep.subr.mxu0 0.0
        %2469 = vmatpush1.xpose.msra.mxu0 %v989
        %2470 = vmatprep.mubr.f32.mxu0 0.0
        %2471 = vmatmul.mubr.f32.gmra.mrb[0].mxu0 %v797
        %v2472 = vpop.f32.mrb[0].mxu0
        %v2473 = vadd.f32 0.0, %v2472
        %v2474 = vpop.f32.mrb[0].mxu0
        %v2475 = vadd.f32 0.0, %v2474
        %2476 = vdwg.mxu0
        %2477 = vmatprep.subr.mxu0 0.0
        %2478 = vmatpush1.xpose.msra.mxu0 %v992
        %2479 = vmatprep.subr.mxu0 0.0
        %2480 = vmatpush1.xpose.msra.mxu0 %v995
        %2481 = vmatprep.subr.mxu0 0.0
        %2482 = vmatpush1.xpose.msra.mxu0 %v998
        %2483 = vmatprep.subr.mxu0 0.0
        %2484 = vmatpush1.xpose.msra.mxu0 %v1001
        %2485 = vmatprep.subr.mxu0 0.0
        %2486 = vmatpush1.xpose.msra.mxu0 %v1004
        %2487 = vmatprep.subr.mxu0 0.0
        %2488 = vmatpush1.xpose.msra.mxu0 %v1007
        %2489 = vmatprep.subr.mxu0 0.0
        %2490 = vmatpush1.xpose.msra.mxu0 %v1010
        %2491 = vmatprep.subr.mxu0 0.0
        %2492 = vmatpush1.xpose.msra.mxu0 %v1013
        %2493 = vmatprep.subr.mxu0 0.0
        %2494 = vmatpush1.xpose.msra.mxu0 %v1016
        %2495 = vmatprep.subr.mxu0 0.0
        %2496 = vmatpush1.xpose.msra.mxu0 %v1019
        %2497 = vmatprep.subr.mxu0 0.0
        %2498 = vmatpush1.xpose.msra.mxu0 %v1022
        %2499 = vmatprep.subr.mxu0 0.0
        %2500 = vmatpush1.xpose.msra.mxu0 %v1025
        %2501 = vmatprep.subr.mxu0 0.0
        %2502 = vmatpush1.xpose.msra.mxu0 %v1028
        %2503 = vmatprep.subr.mxu0 0.0
        %2504 = vmatpush1.xpose.msra.mxu0 %v1031
        %2505 = vmatprep.subr.mxu0 0.0
        %2506 = vmatpush1.xpose.msra.mxu0 %v1034
        %2507 = vmatprep.subr.mxu0 0.0
        %2508 = vmatpush1.xpose.msra.mxu0 %v1037
        %2509 = vmatprep.subr.mxu0 0.0
        %2510 = vmatpush1.xpose.msra.mxu0 %v1040
        %2511 = vmatprep.subr.mxu0 0.0
        %2512 = vmatpush1.xpose.msra.mxu0 %v1043
        %2513 = vmatprep.subr.mxu0 0.0
        %2514 = vmatpush1.xpose.msra.mxu0 %v1046
        %2515 = vmatprep.subr.mxu0 0.0
        %2516 = vmatpush1.xpose.msra.mxu0 %v1049
        %2517 = vmatprep.subr.mxu0 0.0
        %2518 = vmatpush1.xpose.msra.mxu0 %v1052
        %2519 = vmatprep.subr.mxu0 0.0
        %2520 = vmatpush1.xpose.msra.mxu0 %v1055
        %2521 = vmatprep.subr.mxu0 0.0
        %2522 = vmatpush1.xpose.msra.mxu0 %v1058
        %2523 = vmatprep.subr.mxu0 0.0
        %2524 = vmatpush1.xpose.msra.mxu0 %v1061
        %2525 = vmatprep.subr.mxu0 0.0
        %2526 = vmatpush1.xpose.msra.mxu0 %v1064
        %2527 = vmatprep.subr.mxu0 0.0
        %2528 = vmatpush1.xpose.msra.mxu0 %v1067
        %2529 = vmatprep.subr.mxu0 0.0
        %2530 = vmatpush1.xpose.msra.mxu0 %v1070
        %2531 = vmatprep.subr.mxu0 0.0
        %2532 = vmatpush1.xpose.msra.mxu0 %v1073
        %2533 = vmatprep.subr.mxu0 0.0
        %2534 = vmatpush1.xpose.msra.mxu0 %v1076
        %2535 = vmatprep.subr.mxu0 0.0
        %2536 = vmatpush1.xpose.msra.mxu0 %v1079
        %2537 = vmatprep.subr.mxu0 0.0
        %2538 = vmatpush1.xpose.msra.mxu0 %v1082
        %2539 = vmatprep.subr.mxu0 0.0
        %2540 = vmatpush1.xpose.msra.mxu0 %v1085
        %2541 = vmatprep.mubr.f32.mxu0 0.0
        %2542 = vmatmul.mubr.f32.gmra.mrb[0].mxu0 %v797
        %v2543 = vpop.f32.mrb[0].mxu0
        %v2544 = vadd.f32 0.0, %v2543
        %v2545 = vpop.f32.mrb[0].mxu0
        %v2546 = vadd.f32 0.0, %v2545
        %2547 = vdwg.mxu0
        %2548 = vmatprep.subr.mxu0 0.0
        %2549 = vmatpush1.xpose.msra.mxu0 %v1088
        %2550 = vmatprep.subr.mxu0 0.0
        %2551 = vmatpush1.xpose.msra.mxu0 %v1091
        %2552 = vmatprep.subr.mxu0 0.0
        %2553 = vmatpush1.xpose.msra.mxu0 %v1094
        %2554 = vmatprep.subr.mxu0 0.0
        %2555 = vmatpush1.xpose.msra.mxu0 %v1097
        %2556 = vmatprep.subr.mxu0 0.0
        %2557 = vmatpush1.xpose.msra.mxu0 %v1100
        %2558 = vmatprep.subr.mxu0 0.0
        %2559 = vmatpush1.xpose.msra.mxu0 %v1103
        %2560 = vmatprep.subr.mxu0 0.0
        %2561 = vmatpush1.xpose.msra.mxu0 %v1106
        %2562 = vmatprep.subr.mxu0 0.0
        %2563 = vmatpush1.xpose.msra.mxu0 %v1109
        %2564 = vmatprep.subr.mxu0 0.0
        %2565 = vmatpush1.xpose.msra.mxu0 %v1112
        %2566 = vmatprep.subr.mxu0 0.0
        %2567 = vmatpush1.xpose.msra.mxu0 %v1115
        %2568 = vmatprep.subr.mxu0 0.0
        %2569 = vmatpush1.xpose.msra.mxu0 %v1118
        %2570 = vmatprep.subr.mxu0 0.0
        %2571 = vmatpush1.xpose.msra.mxu0 %v1121
        %2572 = vmatprep.subr.mxu0 0.0
        %2573 = vmatpush1.xpose.msra.mxu0 %v1124
        %2574 = vmatprep.subr.mxu0 0.0
        %2575 = vmatpush1.xpose.msra.mxu0 %v1127
        %2576 = vmatprep.subr.mxu0 0.0
        %2577 = vmatpush1.xpose.msra.mxu0 %v1130
        %2578 = vmatprep.subr.mxu0 0.0
        %2579 = vmatpush1.xpose.msra.mxu0 %v1133
        %2580 = vmatprep.subr.mxu0 0.0
        %2581 = vmatpush1.xpose.msra.mxu0 %v1136
        %2582 = vmatprep.subr.mxu0 0.0
        %2583 = vmatpush1.xpose.msra.mxu0 %v1139
        %2584 = vmatprep.subr.mxu0 0.0
        %2585 = vmatpush1.xpose.msra.mxu0 %v1142
        %2586 = vmatprep.subr.mxu0 0.0
        %2587 = vmatpush1.xpose.msra.mxu0 %v1145
        %2588 = vmatprep.subr.mxu0 0.0
        %2589 = vmatpush1.xpose.msra.mxu0 %v1148
        %2590 = vmatprep.subr.mxu0 0.0
        %2591 = vmatpush1.xpose.msra.mxu0 %v1151
        %2592 = vmatprep.subr.mxu0 0.0
        %2593 = vmatpush1.xpose.msra.mxu0 %v1154
        %2594 = vmatprep.subr.mxu0 0.0
        %2595 = vmatpush1.xpose.msra.mxu0 %v1157
        %2596 = vmatprep.subr.mxu0 0.0
        %2597 = vmatpush1.xpose.msra.mxu0 %v1160
        %2598 = vmatprep.subr.mxu0 0.0
        %2599 = vmatpush1.xpose.msra.mxu0 %v1163
        %2600 = vmatprep.subr.mxu0 0.0
        %2601 = vmatpush1.xpose.msra.mxu0 %v1166
        %2602 = vmatprep.subr.mxu0 0.0
        %2603 = vmatpush1.xpose.msra.mxu0 %v1169
        %2604 = vmatprep.subr.mxu0 0.0
        %2605 = vmatpush1.xpose.msra.mxu0 %v1172
        %2606 = vmatprep.subr.mxu0 0.0
        %2607 = vmatpush1.xpose.msra.mxu0 %v1175
        %2608 = vmatprep.subr.mxu0 0.0
        %2609 = vmatpush1.xpose.msra.mxu0 %v1178
        %2610 = vmatprep.subr.mxu0 0.0
        %2611 = vmatpush1.xpose.msra.mxu0 %v1181
        %2612 = vmatprep.mubr.f32.mxu0 0.0
        %2613 = vmatmul.mubr.f32.gmra.mrb[0].mxu0 %v797
        %v2614 = vpop.f32.mrb[0].mxu0
        %v2615 = vadd.f32 0.0, %v2614
        %v2616 = vpop.f32.mrb[0].mxu0
        %v2617 = vadd.f32 0.0, %v2616
        %2618 = vdwg.mxu0
        %2619 = vmatprep.subr.mxu0 0.0
        %2620 = vmatpush1.xpose.msra.mxu0 %v1184
        %2621 = vmatprep.subr.mxu0 0.0
        %2622 = vmatpush1.xpose.msra.mxu0 %v1187
        %2623 = vmatprep.subr.mxu0 0.0
        %2624 = vmatpush1.xpose.msra.mxu0 %v1190
        %2625 = vmatprep.subr.mxu0 0.0
        %2626 = vmatpush1.xpose.msra.mxu0 %v1193
        %2627 = vmatprep.subr.mxu0 0.0
        %2628 = vmatpush1.xpose.msra.mxu0 %v1196
        %2629 = vmatprep.subr.mxu0 0.0
        %2630 = vmatpush1.xpose.msra.mxu0 %v1199
        %2631 = vmatprep.subr.mxu0 0.0
        %2632 = vmatpush1.xpose.msra.mxu0 %v1202
        %2633 = vmatprep.subr.mxu0 0.0
        %2634 = vmatpush1.xpose.msra.mxu0 %v1205
        %2635 = vmatprep.subr.mxu0 0.0
        %2636 = vmatpush1.xpose.msra.mxu0 %v1208
        %2637 = vmatprep.subr.mxu0 0.0
        %2638 = vmatpush1.xpose.msra.mxu0 %v1211
        %2639 = vmatprep.subr.mxu0 0.0
        %2640 = vmatpush1.xpose.msra.mxu0 %v1214
        %2641 = vmatprep.subr.mxu0 0.0
        %2642 = vmatpush1.xpose.msra.mxu0 %v1217
        %2643 = vmatprep.subr.mxu0 0.0
        %2644 = vmatpush1.xpose.msra.mxu0 %v1220
        %2645 = vmatprep.subr.mxu0 0.0
        %2646 = vmatpush1.xpose.msra.mxu0 %v1223
        %2647 = vmatprep.subr.mxu0 0.0
        %2648 = vmatpush1.xpose.msra.mxu0 %v1226
        %2649 = vmatprep.subr.mxu0 0.0
        %2650 = vmatpush1.xpose.msra.mxu0 %v1229
        %2651 = vmatprep.subr.mxu0 0.0
        %2652 = vmatpush1.xpose.msra.mxu0 %v1232
        %2653 = vmatprep.subr.mxu0 0.0
        %2654 = vmatpush1.xpose.msra.mxu0 %v1235
        %2655 = vmatprep.subr.mxu0 0.0
        %2656 = vmatpush1.xpose.msra.mxu0 %v1238
        %2657 = vmatprep.subr.mxu0 0.0
        %2658 = vmatpush1.xpose.msra.mxu0 %v1241
        %2659 = vmatprep.subr.mxu0 0.0
        %2660 = vmatpush1.xpose.msra.mxu0 %v1244
        %2661 = vmatprep.subr.mxu0 0.0
        %2662 = vmatpush1.xpose.msra.mxu0 %v1247
        %2663 = vmatprep.subr.mxu0 0.0
        %2664 = vmatpush1.xpose.msra.mxu0 %v1250
        %2665 = vmatprep.subr.mxu0 0.0
        %2666 = vmatpush1.xpose.msra.mxu0 %v1253
        %2667 = vmatprep.subr.mxu0 0.0
        %2668 = vmatpush1.xpose.msra.mxu0 %v1256
        %2669 = vmatprep.subr.mxu0 0.0
        %2670 = vmatpush1.xpose.msra.mxu0 %v1259
        %2671 = vmatprep.subr.mxu0 0.0
        %2672 = vmatpush1.xpose.msra.mxu0 %v1262
        %2673 = vmatprep.subr.mxu0 0.0
        %2674 = vmatpush1.xpose.msra.mxu0 %v1265
        %2675 = vmatprep.subr.mxu0 0.0
        %2676 = vmatpush1.xpose.msra.mxu0 %v1268
        %2677 = vmatprep.subr.mxu0 0.0
        %2678 = vmatpush1.xpose.msra.mxu0 %v1271
        %2679 = vmatprep.subr.mxu0 0.0
        %2680 = vmatpush1.xpose.msra.mxu0 %v1274
        %2681 = vmatprep.subr.mxu0 0.0
        %2682 = vmatpush1.xpose.msra.mxu0 %v1277
        %2683 = vmatprep.mubr.f32.mxu0 0.0
        %2684 = vmatmul.mubr.f32.gmra.mrb[0].mxu0 %v797
        %v2685 = vpop.f32.mrb[0].mxu0
        %v2686 = vadd.f32 0.0, %v2685
        %v2687 = vpop.f32.mrb[0].mxu0
        %v2688 = vadd.f32 0.0, %v2687
        %2689 = vdwg.mxu0
        %2690 = vmatprep.subr.mxu0 0.0
        %2691 = vmatpush1.xpose.msra.mxu0 %v1280
        %2692 = vmatprep.subr.mxu0 0.0
        %2693 = vmatpush1.xpose.msra.mxu0 %v1283
        %2694 = vmatprep.subr.mxu0 0.0
        %2695 = vmatpush1.xpose.msra.mxu0 %v1286
        %2696 = vmatprep.subr.mxu0 0.0
        %2697 = vmatpush1.xpose.msra.mxu0 %v1289
        %2698 = vmatprep.subr.mxu0 0.0
        %2699 = vmatpush1.xpose.msra.mxu0 %v1292
        %2700 = vmatprep.subr.mxu0 0.0
        %2701 = vmatpush1.xpose.msra.mxu0 %v1295
        %2702 = vmatprep.subr.mxu0 0.0
        %2703 = vmatpush1.xpose.msra.mxu0 %v1298
        %2704 = vmatprep.subr.mxu0 0.0
        %2705 = vmatpush1.xpose.msra.mxu0 %v1301
        %2706 = vmatprep.subr.mxu0 0.0
        %2707 = vmatpush1.xpose.msra.mxu0 %v1304
        %2708 = vmatprep.subr.mxu0 0.0
        %2709 = vmatpush1.xpose.msra.mxu0 %v1307
        %2710 = vmatprep.subr.mxu0 0.0
        %2711 = vmatpush1.xpose.msra.mxu0 %v1310
        %2712 = vmatprep.subr.mxu0 0.0
        %2713 = vmatpush1.xpose.msra.mxu0 %v1313
        %2714 = vmatprep.subr.mxu0 0.0
        %2715 = vmatpush1.xpose.msra.mxu0 %v1316
        %2716 = vmatprep.subr.mxu0 0.0
        %2717 = vmatpush1.xpose.msra.mxu0 %v1319
        %2718 = vmatprep.subr.mxu0 0.0
        %2719 = vmatpush1.xpose.msra.mxu0 %v1322
        %2720 = vmatprep.subr.mxu0 0.0
        %2721 = vmatpush1.xpose.msra.mxu0 %v1325
        %2722 = vmatprep.subr.mxu0 0.0
        %2723 = vmatpush1.xpose.msra.mxu0 %v1328
        %2724 = vmatprep.subr.mxu0 0.0
        %2725 = vmatpush1.xpose.msra.mxu0 %v1331
        %2726 = vmatprep.subr.mxu0 0.0
        %2727 = vmatpush1.xpose.msra.mxu0 %v1334
        %2728 = vmatprep.subr.mxu0 0.0
        %2729 = vmatpush1.xpose.msra.mxu0 %v1337
        %2730 = vmatprep.subr.mxu0 0.0
        %2731 = vmatpush1.xpose.msra.mxu0 %v1340
        %2732 = vmatprep.subr.mxu0 0.0
        %2733 = vmatpush1.xpose.msra.mxu0 %v1343
        %2734 = vmatprep.subr.mxu0 0.0
        %2735 = vmatpush1.xpose.msra.mxu0 %v1346
        %2736 = vmatprep.subr.mxu0 0.0
        %2737 = vmatpush1.xpose.msra.mxu0 %v1349
        %2738 = vmatprep.subr.mxu0 0.0
        %2739 = vmatpush1.xpose.msra.mxu0 %v1352
        %2740 = vmatprep.subr.mxu0 0.0
        %2741 = vmatpush1.xpose.msra.mxu0 %v1355
        %2742 = vmatprep.subr.mxu0 0.0
        %2743 = vmatpush1.xpose.msra.mxu0 %v1358
        %2744 = vmatprep.subr.mxu0 0.0
        %2745 = vmatpush1.xpose.msra.mxu0 %v1361
        %2746 = vmatprep.subr.mxu0 0.0
        %2747 = vmatpush1.xpose.msra.mxu0 %v1364
        %2748 = vmatprep.subr.mxu0 0.0
        %2749 = vmatpush1.xpose.msra.mxu0 %v1367
        %2750 = vmatprep.subr.mxu0 0.0
        %2751 = vmatpush1.xpose.msra.mxu0 %v1370
        %2752 = vmatprep.subr.mxu0 0.0
        %2753 = vmatpush1.xpose.msra.mxu0 %v1373
        %2754 = vmatprep.mubr.f32.mxu0 0.0
        %2755 = vmatmul.mubr.f32.gmra.mrb[0].mxu0 %v797
        %v2756 = vpop.f32.mrb[0].mxu0
        %v2757 = vadd.f32 0.0, %v2756
        %v2758 = vpop.f32.mrb[0].mxu0
        %v2759 = vadd.f32 0.0, %v2758
        %2760 = vdwg.mxu0
        %2761 = vmatprep.subr.mxu0 0.0
        %2762 = vmatpush1.xpose.msra.mxu0 %v1376
        %2763 = vmatprep.subr.mxu0 0.0
        %2764 = vmatpush1.xpose.msra.mxu0 %v1379
        %2765 = vmatprep.subr.mxu0 0.0
        %2766 = vmatpush1.xpose.msra.mxu0 %v1382
        %2767 = vmatprep.subr.mxu0 0.0
        %2768 = vmatpush1.xpose.msra.mxu0 %v1385
        %2769 = vmatprep.subr.mxu0 0.0
        %2770 = vmatpush1.xpose.msra.mxu0 %v1388
        %2771 = vmatprep.subr.mxu0 0.0
        %2772 = vmatpush1.xpose.msra.mxu0 %v1391
        %2773 = vmatprep.subr.mxu0 0.0
        %2774 = vmatpush1.xpose.msra.mxu0 %v1394
        %2775 = vmatprep.subr.mxu0 0.0
        %2776 = vmatpush1.xpose.msra.mxu0 %v1397
        %2777 = vmatprep.subr.mxu0 0.0
        %2778 = vmatpush1.xpose.msra.mxu0 %v1400
        %2779 = vmatprep.subr.mxu0 0.0
        %2780 = vmatpush1.xpose.msra.mxu0 %v1403
        %2781 = vmatprep.subr.mxu0 0.0
        %2782 = vmatpush1.xpose.msra.mxu0 %v1406
        %2783 = vmatprep.subr.mxu0 0.0
        %2784 = vmatpush1.xpose.msra.mxu0 %v1409
        %2785 = vmatprep.subr.mxu0 0.0
        %2786 = vmatpush1.xpose.msra.mxu0 %v1412
        %2787 = vmatprep.subr.mxu0 0.0
        %2788 = vmatpush1.xpose.msra.mxu0 %v1415
        %2789 = vmatprep.subr.mxu0 0.0
        %2790 = vmatpush1.xpose.msra.mxu0 %v1418
        %2791 = vmatprep.subr.mxu0 0.0
        %2792 = vmatpush1.xpose.msra.mxu0 %v1421
        %2793 = vmatprep.subr.mxu0 0.0
        %2794 = vmatpush1.xpose.msra.mxu0 %v1424
        %2795 = vmatprep.subr.mxu0 0.0
        %2796 = vmatpush1.xpose.msra.mxu0 %v1427
        %2797 = vmatprep.subr.mxu0 0.0
        %2798 = vmatpush1.xpose.msra.mxu0 %v1430
        %2799 = vmatprep.subr.mxu0 0.0
        %2800 = vmatpush1.xpose.msra.mxu0 %v1433
        %2801 = vmatprep.subr.mxu0 0.0
        %2802 = vmatpush1.xpose.msra.mxu0 %v1436
        %2803 = vmatprep.subr.mxu0 0.0
        %2804 = vmatpush1.xpose.msra.mxu0 %v1439
        %2805 = vmatprep.subr.mxu0 0.0
        %2806 = vmatpush1.xpose.msra.mxu0 %v1442
        %2807 = vmatprep.subr.mxu0 0.0
        %2808 = vmatpush1.xpose.msra.mxu0 %v1445
        %2809 = vmatprep.subr.mxu0 0.0
        %2810 = vmatpush1.xpose.msra.mxu0 %v1448
        %2811 = vmatprep.subr.mxu0 0.0
        %2812 = vmatpush1.xpose.msra.mxu0 %v1451
        %2813 = vmatprep.subr.mxu0 0.0
        %2814 = vmatpush1.xpose.msra.mxu0 %v1454
        %2815 = vmatprep.subr.mxu0 0.0
        %2816 = vmatpush1.xpose.msra.mxu0 %v1457
        %2817 = vmatprep.subr.mxu0 0.0
        %2818 = vmatpush1.xpose.msra.mxu0 %v1460
        %2819 = vmatprep.subr.mxu0 0.0
        %2820 = vmatpush1.xpose.msra.mxu0 %v1463
        %2821 = vmatprep.subr.mxu0 0.0
        %2822 = vmatpush1.xpose.msra.mxu0 %v1466
        %2823 = vmatprep.subr.mxu0 0.0
        %2824 = vmatpush1.xpose.msra.mxu0 %v1469
        %2825 = vmatprep.mubr.f32.mxu0 0.0
        %2826 = vmatmul.mubr.f32.gmra.mrb[0].mxu0 %v797
        %v2827 = vpop.f32.mrb[0].mxu0
        %v2828 = vadd.f32 0.0, %v2827
        %v2829 = vpop.f32.mrb[0].mxu0
        %v2830 = vadd.f32 0.0, %v2829
        %2831 = vdwg.mxu0
        %2832 = vmatprep.subr.mxu0 0.0
        %2833 = vmatpush1.xpose.msra.mxu0 %v1472
        %2834 = vmatprep.subr.mxu0 0.0
        %2835 = vmatpush1.xpose.msra.mxu0 %v1475
        %2836 = vmatprep.subr.mxu0 0.0
        %2837 = vmatpush1.xpose.msra.mxu0 %v1478
        %2838 = vmatprep.subr.mxu0 0.0
        %2839 = vmatpush1.xpose.msra.mxu0 %v1481
        %2840 = vmatprep.subr.mxu0 0.0
        %2841 = vmatpush1.xpose.msra.mxu0 %v1484
        %2842 = vmatprep.subr.mxu0 0.0
        %2843 = vmatpush1.xpose.msra.mxu0 %v1487
        %2844 = vmatprep.subr.mxu0 0.0
        %2845 = vmatpush1.xpose.msra.mxu0 %v1490
        %2846 = vmatprep.subr.mxu0 0.0
        %2847 = vmatpush1.xpose.msra.mxu0 %v1493
        %2848 = vmatprep.subr.mxu0 0.0
        %2849 = vmatpush1.xpose.msra.mxu0 %v1496
        %2850 = vmatprep.subr.mxu0 0.0
        %2851 = vmatpush1.xpose.msra.mxu0 %v1499
        %2852 = vmatprep.subr.mxu0 0.0
        %2853 = vmatpush1.xpose.msra.mxu0 %v1502
        %2854 = vmatprep.subr.mxu0 0.0
        %2855 = vmatpush1.xpose.msra.mxu0 %v1505
        %2856 = vmatprep.subr.mxu0 0.0
        %2857 = vmatpush1.xpose.msra.mxu0 %v1508
        %2858 = vmatprep.subr.mxu0 0.0
        %2859 = vmatpush1.xpose.msra.mxu0 %v1511
        %2860 = vmatprep.subr.mxu0 0.0
        %2861 = vmatpush1.xpose.msra.mxu0 %v1514
        %2862 = vmatprep.subr.mxu0 0.0
        %2863 = vmatpush1.xpose.msra.mxu0 %v1517
        %2864 = vmatprep.subr.mxu0 0.0
        %2865 = vmatpush1.xpose.msra.mxu0 %v1520
        %2866 = vmatprep.subr.mxu0 0.0
        %2867 = vmatpush1.xpose.msra.mxu0 %v1523
        %2868 = vmatprep.subr.mxu0 0.0
        %2869 = vmatpush1.xpose.msra.mxu0 %v1526
        %2870 = vmatprep.subr.mxu0 0.0
        %2871 = vmatpush1.xpose.msra.mxu0 %v1529
        %2872 = vmatprep.subr.mxu0 0.0
        %2873 = vmatpush1.xpose.msra.mxu0 %v1532
        %2874 = vmatprep.subr.mxu0 0.0
        %2875 = vmatpush1.xpose.msra.mxu0 %v1535
        %2876 = vmatprep.subr.mxu0 0.0
        %2877 = vmatpush1.xpose.msra.mxu0 %v1538
        %2878 = vmatprep.subr.mxu0 0.0
        %2879 = vmatpush1.xpose.msra.mxu0 %v1541
        %2880 = vmatprep.subr.mxu0 0.0
        %2881 = vmatpush1.xpose.msra.mxu0 %v1544
        %2882 = vmatprep.subr.mxu0 0.0
        %2883 = vmatpush1.xpose.msra.mxu0 %v1547
        %2884 = vmatprep.subr.mxu0 0.0
        %2885 = vmatpush1.xpose.msra.mxu0 %v1550
        %2886 = vmatprep.subr.mxu0 0.0
        %2887 = vmatpush1.xpose.msra.mxu0 %v1553
        %2888 = vmatprep.subr.mxu0 0.0
        %2889 = vmatpush1.xpose.msra.mxu0 %v1556
        %2890 = vmatprep.subr.mxu0 0.0
        %2891 = vmatpush1.xpose.msra.mxu0 %v1559
        %2892 = vmatprep.subr.mxu0 0.0
        %2893 = vmatpush1.xpose.msra.mxu0 %v1562
        %2894 = vmatprep.subr.mxu0 0.0
        %2895 = vmatpush1.xpose.msra.mxu0 %v1565
        %2896 = vmatprep.mubr.f32.mxu0 0.0
        %2897 = vmatmul.mubr.f32.gmra.mrb[0].mxu0 %v797
        %v2898 = vpop.f32.mrb[0].mxu0
        %v2899 = vadd.f32 0.0, %v2898
        %v2900 = vpop.f32.mrb[0].mxu0
        %v2901 = vadd.f32 0.0, %v2900
        %2902 = vdwg.mxu0
        %2903 = vmatprep.subr.mxu0 0.0
        %2904 = vmatpush1.xpose.msra.mxu0 %v1568
        %2905 = vmatprep.subr.mxu0 0.0
        %2906 = vmatpush1.xpose.msra.mxu0 %v1571
        %2907 = vmatprep.subr.mxu0 0.0
        %2908 = vmatpush1.xpose.msra.mxu0 %v1574
        %2909 = vmatprep.subr.mxu0 0.0
        %2910 = vmatpush1.xpose.msra.mxu0 %v1577
        %2911 = vmatprep.subr.mxu0 0.0
        %2912 = vmatpush1.xpose.msra.mxu0 %v1580
        %2913 = vmatprep.subr.mxu0 0.0
        %2914 = vmatpush1.xpose.msra.mxu0 %v1583
        %2915 = vmatprep.subr.mxu0 0.0
        %2916 = vmatpush1.xpose.msra.mxu0 %v1586
        %2917 = vmatprep.subr.mxu0 0.0
        %2918 = vmatpush1.xpose.msra.mxu0 %v1589
        %2919 = vmatprep.subr.mxu0 0.0
        %2920 = vmatpush1.xpose.msra.mxu0 %v1592
        %2921 = vmatprep.subr.mxu0 0.0
        %2922 = vmatpush1.xpose.msra.mxu0 %v1595
        %2923 = vmatprep.subr.mxu0 0.0
        %2924 = vmatpush1.xpose.msra.mxu0 %v1598
        %2925 = vmatprep.subr.mxu0 0.0
        %2926 = vmatpush1.xpose.msra.mxu0 %v1601
        %2927 = vmatprep.subr.mxu0 0.0
        %2928 = vmatpush1.xpose.msra.mxu0 %v1604
        %2929 = vmatprep.subr.mxu0 0.0
        %2930 = vmatpush1.xpose.msra.mxu0 %v1607
        %2931 = vmatprep.subr.mxu0 0.0
        %2932 = vmatpush1.xpose.msra.mxu0 %v1610
        %2933 = vmatprep.subr.mxu0 0.0
        %2934 = vmatpush1.xpose.msra.mxu0 %v1613
        %2935 = vmatprep.subr.mxu0 0.0
        %2936 = vmatpush1.xpose.msra.mxu0 %v1616
        %2937 = vmatprep.subr.mxu0 0.0
        %2938 = vmatpush1.xpose.msra.mxu0 %v1619
        %2939 = vmatprep.subr.mxu0 0.0
        %2940 = vmatpush1.xpose.msra.mxu0 %v1622
        %2941 = vmatprep.subr.mxu0 0.0
        %2942 = vmatpush1.xpose.msra.mxu0 %v1625
        %2943 = vmatprep.subr.mxu0 0.0
        %2944 = vmatpush1.xpose.msra.mxu0 %v1628
        %2945 = vmatprep.subr.mxu0 0.0
        %2946 = vmatpush1.xpose.msra.mxu0 %v1631
        %2947 = vmatprep.subr.mxu0 0.0
        %2948 = vmatpush1.xpose.msra.mxu0 %v1634
        %2949 = vmatprep.subr.mxu0 0.0
        %2950 = vmatpush1.xpose.msra.mxu0 %v1637
        %2951 = vmatprep.subr.mxu0 0.0
        %2952 = vmatpush1.xpose.msra.mxu0 %v1640
        %2953 = vmatprep.subr.mxu0 0.0
        %2954 = vmatpush1.xpose.msra.mxu0 %v1643
        %2955 = vmatprep.subr.mxu0 0.0
        %2956 = vmatpush1.xpose.msra.mxu0 %v1646
        %2957 = vmatprep.subr.mxu0 0.0
        %2958 = vmatpush1.xpose.msra.mxu0 %v1649
        %2959 = vmatprep.subr.mxu0 0.0
        %2960 = vmatpush1.xpose.msra.mxu0 %v1652
        %2961 = vmatprep.subr.mxu0 0.0
        %2962 = vmatpush1.xpose.msra.mxu0 %v1655
        %2963 = vmatprep.subr.mxu0 0.0
        %2964 = vmatpush1.xpose.msra.mxu0 %v1658
        %2965 = vmatprep.subr.mxu0 0.0
        %2966 = vmatpush1.xpose.msra.mxu0 %v1661
        %2967 = vmatprep.mubr.f32.mxu0 0.0
        %2968 = vmatmul.mubr.f32.gmra.mrb[0].mxu0 %v797
        %v2969 = vpop.f32.mrb[0].mxu0
        %v2970 = vadd.f32 0.0, %v2969
        %v2971 = vpop.f32.mrb[0].mxu0
        %v2972 = vadd.f32 0.0, %v2971
        %2973 = vdwg.mxu0
        %2974 = vmatprep.subr.mxu0 0.0
        %2975 = vmatpush1.xpose.msra.mxu0 %v1664
        %2976 = vmatprep.subr.mxu0 0.0
        %2977 = vmatpush1.xpose.msra.mxu0 %v1667
        %2978 = vmatprep.subr.mxu0 0.0
        %2979 = vmatpush1.xpose.msra.mxu0 %v1670
        %2980 = vmatprep.subr.mxu0 0.0
        %2981 = vmatpush1.xpose.msra.mxu0 %v1673
        %2982 = vmatprep.subr.mxu0 0.0
        %2983 = vmatpush1.xpose.msra.mxu0 %v1676
        %2984 = vmatprep.subr.mxu0 0.0
        %2985 = vmatpush1.xpose.msra.mxu0 %v1679
        %2986 = vmatprep.subr.mxu0 0.0
        %2987 = vmatpush1.xpose.msra.mxu0 %v1682
        %2988 = vmatprep.subr.mxu0 0.0
        %2989 = vmatpush1.xpose.msra.mxu0 %v1685
        %2990 = vmatprep.subr.mxu0 0.0
        %2991 = vmatpush1.xpose.msra.mxu0 %v1688
        %2992 = vmatprep.subr.mxu0 0.0
        %2993 = vmatpush1.xpose.msra.mxu0 %v1691
        %2994 = vmatprep.subr.mxu0 0.0
        %2995 = vmatpush1.xpose.msra.mxu0 %v1694
        %2996 = vmatprep.subr.mxu0 0.0
        %2997 = vmatpush1.xpose.msra.mxu0 %v1697
        %2998 = vmatprep.subr.mxu0 0.0
        %2999 = vmatpush1.xpose.msra.mxu0 %v1700
        %3000 = vmatprep.subr.mxu0 0.0
        %3001 = vmatpush1.xpose.msra.mxu0 %v1703
        %3002 = vmatprep.subr.mxu0 0.0
        %3003 = vmatpush1.xpose.msra.mxu0 %v1706
        %3004 = vmatprep.subr.mxu0 0.0
        %3005 = vmatpush1.xpose.msra.mxu0 %v1709
        %3006 = vmatprep.subr.mxu0 0.0
        %3007 = vmatpush1.xpose.msra.mxu0 %v1712
        %3008 = vmatprep.subr.mxu0 0.0
        %3009 = vmatpush1.xpose.msra.mxu0 %v1715
        %3010 = vmatprep.subr.mxu0 0.0
        %3011 = vmatpush1.xpose.msra.mxu0 %v1718
        %3012 = vmatprep.subr.mxu0 0.0
        %3013 = vmatpush1.xpose.msra.mxu0 %v1721
        %3014 = vmatprep.subr.mxu0 0.0
        %3015 = vmatpush1.xpose.msra.mxu0 %v1724
        %3016 = vmatprep.subr.mxu0 0.0
        %3017 = vmatpush1.xpose.msra.mxu0 %v1727
        %3018 = vmatprep.subr.mxu0 0.0
        %3019 = vmatpush1.xpose.msra.mxu0 %v1730
        %3020 = vmatprep.subr.mxu0 0.0
        %3021 = vmatpush1.xpose.msra.mxu0 %v1733
        %3022 = vmatprep.subr.mxu0 0.0
        %3023 = vmatpush1.xpose.msra.mxu0 %v1736
        %3024 = vmatprep.subr.mxu0 0.0
        %3025 = vmatpush1.xpose.msra.mxu0 %v1739
        %3026 = vmatprep.subr.mxu0 0.0
        %3027 = vmatpush1.xpose.msra.mxu0 %v1742
        %3028 = vmatprep.subr.mxu0 0.0
        %3029 = vmatpush1.xpose.msra.mxu0 %v1745
        %3030 = vmatprep.subr.mxu0 0.0
        %3031 = vmatpush1.xpose.msra.mxu0 %v1748
        %3032 = vmatprep.subr.mxu0 0.0
        %3033 = vmatpush1.xpose.msra.mxu0 %v1751
        %3034 = vmatprep.subr.mxu0 0.0
        %3035 = vmatpush1.xpose.msra.mxu0 %v1754
        %3036 = vmatprep.subr.mxu0 0.0
        %3037 = vmatpush1.xpose.msra.mxu0 %v1757
        %3038 = vmatprep.mubr.f32.mxu0 0.0
        %3039 = vmatmul.mubr.f32.gmra.mrb[0].mxu0 %v797
        %v3040 = vpop.f32.mrb[0].mxu0
        %v3041 = vadd.f32 0.0, %v3040
        %v3042 = vpop.f32.mrb[0].mxu0
        %v3043 = vadd.f32 0.0, %v3042
        %3044 = vdwg.mxu0
        %3045 = vmatprep.subr.mxu0 0.0
        %3046 = vmatpush1.xpose.msra.mxu0 %v1760
        %3047 = vmatprep.subr.mxu0 0.0
        %3048 = vmatpush1.xpose.msra.mxu0 %v1763
        %3049 = vmatprep.subr.mxu0 0.0
        %3050 = vmatpush1.xpose.msra.mxu0 %v1766
        %3051 = vmatprep.subr.mxu0 0.0
        %3052 = vmatpush1.xpose.msra.mxu0 %v1769
        %3053 = vmatprep.subr.mxu0 0.0
        %3054 = vmatpush1.xpose.msra.mxu0 %v1772
        %3055 = vmatprep.subr.mxu0 0.0
        %3056 = vmatpush1.xpose.msra.mxu0 %v1775
        %3057 = vmatprep.subr.mxu0 0.0
        %3058 = vmatpush1.xpose.msra.mxu0 %v1778
        %3059 = vmatprep.subr.mxu0 0.0
        %3060 = vmatpush1.xpose.msra.mxu0 %v1781
        %3061 = vmatprep.subr.mxu0 0.0
        %3062 = vmatpush1.xpose.msra.mxu0 %v1784
        %3063 = vmatprep.subr.mxu0 0.0
        %3064 = vmatpush1.xpose.msra.mxu0 %v1787
        %3065 = vmatprep.subr.mxu0 0.0
        %3066 = vmatpush1.xpose.msra.mxu0 %v1790
        %3067 = vmatprep.subr.mxu0 0.0
        %3068 = vmatpush1.xpose.msra.mxu0 %v1793
        %3069 = vmatprep.subr.mxu0 0.0
        %3070 = vmatpush1.xpose.msra.mxu0 %v1796
        %3071 = vmatprep.subr.mxu0 0.0
        %3072 = vmatpush1.xpose.msra.mxu0 %v1799
        %3073 = vmatprep.subr.mxu0 0.0
        %3074 = vmatpush1.xpose.msra.mxu0 %v1802
        %3075 = vmatprep.subr.mxu0 0.0
        %3076 = vmatpush1.xpose.msra.mxu0 %v1805
        %3077 = vmatprep.subr.mxu0 0.0
        %3078 = vmatpush1.xpose.msra.mxu0 %v1808
        %3079 = vmatprep.subr.mxu0 0.0
        %3080 = vmatpush1.xpose.msra.mxu0 %v1811
        %3081 = vmatprep.subr.mxu0 0.0
        %3082 = vmatpush1.xpose.msra.mxu0 %v1814
        %3083 = vmatprep.subr.mxu0 0.0
        %3084 = vmatpush1.xpose.msra.mxu0 %v1817
        %3085 = vmatprep.subr.mxu0 0.0
        %3086 = vmatpush1.xpose.msra.mxu0 %v1820
        %3087 = vmatprep.subr.mxu0 0.0
        %3088 = vmatpush1.xpose.msra.mxu0 %v1823
        %3089 = vmatprep.subr.mxu0 0.0
        %3090 = vmatpush1.xpose.msra.mxu0 %v1826
        %3091 = vmatprep.subr.mxu0 0.0
        %3092 = vmatpush1.xpose.msra.mxu0 %v1829
        %3093 = vmatprep.subr.mxu0 0.0
        %3094 = vmatpush1.xpose.msra.mxu0 %v1832
        %3095 = vmatprep.subr.mxu0 0.0
        %3096 = vmatpush1.xpose.msra.mxu0 %v1835
        %3097 = vmatprep.subr.mxu0 0.0
        %3098 = vmatpush1.xpose.msra.mxu0 %v1838
        %3099 = vmatprep.subr.mxu0 0.0
        %3100 = vmatpush1.xpose.msra.mxu0 %v1841
        %3101 = vmatprep.subr.mxu0 0.0
        %3102 = vmatpush1.xpose.msra.mxu0 %v1844
        %3103 = vmatprep.subr.mxu0 0.0
        %3104 = vmatpush1.xpose.msra.mxu0 %v1847
        %3105 = vmatprep.subr.mxu0 0.0
        %3106 = vmatpush1.xpose.msra.mxu0 %v1850
        %3107 = vmatprep.subr.mxu0 0.0
        %3108 = vmatpush1.xpose.msra.mxu0 %v1853
        %3109 = vmatprep.mubr.f32.mxu0 0.0
        %3110 = vmatmul.mubr.f32.gmra.mrb[0].mxu0 %v797
        %v3111 = vpop.f32.mrb[0].mxu0
        %v3112 = vadd.f32 0.0, %v3111
        %v3113 = vpop.f32.mrb[0].mxu0
        %v3114 = vadd.f32 0.0, %v3113
        %3115 = vdwg.mxu0
        %3116 = vmatprep.subr.mxu0 0.0
        %3117 = vmatpush1.xpose.msra.mxu0 %v1856
        %3118 = vmatprep.subr.mxu0 0.0
        %3119 = vmatpush1.xpose.msra.mxu0 %v1859
        %3120 = vmatprep.subr.mxu0 0.0
        %3121 = vmatpush1.xpose.msra.mxu0 %v1862
        %3122 = vmatprep.subr.mxu0 0.0
        %3123 = vmatpush1.xpose.msra.mxu0 %v1865
        %3124 = vmatprep.subr.mxu0 0.0
        %3125 = vmatpush1.xpose.msra.mxu0 %v1868
        %3126 = vmatprep.subr.mxu0 0.0
        %3127 = vmatpush1.xpose.msra.mxu0 %v1871
        %3128 = vmatprep.subr.mxu0 0.0
        %3129 = vmatpush1.xpose.msra.mxu0 %v1874
        %3130 = vmatprep.subr.mxu0 0.0
        %3131 = vmatpush1.xpose.msra.mxu0 %v1877
        %3132 = vmatprep.subr.mxu0 0.0
        %3133 = vmatpush1.xpose.msra.mxu0 %v1880
        %3134 = vmatprep.subr.mxu0 0.0
        %3135 = vmatpush1.xpose.msra.mxu0 %v1883
        %3136 = vmatprep.subr.mxu0 0.0
        %3137 = vmatpush1.xpose.msra.mxu0 %v1886
        %3138 = vmatprep.subr.mxu0 0.0
        %3139 = vmatpush1.xpose.msra.mxu0 %v1889
        %3140 = vmatprep.subr.mxu0 0.0
        %3141 = vmatpush1.xpose.msra.mxu0 %v1892
        %3142 = vmatprep.subr.mxu0 0.0
        %3143 = vmatpush1.xpose.msra.mxu0 %v1895
        %3144 = vmatprep.subr.mxu0 0.0
        %3145 = vmatpush1.xpose.msra.mxu0 %v1898
        %3146 = vmatprep.subr.mxu0 0.0
        %3147 = vmatpush1.xpose.msra.mxu0 %v1901
        %3148 = vmatprep.subr.mxu0 0.0
        %3149 = vmatpush1.xpose.msra.mxu0 %v1904
        %3150 = vmatprep.subr.mxu0 0.0
        %3151 = vmatpush1.xpose.msra.mxu0 %v1907
        %3152 = vmatprep.subr.mxu0 0.0
        %3153 = vmatpush1.xpose.msra.mxu0 %v1910
        %3154 = vmatprep.subr.mxu0 0.0
        %3155 = vmatpush1.xpose.msra.mxu0 %v1913
        %3156 = vmatprep.subr.mxu0 0.0
        %3157 = vmatpush1.xpose.msra.mxu0 %v1916
        %3158 = vmatprep.subr.mxu0 0.0
        %3159 = vmatpush1.xpose.msra.mxu0 %v1919
        %3160 = vmatprep.subr.mxu0 0.0
        %3161 = vmatpush1.xpose.msra.mxu0 %v1922
        %3162 = vmatprep.subr.mxu0 0.0
        %3163 = vmatpush1.xpose.msra.mxu0 %v1925
        %3164 = vmatprep.subr.mxu0 0.0
        %3165 = vmatpush1.xpose.msra.mxu0 %v1928
        %3166 = vmatprep.subr.mxu0 0.0
        %3167 = vmatpush1.xpose.msra.mxu0 %v1931
        %3168 = vmatprep.subr.mxu0 0.0
        %3169 = vmatpush1.xpose.msra.mxu0 %v1934
        %3170 = vmatprep.subr.mxu0 0.0
        %3171 = vmatpush1.xpose.msra.mxu0 %v1937
        %3172 = vmatprep.subr.mxu0 0.0
        %3173 = vmatpush1.xpose.msra.mxu0 %v1940
        %3174 = vmatprep.subr.mxu0 0.0
        %3175 = vmatpush1.xpose.msra.mxu0 %v1943
        %3176 = vmatprep.subr.mxu0 0.0
        %3177 = vmatpush1.xpose.msra.mxu0 %v1946
        %3178 = vmatprep.subr.mxu0 0.0
        %3179 = vmatpush1.xpose.msra.mxu0 %v1949
        %3180 = vmatprep.mubr.f32.mxu0 0.0
        %3181 = vmatmul.mubr.f32.gmra.mrb[0].mxu0 %v797
        %v3182 = vpop.f32.mrb[0].mxu0
        %v3183 = vadd.f32 0.0, %v3182
        %v3184 = vpop.f32.mrb[0].mxu0
        %v3185 = vadd.f32 0.0, %v3184
        %3186 = vdwg.mxu0
        %3187 = vmatprep.subr.mxu0 0.0
        %3188 = vmatpush1.xpose.msra.mxu0 %v1952
        %3189 = vmatprep.subr.mxu0 0.0
        %3190 = vmatpush1.xpose.msra.mxu0 %v1955
        %3191 = vmatprep.subr.mxu0 0.0
        %3192 = vmatpush1.xpose.msra.mxu0 %v1958
        %3193 = vmatprep.subr.mxu0 0.0
        %3194 = vmatpush1.xpose.msra.mxu0 %v1961
        %3195 = vmatprep.subr.mxu0 0.0
        %3196 = vmatpush1.xpose.msra.mxu0 %v1964
        %3197 = vmatprep.subr.mxu0 0.0
        %3198 = vmatpush1.xpose.msra.mxu0 %v1967
        %3199 = vmatprep.subr.mxu0 0.0
        %3200 = vmatpush1.xpose.msra.mxu0 %v1970
        %3201 = vmatprep.subr.mxu0 0.0
        %3202 = vmatpush1.xpose.msra.mxu0 %v1973
        %3203 = vmatprep.subr.mxu0 0.0
        %3204 = vmatpush1.xpose.msra.mxu0 %v1976
        %3205 = vmatprep.subr.mxu0 0.0
        %3206 = vmatpush1.xpose.msra.mxu0 %v1979
        %3207 = vmatprep.subr.mxu0 0.0
        %3208 = vmatpush1.xpose.msra.mxu0 %v1982
        %3209 = vmatprep.subr.mxu0 0.0
        %3210 = vmatpush1.xpose.msra.mxu0 %v1985
        %3211 = vmatprep.subr.mxu0 0.0
        %3212 = vmatpush1.xpose.msra.mxu0 %v1988
        %3213 = vmatprep.subr.mxu0 0.0
        %3214 = vmatpush1.xpose.msra.mxu0 %v1991
        %3215 = vmatprep.subr.mxu0 0.0
        %3216 = vmatpush1.xpose.msra.mxu0 %v1994
        %3217 = vmatprep.subr.mxu0 0.0
        %3218 = vmatpush1.xpose.msra.mxu0 %v1997
        %3219 = vmatprep.subr.mxu0 0.0
        %3220 = vmatpush1.xpose.msra.mxu0 %v2000
        %3221 = vmatprep.subr.mxu0 0.0
        %3222 = vmatpush1.xpose.msra.mxu0 %v2003
        %3223 = vmatprep.subr.mxu0 0.0
        %3224 = vmatpush1.xpose.msra.mxu0 %v2006
        %3225 = vmatprep.subr.mxu0 0.0
        %3226 = vmatpush1.xpose.msra.mxu0 %v2009
        %3227 = vmatprep.subr.mxu0 0.0
        %3228 = vmatpush1.xpose.msra.mxu0 %v2012
        %3229 = vmatprep.subr.mxu0 0.0
        %3230 = vmatpush1.xpose.msra.mxu0 %v2015
        %3231 = vmatprep.subr.mxu0 0.0
        %3232 = vmatpush1.xpose.msra.mxu0 %v2018
        %3233 = vmatprep.subr.mxu0 0.0
        %3234 = vmatpush1.xpose.msra.mxu0 %v2021
        %3235 = vmatprep.subr.mxu0 0.0
        %3236 = vmatpush1.xpose.msra.mxu0 %v2024
        %3237 = vmatprep.subr.mxu0 0.0
        %3238 = vmatpush1.xpose.msra.mxu0 %v2027
        %3239 = vmatprep.subr.mxu0 0.0
        %3240 = vmatpush1.xpose.msra.mxu0 %v2030
        %3241 = vmatprep.subr.mxu0 0.0
        %3242 = vmatpush1.xpose.msra.mxu0 %v2033
        %3243 = vmatprep.subr.mxu0 0.0
        %3244 = vmatpush1.xpose.msra.mxu0 %v2036
        %3245 = vmatprep.subr.mxu0 0.0
        %3246 = vmatpush1.xpose.msra.mxu0 %v2039
        %3247 = vmatprep.subr.mxu0 0.0
        %3248 = vmatpush1.xpose.msra.mxu0 %v2042
        %3249 = vmatprep.subr.mxu0 0.0
        %3250 = vmatpush1.xpose.msra.mxu0 %v2045
        %3251 = vmatprep.mubr.f32.mxu0 0.0
        %3252 = vmatmul.mubr.f32.gmra.mrb[0].mxu0 %v797
        %v3253 = vpop.f32.mrb[0].mxu0
        %v3254 = vadd.f32 0.0, %v3253
        %v3255 = vpop.f32.mrb[0].mxu0
        %v3256 = vadd.f32 0.0, %v3255
        %3257 = vdwg.mxu0
        %3258 = vmatprep.subr.mxu0 0.0
        %3259 = vmatpush1.xpose.msra.mxu0 %v2048
        %3260 = vmatprep.subr.mxu0 0.0
        %3261 = vmatpush1.xpose.msra.mxu0 %v2051
        %3262 = vmatprep.subr.mxu0 0.0
        %3263 = vmatpush1.xpose.msra.mxu0 %v2054
        %3264 = vmatprep.subr.mxu0 0.0
        %3265 = vmatpush1.xpose.msra.mxu0 %v2057
        %3266 = vmatprep.subr.mxu0 0.0
        %3267 = vmatpush1.xpose.msra.mxu0 %v2060
        %3268 = vmatprep.subr.mxu0 0.0
        %3269 = vmatpush1.xpose.msra.mxu0 %v2063
        %3270 = vmatprep.subr.mxu0 0.0
        %3271 = vmatpush1.xpose.msra.mxu0 %v2066
        %3272 = vmatprep.subr.mxu0 0.0
        %3273 = vmatpush1.xpose.msra.mxu0 %v2069
        %3274 = vmatprep.subr.mxu0 0.0
        %3275 = vmatpush1.xpose.msra.mxu0 %v2072
        %3276 = vmatprep.subr.mxu0 0.0
        %3277 = vmatpush1.xpose.msra.mxu0 %v2075
        %3278 = vmatprep.subr.mxu0 0.0
        %3279 = vmatpush1.xpose.msra.mxu0 %v2078
        %3280 = vmatprep.subr.mxu0 0.0
        %3281 = vmatpush1.xpose.msra.mxu0 %v2081
        %3282 = vmatprep.subr.mxu0 0.0
        %3283 = vmatpush1.xpose.msra.mxu0 %v2084
        %3284 = vmatprep.subr.mxu0 0.0
        %3285 = vmatpush1.xpose.msra.mxu0 %v2087
        %3286 = vmatprep.subr.mxu0 0.0
        %3287 = vmatpush1.xpose.msra.mxu0 %v2090
        %3288 = vmatprep.subr.mxu0 0.0
        %3289 = vmatpush1.xpose.msra.mxu0 %v2093
        %3290 = vmatprep.subr.mxu0 0.0
        %3291 = vmatpush1.xpose.msra.mxu0 %v2096
        %3292 = vmatprep.subr.mxu0 0.0
        %3293 = vmatpush1.xpose.msra.mxu0 %v2099
        %3294 = vmatprep.subr.mxu0 0.0
        %3295 = vmatpush1.xpose.msra.mxu0 %v2102
        %3296 = vmatprep.subr.mxu0 0.0
        %3297 = vmatpush1.xpose.msra.mxu0 %v2105
        %3298 = vmatprep.subr.mxu0 0.0
        %3299 = vmatpush1.xpose.msra.mxu0 %v2108
        %3300 = vmatprep.subr.mxu0 0.0
        %3301 = vmatpush1.xpose.msra.mxu0 %v2111
        %3302 = vmatprep.subr.mxu0 0.0
        %3303 = vmatpush1.xpose.msra.mxu0 %v2114
        %3304 = vmatprep.subr.mxu0 0.0
        %3305 = vmatpush1.xpose.msra.mxu0 %v2117
        %3306 = vmatprep.subr.mxu0 0.0
        %3307 = vmatpush1.xpose.msra.mxu0 %v2120
        %3308 = vmatprep.subr.mxu0 0.0
        %3309 = vmatpush1.xpose.msra.mxu0 %v2123
        %3310 = vmatprep.subr.mxu0 0.0
        %3311 = vmatpush1.xpose.msra.mxu0 %v2126
        %3312 = vmatprep.subr.mxu0 0.0
        %3313 = vmatpush1.xpose.msra.mxu0 %v2129
        %3314 = vmatprep.subr.mxu0 0.0
        %3315 = vmatpush1.xpose.msra.mxu0 %v2132
        %3316 = vmatprep.subr.mxu0 0.0
        %3317 = vmatpush1.xpose.msra.mxu0 %v2135
        %3318 = vmatprep.subr.mxu0 0.0
        %3319 = vmatpush1.xpose.msra.mxu0 %v2138
        %3320 = vmatprep.subr.mxu0 0.0
        %3321 = vmatpush1.xpose.msra.mxu0 %v2141
        %3322 = vmatprep.mubr.f32.mxu0 0.0
        %3323 = vmatmul.mubr.f32.gmra.mrb[0].mxu0 %v797
        %v3324 = vpop.f32.mrb[0].mxu0
        %v3325 = vadd.f32 0.0, %v3324
        %v3326 = vpop.f32.mrb[0].mxu0
        %v3327 = vadd.f32 0.0, %v3326
        %3328 = vdwg.mxu0
        %3329 = vmatprep.subr.mxu0 0.0
        %3330 = vmatpush1.xpose.msra.mxu0 %v2144
        %3331 = vmatprep.subr.mxu0 0.0
        %3332 = vmatpush1.xpose.msra.mxu0 %v2147
        %3333 = vmatprep.subr.mxu0 0.0
        %3334 = vmatpush1.xpose.msra.mxu0 %v2150
        %3335 = vmatprep.subr.mxu0 0.0
        %3336 = vmatpush1.xpose.msra.mxu0 %v2153
        %3337 = vmatprep.subr.mxu0 0.0
        %3338 = vmatpush1.xpose.msra.mxu0 %v2156
        %3339 = vmatprep.subr.mxu0 0.0
        %3340 = vmatpush1.xpose.msra.mxu0 %v2159
        %3341 = vmatprep.subr.mxu0 0.0
        %3342 = vmatpush1.xpose.msra.mxu0 %v2162
        %3343 = vmatprep.subr.mxu0 0.0
        %3344 = vmatpush1.xpose.msra.mxu0 %v2165
        %3345 = vmatprep.subr.mxu0 0.0
        %3346 = vmatpush1.xpose.msra.mxu0 %v2168
        %3347 = vmatprep.subr.mxu0 0.0
        %3348 = vmatpush1.xpose.msra.mxu0 %v2171
        %3349 = vmatprep.subr.mxu0 0.0
        %3350 = vmatpush1.xpose.msra.mxu0 %v2174
        %3351 = vmatprep.subr.mxu0 0.0
        %3352 = vmatpush1.xpose.msra.mxu0 %v2177
        %3353 = vmatprep.subr.mxu0 0.0
        %3354 = vmatpush1.xpose.msra.mxu0 %v2180
        %3355 = vmatprep.subr.mxu0 0.0
        %3356 = vmatpush1.xpose.msra.mxu0 %v2183
        %3357 = vmatprep.subr.mxu0 0.0
        %3358 = vmatpush1.xpose.msra.mxu0 %v2186
        %3359 = vmatprep.subr.mxu0 0.0
        %3360 = vmatpush1.xpose.msra.mxu0 %v2189
        %3361 = vmatprep.subr.mxu0 0.0
        %3362 = vmatpush1.xpose.msra.mxu0 %v2192
        %3363 = vmatprep.subr.mxu0 0.0
        %3364 = vmatpush1.xpose.msra.mxu0 %v2195
        %3365 = vmatprep.subr.mxu0 0.0
        %3366 = vmatpush1.xpose.msra.mxu0 %v2198
        %3367 = vmatprep.subr.mxu0 0.0
        %3368 = vmatpush1.xpose.msra.mxu0 %v2201
        %3369 = vmatprep.subr.mxu0 0.0
        %3370 = vmatpush1.xpose.msra.mxu0 %v2204
        %3371 = vmatprep.subr.mxu0 0.0
        %3372 = vmatpush1.xpose.msra.mxu0 %v2207
        %3373 = vmatprep.subr.mxu0 0.0
        %3374 = vmatpush1.xpose.msra.mxu0 %v2210
        %3375 = vmatprep.subr.mxu0 0.0
        %3376 = vmatpush1.xpose.msra.mxu0 %v2213
        %3377 = vmatprep.subr.mxu0 0.0
        %3378 = vmatpush1.xpose.msra.mxu0 %v2216
        %3379 = vmatprep.subr.mxu0 0.0
        %3380 = vmatpush1.xpose.msra.mxu0 %v2219
        %3381 = vmatprep.subr.mxu0 0.0
        %3382 = vmatpush1.xpose.msra.mxu0 %v2222
        %3383 = vmatprep.subr.mxu0 0.0
        %3384 = vmatpush1.xpose.msra.mxu0 %v2225
        %3385 = vmatprep.subr.mxu0 0.0
        %3386 = vmatpush1.xpose.msra.mxu0 %v2228
        %3387 = vmatprep.subr.mxu0 0.0
        %3388 = vmatpush1.xpose.msra.mxu0 %v2231
        %3389 = vmatprep.subr.mxu0 0.0
        %3390 = vmatpush1.xpose.msra.mxu0 %v2234
        %3391 = vmatprep.subr.mxu0 0.0
        %3392 = vmatpush1.xpose.msra.mxu0 %v2237
        %3393 = vmatprep.mubr.f32.mxu0 0.0
        %3394 = vmatmul.mubr.f32.gmra.mrb[0].mxu0 %v797
        %v3395 = vpop.f32.mrb[0].mxu0
        %v3396 = vadd.f32 0.0, %v3395
        %v3397 = vpop.f32.mrb[0].mxu0
        %v3398 = vadd.f32 0.0, %v3397
        %3399 = vdwg.mxu0
        %3400 = vmatprep.subr.mxu0 0.0
        %3401 = vmatpush1.xpose.msra.mxu0 %v2240
        %3402 = vmatprep.subr.mxu0 0.0
        %3403 = vmatpush1.xpose.msra.mxu0 %v2243
        %3404 = vmatprep.subr.mxu0 0.0
        %3405 = vmatpush1.xpose.msra.mxu0 %v2246
        %3406 = vmatprep.subr.mxu0 0.0
        %3407 = vmatpush1.xpose.msra.mxu0 %v2249
        %3408 = vmatprep.subr.mxu0 0.0
        %3409 = vmatpush1.xpose.msra.mxu0 %v2252
        %3410 = vmatprep.subr.mxu0 0.0
        %3411 = vmatpush1.xpose.msra.mxu0 %v2255
        %3412 = vmatprep.subr.mxu0 0.0
        %3413 = vmatpush1.xpose.msra.mxu0 %v2258
        %3414 = vmatprep.subr.mxu0 0.0
        %3415 = vmatpush1.xpose.msra.mxu0 %v2261
        %3416 = vmatprep.subr.mxu0 0.0
        %3417 = vmatpush1.xpose.msra.mxu0 %v2264
        %3418 = vmatprep.subr.mxu0 0.0
        %3419 = vmatpush1.xpose.msra.mxu0 %v2267
        %3420 = vmatprep.subr.mxu0 0.0
        %3421 = vmatpush1.xpose.msra.mxu0 %v2270
        %3422 = vmatprep.subr.mxu0 0.0
        %3423 = vmatpush1.xpose.msra.mxu0 %v2273
        %3424 = vmatprep.subr.mxu0 0.0
        %3425 = vmatpush1.xpose.msra.mxu0 %v2276
        %3426 = vmatprep.subr.mxu0 0.0
        %3427 = vmatpush1.xpose.msra.mxu0 %v2279
        %3428 = vmatprep.subr.mxu0 0.0
        %3429 = vmatpush1.xpose.msra.mxu0 %v2282
        %3430 = vmatprep.subr.mxu0 0.0
        %3431 = vmatpush1.xpose.msra.mxu0 %v2285
        %3432 = vmatprep.subr.mxu0 0.0
        %3433 = vmatpush1.xpose.msra.mxu0 %v2288
        %3434 = vmatprep.subr.mxu0 0.0
        %3435 = vmatpush1.xpose.msra.mxu0 %v2291
        %3436 = vmatprep.subr.mxu0 0.0
        %3437 = vmatpush1.xpose.msra.mxu0 %v2294
        %3438 = vmatprep.subr.mxu0 0.0
        %3439 = vmatpush1.xpose.msra.mxu0 %v2297
        %3440 = vmatprep.subr.mxu0 0.0
        %3441 = vmatpush1.xpose.msra.mxu0 %v2300
        %3442 = vmatprep.subr.mxu0 0.0
        %3443 = vmatpush1.xpose.msra.mxu0 %v2303
        %3444 = vmatprep.subr.mxu0 0.0
        %3445 = vmatpush1.xpose.msra.mxu0 %v2306
        %3446 = vmatprep.subr.mxu0 0.0
        %3447 = vmatpush1.xpose.msra.mxu0 %v2309
        %3448 = vmatprep.subr.mxu0 0.0
        %3449 = vmatpush1.xpose.msra.mxu0 %v2312
        %3450 = vmatprep.subr.mxu0 0.0
        %3451 = vmatpush1.xpose.msra.mxu0 %v2315
        %3452 = vmatprep.subr.mxu0 0.0
        %3453 = vmatpush1.xpose.msra.mxu0 %v2318
        %3454 = vmatprep.subr.mxu0 0.0
        %3455 = vmatpush1.xpose.msra.mxu0 %v2321
        %3456 = vmatprep.subr.mxu0 0.0
        %3457 = vmatpush1.xpose.msra.mxu0 %v2324
        %3458 = vmatprep.subr.mxu0 0.0
        %3459 = vmatpush1.xpose.msra.mxu0 %v2327
        %3460 = vmatprep.subr.mxu0 0.0
        %3461 = vmatpush1.xpose.msra.mxu0 %v2330
        %3462 = vmatprep.subr.mxu0 0.0
        %3463 = vmatpush1.xpose.msra.mxu0 %v2333
        %3464 = vmatprep.mubr.f32.mxu0 0.0
        %3465 = vmatmul.mubr.f32.gmra.mrb[0].mxu0 %v797
        %v3466 = vpop.f32.mrb[0].mxu0
        %v3467 = vadd.f32 0.0, %v3466
        %v3468 = vpop.f32.mrb[0].mxu0
        %v3469 = vadd.f32 0.0, %v3468
        %3470 = vdwg.mxu0
        %v3503 = vcombine.low %v2402, %v2404
        %v3504 = vcombine.low %v2473, %v2475
        %v3506 = vunpack.c.l.s4 1983009808
        %v3507 = vunpack.c.0.s8 %v3506
        %v3508 = vlaneseq
        %v3509 = vshrl.u32 %v3508, 7
        %v3510 = vsub.s32 %v3507, %v3509
        %v3511 = vrot.slane %v3503, %v3510
        %v3513 = vunpack.c.l.s4 1983009808
        %v3514 = vunpack.c.0.s8 %v3513
        %v3515 = vlaneseq
        %v3516 = vshrl.u32 %v3515, 7
        %v3517 = vsub.s32 %v3514, %v3516
        %v3518 = vrot.slane %v3504, %v3517
        %v3519 = vcombine.low %v3511, %v3518
        %v3520 = vcombine.low %v2544, %v2546
        %v3521 = vcombine.low %v2615, %v2617
        %v3523 = vunpack.c.l.s4 1983009808
        %v3524 = vunpack.c.0.s8 %v3523
        %v3525 = vlaneseq
        %v3526 = vshrl.u32 %v3525, 7
        %v3527 = vsub.s32 %v3524, %v3526
        %v3528 = vrot.slane %v3520, %v3527
        %v3530 = vunpack.c.l.s4 1983009808
        %v3531 = vunpack.c.0.s8 %v3530
        %v3532 = vlaneseq
        %v3533 = vshrl.u32 %v3532, 7
        %v3534 = vsub.s32 %v3531, %v3533
        %v3535 = vrot.slane %v3521, %v3534
        %v3536 = vcombine.low %v3528, %v3535
        %v3537 = vcombine.low %v2686, %v2688
        %v3538 = vcombine.low %v2757, %v2759
        %v3540 = vunpack.c.l.s4 1983009808
        %v3541 = vunpack.c.0.s8 %v3540
        %v3542 = vlaneseq
        %v3543 = vshrl.u32 %v3542, 7
        %v3544 = vsub.s32 %v3541, %v3543
        %v3545 = vrot.slane %v3537, %v3544
        %v3547 = vunpack.c.l.s4 1983009808
        %v3548 = vunpack.c.0.s8 %v3547
        %v3549 = vlaneseq
        %v3550 = vshrl.u32 %v3549, 7
        %v3551 = vsub.s32 %v3548, %v3550
        %v3552 = vrot.slane %v3538, %v3551
        %v3553 = vcombine.low %v3545, %v3552
        %v3554 = vcombine.low %v2828, %v2830
        %v3555 = vcombine.low %v2899, %v2901
        %v3557 = vunpack.c.l.s4 1983009808
        %v3558 = vunpack.c.0.s8 %v3557
        %v3559 = vlaneseq
        %v3560 = vshrl.u32 %v3559, 7
        %v3561 = vsub.s32 %v3558, %v3560
        %v3562 = vrot.slane %v3554, %v3561
        %v3564 = vunpack.c.l.s4 1983009808
        %v3565 = vunpack.c.0.s8 %v3564
        %v3566 = vlaneseq
        %v3567 = vshrl.u32 %v3566, 7
        %v3568 = vsub.s32 %v3565, %v3567
        %v3569 = vrot.slane %v3555, %v3568
        %v3570 = vcombine.low %v3562, %v3569
        %v3571 = vcombine.low %v2970, %v2972
        %v3572 = vcombine.low %v3041, %v3043
        %v3574 = vunpack.c.l.s4 1983009808
        %v3575 = vunpack.c.0.s8 %v3574
        %v3576 = vlaneseq
        %v3577 = vshrl.u32 %v3576, 7
        %v3578 = vsub.s32 %v3575, %v3577
        %v3579 = vrot.slane %v3571, %v3578
        %v3581 = vunpack.c.l.s4 1983009808
        %v3582 = vunpack.c.0.s8 %v3581
        %v3583 = vlaneseq
        %v3584 = vshrl.u32 %v3583, 7
        %v3585 = vsub.s32 %v3582, %v3584
        %v3586 = vrot.slane %v3572, %v3585
        %v3587 = vcombine.low %v3579, %v3586
        %v3588 = vcombine.low %v3112, %v3114
        %v3589 = vcombine.low %v3183, %v3185
        %v3591 = vunpack.c.l.s4 1983009808
        %v3592 = vunpack.c.0.s8 %v3591
        %v3593 = vlaneseq
        %v3594 = vshrl.u32 %v3593, 7
        %v3595 = vsub.s32 %v3592, %v3594
        %v3596 = vrot.slane %v3588, %v3595
        %v3598 = vunpack.c.l.s4 1983009808
        %v3599 = vunpack.c.0.s8 %v3598
        %v3600 = vlaneseq
        %v3601 = vshrl.u32 %v3600, 7
        %v3602 = vsub.s32 %v3599, %v3601
        %v3603 = vrot.slane %v3589, %v3602
        %v3604 = vcombine.low %v3596, %v3603
        %v3605 = vcombine.low %v3254, %v3256
        %v3606 = vcombine.low %v3325, %v3327
        %v3608 = vunpack.c.l.s4 1983009808
        %v3609 = vunpack.c.0.s8 %v3608
        %v3610 = vlaneseq
        %v3611 = vshrl.u32 %v3610, 7
        %v3612 = vsub.s32 %v3609, %v3611
        %v3613 = vrot.slane %v3605, %v3612
        %v3615 = vunpack.c.l.s4 1983009808
        %v3616 = vunpack.c.0.s8 %v3615
        %v3617 = vlaneseq
        %v3618 = vshrl.u32 %v3617, 7
        %v3619 = vsub.s32 %v3616, %v3618
        %v3620 = vrot.slane %v3606, %v3619
        %v3621 = vcombine.low %v3613, %v3620
        %v3622 = vcombine.low %v3396, %v3398
        %v3623 = vcombine.low %v3467, %v3469
        %v3625 = vunpack.c.l.s4 1983009808
        %v3626 = vunpack.c.0.s8 %v3625
        %v3627 = vlaneseq
        %v3628 = vshrl.u32 %v3627, 7
        %v3629 = vsub.s32 %v3626, %v3628
        %v3630 = vrot.slane %v3622, %v3629
        %v3632 = vunpack.c.l.s4 1983009808
        %v3633 = vunpack.c.0.s8 %v3632
        %v3634 = vlaneseq
        %v3635 = vshrl.u32 %v3634, 7
        %v3636 = vsub.s32 %v3633, %v3635
        %v3637 = vrot.slane %v3623, %v3636
        %v3638 = vcombine.low %v3630, %v3637
        %v3647 = vadd.f32 %v274, %v3519
        %v3648 = vadd.f32 %v275, %v3536
        %v3649 = vadd.f32 %v276, %v3553
        %v3650 = vadd.f32 %v277, %v3570
        %v3651 = vadd.f32 %v278, %v3587
        %v3652 = vadd.f32 %v279, %v3604
        %v3653 = vadd.f32 %v280, %v3621
        %v3654 = vadd.f32 %v281, %v3638
        %3655 = vst [vmem:[%s258] sm:$0xff] %v3647
        %3656 = vst [vmem:[%s258 + $0x8] sm:$0xff] %v3648
        %3657 = vst [vmem:[%s258 + $0x10] sm:$0xff] %v3649
        %3658 = vst [vmem:[%s258 + $0x18] sm:$0xff] %v3650
        %3659 = vst [vmem:[%s258 + $0x20] sm:$0xff] %v3651
        %3660 = vst [vmem:[%s258 + $0x28] sm:$0xff] %v3652
        %3661 = vst [vmem:[%s258 + $0x30] sm:$0xff] %v3653
        %3662 = vst [vmem:[%s258 + $0x38] sm:$0xff] %v3654
        // Predicated region
        $region49: #{vae_forward.11} parent=31 // pred_check
          %p3663 = pneg %p262
        $region50: #{vae_forward.11} parent=31 // pred_check_branch
          %3665 = sbr.rel (%p3663) target = $region52
        $region51: #{vae_forward.11} parent=31 // pred_region
          %v3666 = vld [vmem:[%s258] sm:$0xff]
          %v3667 = vld [vmem:[%s258 + $0x8] sm:$0xff]
          %v3668 = vld [vmem:[%s258 + $0x10] sm:$0xff]
          %v3669 = vld [vmem:[%s258 + $0x18] sm:$0xff]
          %v3670 = vld [vmem:[%s258 + $0x20] sm:$0xff]
          %v3671 = vld [vmem:[%s258 + $0x28] sm:$0xff]
          %v3672 = vld [vmem:[%s258 + $0x30] sm:$0xff]
          %v3673 = vld [vmem:[%s258 + $0x38] sm:$0xff]
          %v3674 = vld [vmem:[%s231] sm:$0xff]
          %v3675 = vld [vmem:[%s231 + $0x8] sm:$0xff]
          %v3676 = vld [vmem:[%s231 + $0x10] sm:$0xff]
          %v3677 = vld [vmem:[%s231 + $0x18] sm:$0xff]
          %v3682 = vlaneseq
          %v3683 = vshrl.u32 %v3682, 7
          %v3684 = vsub.s32 0, %v3683
          %v3685 = vrot.slane %v3674, %v3684
          %v3686 = vlaneseq
          %v3687 = vshrl.u32 %v3686, 7
          %v3688 = vsub.s32 1, %v3687
          %v3689 = vrot.slane %v3674, %v3688
          %v3690 = vlaneseq
          %v3691 = vshrl.u32 %v3690, 7
          %v3692 = vsub.s32 2, %v3691
          %v3693 = vrot.slane %v3674, %v3692
          %v3694 = vlaneseq
          %v3695 = vshrl.u32 %v3694, 7
          %v3696 = vsub.s32 3, %v3695
          %v3697 = vrot.slane %v3674, %v3696
          %v3698 = vlaneseq
          %v3699 = vshrl.u32 %v3698, 7
          %v3700 = vsub.s32 4, %v3699
          %v3701 = vrot.slane %v3674, %v3700
          %v3702 = vlaneseq
          %v3703 = vshrl.u32 %v3702, 7
          %v3704 = vsub.s32 5, %v3703
          %v3705 = vrot.slane %v3674, %v3704
          %v3706 = vlaneseq
          %v3707 = vshrl.u32 %v3706, 7
          %v3708 = vsub.s32 6, %v3707
          %v3709 = vrot.slane %v3674, %v3708
          %v3710 = vlaneseq
          %v3711 = vshrl.u32 %v3710, 7
          %v3712 = vsub.s32 7, %v3711
          %v3713 = vrot.slane %v3674, %v3712
          %v3714 = vlaneseq
          %v3715 = vshrl.u32 %v3714, 7
          %v3716 = vsub.s32 0, %v3715
          %v3717 = vrot.slane %v3675, %v3716
          %v3718 = vlaneseq
          %v3719 = vshrl.u32 %v3718, 7
          %v3720 = vsub.s32 1, %v3719
          %v3721 = vrot.slane %v3675, %v3720
          %v3722 = vlaneseq
          %v3723 = vshrl.u32 %v3722, 7
          %v3724 = vsub.s32 2, %v3723
          %v3725 = vrot.slane %v3675, %v3724
          %v3726 = vlaneseq
          %v3727 = vshrl.u32 %v3726, 7
          %v3728 = vsub.s32 3, %v3727
          %v3729 = vrot.slane %v3675, %v3728
          %v3730 = vlaneseq
          %v3731 = vshrl.u32 %v3730, 7
          %v3732 = vsub.s32 4, %v3731
          %v3733 = vrot.slane %v3675, %v3732
          %v3734 = vlaneseq
          %v3735 = vshrl.u32 %v3734, 7
          %v3736 = vsub.s32 5, %v3735
          %v3737 = vrot.slane %v3675, %v3736
          %v3738 = vlaneseq
          %v3739 = vshrl.u32 %v3738, 7
          %v3740 = vsub.s32 6, %v3739
          %v3741 = vrot.slane %v3675, %v3740
          %v3742 = vlaneseq
          %v3743 = vshrl.u32 %v3742, 7
          %v3744 = vsub.s32 7, %v3743
          %v3745 = vrot.slane %v3675, %v3744
          %v3746 = vlaneseq
          %v3747 = vshrl.u32 %v3746, 7
          %v3748 = vsub.s32 0, %v3747
          %v3749 = vrot.slane %v3676, %v3748
          %v3750 = vlaneseq
          %v3751 = vshrl.u32 %v3750, 7
          %v3752 = vsub.s32 1, %v3751
          %v3753 = vrot.slane %v3676, %v3752
          %v3754 = vlaneseq
          %v3755 = vshrl.u32 %v3754, 7
          %v3756 = vsub.s32 2, %v3755
          %v3757 = vrot.slane %v3676, %v3756
          %v3758 = vlaneseq
          %v3759 = vshrl.u32 %v3758, 7
          %v3760 = vsub.s32 3, %v3759
          %v3761 = vrot.slane %v3676, %v3760
          %v3762 = vlaneseq
          %v3763 = vshrl.u32 %v3762, 7
          %v3764 = vsub.s32 4, %v3763
          %v3765 = vrot.slane %v3676, %v3764
          %v3766 = vlaneseq
          %v3767 = vshrl.u32 %v3766, 7
          %v3768 = vsub.s32 5, %v3767
          %v3769 = vrot.slane %v3676, %v3768
          %v3770 = vlaneseq
          %v3771 = vshrl.u32 %v3770, 7
          %v3772 = vsub.s32 6, %v3771
          %v3773 = vrot.slane %v3676, %v3772
          %v3774 = vlaneseq
          %v3775 = vshrl.u32 %v3774, 7
          %v3776 = vsub.s32 7, %v3775
          %v3777 = vrot.slane %v3676, %v3776
          %v3778 = vlaneseq
          %v3779 = vshrl.u32 %v3778, 7
          %v3780 = vsub.s32 0, %v3779
          %v3781 = vrot.slane %v3677, %v3780
          %v3782 = vlaneseq
          %v3783 = vshrl.u32 %v3782, 7
          %v3784 = vsub.s32 1, %v3783
          %v3785 = vrot.slane %v3677, %v3784
          %v3786 = vlaneseq
          %v3787 = vshrl.u32 %v3786, 7
          %v3788 = vsub.s32 2, %v3787
          %v3789 = vrot.slane %v3677, %v3788
          %v3790 = vlaneseq
          %v3791 = vshrl.u32 %v3790, 7
          %v3792 = vsub.s32 3, %v3791
          %v3793 = vrot.slane %v3677, %v3792
          %v3794 = vlaneseq
          %v3795 = vshrl.u32 %v3794, 7
          %v3796 = vsub.s32 4, %v3795
          %v3797 = vrot.slane %v3677, %v3796
          %v3798 = vlaneseq
          %v3799 = vshrl.u32 %v3798, 7
          %v3800 = vsub.s32 5, %v3799
          %v3801 = vrot.slane %v3677, %v3800
          %v3802 = vlaneseq
          %v3803 = vshrl.u32 %v3802, 7
          %v3804 = vsub.s32 6, %v3803
          %v3805 = vrot.slane %v3677, %v3804
          %v3806 = vlaneseq
          %v3807 = vshrl.u32 %v3806, 7
          %v3808 = vsub.s32 7, %v3807
          %v3809 = vrot.slane %v3677, %v3808
          %v3810 = vcombine.low %v3685, %v3689
          %v3811 = vcombine.low %v3693, %v3697
          %v3813 = vunpack.c.l.s4 1983009808
          %v3814 = vunpack.c.0.s8 %v3813
          %v3815 = vlaneseq
          %v3816 = vshrl.u32 %v3815, 7
          %v3817 = vsub.s32 %v3814, %v3816
          %v3818 = vrot.slane %v3810, %v3817
          %v3820 = vunpack.c.l.s4 1983009808
          %v3821 = vunpack.c.0.s8 %v3820
          %v3822 = vlaneseq
          %v3823 = vshrl.u32 %v3822, 7
          %v3824 = vsub.s32 %v3821, %v3823
          %v3825 = vrot.slane %v3811, %v3824
          %v3826 = vcombine.low %v3818, %v3825
          %v3827 = vcombine.low %v3701, %v3705
          %v3828 = vcombine.low %v3709, %v3713
          %v3830 = vunpack.c.l.s4 1983009808
          %v3831 = vunpack.c.0.s8 %v3830
          %v3832 = vlaneseq
          %v3833 = vshrl.u32 %v3832, 7
          %v3834 = vsub.s32 %v3831, %v3833
          %v3835 = vrot.slane %v3827, %v3834
          %v3837 = vunpack.c.l.s4 1983009808
          %v3838 = vunpack.c.0.s8 %v3837
          %v3839 = vlaneseq
          %v3840 = vshrl.u32 %v3839, 7
          %v3841 = vsub.s32 %v3838, %v3840
          %v3842 = vrot.slane %v3828, %v3841
          %v3843 = vcombine.low %v3835, %v3842
          %v3844 = vcombine.low %v3717, %v3721
          %v3845 = vcombine.low %v3725, %v3729
          %v3847 = vunpack.c.l.s4 1983009808
          %v3848 = vunpack.c.0.s8 %v3847
          %v3849 = vlaneseq
          %v3850 = vshrl.u32 %v3849, 7
          %v3851 = vsub.s32 %v3848, %v3850
          %v3852 = vrot.slane %v3844, %v3851
          %v3854 = vunpack.c.l.s4 1983009808
          %v3855 = vunpack.c.0.s8 %v3854
          %v3856 = vlaneseq
          %v3857 = vshrl.u32 %v3856, 7
          %v3858 = vsub.s32 %v3855, %v3857
          %v3859 = vrot.slane %v3845, %v3858
          %v3860 = vcombine.low %v3852, %v3859
          %v3861 = vcombine.low %v3733, %v3737
          %v3862 = vcombine.low %v3741, %v3745
          %v3864 = vunpack.c.l.s4 1983009808
          %v3865 = vunpack.c.0.s8 %v3864
          %v3866 = vlaneseq
          %v3867 = vshrl.u32 %v3866, 7
          %v3868 = vsub.s32 %v3865, %v3867
          %v3869 = vrot.slane %v3861, %v3868
          %v3871 = vunpack.c.l.s4 1983009808
          %v3872 = vunpack.c.0.s8 %v3871
          %v3873 = vlaneseq
          %v3874 = vshrl.u32 %v3873, 7
          %v3875 = vsub.s32 %v3872, %v3874
          %v3876 = vrot.slane %v3862, %v3875
          %v3877 = vcombine.low %v3869, %v3876
          %v3878 = vcombine.low %v3749, %v3753
          %v3879 = vcombine.low %v3757, %v3761
          %v3881 = vunpack.c.l.s4 1983009808
          %v3882 = vunpack.c.0.s8 %v3881
          %v3883 = vlaneseq
          %v3884 = vshrl.u32 %v3883, 7
          %v3885 = vsub.s32 %v3882, %v3884
          %v3886 = vrot.slane %v3878, %v3885
          %v3888 = vunpack.c.l.s4 1983009808
          %v3889 = vunpack.c.0.s8 %v3888
          %v3890 = vlaneseq
          %v3891 = vshrl.u32 %v3890, 7
          %v3892 = vsub.s32 %v3889, %v3891
          %v3893 = vrot.slane %v3879, %v3892
          %v3894 = vcombine.low %v3886, %v3893
          %v3895 = vcombine.low %v3765, %v3769
          %v3896 = vcombine.low %v3773, %v3777
          %v3898 = vunpack.c.l.s4 1983009808
          %v3899 = vunpack.c.0.s8 %v3898
          %v3900 = vlaneseq
          %v3901 = vshrl.u32 %v3900, 7
          %v3902 = vsub.s32 %v3899, %v3901
          %v3903 = vrot.slane %v3895, %v3902
          %v3905 = vunpack.c.l.s4 1983009808
          %v3906 = vunpack.c.0.s8 %v3905
          %v3907 = vlaneseq
          %v3908 = vshrl.u32 %v3907, 7
          %v3909 = vsub.s32 %v3906, %v3908
          %v3910 = vrot.slane %v3896, %v3909
          %v3911 = vcombine.low %v3903, %v3910
          %v3912 = vcombine.low %v3781, %v3785
          %v3913 = vcombine.low %v3789, %v3793
          %v3915 = vunpack.c.l.s4 1983009808
          %v3916 = vunpack.c.0.s8 %v3915
          %v3917 = vlaneseq
          %v3918 = vshrl.u32 %v3917, 7
          %v3919 = vsub.s32 %v3916, %v3918
          %v3920 = vrot.slane %v3912, %v3919
          %v3922 = vunpack.c.l.s4 1983009808
          %v3923 = vunpack.c.0.s8 %v3922
          %v3924 = vlaneseq
          %v3925 = vshrl.u32 %v3924, 7
          %v3926 = vsub.s32 %v3923, %v3925
          %v3927 = vrot.slane %v3913, %v3926
          %v3928 = vcombine.low %v3920, %v3927
          %v3929 = vcombine.low %v3797, %v3801
          %v3930 = vcombine.low %v3805, %v3809
          %v3932 = vunpack.c.l.s4 1983009808
          %v3933 = vunpack.c.0.s8 %v3932
          %v3934 = vlaneseq
          %v3935 = vshrl.u32 %v3934, 7
          %v3936 = vsub.s32 %v3933, %v3935
          %v3937 = vrot.slane %v3929, %v3936
          %v3939 = vunpack.c.l.s4 1983009808
          %v3940 = vunpack.c.0.s8 %v3939
          %v3941 = vlaneseq
          %v3942 = vshrl.u32 %v3941, 7
          %v3943 = vsub.s32 %v3940, %v3942
          %v3944 = vrot.slane %v3930, %v3943
          %v3945 = vcombine.low %v3937, %v3944
          %v3954 = vadd.f32 %v3666, %v3826
          %v3955 = vadd.f32 %v3667, %v3843
          %v3956 = vadd.f32 %v3668, %v3860
          %v3957 = vadd.f32 %v3669, %v3877
          %v3958 = vadd.f32 %v3670, %v3894
          %v3959 = vadd.f32 %v3671, %v3911
          %v3960 = vadd.f32 %v3672, %v3928
          %v3961 = vadd.f32 %v3673, %v3945
          %v3962 = vmax.f32 %v3954, 0.0
          %v3963 = vmax.f32 %v3955, 0.0
          %v3964 = vmax.f32 %v3956, 0.0
          %v3965 = vmax.f32 %v3957, 0.0
          %v3966 = vmax.f32 %v3958, 0.0
          %v3967 = vmax.f32 %v3959, 0.0
          %v3968 = vmax.f32 %v3960, 0.0
          %v3969 = vmax.f32 %v3961, 0.0
          %3970 = vst [vmem:[%s258] sm:$0xff] %v3962
          %3971 = vst [vmem:[%s258 + $0x8] sm:$0xff] %v3963
          %3972 = vst [vmem:[%s258 + $0x10] sm:$0xff] %v3964
          %3973 = vst [vmem:[%s258 + $0x18] sm:$0xff] %v3965
          %3974 = vst [vmem:[%s258 + $0x20] sm:$0xff] %v3966
          %3975 = vst [vmem:[%s258 + $0x28] sm:$0xff] %v3967
          %3976 = vst [vmem:[%s258 + $0x30] sm:$0xff] %v3968
          %3977 = vst [vmem:[%s258 + $0x38] sm:$0xff] %v3969
        $region52: #{vae_forward.11} parent=31 // pred_fallthru
          _
        %s3978 = sand.u32 %s121, 1
        %s3979 = scalar_lea.sflag [#allocation4], %s3978
        %s3980 = sand.u32 %s121, 1
        %s3981 = smul.addr %s3980, 64
        %s3982 = scalar_lea.vmem [#allocation8], %s3981
        // Predicated region
        $region53: #{vae_forward.11} parent=31 // pred_check
          %p3983 = pneg %p131
        $region54: #{vae_forward.11} parent=31 // pred_check_branch
          %3985 = sbr.rel (%p3983) target = $region56
        $region55: #{vae_forward.11} parent=31 // pred_region
          %s3986 = smul.u32 32, %s25
          %s3988 = ssub.s32 1024, 1024
          %3989 = vsyncadd %s3979, %s3988
          %s3990 = smul.addr %s3986, 32
          %s3991 = scalar_lea.hbm %s3, %s3990
          %s3993 = sshll.u32 %s3982, 4
          %s3994 = int_to_ptr.vmem [resolvable:$true] %s3993
          %3996 = dma.vmem_to_hbm [thread:$0]  %s3994, 1024, %s3991, %s3979
        $region56: #{vae_forward.11} parent=31 // pred_fallthru
          _
      $region32: #{vae_forward.11} parent=5 // pred_fallthru
        _
      %p3997 = scmp.le.s32.totalorder 2, %s16
      // Predicated region
      $region57: #{vae_forward.11} parent=5 // pred_check
        %p3998 = pneg %p3997
      $region58: #{vae_forward.11} parent=5 // pred_check_branch
        %4000 = sbr.rel (%p3998) target = $region60
      $region59: #{vae_forward.11} parent=5 // pred_region
        %s4001 = ssub.s32 %s16, 2
        // Predicated region
        $region61: #{vae_forward.11} parent=59 // pred_check
          %p4002 = pneg %p137
        $region62: #{vae_forward.11} parent=59 // pred_check_branch
          %4004 = sbr.rel (%p4002) target = $region64
        $region63: #{vae_forward.11} parent=59 // pred_region
          %s4005 = sand.u32 %s122, 1
          %s4006 = scalar_lea.sflag [#allocation4], %s4005
          %s4007 = sand.u32 %s122, 1
          %s4008 = smul.addr %s4007, 64
          %s4009 = scalar_lea.vmem [#allocation8], %s4008
          %4010 = dma.done %s4006, 1024
        $region64: #{vae_forward.11} parent=59 // pred_fallthru
          _
      $region60: #{vae_forward.11} parent=5 // pred_fallthru
        _
    $region6: #{vae_forward.11} parent=1 // loop_footer
      %s20 = sadd.s32 1, %s16
    $region7: #{vae_forward.11} parent=1 // loop_footer_branch
      %15 = sbr.rel target = $region3
    $region8: #{vae_forward.11} parent=1 // loop_exit
      _
    %4011 = vsyncpa [#allocation3], 1
    %s4012 = scalar_lea.sflag [#allocation3], 1
    %4013 = vsyncpa %s4012, 1
    %4014 = vsyncpa [#allocation6], 1
    %s4015 = scalar_lea.sflag [#allocation6], 1
    %4016 = vsyncpa %s4015, 1
    %4017 = vsyncpa [#allocation4], 1
    %s4018 = scalar_lea.sflag [#allocation4], 1
    %4019 = vsyncpa %s4018, 1

// kernel: squeeze.30
$region0: #{squeeze.30}
  %s0 = inlined_call_operand.vmem [shape: f32[2,32,32], index: 0, kind: input, shape index: {}]
  %s1 = inlined_call_operand.vmem [shape: f32[2,1,1024], index: 1, kind: output, shape index: {}]
  $region1: #{squeeze.30} parent=0
    #allocation0 [shape = 'u8[65536]{0}', space=vmem, size = 0x10000, scoped, tag = 'scoped mem for output reshape']
    %v2 = vld [vmem:[%s0] ss:$4 sm:$0xff]
    %vm3 = vcmask 261120
    %4 = vst.msk [vmem:[#allocation0] ss:$8 sm:$0xf] %vm3, %v2
    %5 = vst.msk [vmem:[#allocation0] ss:$8 sm:$0xf0] %vm3, %v2
    %s6 = scalar_lea.vmem %s0, 32
    %v7 = vld [vmem:[%s6] ss:$4 sm:$0xff]
    %vm8 = vcmask 261120
    %s9 = scalar_lea.vmem [#allocation0], 64
    %10 = vst.msk [vmem:[%s9] ss:$8 sm:$0xf] %vm8, %v7
    %s11 = scalar_lea.vmem [#allocation0], 64
    %12 = vst.msk [vmem:[%s11] ss:$8 sm:$0xf0] %vm8, %v7
    %s13 = scalar_lea.vmem %s0, 3
    %v14 = vld [vmem:[%s13] ss:$4 sm:$0xff]
    %15 = vrot.lane.b32.xlu0 %v14, 96
    %v16 = vpop.permute.xlu0 %15
    %vm17 = vcmask 1048320
    %18 = vst.msk [vmem:[#allocation0] ss:$8 sm:$0xf] %vm17, %v16
    %19 = vst.msk [vmem:[#allocation0] ss:$8 sm:$0xf0] %vm17, %v16
    %s20 = scalar_lea.vmem %s0, 35
    %v21 = vld [vmem:[%s20] ss:$4 sm:$0xff]
    %22 = vrot.lane.b32.xlu0 %v21, 96
    %v23 = vpop.permute.xlu0 %22
    %vm24 = vcmask 1048320
    %s25 = scalar_lea.vmem [#allocation0], 64
    %26 = vst.msk [vmem:[%s25] ss:$8 sm:$0xf] %vm24, %v23
    %s27 = scalar_lea.vmem [#allocation0], 64
    %28 = vst.msk [vmem:[%s27] ss:$8 sm:$0xf0] %vm24, %v23
    %s29 = scalar_lea.vmem %s0, 2
    %v30 = vld [vmem:[%s29] ss:$4 sm:$0xff]
    %31 = vrot.lane.b32.xlu0 %v30, 64
    %v32 = vpop.permute.xlu0 %31
    %vm33 = vcmask 785920
    %34 = vst.msk [vmem:[#allocation0] ss:$8 sm:$0xf] %vm33, %v32
    %35 = vst.msk [vmem:[#allocation0] ss:$8 sm:$0xf0] %vm33, %v32
    %s36 = scalar_lea.vmem %s0, 34
    %v37 = vld [vmem:[%s36] ss:$4 sm:$0xff]
    %38 = vrot.lane.b32.xlu0 %v37, 64
    %v39 = vpop.permute.xlu0 %38
    %vm40 = vcmask 785920
    %s41 = scalar_lea.vmem [#allocation0], 64
    %42 = vst.msk [vmem:[%s41] ss:$8 sm:$0xf] %vm40, %v39
    %s43 = scalar_lea.vmem [#allocation0], 64
    %44 = vst.msk [vmem:[%s43] ss:$8 sm:$0xf0] %vm40, %v39
    %s45 = scalar_lea.vmem %s0, 1
    %v46 = vld [vmem:[%s45] ss:$4 sm:$0xff]
    %47 = vrot.lane.b32.xlu0 %v46, 32
    %v48 = vpop.permute.xlu0 %47
    %vm49 = vcmask 523520
    %50 = vst.msk [vmem:[#allocation0] ss:$8 sm:$0xf] %vm49, %v48
    %51 = vst.msk [vmem:[#allocation0] ss:$8 sm:$0xf0] %vm49, %v48
    %s52 = scalar_lea.vmem %s0, 33
    %v53 = vld [vmem:[%s52] ss:$4 sm:$0xff]
    %54 = vrot.lane.b32.xlu0 %v53, 32
    %v55 = vpop.permute.xlu0 %54
    %vm56 = vcmask 523520
    %s57 = scalar_lea.vmem [#allocation0], 64
    %58 = vst.msk [vmem:[%s57] ss:$8 sm:$0xf] %vm56, %v55
    %s59 = scalar_lea.vmem [#allocation0], 64
    %60 = vst.msk [vmem:[%s59] ss:$8 sm:$0xf0] %vm56, %v55
    %s62 = sshllo.u32 0, 1
    %v64 = vld [vmem:[#allocation0] sm:%s62]
    %s65 = sshllo.u32 0, 1
    %66 = vst [vmem:[%s1] sm:%s65] %v64
    %s67 = scalar_lea.vmem [#allocation0], 8
    %v68 = vld [vmem:[%s67] sm:%s62]
    %s69 = sshllo.u32 0, 1
    %s70 = scalar_lea.vmem %s1, 1
    %71 = vst [vmem:[%s70] sm:%s69] %v68
    %s72 = scalar_lea.vmem [#allocation0], 16
    %v73 = vld [vmem:[%s72] sm:%s62]
    %s74 = sshllo.u32 0, 1
    %s75 = smul.addr 1, 2
    %s76 = scalar_lea.vmem %s1, %s75
    %77 = vst [vmem:[%s76] sm:%s74] %v73
    %s78 = scalar_lea.vmem [#allocation0], 24
    %v79 = vld [vmem:[%s78] sm:%s62]
    %s80 = sshllo.u32 0, 1
    %s81 = smul.addr 1, 3
    %s82 = scalar_lea.vmem %s1, %s81
    %83 = vst [vmem:[%s82] sm:%s80] %v79
    %s84 = scalar_lea.vmem [#allocation0], 32
    %v85 = vld [vmem:[%s84] sm:%s62]
    %s86 = sshllo.u32 0, 1
    %s87 = smul.addr 1, 4
    %s88 = scalar_lea.vmem %s1, %s87
    %89 = vst [vmem:[%s88] sm:%s86] %v85
    %s90 = scalar_lea.vmem [#allocation0], 40
    %v91 = vld [vmem:[%s90] sm:%s62]
    %s92 = sshllo.u32 0, 1
    %s93 = smul.addr 1, 5
    %s94 = scalar_lea.vmem %s1, %s93
    %95 = vst [vmem:[%s94] sm:%s92] %v91
    %s96 = scalar_lea.vmem [#allocation0], 48
    %v97 = vld [vmem:[%s96] sm:%s62]
    %s98 = sshllo.u32 0, 1
    %s99 = smul.addr 1, 6
    %s100 = scalar_lea.vmem %s1, %s99
    %101 = vst [vmem:[%s100] sm:%s98] %v97
    %s102 = scalar_lea.vmem [#allocation0], 56
    %v103 = vld [vmem:[%s102] sm:%s62]
    %s104 = sshllo.u32 0, 1
    %s105 = smul.addr 1, 7
    %s106 = scalar_lea.vmem %s1, %s105
    %107 = vst [vmem:[%s106] sm:%s104] %v103
    %s108 = scalar_lea.vmem [#allocation0], 64
    %v109 = vld [vmem:[%s108] sm:%s62]
    %s110 = sshllo.u32 0, 1
    %s111 = smul.addr 1, 8
    %s112 = scalar_lea.vmem %s1, %s111
    %113 = vst [vmem:[%s112] sm:%s110] %v109
    %s114 = scalar_lea.vmem [#allocation0], 72
    %v115 = vld [vmem:[%s114] sm:%s62]
    %s116 = sshllo.u32 0, 1
    %s117 = smul.addr 1, 9
    %s118 = scalar_lea.vmem %s1, %s117
    %119 = vst [vmem:[%s118] sm:%s116] %v115
    %s120 = scalar_lea.vmem [#allocation0], 80
    %v121 = vld [vmem:[%s120] sm:%s62]
    %s122 = sshllo.u32 0, 1
    %s123 = smul.addr 1, 10
    %s124 = scalar_lea.vmem %s1, %s123
    %125 = vst [vmem:[%s124] sm:%s122] %v121
    %s126 = scalar_lea.vmem [#allocation0], 88
    %v127 = vld [vmem:[%s126] sm:%s62]
    %s128 = sshllo.u32 0, 1
    %s129 = smul.addr 1, 11
    %s130 = scalar_lea.vmem %s1, %s129
    %131 = vst [vmem:[%s130] sm:%s128] %v127
    %s132 = scalar_lea.vmem [#allocation0], 96
    %v133 = vld [vmem:[%s132] sm:%s62]
    %s134 = sshllo.u32 0, 1
    %s135 = smul.addr 1, 12
    %s136 = scalar_lea.vmem %s1, %s135
    %137 = vst [vmem:[%s136] sm:%s134] %v133
    %s138 = scalar_lea.vmem [#allocation0], 104
    %v139 = vld [vmem:[%s138] sm:%s62]
    %s140 = sshllo.u32 0, 1
    %s141 = smul.addr 1, 13
    %s142 = scalar_lea.vmem %s1, %s141
    %143 = vst [vmem:[%s142] sm:%s140] %v139
    %s144 = scalar_lea.vmem [#allocation0], 112
    %v145 = vld [vmem:[%s144] sm:%s62]
    %s146 = sshllo.u32 0, 1
    %s147 = smul.addr 1, 14
    %s148 = scalar_lea.vmem %s1, %s147
    %149 = vst [vmem:[%s148] sm:%s146] %v145
    %s150 = scalar_lea.vmem [#allocation0], 120
    %v151 = vld [vmem:[%s150] sm:%s62]
    %s152 = sshllo.u32 0, 1
    %s153 = smul.addr 1, 15
    %s154 = scalar_lea.vmem %s1, %s153
    %155 = vst [vmem:[%s154] sm:%s152] %v151

// kernel: vae_forward.13
$region0: #{vae_forward.13}
  #allocation0 [shape = 'u32[]', space=smem, size = 0x4, offset = 0x4, fixed_abs, tag = 'smem constant byte address 0x4 - core index']
  #allocation1 [shape = 'u32[144,128]{1,0:T(1,128)}', space=vmem, size = 0x12000, scoped, tag = 'internal scratch']
  %s0 = inlined_call_operand.vmem [shape: f32[2,288,1024], index: 0, kind: input, shape index: {}]
  %s1 = inlined_call_operand.vmem [shape: f32[3,288], index: 1, kind: input, shape index: {}]
  %s2 = inlined_call_operand.vmem [shape: f32[3,1], index: 2, kind: input, shape index: {}]
  %s3 = inlined_call_operand.vmem [shape: f32[2,3,1024], index: 3, kind: output, shape index: {}]
  %s4 = sld [smem:[#allocation0]]
  $region45: #{vae_forward.13} parent=0
    _
  %s6 = ssub.s32 1, %s4
  %s7 = scalar_select 0, %s6, %s4
  loop: start=0, step=1, limit=4
  $region2: #{vae_forward.13} parent=0 // loop_pre_header
    _
  $region3: #{vae_forward.13} parent=0 // loop_header
    %s9 = sphi 0, %s13
    %p10 = scmp.ge.s32.totalorder %s9, 4
    %s16 = sphi 0, %s28
    %s17 = sphi 0, %s24
    %s18 = sphi 0, %s16
    %s19 = sphi 0, %s17
    %s20 = sphi 0, %s18
    %s21 = sphi 0, %s19
    %s33 = sphi 0, %s35
    %s36 = sphi 0, %s33
    %s37 = sphi 0, %s36
    %s53 = sphi 0, %s37
    %s57 = sphi 0, %s57
    %s59 = sphi 0, %s57
    %s60 = sphi 0, %s59
    %s74 = sphi 0, %s60
    %s78 = sphi 0, %s78
    %s80 = sphi 0, %s78
    %s81 = sphi 0, %s80
    %s95 = sphi 0, %s81
    %s103 = sphi 0, %s105
    %s106 = sphi 0, %s103
    %s107 = sphi 0, %s106
    %s123 = sphi 0, %s107
  $region4: #{vae_forward.13} parent=0 // loop_header_branch
    %12 = sbr.rel (%p10) target = $region8
  $region5: #{vae_forward.13} parent=0 // loop_body
    %s14 = ssub.s32 %s9, 1
    %s15 = ssub.s32 %s9, 2
    %s22 = sadd.s32 1, %s17
    %p23 = scmp.ge.s32.totalorder %s22, 1
    %s24 = scalar_select %p23, 0, %s22
    %s25 = sadd.s32 1, %s16
    %s26 = scalar_select %p23, %s25, %s16
    %p27 = scmp.ge.s32.totalorder %s26, 2
    %s28 = scalar_select %p27, 0, %s26
    %s29 = ssub.s32 %s16, %s28
    %s30 = ssub.s32 %s17, %s24
    %s31 = sor.u32 %s29, %s30
    %p32 = scmp.eq.s32.totalorder %s31, 0
    %s34 = sadd.s32 %s33, 1
    %s35 = scalar_select %p32, %s33, %s34
    %p38 = pneg %p32
    %p39 = scmp.eq.s32.totalorder %s9, 1
    %p40 = por %p38, %p39
    %p41 = scmp.ne.s32.totalorder %s33, %s36
    %p42 = scmp.eq.s32.totalorder %s9, 0
    %p43 = por %p41, %p42
    %p44 = scmp.ne.s32.totalorder %s33, %s36
    %p45 = scmp.eq.s32.totalorder %s14, 1
    %p46 = por %p44, %p45
    %p47 = scmp.ne.s32.totalorder %s36, %s37
    %p48 = scmp.eq.s32.totalorder %s14, 0
    %p49 = por %p47, %p48
    %p50 = scmp.ne.s32.totalorder %s36, %s37
    %p51 = scmp.eq.s32.totalorder %s15, 1
    %p52 = por %p50, %p51
    %p54 = scmp.ne.s32.totalorder %s37, %s53
    %p55 = scmp.eq.s32.totalorder %s15, 0
    %p56 = por %p54, %p55
    %s58 = sadd.s32 %s57, 1
    %p61 = scmp.eq.s32.totalorder %s9, 1
    %p62 = scmp.ne.s32.totalorder %s57, %s59
    %p63 = scmp.eq.s32.totalorder %s9, 0
    %p64 = por %p62, %p63
    %p65 = scmp.ne.s32.totalorder %s57, %s59
    %p66 = scmp.eq.s32.totalorder %s14, 1
    %p67 = por %p65, %p66
    %p68 = scmp.ne.s32.totalorder %s59, %s60
    %p69 = scmp.eq.s32.totalorder %s14, 0
    %p70 = por %p68, %p69
    %p71 = scmp.ne.s32.totalorder %s59, %s60
    %p72 = scmp.eq.s32.totalorder %s15, 1
    %p73 = por %p71, %p72
    %p75 = scmp.ne.s32.totalorder %s60, %s74
    %p76 = scmp.eq.s32.totalorder %s15, 0
    %p77 = por %p75, %p76
    %s79 = sadd.s32 %s78, 1
    %p82 = scmp.eq.s32.totalorder %s9, 1
    %p83 = scmp.ne.s32.totalorder %s78, %s80
    %p84 = scmp.eq.s32.totalorder %s9, 0
    %p85 = por %p83, %p84
    %p86 = scmp.ne.s32.totalorder %s78, %s80
    %p87 = scmp.eq.s32.totalorder %s14, 1
    %p88 = por %p86, %p87
    %p89 = scmp.ne.s32.totalorder %s80, %s81
    %p90 = scmp.eq.s32.totalorder %s14, 0
    %p91 = por %p89, %p90
    %p92 = scmp.ne.s32.totalorder %s80, %s81
    %p93 = scmp.eq.s32.totalorder %s15, 1
    %p94 = por %p92, %p93
    %p96 = scmp.ne.s32.totalorder %s81, %s95
    %p97 = scmp.eq.s32.totalorder %s15, 0
    %p98 = por %p96, %p97
    %s99 = ssub.s32 %s16, %s28
    %s100 = ssub.s32 %s17, %s24
    %s101 = sor.u32 %s99, %s100
    %p102 = scmp.eq.s32.totalorder %s101, 0
    %s104 = sadd.s32 %s103, 1
    %s105 = scalar_select %p102, %s103, %s104
    %p108 = pneg %p102
    %p109 = scmp.eq.s32.totalorder %s9, 1
    %p110 = por %p108, %p109
    %p111 = scmp.ne.s32.totalorder %s103, %s106
    %p112 = scmp.eq.s32.totalorder %s9, 0
    %p113 = por %p111, %p112
    %p114 = scmp.ne.s32.totalorder %s103, %s106
    %p115 = scmp.eq.s32.totalorder %s14, 1
    %p116 = por %p114, %p115
    %p117 = scmp.ne.s32.totalorder %s106, %s107
    %p118 = scmp.eq.s32.totalorder %s14, 0
    %p119 = por %p117, %p118
    %p120 = scmp.ne.s32.totalorder %s106, %s107
    %p121 = scmp.eq.s32.totalorder %s15, 1
    %p122 = por %p120, %p121
    %p124 = scmp.ne.s32.totalorder %s107, %s123
    %p125 = scmp.eq.s32.totalorder %s15, 0
    %p126 = por %p124, %p125
    %p127 = scmp.le.s32.totalorder 1, %s9
    %p128 = scmp.lt.s32.totalorder %s9, 3
    %p129 = pnand %p127, %p128
    %p130 = pneg %p129
    // Predicated region
    $region9: #{vae_forward.13} parent=5 // pred_check
      _
    $region10: #{vae_forward.13} parent=5 // pred_check_branch
      %132 = sbr.rel (%p129) target = $region12
    $region11: #{vae_forward.13} parent=5 // pred_region
      %s133 = ssub.s32 %s9, 1
      // Predicated region
      $region13: #{vae_forward.13} parent=11 // pred_check
        %p134 = pneg %p70
      $region14: #{vae_forward.13} parent=11 // pred_check_branch
        %136 = sbr.rel (%p134) target = $region16
      $region15: #{vae_forward.13} parent=11 // pred_region
        _
      $region16: #{vae_forward.13} parent=11 // pred_fallthru
        _
      // Predicated region
      $region17: #{vae_forward.13} parent=11 // pred_check
        %p137 = pneg %p91
      $region18: #{vae_forward.13} parent=11 // pred_check_branch
        %139 = sbr.rel (%p137) target = $region20
      $region19: #{vae_forward.13} parent=11 // pred_region
        _
      $region20: #{vae_forward.13} parent=11 // pred_fallthru
        _
    $region12: #{vae_forward.13} parent=5 // pred_fallthru
      _
    %p140 = scmp.lt.s32.totalorder %s9, 2
    // Predicated region
    $region21: #{vae_forward.13} parent=5 // pred_check
      %p141 = pneg %p140
    $region22: #{vae_forward.13} parent=5 // pred_check_branch
      %143 = sbr.rel (%p141) target = $region24
    $region23: #{vae_forward.13} parent=5 // pred_region
      // Predicated region
      $region25: #{vae_forward.13} parent=23 // pred_check
        %p144 = pneg %p43
      $region26: #{vae_forward.13} parent=23 // pred_check_branch
        %146 = sbr.rel (%p144) target = $region28
      $region27: #{vae_forward.13} parent=23 // pred_region
        %s147 = smul.u32 8, %s17
        %p148 = scmp.lt.s32.totalorder %s16, 1
        %s149 = scalar_select %p148, %s16, 1
        %p150 = scmp.lt.s32.totalorder %s147, 7
        %s151 = scalar_select %p150, %s147, 7
        %s152 = smul.addr %s149, 288
        %s153 = sadd.s32 %s151, %s152
        %s154 = smul.addr %s153, 8
        %s155 = scalar_lea.vmem %s0, %s154
        %s156 = smul.u32 8, %s17
      $region28: #{vae_forward.13} parent=23 // pred_fallthru
        _
    $region24: #{vae_forward.13} parent=5 // pred_fallthru
      _
    %p157 = scmp.le.s32.totalorder 1, %s9
    %p158 = scmp.lt.s32.totalorder %s9, 3
    %p159 = pnand %p157, %p158
    %p160 = pneg %p159
    // Predicated region
    $region29: #{vae_forward.13} parent=5 // pred_check
      _
    $region30: #{vae_forward.13} parent=5 // pred_check_branch
      %162 = sbr.rel (%p159) target = $region32
    $region31: #{vae_forward.13} parent=5 // pred_region
      %s163 = ssub.s32 %s9, 1
      %s164 = smul.u32 8, %s19
      %p165 = scmp.lt.s32.totalorder %s18, 1
      %s166 = scalar_select %p165, %s18, 1
      %p167 = scmp.lt.s32.totalorder %s164, 7
      %s168 = scalar_select %p167, %s164, 7
      %s169 = smul.addr %s166, 288
      %s170 = sadd.s32 %s168, %s169
      %s171 = smul.addr %s170, 8
      %s172 = scalar_lea.vmem %s0, %s171
      %p173 = pneg %p49
      %p174 = pneg %p46
      %p175 = pneg %p70
      %p176 = pneg %p67
      %p177 = pneg %p91
      %p178 = pneg %p88
      %p179 = pneg %p119
      %p180 = pneg %p116
      %s181 = smul.u32 8, %s19
      %p182 = scmp.lt.s32.totalorder %s18, 1
      %s183 = scalar_select %p182, %s18, 1
      %p184 = scmp.lt.s32.totalorder %s181, 7
      %s185 = scalar_select %p184, %s181, 7
      %s186 = smul.addr %s183, 8
      %s187 = sadd.s32 %s185, %s186
      %s188 = smul.addr %s187, 4
      %s189 = scalar_lea.vmem %s3, %s188
      %s190 = smul.u32 8, %s19
      %p191 = scmp.lt.s32.totalorder %s18, 1
      %s192 = scalar_select %p191, %s18, 1
      %p193 = scmp.lt.s32.totalorder %s190, 7
      %s194 = scalar_select %p193, %s190, 7
      %s195 = smul.addr %s192, 288
      %s196 = sadd.s32 %s194, %s195
      %s197 = smul.addr %s196, 8
      %s198 = scalar_lea.vmem %s0, %s197
      %s199 = smul.u32 8, %s19
      %s200 = smul.u32 8, %s19
      %p201 = scmp.lt.s32.totalorder %s18, 1
      %s202 = scalar_select %p201, %s18, 1
      %p203 = scmp.lt.s32.totalorder %s200, 7
      %s204 = scalar_select %p203, %s200, 7
      %s205 = smul.addr %s202, 8
      %s206 = sadd.s32 %s204, %s205
      %s207 = smul.addr %s206, 4
      %s208 = scalar_lea.vmem %s3, %s207
      %s209 = smul.u32 8, %s19
      %v210 = vld [vmem:[%s1] sm:$0x77]
      %v211 = vld [vmem:[%s1 + $0x8] sm:$0x7]
      %v212 = vld [vmem:[%s198] sm:$0xff]
      %v213 = vld [vmem:[%s198 + $0x8] sm:$0xff]
      %v214 = vld [vmem:[%s198 + $0x10] sm:$0xff]
      %v215 = vld [vmem:[%s198 + $0x18] sm:$0xff]
      %v216 = vld [vmem:[%s198 + $0x20] sm:$0xff]
      %v217 = vld [vmem:[%s198 + $0x28] sm:$0xff]
      %v218 = vld [vmem:[%s198 + $0x30] sm:$0xff]
      %v219 = vld [vmem:[%s198 + $0x38] sm:$0xff]
      %v220 = vld [vmem:[%s198 + $0x40] sm:$0xff]
      %v221 = vld [vmem:[%s198 + $0x48] sm:$0xff]
      %v222 = vld [vmem:[%s198 + $0x50] sm:$0xff]
      %v223 = vld [vmem:[%s198 + $0x58] sm:$0xff]
      %v224 = vld [vmem:[%s198 + $0x60] sm:$0xff]
      %v225 = vld [vmem:[%s198 + $0x68] sm:$0xff]
      %v226 = vld [vmem:[%s198 + $0x70] sm:$0xff]
      %v227 = vld [vmem:[%s198 + $0x78] sm:$0xff]
      %v228 = vld [vmem:[%s198 + $0x80] sm:$0xff]
      %v229 = vld [vmem:[%s198 + $0x88] sm:$0xff]
      %v230 = vld [vmem:[%s198 + $0x90] sm:$0xff]
      %v231 = vld [vmem:[%s198 + $0x98] sm:$0xff]
      %v232 = vld [vmem:[%s198 + $0xa0] sm:$0xff]
      %v233 = vld [vmem:[%s198 + $0xa8] sm:$0xff]
      %v234 = vld [vmem:[%s198 + $0xb0] sm:$0xff]
      %v235 = vld [vmem:[%s198 + $0xb8] sm:$0xff]
      %v236 = vld [vmem:[%s198 + $0xc0] sm:$0xff]
      %v237 = vld [vmem:[%s198 + $0xc8] sm:$0xff]
      %v238 = vld [vmem:[%s198 + $0xd0] sm:$0xff]
      %v239 = vld [vmem:[%s198 + $0xd8] sm:$0xff]
      %v240 = vld [vmem:[%s198 + $0xe0] sm:$0xff]
      %v241 = vld [vmem:[%s198 + $0xe8] sm:$0xff]
      %v242 = vld [vmem:[%s198 + $0xf0] sm:$0xff]
      %v243 = vld [vmem:[%s198 + $0xf8] sm:$0xff]
      %v244 = vld [vmem:[%s198 + $0x100] sm:$0xff]
      %v245 = vld [vmem:[%s198 + $0x108] sm:$0xff]
      %v246 = vld [vmem:[%s198 + $0x110] sm:$0xff]
      %v247 = vld [vmem:[%s198 + $0x118] sm:$0xff]
      %v248 = vld [vmem:[%s198 + $0x120] sm:$0xff]
      %v249 = vld [vmem:[%s198 + $0x128] sm:$0xff]
      %v250 = vld [vmem:[%s198 + $0x130] sm:$0xff]
      %v251 = vld [vmem:[%s198 + $0x138] sm:$0xff]
      %v252 = vld [vmem:[%s198 + $0x140] sm:$0xff]
      %v253 = vld [vmem:[%s198 + $0x148] sm:$0xff]
      %v254 = vld [vmem:[%s198 + $0x150] sm:$0xff]
      %v255 = vld [vmem:[%s198 + $0x158] sm:$0xff]
      %v256 = vld [vmem:[%s198 + $0x160] sm:$0xff]
      %v257 = vld [vmem:[%s198 + $0x168] sm:$0xff]
      %v258 = vld [vmem:[%s198 + $0x170] sm:$0xff]
      %v259 = vld [vmem:[%s198 + $0x178] sm:$0xff]
      %v260 = vld [vmem:[%s198 + $0x180] sm:$0xff]
      %v261 = vld [vmem:[%s198 + $0x188] sm:$0xff]
      %v262 = vld [vmem:[%s198 + $0x190] sm:$0xff]
      %v263 = vld [vmem:[%s198 + $0x198] sm:$0xff]
      %v264 = vld [vmem:[%s198 + $0x1a0] sm:$0xff]
      %v265 = vld [vmem:[%s198 + $0x1a8] sm:$0xff]
      %v266 = vld [vmem:[%s198 + $0x1b0] sm:$0xff]
      %v267 = vld [vmem:[%s198 + $0x1b8] sm:$0xff]
      %v268 = vld [vmem:[%s198 + $0x1c0] sm:$0xff]
      %v269 = vld [vmem:[%s198 + $0x1c8] sm:$0xff]
      %v270 = vld [vmem:[%s198 + $0x1d0] sm:$0xff]
      %v271 = vld [vmem:[%s198 + $0x1d8] sm:$0xff]
      %v272 = vld [vmem:[%s198 + $0x1e0] sm:$0xff]
      %v273 = vld [vmem:[%s198 + $0x1e8] sm:$0xff]
      %v274 = vld [vmem:[%s198 + $0x1f0] sm:$0xff]
      %v275 = vld [vmem:[%s198 + $0x1f8] sm:$0xff]
      %v276 = vld [vmem:[%s198 + $0x200] sm:$0xff]
      %v277 = vld [vmem:[%s198 + $0x208] sm:$0xff]
      %v278 = vld [vmem:[%s198 + $0x210] sm:$0xff]
      %v279 = vld [vmem:[%s198 + $0x218] sm:$0xff]
      %v280 = vld [vmem:[%s198 + $0x220] sm:$0xff]
      %v281 = vld [vmem:[%s198 + $0x228] sm:$0xff]
      %v282 = vld [vmem:[%s198 + $0x230] sm:$0xff]
      %v283 = vld [vmem:[%s198 + $0x238] sm:$0xff]
      %v284 = vld [vmem:[%s198 + $0x240] sm:$0xff]
      %v285 = vld [vmem:[%s198 + $0x248] sm:$0xff]
      %v286 = vld [vmem:[%s198 + $0x250] sm:$0xff]
      %v287 = vld [vmem:[%s198 + $0x258] sm:$0xff]
      %v288 = vld [vmem:[%s198 + $0x260] sm:$0xff]
      %v289 = vld [vmem:[%s198 + $0x268] sm:$0xff]
      %v290 = vld [vmem:[%s198 + $0x270] sm:$0xff]
      %v291 = vld [vmem:[%s198 + $0x278] sm:$0xff]
      %v292 = vld [vmem:[%s198 + $0x280] sm:$0xff]
      %v293 = vld [vmem:[%s198 + $0x288] sm:$0xff]
      %v294 = vld [vmem:[%s198 + $0x290] sm:$0xff]
      %v295 = vld [vmem:[%s198 + $0x298] sm:$0xff]
      %v296 = vld [vmem:[%s198 + $0x2a0] sm:$0xff]
      %v297 = vld [vmem:[%s198 + $0x2a8] sm:$0xff]
      %v298 = vld [vmem:[%s198 + $0x2b0] sm:$0xff]
      %v299 = vld [vmem:[%s198 + $0x2b8] sm:$0xff]
      %v300 = vld [vmem:[%s198 + $0x2c0] sm:$0xff]
      %v301 = vld [vmem:[%s198 + $0x2c8] sm:$0xff]
      %v302 = vld [vmem:[%s198 + $0x2d0] sm:$0xff]
      %v303 = vld [vmem:[%s198 + $0x2d8] sm:$0xff]
      %v304 = vld [vmem:[%s198 + $0x2e0] sm:$0xff]
      %v305 = vld [vmem:[%s198 + $0x2e8] sm:$0xff]
      %v306 = vld [vmem:[%s198 + $0x2f0] sm:$0xff]
      %v307 = vld [vmem:[%s198 + $0x2f8] sm:$0xff]
      %v308 = vld [vmem:[%s198 + $0x300] sm:$0xff]
      %v309 = vld [vmem:[%s198 + $0x308] sm:$0xff]
      %v310 = vld [vmem:[%s198 + $0x310] sm:$0xff]
      %v311 = vld [vmem:[%s198 + $0x318] sm:$0xff]
      %v312 = vld [vmem:[%s198 + $0x320] sm:$0xff]
      %v313 = vld [vmem:[%s198 + $0x328] sm:$0xff]
      %v314 = vld [vmem:[%s198 + $0x330] sm:$0xff]
      %v315 = vld [vmem:[%s198 + $0x338] sm:$0xff]
      %v316 = vld [vmem:[%s198 + $0x340] sm:$0xff]
      %v317 = vld [vmem:[%s198 + $0x348] sm:$0xff]
      %v318 = vld [vmem:[%s198 + $0x350] sm:$0xff]
      %v319 = vld [vmem:[%s198 + $0x358] sm:$0xff]
      %v320 = vld [vmem:[%s198 + $0x360] sm:$0xff]
      %v321 = vld [vmem:[%s198 + $0x368] sm:$0xff]
      %v322 = vld [vmem:[%s198 + $0x370] sm:$0xff]
      %v323 = vld [vmem:[%s198 + $0x378] sm:$0xff]
      %v324 = vld [vmem:[%s198 + $0x380] sm:$0xff]
      %v325 = vld [vmem:[%s198 + $0x388] sm:$0xff]
      %v326 = vld [vmem:[%s198 + $0x390] sm:$0xff]
      %v327 = vld [vmem:[%s198 + $0x398] sm:$0xff]
      %v328 = vld [vmem:[%s198 + $0x3a0] sm:$0xff]
      %v329 = vld [vmem:[%s198 + $0x3a8] sm:$0xff]
      %v330 = vld [vmem:[%s198 + $0x3b0] sm:$0xff]
      %v331 = vld [vmem:[%s198 + $0x3b8] sm:$0xff]
      %v332 = vld [vmem:[%s198 + $0x3c0] sm:$0xff]
      %v333 = vld [vmem:[%s198 + $0x3c8] sm:$0xff]
      %v334 = vld [vmem:[%s198 + $0x3d0] sm:$0xff]
      %v335 = vld [vmem:[%s198 + $0x3d8] sm:$0xff]
      %v336 = vld [vmem:[%s198 + $0x3e0] sm:$0xff]
      %v337 = vld [vmem:[%s198 + $0x3e8] sm:$0xff]
      %v338 = vld [vmem:[%s198 + $0x3f0] sm:$0xff]
      %v339 = vld [vmem:[%s198 + $0x3f8] sm:$0xff]
      %v340 = vld [vmem:[%s198 + $0x400] sm:$0xff]
      %v341 = vld [vmem:[%s198 + $0x408] sm:$0xff]
      %v342 = vld [vmem:[%s198 + $0x410] sm:$0xff]
      %v343 = vld [vmem:[%s198 + $0x418] sm:$0xff]
      %v344 = vld [vmem:[%s198 + $0x420] sm:$0xff]
      %v345 = vld [vmem:[%s198 + $0x428] sm:$0xff]
      %v346 = vld [vmem:[%s198 + $0x430] sm:$0xff]
      %v347 = vld [vmem:[%s198 + $0x438] sm:$0xff]
      %v348 = vld [vmem:[%s198 + $0x440] sm:$0xff]
      %v349 = vld [vmem:[%s198 + $0x448] sm:$0xff]
      %v350 = vld [vmem:[%s198 + $0x450] sm:$0xff]
      %v351 = vld [vmem:[%s198 + $0x458] sm:$0xff]
      %v352 = vld [vmem:[%s198 + $0x460] sm:$0xff]
      %v353 = vld [vmem:[%s198 + $0x468] sm:$0xff]
      %v354 = vld [vmem:[%s198 + $0x470] sm:$0xff]
      %v355 = vld [vmem:[%s198 + $0x478] sm:$0xff]
      %v356 = vld [vmem:[%s198 + $0x480] sm:$0xff]
      %v357 = vld [vmem:[%s198 + $0x488] sm:$0xff]
      %v358 = vld [vmem:[%s198 + $0x490] sm:$0xff]
      %v359 = vld [vmem:[%s198 + $0x498] sm:$0xff]
      %v360 = vld [vmem:[%s198 + $0x4a0] sm:$0xff]
      %v361 = vld [vmem:[%s198 + $0x4a8] sm:$0xff]
      %v362 = vld [vmem:[%s198 + $0x4b0] sm:$0xff]
      %v363 = vld [vmem:[%s198 + $0x4b8] sm:$0xff]
      %v364 = vld [vmem:[%s198 + $0x4c0] sm:$0xff]
      %v365 = vld [vmem:[%s198 + $0x4c8] sm:$0xff]
      %v366 = vld [vmem:[%s198 + $0x4d0] sm:$0xff]
      %v367 = vld [vmem:[%s198 + $0x4d8] sm:$0xff]
      %v368 = vld [vmem:[%s198 + $0x4e0] sm:$0xff]
      %v369 = vld [vmem:[%s198 + $0x4e8] sm:$0xff]
      %v370 = vld [vmem:[%s198 + $0x4f0] sm:$0xff]
      %v371 = vld [vmem:[%s198 + $0x4f8] sm:$0xff]
      %v372 = vld [vmem:[%s198 + $0x500] sm:$0xff]
      %v373 = vld [vmem:[%s198 + $0x508] sm:$0xff]
      %v374 = vld [vmem:[%s198 + $0x510] sm:$0xff]
      %v375 = vld [vmem:[%s198 + $0x518] sm:$0xff]
      %v376 = vld [vmem:[%s198 + $0x520] sm:$0xff]
      %v377 = vld [vmem:[%s198 + $0x528] sm:$0xff]
      %v378 = vld [vmem:[%s198 + $0x530] sm:$0xff]
      %v379 = vld [vmem:[%s198 + $0x538] sm:$0xff]
      %v380 = vld [vmem:[%s198 + $0x540] sm:$0xff]
      %v381 = vld [vmem:[%s198 + $0x548] sm:$0xff]
      %v382 = vld [vmem:[%s198 + $0x550] sm:$0xff]
      %v383 = vld [vmem:[%s198 + $0x558] sm:$0xff]
      %v384 = vld [vmem:[%s198 + $0x560] sm:$0xff]
      %v385 = vld [vmem:[%s198 + $0x568] sm:$0xff]
      %v386 = vld [vmem:[%s198 + $0x570] sm:$0xff]
      %v387 = vld [vmem:[%s198 + $0x578] sm:$0xff]
      %v388 = vld [vmem:[%s198 + $0x580] sm:$0xff]
      %v389 = vld [vmem:[%s198 + $0x588] sm:$0xff]
      %v390 = vld [vmem:[%s198 + $0x590] sm:$0xff]
      %v391 = vld [vmem:[%s198 + $0x598] sm:$0xff]
      %v392 = vld [vmem:[%s198 + $0x5a0] sm:$0xff]
      %v393 = vld [vmem:[%s198 + $0x5a8] sm:$0xff]
      %v394 = vld [vmem:[%s198 + $0x5b0] sm:$0xff]
      %v395 = vld [vmem:[%s198 + $0x5b8] sm:$0xff]
      %v396 = vld [vmem:[%s198 + $0x5c0] sm:$0xff]
      %v397 = vld [vmem:[%s198 + $0x5c8] sm:$0xff]
      %v398 = vld [vmem:[%s198 + $0x5d0] sm:$0xff]
      %v399 = vld [vmem:[%s198 + $0x5d8] sm:$0xff]
      %v400 = vld [vmem:[%s198 + $0x5e0] sm:$0xff]
      %v401 = vld [vmem:[%s198 + $0x5e8] sm:$0xff]
      %v402 = vld [vmem:[%s198 + $0x5f0] sm:$0xff]
      %v403 = vld [vmem:[%s198 + $0x5f8] sm:$0xff]
      %v404 = vld [vmem:[%s198 + $0x600] sm:$0xff]
      %v405 = vld [vmem:[%s198 + $0x608] sm:$0xff]
      %v406 = vld [vmem:[%s198 + $0x610] sm:$0xff]
      %v407 = vld [vmem:[%s198 + $0x618] sm:$0xff]
      %v408 = vld [vmem:[%s198 + $0x620] sm:$0xff]
      %v409 = vld [vmem:[%s198 + $0x628] sm:$0xff]
      %v410 = vld [vmem:[%s198 + $0x630] sm:$0xff]
      %v411 = vld [vmem:[%s198 + $0x638] sm:$0xff]
      %v412 = vld [vmem:[%s198 + $0x640] sm:$0xff]
      %v413 = vld [vmem:[%s198 + $0x648] sm:$0xff]
      %v414 = vld [vmem:[%s198 + $0x650] sm:$0xff]
      %v415 = vld [vmem:[%s198 + $0x658] sm:$0xff]
      %v416 = vld [vmem:[%s198 + $0x660] sm:$0xff]
      %v417 = vld [vmem:[%s198 + $0x668] sm:$0xff]
      %v418 = vld [vmem:[%s198 + $0x670] sm:$0xff]
      %v419 = vld [vmem:[%s198 + $0x678] sm:$0xff]
      %v420 = vld [vmem:[%s198 + $0x680] sm:$0xff]
      %v421 = vld [vmem:[%s198 + $0x688] sm:$0xff]
      %v422 = vld [vmem:[%s198 + $0x690] sm:$0xff]
      %v423 = vld [vmem:[%s198 + $0x698] sm:$0xff]
      %v424 = vld [vmem:[%s198 + $0x6a0] sm:$0xff]
      %v425 = vld [vmem:[%s198 + $0x6a8] sm:$0xff]
      %v426 = vld [vmem:[%s198 + $0x6b0] sm:$0xff]
      %v427 = vld [vmem:[%s198 + $0x6b8] sm:$0xff]
      %v428 = vld [vmem:[%s198 + $0x6c0] sm:$0xff]
      %v429 = vld [vmem:[%s198 + $0x6c8] sm:$0xff]
      %v430 = vld [vmem:[%s198 + $0x6d0] sm:$0xff]
      %v431 = vld [vmem:[%s198 + $0x6d8] sm:$0xff]
      %v432 = vld [vmem:[%s198 + $0x6e0] sm:$0xff]
      %v433 = vld [vmem:[%s198 + $0x6e8] sm:$0xff]
      %v434 = vld [vmem:[%s198 + $0x6f0] sm:$0xff]
      %v435 = vld [vmem:[%s198 + $0x6f8] sm:$0xff]
      %v436 = vld [vmem:[%s198 + $0x700] sm:$0xff]
      %v437 = vld [vmem:[%s198 + $0x708] sm:$0xff]
      %v438 = vld [vmem:[%s198 + $0x710] sm:$0xff]
      %v439 = vld [vmem:[%s198 + $0x718] sm:$0xff]
      %v440 = vld [vmem:[%s198 + $0x720] sm:$0xff]
      %v441 = vld [vmem:[%s198 + $0x728] sm:$0xff]
      %v442 = vld [vmem:[%s198 + $0x730] sm:$0xff]
      %v443 = vld [vmem:[%s198 + $0x738] sm:$0xff]
      %v444 = vld [vmem:[%s198 + $0x740] sm:$0xff]
      %v445 = vld [vmem:[%s198 + $0x748] sm:$0xff]
      %v446 = vld [vmem:[%s198 + $0x750] sm:$0xff]
      %v447 = vld [vmem:[%s198 + $0x758] sm:$0xff]
      %v448 = vld [vmem:[%s198 + $0x760] sm:$0xff]
      %v449 = vld [vmem:[%s198 + $0x768] sm:$0xff]
      %v450 = vld [vmem:[%s198 + $0x770] sm:$0xff]
      %v451 = vld [vmem:[%s198 + $0x778] sm:$0xff]
      %v452 = vld [vmem:[%s198 + $0x780] sm:$0xff]
      %v453 = vld [vmem:[%s198 + $0x788] sm:$0xff]
      %v454 = vld [vmem:[%s198 + $0x790] sm:$0xff]
      %v455 = vld [vmem:[%s198 + $0x798] sm:$0xff]
      %v456 = vld [vmem:[%s198 + $0x7a0] sm:$0xff]
      %v457 = vld [vmem:[%s198 + $0x7a8] sm:$0xff]
      %v458 = vld [vmem:[%s198 + $0x7b0] sm:$0xff]
      %v459 = vld [vmem:[%s198 + $0x7b8] sm:$0xff]
      %v460 = vld [vmem:[%s198 + $0x7c0] sm:$0xff]
      %v461 = vld [vmem:[%s198 + $0x7c8] sm:$0xff]
      %v462 = vld [vmem:[%s198 + $0x7d0] sm:$0xff]
      %v463 = vld [vmem:[%s198 + $0x7d8] sm:$0xff]
      %v464 = vld [vmem:[%s198 + $0x7e0] sm:$0xff]
      %v465 = vld [vmem:[%s198 + $0x7e8] sm:$0xff]
      %v466 = vld [vmem:[%s198 + $0x7f0] sm:$0xff]
      %v467 = vld [vmem:[%s198 + $0x7f8] sm:$0xff]
      %v468 = vld [vmem:[%s198 + $0x800] sm:$0xff]
      %v469 = vld [vmem:[%s198 + $0x808] sm:$0xff]
      %v470 = vld [vmem:[%s198 + $0x810] sm:$0xff]
      %v471 = vld [vmem:[%s198 + $0x818] sm:$0xff]
      %v472 = vld [vmem:[%s198 + $0x820] sm:$0xff]
      %v473 = vld [vmem:[%s198 + $0x828] sm:$0xff]
      %v474 = vld [vmem:[%s198 + $0x830] sm:$0xff]
      %v475 = vld [vmem:[%s198 + $0x838] sm:$0xff]
      %v476 = vld [vmem:[%s198 + $0x840] sm:$0xff]
      %v477 = vld [vmem:[%s198 + $0x848] sm:$0xff]
      %v478 = vld [vmem:[%s198 + $0x850] sm:$0xff]
      %v479 = vld [vmem:[%s198 + $0x858] sm:$0xff]
      %v480 = vld [vmem:[%s198 + $0x860] sm:$0xff]
      %v481 = vld [vmem:[%s198 + $0x868] sm:$0xff]
      %v482 = vld [vmem:[%s198 + $0x870] sm:$0xff]
      %v483 = vld [vmem:[%s198 + $0x878] sm:$0xff]
      %v484 = vld [vmem:[%s198 + $0x880] sm:$0xff]
      %v485 = vld [vmem:[%s198 + $0x888] sm:$0xff]
      %v486 = vld [vmem:[%s198 + $0x890] sm:$0xff]
      %v487 = vld [vmem:[%s198 + $0x898] sm:$0xff]
      %v488 = vld [vmem:[%s198 + $0x8a0] sm:$0xff]
      %v489 = vld [vmem:[%s198 + $0x8a8] sm:$0xff]
      %v490 = vld [vmem:[%s198 + $0x8b0] sm:$0xff]
      %v491 = vld [vmem:[%s198 + $0x8b8] sm:$0xff]
      %v492 = vld [vmem:[%s198 + $0x8c0] sm:$0xff]
      %v493 = vld [vmem:[%s198 + $0x8c8] sm:$0xff]
      %v494 = vld [vmem:[%s198 + $0x8d0] sm:$0xff]
      %v495 = vld [vmem:[%s198 + $0x8d8] sm:$0xff]
      %v496 = vld [vmem:[%s198 + $0x8e0] sm:$0xff]
      %v497 = vld [vmem:[%s198 + $0x8e8] sm:$0xff]
      %v498 = vld [vmem:[%s198 + $0x8f0] sm:$0xff]
      %v499 = vld [vmem:[%s198 + $0x8f8] sm:$0xff]
      %v500 = vld [vmem:[%s2] sm:$0x7]
      %502 = vset.pattern.permute.xlu0 0
      %503 = vperm.xlu0 %502, %v500
      %v504 = vpop.permute.xlu0 %503
      %v508 = vcombine.high %v210, %v210
      %vm510 = vcmask 261120
      %v511 = vsel %vm510, %v211, 0
      %513 = vmatprep.subr.mxu0 %v213
      %514 = vmatpush1.msra.mxu0 %v212
      %515 = vmatprep.subr.mxu0 %v221
      %516 = vmatpush1.msra.mxu0 %v220
      %517 = vmatprep.subr.mxu0 %v229
      %518 = vmatpush1.msra.mxu0 %v228
      %519 = vmatprep.subr.mxu0 %v237
      %520 = vmatpush1.msra.mxu0 %v236
      %521 = vmatprep.subr.mxu0 %v245
      %522 = vmatpush1.msra.mxu0 %v244
      %523 = vmatprep.subr.mxu0 %v253
      %524 = vmatpush1.msra.mxu0 %v252
      %525 = vmatprep.subr.mxu0 %v261
      %526 = vmatpush1.msra.mxu0 %v260
      %527 = vmatprep.subr.mxu0 %v269
      %528 = vmatpush1.msra.mxu0 %v268
      %529 = vmatprep.subr.mxu0 %v277
      %530 = vmatpush1.msra.mxu0 %v276
      %531 = vmatprep.subr.mxu0 %v285
      %532 = vmatpush1.msra.mxu0 %v284
      %533 = vmatprep.subr.mxu0 %v293
      %534 = vmatpush1.msra.mxu0 %v292
      %535 = vmatprep.subr.mxu0 %v301
      %536 = vmatpush1.msra.mxu0 %v300
      %537 = vmatprep.subr.mxu0 %v309
      %538 = vmatpush1.msra.mxu0 %v308
      %539 = vmatprep.subr.mxu0 %v317
      %540 = vmatpush1.msra.mxu0 %v316
      %541 = vmatprep.subr.mxu0 %v325
      %542 = vmatpush1.msra.mxu0 %v324
      %543 = vmatprep.subr.mxu0 %v333
      %544 = vmatpush1.msra.mxu0 %v332
      %545 = vmatprep.subr.mxu0 %v341
      %546 = vmatpush1.msra.mxu0 %v340
      %547 = vmatprep.subr.mxu0 %v349
      %548 = vmatpush1.msra.mxu0 %v348
      %549 = vmatprep.subr.mxu0 %v357
      %550 = vmatpush1.msra.mxu0 %v356
      %551 = vmatprep.subr.mxu0 %v365
      %552 = vmatpush1.msra.mxu0 %v364
      %553 = vmatprep.subr.mxu0 %v373
      %554 = vmatpush1.msra.mxu0 %v372
      %555 = vmatprep.subr.mxu0 %v381
      %556 = vmatpush1.msra.mxu0 %v380
      %557 = vmatprep.subr.mxu0 %v389
      %558 = vmatpush1.msra.mxu0 %v388
      %559 = vmatprep.subr.mxu0 %v397
      %560 = vmatpush1.msra.mxu0 %v396
      %561 = vmatprep.subr.mxu0 %v405
      %562 = vmatpush1.msra.mxu0 %v404
      %563 = vmatprep.subr.mxu0 %v413
      %564 = vmatpush1.msra.mxu0 %v412
      %565 = vmatprep.subr.mxu0 %v421
      %566 = vmatpush1.msra.mxu0 %v420
      %567 = vmatprep.subr.mxu0 %v429
      %568 = vmatpush1.msra.mxu0 %v428
      %569 = vmatprep.subr.mxu0 %v437
      %570 = vmatpush1.msra.mxu0 %v436
      %571 = vmatprep.subr.mxu0 %v445
      %572 = vmatpush1.msra.mxu0 %v444
      %573 = vmatprep.subr.mxu0 %v453
      %574 = vmatpush1.msra.mxu0 %v452
      %575 = vmatprep.subr.mxu0 %v461
      %576 = vmatpush1.msra.mxu0 %v460
      %577 = vmatprep.mubr.f32.mxu0 %v508
      %578 = vmatmul.mubr.f32.gmra.mrb[0].mxu0 %v210
      %v579 = vpop.f32.mrb[0].mxu0
      %v580 = vadd.f32 %v504, %v579
      %v581 = vpop.f32.mrb[0].mxu0
      %v582 = vadd.f32 %v504, %v581
      %583 = vdwg.mxu0
      %584 = vmatprep.subr.mxu0 %v469
      %585 = vmatpush1.msra.mxu0 %v468
      %586 = vmatprep.subr.mxu0 %v477
      %587 = vmatpush1.msra.mxu0 %v476
      %588 = vmatprep.subr.mxu0 %v485
      %589 = vmatpush1.msra.mxu0 %v484
      %590 = vmatprep.subr.mxu0 %v493
      %591 = vmatpush1.msra.mxu0 %v492
      %592 = vmatprep.subr.mxu0 0.0
      %593 = vmatpush1.msra.mxu0 0.0
      %594 = vmatprep.subr.mxu0 0.0
      %595 = vmatpush1.msra.mxu0 0.0
      %596 = vmatprep.subr.mxu0 0.0
      %597 = vmatpush1.msra.mxu0 0.0
      %598 = vmatprep.subr.mxu0 0.0
      %599 = vmatpush1.msra.mxu0 0.0
      %600 = vmatprep.subr.mxu0 0.0
      %601 = vmatpush1.msra.mxu0 0.0
      %602 = vmatprep.subr.mxu0 0.0
      %603 = vmatpush1.msra.mxu0 0.0
      %604 = vmatprep.subr.mxu0 0.0
      %605 = vmatpush1.msra.mxu0 0.0
      %606 = vmatprep.subr.mxu0 0.0
      %607 = vmatpush1.msra.mxu0 0.0
      %608 = vmatprep.subr.mxu0 0.0
      %609 = vmatpush1.msra.mxu0 0.0
      %610 = vmatprep.subr.mxu0 0.0
      %611 = vmatpush1.msra.mxu0 0.0
      %612 = vmatprep.subr.mxu0 0.0
      %613 = vmatpush1.msra.mxu0 0.0
      %614 = vmatprep.subr.mxu0 0.0
      %615 = vmatpush1.msra.mxu0 0.0
      %616 = vmatprep.subr.mxu0 0.0
      %617 = vmatpush1.msra.mxu0 0.0
      %618 = vmatprep.subr.mxu0 0.0
      %619 = vmatpush1.msra.mxu0 0.0
      %620 = vmatprep.subr.mxu0 0.0
      %621 = vmatpush1.msra.mxu0 0.0
      %622 = vmatprep.subr.mxu0 0.0
      %623 = vmatpush1.msra.mxu0 0.0
      %624 = vmatprep.subr.mxu0 0.0
      %625 = vmatpush1.msra.mxu0 0.0
      %626 = vmatprep.subr.mxu0 0.0
      %627 = vmatpush1.msra.mxu0 0.0
      %628 = vmatprep.subr.mxu0 0.0
      %629 = vmatpush1.msra.mxu0 0.0
      %630 = vmatprep.subr.mxu0 0.0
      %631 = vmatpush1.msra.mxu0 0.0
      %632 = vmatprep.subr.mxu0 0.0
      %633 = vmatpush1.msra.mxu0 0.0
      %634 = vmatprep.subr.mxu0 0.0
      %635 = vmatpush1.msra.mxu0 0.0
      %636 = vmatprep.subr.mxu0 0.0
      %637 = vmatpush1.msra.mxu0 0.0
      %638 = vmatprep.subr.mxu0 0.0
      %639 = vmatpush1.msra.mxu0 0.0
      %640 = vmatprep.subr.mxu0 0.0
      %641 = vmatpush1.msra.mxu0 0.0
      %642 = vmatprep.subr.mxu0 0.0
      %643 = vmatpush1.msra.mxu0 0.0
      %644 = vmatprep.subr.mxu0 0.0
      %645 = vmatpush1.msra.mxu0 0.0
      %646 = vmatprep.subr.mxu0 0.0
      %647 = vmatpush1.msra.mxu0 0.0
      %648 = vmatprep.mubr.f32.mxu0 0.0
      %649 = vmatmul.mubr.f32.gmra.mrb[0].mxu0 %v511
      %v650 = vpop.f32.mrb[0].mxu0
      %v651 = vadd.f32 %v580, %v650
      %v652 = vpop.f32.mrb[0].mxu0
      %v653 = vadd.f32 %v582, %v652
      %654 = vdwg.mxu0
      %655 = vmatprep.subr.mxu0 %v215
      %656 = vmatpush1.msra.mxu0 %v214
      %657 = vmatprep.subr.mxu0 %v223
      %658 = vmatpush1.msra.mxu0 %v222
      %659 = vmatprep.subr.mxu0 %v231
      %660 = vmatpush1.msra.mxu0 %v230
      %661 = vmatprep.subr.mxu0 %v239
      %662 = vmatpush1.msra.mxu0 %v238
      %663 = vmatprep.subr.mxu0 %v247
      %664 = vmatpush1.msra.mxu0 %v246
      %665 = vmatprep.subr.mxu0 %v255
      %666 = vmatpush1.msra.mxu0 %v254
      %667 = vmatprep.subr.mxu0 %v263
      %668 = vmatpush1.msra.mxu0 %v262
      %669 = vmatprep.subr.mxu0 %v271
      %670 = vmatpush1.msra.mxu0 %v270
      %671 = vmatprep.subr.mxu0 %v279
      %672 = vmatpush1.msra.mxu0 %v278
      %673 = vmatprep.subr.mxu0 %v287
      %674 = vmatpush1.msra.mxu0 %v286
      %675 = vmatprep.subr.mxu0 %v295
      %676 = vmatpush1.msra.mxu0 %v294
      %677 = vmatprep.subr.mxu0 %v303
      %678 = vmatpush1.msra.mxu0 %v302
      %679 = vmatprep.subr.mxu0 %v311
      %680 = vmatpush1.msra.mxu0 %v310
      %681 = vmatprep.subr.mxu0 %v319
      %682 = vmatpush1.msra.mxu0 %v318
      %683 = vmatprep.subr.mxu0 %v327
      %684 = vmatpush1.msra.mxu0 %v326
      %685 = vmatprep.subr.mxu0 %v335
      %686 = vmatpush1.msra.mxu0 %v334
      %687 = vmatprep.subr.mxu0 %v343
      %688 = vmatpush1.msra.mxu0 %v342
      %689 = vmatprep.subr.mxu0 %v351
      %690 = vmatpush1.msra.mxu0 %v350
      %691 = vmatprep.subr.mxu0 %v359
      %692 = vmatpush1.msra.mxu0 %v358
      %693 = vmatprep.subr.mxu0 %v367
      %694 = vmatpush1.msra.mxu0 %v366
      %695 = vmatprep.subr.mxu0 %v375
      %696 = vmatpush1.msra.mxu0 %v374
      %697 = vmatprep.subr.mxu0 %v383
      %698 = vmatpush1.msra.mxu0 %v382
      %699 = vmatprep.subr.mxu0 %v391
      %700 = vmatpush1.msra.mxu0 %v390
      %701 = vmatprep.subr.mxu0 %v399
      %702 = vmatpush1.msra.mxu0 %v398
      %703 = vmatprep.subr.mxu0 %v407
      %704 = vmatpush1.msra.mxu0 %v406
      %705 = vmatprep.subr.mxu0 %v415
      %706 = vmatpush1.msra.mxu0 %v414
      %707 = vmatprep.subr.mxu0 %v423
      %708 = vmatpush1.msra.mxu0 %v422
      %709 = vmatprep.subr.mxu0 %v431
      %710 = vmatpush1.msra.mxu0 %v430
      %711 = vmatprep.subr.mxu0 %v439
      %712 = vmatpush1.msra.mxu0 %v438
      %713 = vmatprep.subr.mxu0 %v447
      %714 = vmatpush1.msra.mxu0 %v446
      %715 = vmatprep.subr.mxu0 %v455
      %716 = vmatpush1.msra.mxu0 %v454
      %717 = vmatprep.subr.mxu0 %v463
      %718 = vmatpush1.msra.mxu0 %v462
      %719 = vmatprep.mubr.f32.mxu0 %v508
      %720 = vmatmul.mubr.f32.gmra.mrb[0].mxu0 %v210
      %v721 = vpop.f32.mrb[0].mxu0
      %v722 = vadd.f32 %v504, %v721
      %v723 = vpop.f32.mrb[0].mxu0
      %v724 = vadd.f32 %v504, %v723
      %725 = vdwg.mxu0
      %726 = vmatprep.subr.mxu0 %v471
      %727 = vmatpush1.msra.mxu0 %v470
      %728 = vmatprep.subr.mxu0 %v479
      %729 = vmatpush1.msra.mxu0 %v478
      %730 = vmatprep.subr.mxu0 %v487
      %731 = vmatpush1.msra.mxu0 %v486
      %732 = vmatprep.subr.mxu0 %v495
      %733 = vmatpush1.msra.mxu0 %v494
      %734 = vmatprep.subr.mxu0 0.0
      %735 = vmatpush1.msra.mxu0 0.0
      %736 = vmatprep.subr.mxu0 0.0
      %737 = vmatpush1.msra.mxu0 0.0
      %738 = vmatprep.subr.mxu0 0.0
      %739 = vmatpush1.msra.mxu0 0.0
      %740 = vmatprep.subr.mxu0 0.0
      %741 = vmatpush1.msra.mxu0 0.0
      %742 = vmatprep.subr.mxu0 0.0
      %743 = vmatpush1.msra.mxu0 0.0
      %744 = vmatprep.subr.mxu0 0.0
      %745 = vmatpush1.msra.mxu0 0.0
      %746 = vmatprep.subr.mxu0 0.0
      %747 = vmatpush1.msra.mxu0 0.0
      %748 = vmatprep.subr.mxu0 0.0
      %749 = vmatpush1.msra.mxu0 0.0
      %750 = vmatprep.subr.mxu0 0.0
      %751 = vmatpush1.msra.mxu0 0.0
      %752 = vmatprep.subr.mxu0 0.0
      %753 = vmatpush1.msra.mxu0 0.0
      %754 = vmatprep.subr.mxu0 0.0
      %755 = vmatpush1.msra.mxu0 0.0
      %756 = vmatprep.subr.mxu0 0.0
      %757 = vmatpush1.msra.mxu0 0.0
      %758 = vmatprep.subr.mxu0 0.0
      %759 = vmatpush1.msra.mxu0 0.0
      %760 = vmatprep.subr.mxu0 0.0
      %761 = vmatpush1.msra.mxu0 0.0
      %762 = vmatprep.subr.mxu0 0.0
      %763 = vmatpush1.msra.mxu0 0.0
      %764 = vmatprep.subr.mxu0 0.0
      %765 = vmatpush1.msra.mxu0 0.0
      %766 = vmatprep.subr.mxu0 0.0
      %767 = vmatpush1.msra.mxu0 0.0
      %768 = vmatprep.subr.mxu0 0.0
      %769 = vmatpush1.msra.mxu0 0.0
      %770 = vmatprep.subr.mxu0 0.0
      %771 = vmatpush1.msra.mxu0 0.0
      %772 = vmatprep.subr.mxu0 0.0
      %773 = vmatpush1.msra.mxu0 0.0
      %774 = vmatprep.subr.mxu0 0.0
      %775 = vmatpush1.msra.mxu0 0.0
      %776 = vmatprep.subr.mxu0 0.0
      %777 = vmatpush1.msra.mxu0 0.0
      %778 = vmatprep.subr.mxu0 0.0
      %779 = vmatpush1.msra.mxu0 0.0
      %780 = vmatprep.subr.mxu0 0.0
      %781 = vmatpush1.msra.mxu0 0.0
      %782 = vmatprep.subr.mxu0 0.0
      %783 = vmatpush1.msra.mxu0 0.0
      %784 = vmatprep.subr.mxu0 0.0
      %785 = vmatpush1.msra.mxu0 0.0
      %786 = vmatprep.subr.mxu0 0.0
      %787 = vmatpush1.msra.mxu0 0.0
      %788 = vmatprep.subr.mxu0 0.0
      %789 = vmatpush1.msra.mxu0 0.0
      %790 = vmatprep.mubr.f32.mxu0 0.0
      %791 = vmatmul.mubr.f32.gmra.mrb[0].mxu0 %v511
      %v792 = vpop.f32.mrb[0].mxu0
      %v793 = vadd.f32 %v722, %v792
      %v794 = vpop.f32.mrb[0].mxu0
      %v795 = vadd.f32 %v724, %v794
      %796 = vdwg.mxu0
      %797 = vmatprep.subr.mxu0 %v217
      %798 = vmatpush1.msra.mxu0 %v216
      %799 = vmatprep.subr.mxu0 %v225
      %800 = vmatpush1.msra.mxu0 %v224
      %801 = vmatprep.subr.mxu0 %v233
      %802 = vmatpush1.msra.mxu0 %v232
      %803 = vmatprep.subr.mxu0 %v241
      %804 = vmatpush1.msra.mxu0 %v240
      %805 = vmatprep.subr.mxu0 %v249
      %806 = vmatpush1.msra.mxu0 %v248
      %807 = vmatprep.subr.mxu0 %v257
      %808 = vmatpush1.msra.mxu0 %v256
      %809 = vmatprep.subr.mxu0 %v265
      %810 = vmatpush1.msra.mxu0 %v264
      %811 = vmatprep.subr.mxu0 %v273
      %812 = vmatpush1.msra.mxu0 %v272
      %813 = vmatprep.subr.mxu0 %v281
      %814 = vmatpush1.msra.mxu0 %v280
      %815 = vmatprep.subr.mxu0 %v289
      %816 = vmatpush1.msra.mxu0 %v288
      %817 = vmatprep.subr.mxu0 %v297
      %818 = vmatpush1.msra.mxu0 %v296
      %819 = vmatprep.subr.mxu0 %v305
      %820 = vmatpush1.msra.mxu0 %v304
      %821 = vmatprep.subr.mxu0 %v313
      %822 = vmatpush1.msra.mxu0 %v312
      %823 = vmatprep.subr.mxu0 %v321
      %824 = vmatpush1.msra.mxu0 %v320
      %825 = vmatprep.subr.mxu0 %v329
      %826 = vmatpush1.msra.mxu0 %v328
      %827 = vmatprep.subr.mxu0 %v337
      %828 = vmatpush1.msra.mxu0 %v336
      %829 = vmatprep.subr.mxu0 %v345
      %830 = vmatpush1.msra.mxu0 %v344
      %831 = vmatprep.subr.mxu0 %v353
      %832 = vmatpush1.msra.mxu0 %v352
      %833 = vmatprep.subr.mxu0 %v361
      %834 = vmatpush1.msra.mxu0 %v360
      %835 = vmatprep.subr.mxu0 %v369
      %836 = vmatpush1.msra.mxu0 %v368
      %837 = vmatprep.subr.mxu0 %v377
      %838 = vmatpush1.msra.mxu0 %v376
      %839 = vmatprep.subr.mxu0 %v385
      %840 = vmatpush1.msra.mxu0 %v384
      %841 = vmatprep.subr.mxu0 %v393
      %842 = vmatpush1.msra.mxu0 %v392
      %843 = vmatprep.subr.mxu0 %v401
      %844 = vmatpush1.msra.mxu0 %v400
      %845 = vmatprep.subr.mxu0 %v409
      %846 = vmatpush1.msra.mxu0 %v408
      %847 = vmatprep.subr.mxu0 %v417
      %848 = vmatpush1.msra.mxu0 %v416
      %849 = vmatprep.subr.mxu0 %v425
      %850 = vmatpush1.msra.mxu0 %v424
      %851 = vmatprep.subr.mxu0 %v433
      %852 = vmatpush1.msra.mxu0 %v432
      %853 = vmatprep.subr.mxu0 %v441
      %854 = vmatpush1.msra.mxu0 %v440
      %855 = vmatprep.subr.mxu0 %v449
      %856 = vmatpush1.msra.mxu0 %v448
      %857 = vmatprep.subr.mxu0 %v457
      %858 = vmatpush1.msra.mxu0 %v456
      %859 = vmatprep.subr.mxu0 %v465
      %860 = vmatpush1.msra.mxu0 %v464
      %861 = vmatprep.mubr.f32.mxu0 %v508
      %862 = vmatmul.mubr.f32.gmra.mrb[0].mxu0 %v210
      %v863 = vpop.f32.mrb[0].mxu0
      %v864 = vadd.f32 %v504, %v863
      %v865 = vpop.f32.mrb[0].mxu0
      %v866 = vadd.f32 %v504, %v865
      %867 = vdwg.mxu0
      %868 = vmatprep.subr.mxu0 %v473
      %869 = vmatpush1.msra.mxu0 %v472
      %870 = vmatprep.subr.mxu0 %v481
      %871 = vmatpush1.msra.mxu0 %v480
      %872 = vmatprep.subr.mxu0 %v489
      %873 = vmatpush1.msra.mxu0 %v488
      %874 = vmatprep.subr.mxu0 %v497
      %875 = vmatpush1.msra.mxu0 %v496
      %876 = vmatprep.subr.mxu0 0.0
      %877 = vmatpush1.msra.mxu0 0.0
      %878 = vmatprep.subr.mxu0 0.0
      %879 = vmatpush1.msra.mxu0 0.0
      %880 = vmatprep.subr.mxu0 0.0
      %881 = vmatpush1.msra.mxu0 0.0
      %882 = vmatprep.subr.mxu0 0.0
      %883 = vmatpush1.msra.mxu0 0.0
      %884 = vmatprep.subr.mxu0 0.0
      %885 = vmatpush1.msra.mxu0 0.0
      %886 = vmatprep.subr.mxu0 0.0
      %887 = vmatpush1.msra.mxu0 0.0
      %888 = vmatprep.subr.mxu0 0.0
      %889 = vmatpush1.msra.mxu0 0.0
      %890 = vmatprep.subr.mxu0 0.0
      %891 = vmatpush1.msra.mxu0 0.0
      %892 = vmatprep.subr.mxu0 0.0
      %893 = vmatpush1.msra.mxu0 0.0
      %894 = vmatprep.subr.mxu0 0.0
      %895 = vmatpush1.msra.mxu0 0.0
      %896 = vmatprep.subr.mxu0 0.0
      %897 = vmatpush1.msra.mxu0 0.0
      %898 = vmatprep.subr.mxu0 0.0
      %899 = vmatpush1.msra.mxu0 0.0
      %900 = vmatprep.subr.mxu0 0.0
      %901 = vmatpush1.msra.mxu0 0.0
      %902 = vmatprep.subr.mxu0 0.0
      %903 = vmatpush1.msra.mxu0 0.0
      %904 = vmatprep.subr.mxu0 0.0
      %905 = vmatpush1.msra.mxu0 0.0
      %906 = vmatprep.subr.mxu0 0.0
      %907 = vmatpush1.msra.mxu0 0.0
      %908 = vmatprep.subr.mxu0 0.0
      %909 = vmatpush1.msra.mxu0 0.0
      %910 = vmatprep.subr.mxu0 0.0
      %911 = vmatpush1.msra.mxu0 0.0
      %912 = vmatprep.subr.mxu0 0.0
      %913 = vmatpush1.msra.mxu0 0.0
      %914 = vmatprep.subr.mxu0 0.0
      %915 = vmatpush1.msra.mxu0 0.0
      %916 = vmatprep.subr.mxu0 0.0
      %917 = vmatpush1.msra.mxu0 0.0
      %918 = vmatprep.subr.mxu0 0.0
      %919 = vmatpush1.msra.mxu0 0.0
      %920 = vmatprep.subr.mxu0 0.0
      %921 = vmatpush1.msra.mxu0 0.0
      %922 = vmatprep.subr.mxu0 0.0
      %923 = vmatpush1.msra.mxu0 0.0
      %924 = vmatprep.subr.mxu0 0.0
      %925 = vmatpush1.msra.mxu0 0.0
      %926 = vmatprep.subr.mxu0 0.0
      %927 = vmatpush1.msra.mxu0 0.0
      %928 = vmatprep.subr.mxu0 0.0
      %929 = vmatpush1.msra.mxu0 0.0
      %930 = vmatprep.subr.mxu0 0.0
      %931 = vmatpush1.msra.mxu0 0.0
      %932 = vmatprep.mubr.f32.mxu0 0.0
      %933 = vmatmul.mubr.f32.gmra.mrb[0].mxu0 %v511
      %v934 = vpop.f32.mrb[0].mxu0
      %v935 = vadd.f32 %v864, %v934
      %v936 = vpop.f32.mrb[0].mxu0
      %v937 = vadd.f32 %v866, %v936
      %938 = vdwg.mxu0
      %939 = vmatprep.subr.mxu0 %v219
      %940 = vmatpush1.msra.mxu0 %v218
      %941 = vmatprep.subr.mxu0 %v227
      %942 = vmatpush1.msra.mxu0 %v226
      %943 = vmatprep.subr.mxu0 %v235
      %944 = vmatpush1.msra.mxu0 %v234
      %945 = vmatprep.subr.mxu0 %v243
      %946 = vmatpush1.msra.mxu0 %v242
      %947 = vmatprep.subr.mxu0 %v251
      %948 = vmatpush1.msra.mxu0 %v250
      %949 = vmatprep.subr.mxu0 %v259
      %950 = vmatpush1.msra.mxu0 %v258
      %951 = vmatprep.subr.mxu0 %v267
      %952 = vmatpush1.msra.mxu0 %v266
      %953 = vmatprep.subr.mxu0 %v275
      %954 = vmatpush1.msra.mxu0 %v274
      %955 = vmatprep.subr.mxu0 %v283
      %956 = vmatpush1.msra.mxu0 %v282
      %957 = vmatprep.subr.mxu0 %v291
      %958 = vmatpush1.msra.mxu0 %v290
      %959 = vmatprep.subr.mxu0 %v299
      %960 = vmatpush1.msra.mxu0 %v298
      %961 = vmatprep.subr.mxu0 %v307
      %962 = vmatpush1.msra.mxu0 %v306
      %963 = vmatprep.subr.mxu0 %v315
      %964 = vmatpush1.msra.mxu0 %v314
      %965 = vmatprep.subr.mxu0 %v323
      %966 = vmatpush1.msra.mxu0 %v322
      %967 = vmatprep.subr.mxu0 %v331
      %968 = vmatpush1.msra.mxu0 %v330
      %969 = vmatprep.subr.mxu0 %v339
      %970 = vmatpush1.msra.mxu0 %v338
      %971 = vmatprep.subr.mxu0 %v347
      %972 = vmatpush1.msra.mxu0 %v346
      %973 = vmatprep.subr.mxu0 %v355
      %974 = vmatpush1.msra.mxu0 %v354
      %975 = vmatprep.subr.mxu0 %v363
      %976 = vmatpush1.msra.mxu0 %v362
      %977 = vmatprep.subr.mxu0 %v371
      %978 = vmatpush1.msra.mxu0 %v370
      %979 = vmatprep.subr.mxu0 %v379
      %980 = vmatpush1.msra.mxu0 %v378
      %981 = vmatprep.subr.mxu0 %v387
      %982 = vmatpush1.msra.mxu0 %v386
      %983 = vmatprep.subr.mxu0 %v395
      %984 = vmatpush1.msra.mxu0 %v394
      %985 = vmatprep.subr.mxu0 %v403
      %986 = vmatpush1.msra.mxu0 %v402
      %987 = vmatprep.subr.mxu0 %v411
      %988 = vmatpush1.msra.mxu0 %v410
      %989 = vmatprep.subr.mxu0 %v419
      %990 = vmatpush1.msra.mxu0 %v418
      %991 = vmatprep.subr.mxu0 %v427
      %992 = vmatpush1.msra.mxu0 %v426
      %993 = vmatprep.subr.mxu0 %v435
      %994 = vmatpush1.msra.mxu0 %v434
      %995 = vmatprep.subr.mxu0 %v443
      %996 = vmatpush1.msra.mxu0 %v442
      %997 = vmatprep.subr.mxu0 %v451
      %998 = vmatpush1.msra.mxu0 %v450
      %999 = vmatprep.subr.mxu0 %v459
      %1000 = vmatpush1.msra.mxu0 %v458
      %1001 = vmatprep.subr.mxu0 %v467
      %1002 = vmatpush1.msra.mxu0 %v466
      %1003 = vmatprep.mubr.f32.mxu0 %v508
      %1004 = vmatmul.mubr.f32.gmra.mrb[0].mxu0 %v210
      %v1005 = vpop.f32.mrb[0].mxu0
      %v1006 = vadd.f32 %v504, %v1005
      %v1007 = vpop.f32.mrb[0].mxu0
      %v1008 = vadd.f32 %v504, %v1007
      %1009 = vdwg.mxu0
      %1010 = vmatprep.subr.mxu0 %v475
      %1011 = vmatpush1.msra.mxu0 %v474
      %1012 = vmatprep.subr.mxu0 %v483
      %1013 = vmatpush1.msra.mxu0 %v482
      %1014 = vmatprep.subr.mxu0 %v491
      %1015 = vmatpush1.msra.mxu0 %v490
      %1016 = vmatprep.subr.mxu0 %v499
      %1017 = vmatpush1.msra.mxu0 %v498
      %1018 = vmatprep.subr.mxu0 0.0
      %1019 = vmatpush1.msra.mxu0 0.0
      %1020 = vmatprep.subr.mxu0 0.0
      %1021 = vmatpush1.msra.mxu0 0.0
      %1022 = vmatprep.subr.mxu0 0.0
      %1023 = vmatpush1.msra.mxu0 0.0
      %1024 = vmatprep.subr.mxu0 0.0
      %1025 = vmatpush1.msra.mxu0 0.0
      %1026 = vmatprep.subr.mxu0 0.0
      %1027 = vmatpush1.msra.mxu0 0.0
      %1028 = vmatprep.subr.mxu0 0.0
      %1029 = vmatpush1.msra.mxu0 0.0
      %1030 = vmatprep.subr.mxu0 0.0
      %1031 = vmatpush1.msra.mxu0 0.0
      %1032 = vmatprep.subr.mxu0 0.0
      %1033 = vmatpush1.msra.mxu0 0.0
      %1034 = vmatprep.subr.mxu0 0.0
      %1035 = vmatpush1.msra.mxu0 0.0
      %1036 = vmatprep.subr.mxu0 0.0
      %1037 = vmatpush1.msra.mxu0 0.0
      %1038 = vmatprep.subr.mxu0 0.0
      %1039 = vmatpush1.msra.mxu0 0.0
      %1040 = vmatprep.subr.mxu0 0.0
      %1041 = vmatpush1.msra.mxu0 0.0
      %1042 = vmatprep.subr.mxu0 0.0
      %1043 = vmatpush1.msra.mxu0 0.0
      %1044 = vmatprep.subr.mxu0 0.0
      %1045 = vmatpush1.msra.mxu0 0.0
      %1046 = vmatprep.subr.mxu0 0.0
      %1047 = vmatpush1.msra.mxu0 0.0
      %1048 = vmatprep.subr.mxu0 0.0
      %1049 = vmatpush1.msra.mxu0 0.0
      %1050 = vmatprep.subr.mxu0 0.0
      %1051 = vmatpush1.msra.mxu0 0.0
      %1052 = vmatprep.subr.mxu0 0.0
      %1053 = vmatpush1.msra.mxu0 0.0
      %1054 = vmatprep.subr.mxu0 0.0
      %1055 = vmatpush1.msra.mxu0 0.0
      %1056 = vmatprep.subr.mxu0 0.0
      %1057 = vmatpush1.msra.mxu0 0.0
      %1058 = vmatprep.subr.mxu0 0.0
      %1059 = vmatpush1.msra.mxu0 0.0
      %1060 = vmatprep.subr.mxu0 0.0
      %1061 = vmatpush1.msra.mxu0 0.0
      %1062 = vmatprep.subr.mxu0 0.0
      %1063 = vmatpush1.msra.mxu0 0.0
      %1064 = vmatprep.subr.mxu0 0.0
      %1065 = vmatpush1.msra.mxu0 0.0
      %1066 = vmatprep.subr.mxu0 0.0
      %1067 = vmatpush1.msra.mxu0 0.0
      %1068 = vmatprep.subr.mxu0 0.0
      %1069 = vmatpush1.msra.mxu0 0.0
      %1070 = vmatprep.subr.mxu0 0.0
      %1071 = vmatpush1.msra.mxu0 0.0
      %1072 = vmatprep.subr.mxu0 0.0
      %1073 = vmatpush1.msra.mxu0 0.0
      %1074 = vmatprep.mubr.f32.mxu0 0.0
      %1075 = vmatmul.mubr.f32.gmra.mrb[0].mxu0 %v511
      %v1076 = vpop.f32.mrb[0].mxu0
      %v1077 = vadd.f32 %v1006, %v1076
      %v1078 = vpop.f32.mrb[0].mxu0
      %v1079 = vadd.f32 %v1008, %v1078
      %1080 = vdwg.mxu0
      %v1081 = vxor.u32 %v651, 2147483648
      %v1082 = vxor.u32 %v653, 2147483648
      %v1083 = vxor.u32 %v793, 2147483648
      %v1084 = vxor.u32 %v795, 2147483648
      %v1085 = vxor.u32 %v935, 2147483648
      %v1086 = vxor.u32 %v937, 2147483648
      %v1087 = vxor.u32 %v1077, 2147483648
      %v1088 = vxor.u32 %v1079, 2147483648
      %v1089 = vmul.f32 %v1081, 1.442695
      %v1090 = vpow.pop %v1089
      %v1091 = vmul.f32 %v1082, 1.442695
      %v1092 = vpow.pop %v1091
      %v1093 = vmul.f32 %v1083, 1.442695
      %v1094 = vpow.pop %v1093
      %v1095 = vmul.f32 %v1084, 1.442695
      %v1096 = vpow.pop %v1095
      %v1097 = vmul.f32 %v1085, 1.442695
      %v1098 = vpow.pop %v1097
      %v1099 = vmul.f32 %v1086, 1.442695
      %v1100 = vpow.pop %v1099
      %v1101 = vmul.f32 %v1087, 1.442695
      %v1102 = vpow.pop %v1101
      %v1103 = vmul.f32 %v1088, 1.442695
      %v1104 = vpow.pop %v1103
      %v1105 = vadd.f32 %v1090, 1.0
      %v1106 = vadd.f32 %v1092, 1.0
      %v1107 = vadd.f32 %v1094, 1.0
      %v1108 = vadd.f32 %v1096, 1.0
      %v1109 = vadd.f32 %v1098, 1.0
      %v1110 = vadd.f32 %v1100, 1.0
      %v1111 = vadd.f32 %v1102, 1.0
      %v1112 = vadd.f32 %v1104, 1.0
      %v1113 = vrcp.pop %v1105
      %v1114 = vmul.f32 1.0, %v1113
      %v1115 = vrcp.pop %v1106
      %v1116 = vmul.f32 1.0, %v1115
      %v1117 = vrcp.pop %v1107
      %v1118 = vmul.f32 1.0, %v1117
      %v1119 = vrcp.pop %v1108
      %v1120 = vmul.f32 1.0, %v1119
      %v1121 = vrcp.pop %v1109
      %v1122 = vmul.f32 1.0, %v1121
      %v1123 = vrcp.pop %v1110
      %v1124 = vmul.f32 1.0, %v1123
      %v1125 = vrcp.pop %v1111
      %v1126 = vmul.f32 1.0, %v1125
      %v1127 = vrcp.pop %v1112
      %v1128 = vmul.f32 1.0, %v1127
      %v1137 = vcombine.low %v1114, %v1116
      %v1138 = vcombine.low %v1118, %v1120
      %v1139 = vcombine.low %v1122, %v1124
      %v1140 = vcombine.low %v1126, %v1128
      %1145 = vst [vmem:[%s208] sm:$0x77] %v1137
      %1146 = vst [vmem:[%s208 + $0x8] sm:$0x77] %v1138
      %1147 = vst [vmem:[%s208 + $0x10] sm:$0x77] %v1139
      %1148 = vst [vmem:[%s208 + $0x18] sm:$0x77] %v1140
      %s1149 = smul.u32 8, %s19
      %p1150 = scmp.lt.s32.totalorder %s18, 1
      %s1151 = scalar_select %p1150, %s18, 1
      %p1152 = scmp.lt.s32.totalorder %s1149, 7
      %s1153 = scalar_select %p1152, %s1149, 7
      %s1154 = smul.addr %s1151, 8
      %s1155 = sadd.s32 %s1153, %s1154
      %s1156 = smul.addr %s1155, 4
      %s1157 = scalar_lea.vmem %s3, %s1156
      // Predicated region
      $region33: #{vae_forward.13} parent=31 // pred_check
        %p1158 = pneg %p116
      $region34: #{vae_forward.13} parent=31 // pred_check_branch
        %1160 = sbr.rel (%p1158) target = $region36
      $region35: #{vae_forward.13} parent=31 // pred_region
        %s1161 = smul.u32 8, %s19
      $region36: #{vae_forward.13} parent=31 // pred_fallthru
        _
    $region32: #{vae_forward.13} parent=5 // pred_fallthru
      _
    %p1162 = scmp.le.s32.totalorder 2, %s9
    // Predicated region
    $region37: #{vae_forward.13} parent=5 // pred_check
      %p1163 = pneg %p1162
    $region38: #{vae_forward.13} parent=5 // pred_check_branch
      %1165 = sbr.rel (%p1163) target = $region40
    $region39: #{vae_forward.13} parent=5 // pred_region
      %s1166 = ssub.s32 %s9, 2
      // Predicated region
      $region41: #{vae_forward.13} parent=39 // pred_check
        %p1167 = pneg %p122
      $region42: #{vae_forward.13} parent=39 // pred_check_branch
        %1169 = sbr.rel (%p1167) target = $region44
      $region43: #{vae_forward.13} parent=39 // pred_region
        %s1170 = smul.u32 8, %s21
        %p1171 = scmp.lt.s32.totalorder %s20, 1
        %s1172 = scalar_select %p1171, %s20, 1
        %p1173 = scmp.lt.s32.totalorder %s1170, 7
        %s1174 = scalar_select %p1173, %s1170, 7
        %s1175 = smul.addr %s1172, 8
        %s1176 = sadd.s32 %s1174, %s1175
        %s1177 = smul.addr %s1176, 4
        %s1178 = scalar_lea.vmem %s3, %s1177
      $region44: #{vae_forward.13} parent=39 // pred_fallthru
        _
    $region40: #{vae_forward.13} parent=5 // pred_fallthru
      _
  $region6: #{vae_forward.13} parent=0 // loop_footer
    %s13 = sadd.s32 1, %s9
  $region7: #{vae_forward.13} parent=0 // loop_footer_branch
    %8 = sbr.rel target = $region3
  $region8: #{vae_forward.13} parent=0 // loop_exit
    _

</llo_original>
